<compile_context>
chip_gen: v6e
topology: v6e:2x2x1
jax: 0.10.0
libtpu: 0.0.40
codegen_flags: <defaults>
</compile_context>

<pallas_src>
import numpy as np
import jax
import jax.numpy as jnp
from jax.experimental import pallas as pl
from jax.experimental.pallas import tpu as pltpu

# ----------------------------- configuration --------------------------------
SR      = 16000
N_FFT   = 400
WIN     = 400
HOP     = 160
N_FREQ  = N_FFT // 2 + 1          # 201
N_MELS  = 80                      # Fbank(n_mels=80)

WIN_PAD = 512                     # frame length padded for lane-dense MXU K
F_PAD   = 256                     # frequency bins padded 201 -> 256
MEL_PAD = 128                     # mel channels padded 80 -> 128 (lane-dense)

BATCH    = 2
L_WAVE   = 3200                   # 0.2 s of 16 kHz audio -> 18 frames
T_FRAMES = (L_WAVE - WIN) // HOP + 1        # 18
M_ROWS   = BATCH * T_FRAMES                 # 36 flattened (batch, time) rows

# small ECAPA-TDNN configuration (structure preserved, widths reduced)
C        = 64                     # TDNN channels        (512  in full ECAPA)
SCALE    = 4                      # Res2Net scale        (8    in full ECAPA)
CSUB     = C // SCALE             # 16
SE_CH    = 32                     # SE bottleneck        (128  in full ECAPA)
ATTN_CH  = 32                     # ASP attention chans  (128  in full ECAPA)
MFA_CH   = 192                    # MFA channels         (1536 in full ECAPA)
LIN      = 192                    # embedding dim        (lin_neurons=192)
K0       = 5                      # block0 kernel size
KR       = 3                      # Res2Net kernel size
# TODO(synk): out_neurons=5994 classifier head exists in the module but its output
#             is discarded by Reverser.forward (`xv, _ = ...`), so it is not computed.


# ------------------------- host-side constant builders -----------------------
def _reflect(i, t):
    if i < 0:
        return -i
    if i >= t:
        return 2 * (t - 1) - i
    return i


def _shift_mats_np(b, t, k, dilation):
    """0/1 matrices realising 'same' reflect-padded Conv1d taps on flattened (b*t) rows."""
    pad = (k - 1) * dilation // 2
    s = np.zeros((k, b * t, b * t), np.float32)
    for j in range(k):
        off = j * dilation - pad
        for bb in range(b):
            for tt in range(t):
                s[j, bb * t + tt, bb * t + _reflect(tt + off, t)] = 1.0
    return s


def _block_mats_np(b, t):
    """per-utterance time-average / time-sum (broadcast) and (B, B*T) pooling matrices."""
    avg = np.zeros((b * t, b * t), np.float32)
    summ = np.zeros((b * t, b * t), np.float32)
    pool = np.zeros((b, b * t), np.float32)
    for bb in range(b):
        avg[bb * t:(bb + 1) * t, bb * t:(bb + 1) * t] = 1.0 / t
        summ[bb * t:(bb + 1) * t, bb * t:(bb + 1) * t] = 1.0
        pool[bb, bb * t:(bb + 1) * t] = 1.0
    return avg, summ, pool


def _dft_mat_np():
    """Hamming window folded into a combined (cos | sin) DFT matrix, zero-padded to (512, 512)."""
    n = np.arange(WIN, dtype=np.float64)
    k = np.arange(N_FREQ, dtype=np.float64)
    ang = 2.0 * np.pi * np.outer(n, k) / N_FFT
    win = 0.54 - 0.46 * np.cos(2.0 * np.pi * n / WIN)
    dft = np.zeros((WIN_PAD, 2 * F_PAD), np.float32)
    dft[:WIN, :N_FREQ] = np.cos(ang) * win[:, None]
    dft[:WIN, F_PAD:F_PAD + N_FREQ] = np.sin(ang) * win[:, None]
    return dft


def _mel_mat_np():
    """Triangular mel filterbank, zero-padded to (256, 128) for lane-dense matmuls."""
    def hz_to_mel(f): return 2595.0 * np.log10(1.0 + f / 700.0)
    def mel_to_hz(m): return 700.0 * (10.0 ** (m / 2595.0) - 1.0)
    mels = np.linspace(hz_to_mel(0.0), hz_to_mel(SR / 2.0), N_MELS + 2)
    hz = mel_to_hz(mels)
    freqs = np.linspace(0.0, SR / 2.0, N_FREQ)[:, None]
    left, center, right = hz[None, :-2], hz[None, 1:-1], hz[None, 2:]
    up = (freqs - left) / (center - left)
    down = (right - freqs) / (right - center)
    fb = np.clip(np.minimum(up, down), 0.0, None).astype(np.float32)
    melp = np.zeros((F_PAD, MEL_PAD), np.float32)
    melp[:N_FREQ, :N_MELS] = fb
    return melp


# ------------------------------ Pallas kernels -------------------------------
def _tdnn_epilogue(acc, ep):
    """TDNNBlock tail: Conv bias -> ReLU -> eval-mode BatchNorm affine.
    ep rows: [conv_bias, bn_scale, bn_shift]."""
    return jnp.maximum(acc + ep[0:1, :], 0.0) * ep[1:2, :] + ep[2:3, :]


def _frontend_kernel(frames_ref, dft_ref, mel_ref, avg_ref, sh_ref, w0_ref, ep0_ref, o_ref):
    """Fbank (windowed DFT + power + mel + log) + sentence InputNormalization + block0 conv."""
    # one combined (cos|sin) bf16 matmul, padded to 512 lanes / 512-deep K
    f = frames_ref[...].astype(jnp.bfloat16)
    spec = jnp.dot(f, dft_ref[...], preferred_element_type=jnp.float32)          # (M, 512)
    re = spec[:, :F_PAD]
    im = spec[:, F_PAD:]
    power = re * re + im * im                                                    # (M, 256)
    mel = jnp.dot(power.astype(jnp.bfloat16), mel_ref[...],
                  preferred_element_type=jnp.float32)                            # (M, 128)
    # TODO(synk): SpeechBrain Fbank uses center=True reflect STFT padding and top_db
    #             clamping in amplitude_to_DB; here: valid framing + plain 10*log10(clamp).
    logmel = 10.0 * jnp.log10(jnp.maximum(mel, 1e-10))
    # InputNormalization(norm_type='sentence', std_norm=False): subtract per-utterance time mean
    x = logmel - jnp.dot(avg_ref[...], logmel, preferred_element_type=jnp.float32)
    # block0: Conv1d(k=5, dil=1, 'same' reflect) + ReLU + BN, taps via 0/1 reflect-shift matmuls
    ep0 = ep0_ref[...]
    acc = jnp.zeros((M_ROWS, C), jnp.float32)
    for j in range(K0):
        shifted = jnp.dot(sh_ref[j], x, preferred_element_type=jnp.float32)
        acc += jnp.dot(shifted.astype(jnp.bfloat16), w0_ref[j],
                       preferred_element_type=jnp.float32)
    o_ref[...] = _tdnn_epilogue(acc, ep0)


def _se_res2net_kernel(x_ref, sh_ref, avg_ref, w1_ref, ep1_ref, wr_ref, epr_ref,
                       w2_ref, ep2_ref, sew1_ref, seb1_ref, sew2_ref, seb2_ref, o_ref):
    """Whole SERes2NetBlock fused: tdnn1 + Res2Net + tdnn2 + SE gate + residual."""
    x = x_ref[...]                                                               # (M, 64)
    # tdnn1: 1x1 conv + ReLU + BN
    y = jnp.dot(x.astype(jnp.bfloat16), w1_ref[...], preferred_element_type=jnp.float32)
    y = _tdnn_epilogue(y, ep1_ref[...])
    # Res2Net (scale=4), hierarchical 3-tap dilated convs on 16-ch chunks;
    # tdnn2 (1x1 conv) is accumulated chunk-wise to avoid an in-kernel lane concat.
    z = jnp.dot(y[:, 0:CSUB].astype(jnp.bfloat16), w2_ref[0:CSUB, :],
                preferred_element_type=jnp.float32)
    prev = None
    for i in range(1, SCALE):
        inp = y[:, i * CSUB:(i + 1) * CSUB]
        if i > 1:
            inp = inp + prev
        acc = jnp.zeros((M_ROWS, CSUB), jnp.float32)
        for j in range(KR):
            shifted = jnp.dot(sh_ref[j], inp, preferred_element_type=jnp.float32)
            acc += jnp.dot(shifted.astype(jnp.bfloat16), wr_ref[(i - 1) * KR + j],
                           preferred_element_type=jnp.float32)
        prev = _tdnn_epilogue(acc, epr_ref[i - 1])
        z += jnp.dot(prev.astype(jnp.bfloat16), w2_ref[i * CSUB:(i + 1) * CSUB, :],
                     preferred_element_type=jnp.float32)
    z = _tdnn_epilogue(z, ep2_ref[...])                                          # tdnn2 tail
    # SE gate: per-utterance time mean (broadcast via avg matrix) -> bottleneck MLP -> sigmoid
    s = jnp.dot(avg_ref[...], z, preferred_element_type=jnp.float32)
    h = jnp.maximum(jnp.dot(s.astype(jnp.bfloat16), sew1_ref[...],
                            preferred_element_type=jnp.float32) + seb1_ref[...], 0.0)
    g = jax.nn.sigmoid(jnp.dot(h.astype(jnp.bfloat16), sew2_ref[...],
                               preferred_element_type=jnp.float32) + seb2_ref[...])
    o_ref[...] = z * g + x                                                       # gate + residual


def _tail_kernel(x2_ref, x3_ref, x4_ref, avg_ref, sumb_ref, poolb_ref,
                 wm_ref, epm_ref, wa_ref, epa_ref, wc_ref, bc_ref,
                 aspbn_ref, fcm_ref, fcs_ref, fcb_ref, o_ref):
    """MFA conv + attentive statistics pooling (global context) + asp_bn + final fc, fused."""
    x2 = x2_ref[...].astype(jnp.bfloat16)
    x3 = x3_ref[...].astype(jnp.bfloat16)
    x4 = x4_ref[...].astype(jnp.bfloat16)
    # MFA 1x1 conv over channel-concat([x2, x3, x4]) folded into three partial matmuls
    m = (jnp.dot(x2, wm_ref[0:C, :], preferred_element_type=jnp.float32)
         + jnp.dot(x3, wm_ref[C:2 * C, :], preferred_element_type=jnp.float32)
         + jnp.dot(x4, wm_ref[2 * C:3 * C, :], preferred_element_type=jnp.float32))
    mfa = _tdnn_epilogue(m, epm_ref[...])                                        # (M, 192)
    # ASP global context: uniform-weight mean / std over time per utterance (broadcast rows)
    mean0 = jnp.dot(avg_ref[...], mfa, preferred_element_type=jnp.float32)
    var0 = jnp.dot(avg_ref[...], (mfa - mean0) ** 2, preferred_element_type=jnp.float32)
    std0 = jnp.sqrt(jnp.maximum(var0, 1e-12))
    # attention TDNN(3*192 -> 32) + ReLU + BN, tanh (EUP), 1x1 conv(32 -> 192); concat folded
    a = (jnp.dot(mfa.astype(jnp.bfloat16), wa_ref[0:MFA_CH, :],
                 preferred_element_type=jnp.float32)
         + jnp.dot(mean0.astype(jnp.bfloat16), wa_ref[MFA_CH:2 * MFA_CH, :],
                   preferred_element_type=jnp.float32)
         + jnp.dot(std0.astype(jnp.bfloat16), wa_ref[2 * MFA_CH:3 * MFA_CH, :],
                   preferred_element_type=jnp.float32))
    a = jnp.tanh(_tdnn_epilogue(a, epa_ref[...]))
    logits = jnp.dot(a.astype(jnp.bfloat16), wc_ref[...],
                     preferred_element_type=jnp.float32) + bc_ref[...]           # (M, 192)
    # softmax over time within each utterance (global max shift is exact for softmax)
    e = jnp.exp(logits - jnp.max(logits))
    w = e / jnp.dot(sumb_ref[...], e, preferred_element_type=jnp.float32)
    # attentive statistics, collapsed to one row per utterance (two-pass, no E[x^2]-m^2)
    wx = w * mfa
    mean_rows = jnp.dot(sumb_ref[...], wx, preferred_element_type=jnp.float32)
    mean_b = jnp.dot(poolb_ref[...], wx, preferred_element_type=jnp.float32)     # (B, 192)
    var_b = jnp.dot(poolb_ref[...], w * (mfa - mean_rows) ** 2,
                    preferred_element_type=jnp.float32)
    std_b = jnp.sqrt(jnp.maximum(var_b, 1e-12))
    # asp BatchNorm affine + final 1x1 conv; concat([mean, std]) folded into two matmuls
    aspbn = aspbn_ref[...]
    pm = mean_b * aspbn[0:1, :] + aspbn[1:2, :]
    ps = std_b * aspbn[2:3, :] + aspbn[3:4, :]
    o_ref[...] = (jnp.dot(pm.astype(jnp.bfloat16), fcm_ref[...],
                          preferred_element_type=jnp.float32)
                  + jnp.dot(ps.astype(jnp.bfloat16), fcs_ref[...],
                            preferred_element_type=jnp.float32)
                  + fcb_ref[...])


# ------------------------------ Pallas wrappers ------------------------------
def _zeros_map(ndim):
    return lambda i: (0,) * ndim


def _full_call(kernel, out_shape, *args):
    """Single-block pallas_call: every operand fits fully in VMEM at these shapes."""
    in_specs = [pl.BlockSpec(a.shape, _zeros_map(a.ndim)) for a in args]
    out_specs = pl.BlockSpec(out_shape.shape, _zeros_map(len(out_shape.shape)))
    return pl.pallas_call(
        kernel, out_shape=out_shape, grid=(1,),
        in_specs=in_specs, out_specs=out_specs,
        compiler_params=pltpu.CompilerParams(dimension_semantics=("arbitrary",)),
    )(*args)


# ------------------------------ forward pass ---------------------------------
def reverser_forward(params, wave):
    c = params["const"]
    B, L = wave.shape
    T = (L - WIN) // HOP + 1
    assert B * T == c["avg"].shape[0]

    # framing (plain-JAX gather glue), padded to a lane-dense 512-sample frame
    idx = jnp.arange(T)[:, None] * HOP + jnp.arange(WIN)[None, :]
    frames = wave[:, idx].reshape(B * T, WIN).astype(jnp.float32)
    frames = jnp.pad(frames, ((0, 0), (0, WIN_PAD - WIN)))

    f = params["front"]
    x1 = _full_call(_frontend_kernel, jax.ShapeDtypeStruct((B * T, C), jnp.float32),
                    frames, c["dft"], c["mel"], c["avg"], c["sh0"], f["w0"], f["ep0"])

    def se_block(x, p, sh):
        return _full_call(_se_res2net_kernel, jax.ShapeDtypeStruct((B * T, C), jnp.float32),
                          x, sh, c["avg"], p["w1"], p["ep1"], p["wr"], p["epr"],
                          p["w2"], p["ep2"], p["sew1"], p["seb1"], p["sew2"], p["seb2"])

    x2 = se_block(x1, params["block1"], c["sh2"])
    x3 = se_block(x2, params["block2"], c["sh3"])
    x4 = se_block(x3, params["block3"], c["sh4"])

    t = params["tail"]
    xv = _full_call(_tail_kernel, jax.ShapeDtypeStruct((B, LIN), jnp.float32),
                    x2, x3, x4, c["avg"], c["sumb"], c["poolb"],
                    t["wm"], t["epm"], t["wa"], t["epa"], t["wc"], t["bc"],
                    t["aspbn"], t["fcm"], t["fcs"], t["fcb"])
    # matches `xv.squeeze()` in the PyTorch module (no-op at B=2)
    return jnp.squeeze(xv)


# ------------------------------ parameter init -------------------------------
def init_params(key):
    keys = iter(jax.random.split(key, 128))

    def w(shape, fan_in):
        return jax.random.normal(next(keys), shape, jnp.float32) * float(np.sqrt(2.0 / fan_in))

    def b(n):
        return 0.01 * jax.random.normal(next(keys), (1, n), jnp.float32)

    def ep(bias):
        # rows: [conv bias, BN scale, BN shift]
        # TODO(synk): BatchNorm layers use eval-mode running stats (fresh-init => identity
        #             affine), not training-mode batch statistics.
        n = bias.shape[-1]
        return jnp.concatenate([bias, jnp.ones((1, n), jnp.float32),
                                jnp.zeros((1, n), jnp.float32)], axis=0)

    # block0 Conv1d(80 -> 64, k=5): per-tap weights, input channels zero-padded 80 -> 128
    w0 = jnp.pad(w((K0, N_MELS, C), K0 * N_MELS), ((0, 0), (0, MEL_PAD - N_MELS), (0, 0)))
    front = {"w0": w0.astype(jnp.bfloat16), "ep0": ep(b(C))}

    def se_block_params():
        wr = w((SCALE - 1, KR, CSUB, CSUB), KR * CSUB).reshape((SCALE - 1) * KR, CSUB, CSUB)
        return {
            "w1": w((C, C), C).astype(jnp.bfloat16), "ep1": ep(b(C)),
            "wr": wr.astype(jnp.bfloat16),
            "epr": jnp.stack([ep(b(CSUB)) for _ in range(SCALE - 1)], axis=0),
            "w2": w((C, C), C).astype(jnp.bfloat16), "ep2": ep(b(C)),
            "sew1": w((C, SE_CH), C).astype(jnp.bfloat16), "seb1": b(SE_CH),
            "sew2": w((SE_CH, C), SE_CH).astype(jnp.bfloat16), "seb2": b(C),
        }

    fcw = w((2 * MFA_CH, LIN), 2 * MFA_CH)
    tail = {
        "wm": w((3 * C, MFA_CH), 3 * C).astype(jnp.bfloat16), "epm": ep(b(MFA_CH)),
        "wa": w((3 * MFA_CH, ATTN_CH), 3 * MFA_CH).astype(jnp.bfloat16), "epa": ep(b(ATTN_CH)),
        "wc": w((ATTN_CH, MFA_CH), ATTN_CH).astype(jnp.bfloat16), "bc": b(MFA_CH),
        "aspbn": jnp.concatenate([jnp.ones((1, MFA_CH), jnp.float32),
                                  jnp.zeros((1, MFA_CH), jnp.float32),
                                  jnp.ones((1, MFA_CH), jnp.float32),
                                  jnp.zeros((1, MFA_CH), jnp.float32)], axis=0),
        "fcm": fcw[:MFA_CH].astype(jnp.bfloat16),
        "fcs": fcw[MFA_CH:].astype(jnp.bfloat16),
        "fcb": b(LIN),
    }

    avg, sumb, poolb = _block_mats_np(BATCH, T_FRAMES)
    const = {
        "dft": jnp.asarray(_dft_mat_np(), jnp.bfloat16),
        "mel": jnp.asarray(_mel_mat_np(), jnp.bfloat16),
        "avg": jnp.asarray(avg),
        "sumb": jnp.asarray(sumb),
        "poolb": jnp.asarray(poolb),
        "sh0": jnp.asarray(_shift_mats_np(BATCH, T_FRAMES, K0, 1)),
        "sh2": jnp.asarray(_shift_mats_np(BATCH, T_FRAMES, KR, 2)),
        "sh3": jnp.asarray(_shift_mats_np(BATCH, T_FRAMES, KR, 3)),
        "sh4": jnp.asarray(_shift_mats_np(BATCH, T_FRAMES, KR, 4)),
    }

    return {"front": front, "block1": se_block_params(), "block2": se_block_params(),
            "block3": se_block_params(), "tail": tail, "const": const}


# ----------------------------------- main ------------------------------------
if __name__ == "__main__":
    key = jax.random.PRNGKey(0)
    kx, kp = jax.random.split(key)
    wave = 0.1 * jax.random.normal(kx, (BATCH, L_WAVE), jnp.float32)
    params = init_params(kp)

    xv = jax.jit(reverser_forward)(params, wave)
    xv = jax.block_until_ready(xv)

    assert xv.shape == (BATCH, LIN), xv.shape
    assert bool(jnp.all(jnp.isfinite(xv)))
    print("KERNEL_OK")
</pallas_src>

<mosaic_0001>
module attributes {stable_mosaic.version = 11 : i64} {
  func.func @_frontend_kernel(%arg0: i32, %arg1: memref<36x512xf32, #tpu.memory_space<vmem>>, %arg2: memref<512x512xbf16, #tpu.memory_space<vmem>>, %arg3: memref<256x128xbf16, #tpu.memory_space<vmem>>, %arg4: memref<36x36xf32, #tpu.memory_space<vmem>>, %arg5: memref<5x36x36xf32, #tpu.memory_space<vmem>>, %arg6: memref<5x128x64xbf16, #tpu.memory_space<vmem>>, %arg7: memref<3x64xf32, #tpu.memory_space<vmem>>, %arg8: memref<36x64xf32, #tpu.memory_space<vmem>>) attributes {dimension_semantics = [#tpu.dimension_semantics<arbitrary>], iteration_bounds = array<i64: 1>, scalar_prefetch = 0 : i64, scratch_operands = 0 : i64, tpu.core_type = #tpu.core_type<tc>, window_params = [{pipeline_mode = #tpu.pipeline_mode<synchronous>, transform_indices = @transform_0, window_bounds = array<i64: 36, 512>}, {pipeline_mode = #tpu.pipeline_mode<synchronous>, transform_indices = @transform_1, window_bounds = array<i64: 512, 512>}, {pipeline_mode = #tpu.pipeline_mode<synchronous>, transform_indices = @transform_2, window_bounds = array<i64: 256, 128>}, {pipeline_mode = #tpu.pipeline_mode<synchronous>, transform_indices = @transform_3, window_bounds = array<i64: 36, 36>}, {pipeline_mode = #tpu.pipeline_mode<synchronous>, transform_indices = @transform_4, window_bounds = array<i64: 5, 36, 36>}, {pipeline_mode = #tpu.pipeline_mode<synchronous>, transform_indices = @transform_5, window_bounds = array<i64: 5, 128, 64>}, {pipeline_mode = #tpu.pipeline_mode<synchronous>, transform_indices = @transform_6, window_bounds = array<i64: 3, 64>}, {pipeline_mode = #tpu.pipeline_mode<synchronous>, transform_indices = @transform_7, window_bounds = array<i64: 36, 64>}]} {
    %c0 = arith.constant 0 : index
    %c0_0 = arith.constant 0 : index
    %0 = vector.load %arg1[%c0, %c0_0] : memref<36x512xf32, #tpu.memory_space<vmem>>, vector<36x512xf32>
    %1 = arith.truncf %0 : vector<36x512xf32> to vector<36x512xbf16>
    %c0_1 = arith.constant 0 : index
    %c0_2 = arith.constant 0 : index
    %2 = vector.load %arg2[%c0_1, %c0_2] : memref<512x512xbf16, #tpu.memory_space<vmem>>, vector<512x512xbf16>
    %cst = arith.constant dense<0.000000e+00> : vector<36x512xf32>
    %3 = tpu.matmul %1, %2, %cst {dimension_numbers = #tpu.dot_dimension_numbers<[1], [0], [0], [1], [0, 0, 1, 1], [], []>} : vector<36x512xbf16>, vector<512x512xbf16>, vector<36x512xf32> -> vector<36x512xf32>
    %4 = vector.extract_strided_slice %3 {offsets = [0, 0], sizes = [36, 256], strides = [1, 1]} : vector<36x512xf32> to vector<36x256xf32>
    %5 = vector.extract_strided_slice %3 {offsets = [0, 256], sizes = [36, 256], strides = [1, 1]} : vector<36x512xf32> to vector<36x256xf32>
    %6 = arith.mulf %4, %4 : vector<36x256xf32>
    %7 = arith.mulf %5, %5 : vector<36x256xf32>
    %8 = arith.addf %6, %7 : vector<36x256xf32>
    %9 = arith.truncf %8 : vector<36x256xf32> to vector<36x256xbf16>
    %c0_3 = arith.constant 0 : index
    %c0_4 = arith.constant 0 : index
    %10 = vector.load %arg3[%c0_3, %c0_4] : memref<256x128xbf16, #tpu.memory_space<vmem>>, vector<256x128xbf16>
    %cst_5 = arith.constant dense<0.000000e+00> : vector<36x128xf32>
    %11 = tpu.matmul %9, %10, %cst_5 {dimension_numbers = #tpu.dot_dimension_numbers<[1], [0], [0], [1], [0, 0, 1, 1], [], []>} : vector<36x256xbf16>, vector<256x128xbf16>, vector<36x128xf32> -> vector<36x128xf32>
    %cst_6 = arith.constant 1.000000e-10 : f32
    %12 = vector.broadcast %cst_6 : f32 to vector<36x128xf32>
    %13 = arith.maximumf %11, %12 : vector<36x128xf32>
    %14 = math.log %13 : vector<36x128xf32>
    %cst_7 = arith.constant 0.434294492 : f32
    %15 = vector.broadcast %cst_7 : f32 to vector<36x128xf32>
    %16 = arith.mulf %14, %15 : vector<36x128xf32>
    %cst_8 = arith.constant 1.000000e+01 : f32
    %17 = vector.broadcast %cst_8 : f32 to vector<36x128xf32>
    %18 = arith.mulf %17, %16 : vector<36x128xf32>
    %c0_9 = arith.constant 0 : index
    %c0_10 = arith.constant 0 : index
    %19 = vector.load %arg4[%c0_9, %c0_10] : memref<36x36xf32, #tpu.memory_space<vmem>>, vector<36x36xf32>
    %cst_11 = arith.constant dense<0.000000e+00> : vector<36x128xf32>
    %20 = tpu.matmul %19, %18, %cst_11 {dimension_numbers = #tpu.dot_dimension_numbers<[1], [0], [0], [1], [0, 0, 1, 1], [], []>} : vector<36x36xf32>, vector<36x128xf32>, vector<36x128xf32> -> vector<36x128xf32>
    %21 = arith.subf %18, %20 : vector<36x128xf32>
    %c0_12 = arith.constant 0 : index
    %c0_13 = arith.constant 0 : index
    %22 = vector.load %arg7[%c0_12, %c0_13] : memref<3x64xf32, #tpu.memory_space<vmem>>, vector<3x64xf32>
    %cst_14 = arith.constant 0.000000e+00 : f32
    %23 = vector.broadcast %cst_14 : f32 to vector<36x64xf32>
    %c0_15 = arith.constant 0 : index
    %c0_16 = arith.constant 0 : index
    %c0_17 = arith.constant 0 : index
    %24 = vector.load %arg5[%c0_15, %c0_16, %c0_17] : memref<5x36x36xf32, #tpu.memory_space<vmem>>, vector<1x36x36xf32>
    %25 = vector.shape_cast %24 : vector<1x36x36xf32> to vector<36x36xf32>
    %cst_18 = arith.constant dense<0.000000e+00> : vector<36x128xf32>
    %26 = tpu.matmul %25, %21, %cst_18 {dimension_numbers = #tpu.dot_dimension_numbers<[1], [0], [0], [1], [0, 0, 1, 1], [], []>} : vector<36x36xf32>, vector<36x128xf32>, vector<36x128xf32> -> vector<36x128xf32>
    %27 = arith.truncf %26 : vector<36x128xf32> to vector<36x128xbf16>
    %c0_19 = arith.constant 0 : index
    %c0_20 = arith.constant 0 : index
    %c0_21 = arith.constant 0 : index
    %28 = vector.load %arg6[%c0_19, %c0_20, %c0_21] : memref<5x128x64xbf16, #tpu.memory_space<vmem>>, vector<1x128x64xbf16>
    %29 = vector.shape_cast %28 : vector<1x128x64xbf16> to vector<128x64xbf16>
    %cst_22 = arith.constant dense<0.000000e+00> : vector<36x64xf32>
    %30 = tpu.matmul %27, %29, %cst_22 {dimension_numbers = #tpu.dot_dimension_numbers<[1], [0], [0], [1], [0, 0, 1, 1], [], []>} : vector<36x128xbf16>, vector<128x64xbf16>, vector<36x64xf32> -> vector<36x64xf32>
    %31 = arith.addf %23, %30 : vector<36x64xf32>
    %c1 = arith.constant 1 : index
    %c0_23 = arith.constant 0 : index
    %c0_24 = arith.constant 0 : index
    %32 = vector.load %arg5[%c1, %c0_23, %c0_24] : memref<5x36x36xf32, #tpu.memory_space<vmem>>, vector<1x36x36xf32>
    %33 = vector.shape_cast %32 : vector<1x36x36xf32> to vector<36x36xf32>
    %cst_25 = arith.constant dense<0.000000e+00> : vector<36x128xf32>
    %34 = tpu.matmul %33, %21, %cst_25 {dimension_numbers = #tpu.dot_dimension_numbers<[1], [0], [0], [1], [0, 0, 1, 1], [], []>} : vector<36x36xf32>, vector<36x128xf32>, vector<36x128xf32> -> vector<36x128xf32>
    %35 = arith.truncf %34 : vector<36x128xf32> to vector<36x128xbf16>
    %c1_26 = arith.constant 1 : index
    %c0_27 = arith.constant 0 : index
    %c0_28 = arith.constant 0 : index
    %36 = vector.load %arg6[%c1_26, %c0_27, %c0_28] : memref<5x128x64xbf16, #tpu.memory_space<vmem>>, vector<1x128x64xbf16>
    %37 = vector.shape_cast %36 : vector<1x128x64xbf16> to vector<128x64xbf16>
    %cst_29 = arith.constant dense<0.000000e+00> : vector<36x64xf32>
    %38 = tpu.matmul %35, %37, %cst_29 {dimension_numbers = #tpu.dot_dimension_numbers<[1], [0], [0], [1], [0, 0, 1, 1], [], []>} : vector<36x128xbf16>, vector<128x64xbf16>, vector<36x64xf32> -> vector<36x64xf32>
    %39 = arith.addf %31, %38 : vector<36x64xf32>
    %c2 = arith.constant 2 : index
    %c0_30 = arith.constant 0 : index
    %c0_31 = arith.constant 0 : index
    %40 = vector.load %arg5[%c2, %c0_30, %c0_31] : memref<5x36x36xf32, #tpu.memory_space<vmem>>, vector<1x36x36xf32>
    %41 = vector.shape_cast %40 : vector<1x36x36xf32> to vector<36x36xf32>
    %cst_32 = arith.constant dense<0.000000e+00> : vector<36x128xf32>
    %42 = tpu.matmul %41, %21, %cst_32 {dimension_numbers = #tpu.dot_dimension_numbers<[1], [0], [0], [1], [0, 0, 1, 1], [], []>} : vector<36x36xf32>, vector<36x128xf32>, vector<36x128xf32> -> vector<36x128xf32>
    %43 = arith.truncf %42 : vector<36x128xf32> to vector<36x128xbf16>
    %c2_33 = arith.constant 2 : index
    %c0_34 = arith.constant 0 : index
    %c0_35 = arith.constant 0 : index
    %44 = vector.load %arg6[%c2_33, %c0_34, %c0_35] : memref<5x128x64xbf16, #tpu.memory_space<vmem>>, vector<1x128x64xbf16>
    %45 = vector.shape_cast %44 : vector<1x128x64xbf16> to vector<128x64xbf16>
    %cst_36 = arith.constant dense<0.000000e+00> : vector<36x64xf32>
    %46 = tpu.matmul %43, %45, %cst_36 {dimension_numbers = #tpu.dot_dimension_numbers<[1], [0], [0], [1], [0, 0, 1, 1], [], []>} : vector<36x128xbf16>, vector<128x64xbf16>, vector<36x64xf32> -> vector<36x64xf32>
    %47 = arith.addf %39, %46 : vector<36x64xf32>
    %c3 = arith.constant 3 : index
    %c0_37 = arith.constant 0 : index
    %c0_38 = arith.constant 0 : index
    %48 = vector.load %arg5[%c3, %c0_37, %c0_38] : memref<5x36x36xf32, #tpu.memory_space<vmem>>, vector<1x36x36xf32>
    %49 = vector.shape_cast %48 : vector<1x36x36xf32> to vector<36x36xf32>
    %cst_39 = arith.constant dense<0.000000e+00> : vector<36x128xf32>
    %50 = tpu.matmul %49, %21, %cst_39 {dimension_numbers = #tpu.dot_dimension_numbers<[1], [0], [0], [1], [0, 0, 1, 1], [], []>} : vector<36x36xf32>, vector<36x128xf32>, vector<36x128xf32> -> vector<36x128xf32>
    %51 = arith.truncf %50 : vector<36x128xf32> to vector<36x128xbf16>
    %c3_40 = arith.constant 3 : index
    %c0_41 = arith.constant 0 : index
    %c0_42 = arith.constant 0 : index
    %52 = vector.load %arg6[%c3_40, %c0_41, %c0_42] : memref<5x128x64xbf16, #tpu.memory_space<vmem>>, vector<1x128x64xbf16>
    %53 = vector.shape_cast %52 : vector<1x128x64xbf16> to vector<128x64xbf16>
    %cst_43 = arith.constant dense<0.000000e+00> : vector<36x64xf32>
    %54 = tpu.matmul %51, %53, %cst_43 {dimension_numbers = #tpu.dot_dimension_numbers<[1], [0], [0], [1], [0, 0, 1, 1], [], []>} : vector<36x128xbf16>, vector<128x64xbf16>, vector<36x64xf32> -> vector<36x64xf32>
    %55 = arith.addf %47, %54 : vector<36x64xf32>
    %c4 = arith.constant 4 : index
    %c0_44 = arith.constant 0 : index
    %c0_45 = arith.constant 0 : index
    %56 = vector.load %arg5[%c4, %c0_44, %c0_45] : memref<5x36x36xf32, #tpu.memory_space<vmem>>, vector<1x36x36xf32>
    %57 = vector.shape_cast %56 : vector<1x36x36xf32> to vector<36x36xf32>
    %cst_46 = arith.constant dense<0.000000e+00> : vector<36x128xf32>
    %58 = tpu.matmul %57, %21, %cst_46 {dimension_numbers = #tpu.dot_dimension_numbers<[1], [0], [0], [1], [0, 0, 1, 1], [], []>} : vector<36x36xf32>, vector<36x128xf32>, vector<36x128xf32> -> vector<36x128xf32>
    %59 = arith.truncf %58 : vector<36x128xf32> to vector<36x128xbf16>
    %c4_47 = arith.constant 4 : index
    %c0_48 = arith.constant 0 : index
    %c0_49 = arith.constant 0 : index
    %60 = vector.load %arg6[%c4_47, %c0_48, %c0_49] : memref<5x128x64xbf16, #tpu.memory_space<vmem>>, vector<1x128x64xbf16>
    %61 = vector.shape_cast %60 : vector<1x128x64xbf16> to vector<128x64xbf16>
    %cst_50 = arith.constant dense<0.000000e+00> : vector<36x64xf32>
    %62 = tpu.matmul %59, %61, %cst_50 {dimension_numbers = #tpu.dot_dimension_numbers<[1], [0], [0], [1], [0, 0, 1, 1], [], []>} : vector<36x128xbf16>, vector<128x64xbf16>, vector<36x64xf32> -> vector<36x64xf32>
    %63 = arith.addf %55, %62 : vector<36x64xf32>
    %64 = vector.extract_strided_slice %22 {offsets = [0, 0], sizes = [1, 64], strides = [1, 1]} : vector<3x64xf32> to vector<1x64xf32>
    %65 = vector.broadcast %64 : vector<1x64xf32> to vector<36x64xf32>
    %66 = arith.addf %63, %65 : vector<36x64xf32>
    %cst_51 = arith.constant 0.000000e+00 : f32
    %67 = vector.broadcast %cst_51 : f32 to vector<36x64xf32>
    %68 = arith.maximumf %66, %67 : vector<36x64xf32>
    %69 = vector.extract_strided_slice %22 {offsets = [1, 0], sizes = [1, 64], strides = [1, 1]} : vector<3x64xf32> to vector<1x64xf32>
    %70 = vector.broadcast %69 : vector<1x64xf32> to vector<36x64xf32>
    %71 = arith.mulf %68, %70 : vector<36x64xf32>
    %72 = vector.extract_strided_slice %22 {offsets = [2, 0], sizes = [1, 64], strides = [1, 1]} : vector<3x64xf32> to vector<1x64xf32>
    %73 = vector.broadcast %72 : vector<1x64xf32> to vector<36x64xf32>
    %74 = arith.addf %71, %73 : vector<36x64xf32>
    %c0_52 = arith.constant 0 : index
    %c0_53 = arith.constant 0 : index
    %75 = vector.load %arg8[%c0_52, %c0_53] : memref<36x64xf32, #tpu.memory_space<vmem>>, vector<36x64xf32>
    tpu.vector_store %arg8[%c0_52, %c0_53], %74 {strides = array<i32>} : memref<36x64xf32, #tpu.memory_space<vmem>>, vector<36x64xf32>,
    return
  }
  func.func @transform_0(%arg0: i32) -> (i32, i32) {
    %c0_i32 = arith.constant 0 : i32
    %c0_i32_0 = arith.constant 0 : i32
    %c0_i32_1 = arith.constant 0 : i32
    return %c0_i32, %c0_i32_0 : i32, i32
  }
  func.func @transform_1(%arg0: i32) -> (i32, i32) {
    %c0_i32 = arith.constant 0 : i32
    %c0_i32_0 = arith.constant 0 : i32
    %c0_i32_1 = arith.constant 0 : i32
    return %c0_i32, %c0_i32_0 : i32, i32
  }
  func.func @transform_2(%arg0: i32) -> (i32, i32) {
    %c0_i32 = arith.constant 0 : i32
    %c0_i32_0 = arith.constant 0 : i32
    %c0_i32_1 = arith.constant 0 : i32
    return %c0_i32, %c0_i32_0 : i32, i32
  }
  func.func @transform_3(%arg0: i32) -> (i32, i32) {
    %c0_i32 = arith.constant 0 : i32
    %c0_i32_0 = arith.constant 0 : i32
    %c0_i32_1 = arith.constant 0 : i32
    return %c0_i32, %c0_i32_0 : i32, i32
  }
  func.func @transform_4(%arg0: i32) -> (i32, i32, i32) {
    %c0_i32 = arith.constant 0 : i32
    %c0_i32_0 = arith.constant 0 : i32
    %c0_i32_1 = arith.constant 0 : i32
    %c0_i32_2 = arith.constant 0 : i32
    return %c0_i32, %c0_i32_0, %c0_i32_1 : i32, i32, i32
  }
  func.func @transform_5(%arg0: i32) -> (i32, i32, i32) {
    %c0_i32 = arith.constant 0 : i32
    %c0_i32_0 = arith.constant 0 : i32
    %c0_i32_1 = arith.constant 0 : i32
    %c0_i32_2 = arith.constant 0 : i32
    return %c0_i32, %c0_i32_0, %c0_i32_1 : i32, i32, i32
  }
  func.func @transform_6(%arg0: i32) -> (i32, i32) {
    %c0_i32 = arith.constant 0 : i32
    %c0_i32_0 = arith.constant 0 : i32
    %c0_i32_1 = arith.constant 0 : i32
    return %c0_i32, %c0_i32_0 : i32, i32
  }
  func.func @transform_7(%arg0: i32) -> (i32, i32) {
    %c0_i32 = arith.constant 0 : i32
    %c0_i32_0 = arith.constant 0 : i32
    %c0_i32_1 = arith.constant 0 : i32
    return %c0_i32, %c0_i32_0 : i32, i32
  }
}

module attributes {stable_mosaic.version = 11 : i64} {
  func.func @_se_res2net_kernel(%arg0: i32, %arg1: memref<36x64xf32, #tpu.memory_space<vmem>>, %arg2: memref<3x36x36xf32, #tpu.memory_space<vmem>>, %arg3: memref<36x36xf32, #tpu.memory_space<vmem>>, %arg4: memref<64x64xbf16, #tpu.memory_space<vmem>>, %arg5: memref<3x64xf32, #tpu.memory_space<vmem>>, %arg6: memref<9x16x16xbf16, #tpu.memory_space<vmem>>, %arg7: memref<3x3x16xf32, #tpu.memory_space<vmem>>, %arg8: memref<64x64xbf16, #tpu.memory_space<vmem>>, %arg9: memref<3x64xf32, #tpu.memory_space<vmem>>, %arg10: memref<64x32xbf16, #tpu.memory_space<vmem>>, %arg11: memref<1x32xf32, #tpu.memory_space<vmem>>, %arg12: memref<32x64xbf16, #tpu.memory_space<vmem>>, %arg13: memref<1x64xf32, #tpu.memory_space<vmem>>, %arg14: memref<36x64xf32, #tpu.memory_space<vmem>>) attributes {dimension_semantics = [#tpu.dimension_semantics<arbitrary>], iteration_bounds = array<i64: 1>, scalar_prefetch = 0 : i64, scratch_operands = 0 : i64, tpu.core_type = #tpu.core_type<tc>, window_params = [{pipeline_mode = #tpu.pipeline_mode<synchronous>, transform_indices = @transform_0, window_bounds = array<i64: 36, 64>}, {pipeline_mode = #tpu.pipeline_mode<synchronous>, transform_indices = @transform_1, window_bounds = array<i64: 3, 36, 36>}, {pipeline_mode = #tpu.pipeline_mode<synchronous>, transform_indices = @transform_2, window_bounds = array<i64: 36, 36>}, {pipeline_mode = #tpu.pipeline_mode<synchronous>, transform_indices = @transform_3, window_bounds = array<i64: 64, 64>}, {pipeline_mode = #tpu.pipeline_mode<synchronous>, transform_indices = @transform_4, window_bounds = array<i64: 3, 64>}, {pipeline_mode = #tpu.pipeline_mode<synchronous>, transform_indices = @transform_5, window_bounds = array<i64: 9, 16, 16>}, {pipeline_mode = #tpu.pipeline_mode<synchronous>, transform_indices = @transform_6, window_bounds = array<i64: 3, 3, 16>}, {pipeline_mode = #tpu.pipeline_mode<synchronous>, transform_indices = @transform_7, window_bounds = array<i64: 64, 64>}, {pipeline_mode = #tpu.pipeline_mode<synchronous>, transform_indices = @transform_8, window_bounds = array<i64: 3, 64>}, {pipeline_mode = #tpu.pipeline_mode<synchronous>, transform_indices = @transform_9, window_bounds = array<i64: 64, 32>}, {pipeline_mode = #tpu.pipeline_mode<synchronous>, transform_indices = @transform_10, window_bounds = array<i64: 1, 32>}, {pipeline_mode = #tpu.pipeline_mode<synchronous>, transform_indices = @transform_11, window_bounds = array<i64: 32, 64>}, {pipeline_mode = #tpu.pipeline_mode<synchronous>, transform_indices = @transform_12, window_bounds = array<i64: 1, 64>}, {pipeline_mode = #tpu.pipeline_mode<synchronous>, transform_indices = @transform_13, window_bounds = array<i64: 36, 64>}]} {
    %c0 = arith.constant 0 : index
    %c0_0 = arith.constant 0 : index
    %0 = vector.load %arg1[%c0, %c0_0] : memref<36x64xf32, #tpu.memory_space<vmem>>, vector<36x64xf32>
    %1 = arith.truncf %0 : vector<36x64xf32> to vector<36x64xbf16>
    %c0_1 = arith.constant 0 : index
    %c0_2 = arith.constant 0 : index
    %2 = vector.load %arg4[%c0_1, %c0_2] : memref<64x64xbf16, #tpu.memory_space<vmem>>, vector<64x64xbf16>
    %cst = arith.constant dense<0.000000e+00> : vector<36x64xf32>
    %3 = tpu.matmul %1, %2, %cst {dimension_numbers = #tpu.dot_dimension_numbers<[1], [0], [0], [1], [0, 0, 1, 1], [], []>} : vector<36x64xbf16>, vector<64x64xbf16>, vector<36x64xf32> -> vector<36x64xf32>
    %c0_3 = arith.constant 0 : index
    %c0_4 = arith.constant 0 : index
    %4 = vector.load %arg5[%c0_3, %c0_4] : memref<3x64xf32, #tpu.memory_space<vmem>>, vector<3x64xf32>
    %5 = vector.extract_strided_slice %4 {offsets = [0, 0], sizes = [1, 64], strides = [1, 1]} : vector<3x64xf32> to vector<1x64xf32>
    %6 = vector.broadcast %5 : vector<1x64xf32> to vector<36x64xf32>
    %7 = arith.addf %3, %6 : vector<36x64xf32>
    %cst_5 = arith.constant 0.000000e+00 : f32
    %8 = vector.broadcast %cst_5 : f32 to vector<36x64xf32>
    %9 = arith.maximumf %7, %8 : vector<36x64xf32>
    %10 = vector.extract_strided_slice %4 {offsets = [1, 0], sizes = [1, 64], strides = [1, 1]} : vector<3x64xf32> to vector<1x64xf32>
    %11 = vector.broadcast %10 : vector<1x64xf32> to vector<36x64xf32>
    %12 = arith.mulf %9, %11 : vector<36x64xf32>
    %13 = vector.extract_strided_slice %4 {offsets = [2, 0], sizes = [1, 64], strides = [1, 1]} : vector<3x64xf32> to vector<1x64xf32>
    %14 = vector.broadcast %13 : vector<1x64xf32> to vector<36x64xf32>
    %15 = arith.addf %12, %14 : vector<36x64xf32>
    %16 = vector.extract_strided_slice %15 {offsets = [0, 0], sizes = [36, 16], strides = [1, 1]} : vector<36x64xf32> to vector<36x16xf32>
    %17 = arith.truncf %16 : vector<36x16xf32> to vector<36x16xbf16>
    %c0_6 = arith.constant 0 : index
    %c0_7 = arith.constant 0 : index
    %18 = vector.load %arg8[%c0_6, %c0_7] : memref<64x64xbf16, #tpu.memory_space<vmem>>, vector<16x64xbf16>
    %cst_8 = arith.constant dense<0.000000e+00> : vector<36x64xf32>
    %19 = tpu.matmul %17, %18, %cst_8 {dimension_numbers = #tpu.dot_dimension_numbers<[1], [0], [0], [1], [0, 0, 1, 1], [], []>} : vector<36x16xbf16>, vector<16x64xbf16>, vector<36x64xf32> -> vector<36x64xf32>
    %20 = vector.extract_strided_slice %15 {offsets = [0, 16], sizes = [36, 16], strides = [1, 1]} : vector<36x64xf32> to vector<36x16xf32>
    %cst_9 = arith.constant 0.000000e+00 : f32
    %21 = vector.broadcast %cst_9 : f32 to vector<36x16xf32>
    %c0_10 = arith.constant 0 : index
    %c0_11 = arith.constant 0 : index
    %c0_12 = arith.constant 0 : index
    %22 = vector.load %arg2[%c0_10, %c0_11, %c0_12] : memref<3x36x36xf32, #tpu.memory_space<vmem>>, vector<1x36x36xf32>
    %23 = vector.shape_cast %22 : vector<1x36x36xf32> to vector<36x36xf32>
    %cst_13 = arith.constant dense<0.000000e+00> : vector<36x16xf32>
    %24 = tpu.matmul %23, %20, %cst_13 {dimension_numbers = #tpu.dot_dimension_numbers<[1], [0], [0], [1], [0, 0, 1, 1], [], []>} : vector<36x36xf32>, vector<36x16xf32>, vector<36x16xf32> -> vector<36x16xf32>
    %25 = arith.truncf %24 : vector<36x16xf32> to vector<36x16xbf16>
    %c0_14 = arith.constant 0 : index
    %c0_15 = arith.constant 0 : index
    %c0_16 = arith.constant 0 : index
    %26 = vector.load %arg6[%c0_14, %c0_15, %c0_16] : memref<9x16x16xbf16, #tpu.memory_space<vmem>>, vector<1x16x16xbf16>
    %27 = vector.shape_cast %26 : vector<1x16x16xbf16> to vector<16x16xbf16>
    %cst_17 = arith.constant dense<0.000000e+00> : vector<36x16xf32>
    %28 = tpu.matmul %25, %27, %cst_17 {dimension_numbers = #tpu.dot_dimension_numbers<[1], [0], [0], [1], [0, 0, 1, 1], [], []>} : vector<36x16xbf16>, vector<16x16xbf16>, vector<36x16xf32> -> vector<36x16xf32>
    %29 = arith.addf %21, %28 : vector<36x16xf32>
    %c1 = arith.constant 1 : index
    %c0_18 = arith.constant 0 : index
    %c0_19 = arith.constant 0 : index
    %30 = vector.load %arg2[%c1, %c0_18, %c0_19] : memref<3x36x36xf32, #tpu.memory_space<vmem>>, vector<1x36x36xf32>
    %31 = vector.shape_cast %30 : vector<1x36x36xf32> to vector<36x36xf32>
    %cst_20 = arith.constant dense<0.000000e+00> : vector<36x16xf32>
    %32 = tpu.matmul %31, %20, %cst_20 {dimension_numbers = #tpu.dot_dimension_numbers<[1], [0], [0], [1], [0, 0, 1, 1], [], []>} : vector<36x36xf32>, vector<36x16xf32>, vector<36x16xf32> -> vector<36x16xf32>
    %33 = arith.truncf %32 : vector<36x16xf32> to vector<36x16xbf16>
    %c1_21 = arith.constant 1 : index
    %c0_22 = arith.constant 0 : index
    %c0_23 = arith.constant 0 : index
    %34 = vector.load %arg6[%c1_21, %c0_22, %c0_23] : memref<9x16x16xbf16, #tpu.memory_space<vmem>>, vector<1x16x16xbf16>
    %35 = vector.shape_cast %34 : vector<1x16x16xbf16> to vector<16x16xbf16>
    %cst_24 = arith.constant dense<0.000000e+00> : vector<36x16xf32>
    %36 = tpu.matmul %33, %35, %cst_24 {dimension_numbers = #tpu.dot_dimension_numbers<[1], [0], [0], [1], [0, 0, 1, 1], [], []>} : vector<36x16xbf16>, vector<16x16xbf16>, vector<36x16xf32> -> vector<36x16xf32>
    %37 = arith.addf %29, %36 : vector<36x16xf32>
    %c2 = arith.constant 2 : index
    %c0_25 = arith.constant 0 : index
    %c0_26 = arith.constant 0 : index
    %38 = vector.load %arg2[%c2, %c0_25, %c0_26] : memref<3x36x36xf32, #tpu.memory_space<vmem>>, vector<1x36x36xf32>
    %39 = vector.shape_cast %38 : vector<1x36x36xf32> to vector<36x36xf32>
    %cst_27 = arith.constant dense<0.000000e+00> : vector<36x16xf32>
    %40 = tpu.matmul %39, %20, %cst_27 {dimension_numbers = #tpu.dot_dimension_numbers<[1], [0], [0], [1], [0, 0, 1, 1], [], []>} : vector<36x36xf32>, vector<36x16xf32>, vector<36x16xf32> -> vector<36x16xf32>
    %41 = arith.truncf %40 : vector<36x16xf32> to vector<36x16xbf16>
    %c2_28 = arith.constant 2 : index
    %c0_29 = arith.constant 0 : index
    %c0_30 = arith.constant 0 : index
    %42 = vector.load %arg6[%c2_28, %c0_29, %c0_30] : memref<9x16x16xbf16, #tpu.memory_space<vmem>>, vector<1x16x16xbf16>
    %43 = vector.shape_cast %42 : vector<1x16x16xbf16> to vector<16x16xbf16>
    %cst_31 = arith.constant dense<0.000000e+00> : vector<36x16xf32>
    %44 = tpu.matmul %41, %43, %cst_31 {dimension_numbers = #tpu.dot_dimension_numbers<[1], [0], [0], [1], [0, 0, 1, 1], [], []>} : vector<36x16xbf16>, vector<16x16xbf16>, vector<36x16xf32> -> vector<36x16xf32>
    %45 = arith.addf %37, %44 : vector<36x16xf32>
    %c0_32 = arith.constant 0 : index
    %c0_33 = arith.constant 0 : index
    %c0_34 = arith.constant 0 : index
    %46 = vector.load %arg7[%c0_32, %c0_33, %c0_34] : memref<3x3x16xf32, #tpu.memory_space<vmem>>, vector<1x3x16xf32>
    %47 = vector.shape_cast %46 : vector<1x3x16xf32> to vector<3x16xf32>
    %48 = vector.extract_strided_slice %47 {offsets = [0, 0], sizes = [1, 16], strides = [1, 1]} : vector<3x16xf32> to vector<1x16xf32>
    %49 = vector.broadcast %48 : vector<1x16xf32> to vector<36x16xf32>
    %50 = arith.addf %45, %49 : vector<36x16xf32>
    %cst_35 = arith.constant 0.000000e+00 : f32
    %51 = vector.broadcast %cst_35 : f32 to vector<36x16xf32>
    %52 = arith.maximumf %50, %51 : vector<36x16xf32>
    %53 = vector.extract_strided_slice %47 {offsets = [1, 0], sizes = [1, 16], strides = [1, 1]} : vector<3x16xf32> to vector<1x16xf32>
    %54 = vector.broadcast %53 : vector<1x16xf32> to vector<36x16xf32>
    %55 = arith.mulf %52, %54 : vector<36x16xf32>
    %56 = vector.extract_strided_slice %47 {offsets = [2, 0], sizes = [1, 16], strides = [1, 1]} : vector<3x16xf32> to vector<1x16xf32>
    %57 = vector.broadcast %56 : vector<1x16xf32> to vector<36x16xf32>
    %58 = arith.addf %55, %57 : vector<36x16xf32>
    %59 = arith.truncf %58 : vector<36x16xf32> to vector<36x16xbf16>
    %c16 = arith.constant 16 : index
    %c0_36 = arith.constant 0 : index
    %60 = vector.load %arg8[%c16, %c0_36] : memref<64x64xbf16, #tpu.memory_space<vmem>>, vector<16x64xbf16>
    %cst_37 = arith.constant dense<0.000000e+00> : vector<36x64xf32>
    %61 = tpu.matmul %59, %60, %cst_37 {dimension_numbers = #tpu.dot_dimension_numbers<[1], [0], [0], [1], [0, 0, 1, 1], [], []>} : vector<36x16xbf16>, vector<16x64xbf16>, vector<36x64xf32> -> vector<36x64xf32>
    %62 = arith.addf %19, %61 : vector<36x64xf32>
    %63 = vector.extract_strided_slice %15 {offsets = [0, 32], sizes = [36, 16], strides = [1, 1]} : vector<36x64xf32> to vector<36x16xf32>
    %64 = arith.addf %63, %58 : vector<36x16xf32>
    %cst_38 = arith.constant 0.000000e+00 : f32
    %65 = vector.broadcast %cst_38 : f32 to vector<36x16xf32>
    %c0_39 = arith.constant 0 : index
    %c0_40 = arith.constant 0 : index
    %c0_41 = arith.constant 0 : index
    %66 = vector.load %arg2[%c0_39, %c0_40, %c0_41] : memref<3x36x36xf32, #tpu.memory_space<vmem>>, vector<1x36x36xf32>
    %67 = vector.shape_cast %66 : vector<1x36x36xf32> to vector<36x36xf32>
    %cst_42 = arith.constant dense<0.000000e+00> : vector<36x16xf32>
    %68 = tpu.matmul %67, %64, %cst_42 {dimension_numbers = #tpu.dot_dimension_numbers<[1], [0], [0], [1], [0, 0, 1, 1], [], []>} : vector<36x36xf32>, vector<36x16xf32>, vector<36x16xf32> -> vector<36x16xf32>
    %69 = arith.truncf %68 : vector<36x16xf32> to vector<36x16xbf16>
    %c3 = arith.constant 3 : index
    %c0_43 = arith.constant 0 : index
    %c0_44 = arith.constant 0 : index
    %70 = vector.load %arg6[%c3, %c0_43, %c0_44] : memref<9x16x16xbf16, #tpu.memory_space<vmem>>, vector<1x16x16xbf16>
    %71 = vector.shape_cast %70 : vector<1x16x16xbf16> to vector<16x16xbf16>
    %cst_45 = arith.constant dense<0.000000e+00> : vector<36x16xf32>
    %72 = tpu.matmul %69, %71, %cst_45 {dimension_numbers = #tpu.dot_dimension_numbers<[1], [0], [0], [1], [0, 0, 1, 1], [], []>} : vector<36x16xbf16>, vector<16x16xbf16>, vector<36x16xf32> -> vector<36x16xf32>
    %73 = arith.addf %65, %72 : vector<36x16xf32>
    %c1_46 = arith.constant 1 : index
    %c0_47 = arith.constant 0 : index
    %c0_48 = arith.constant 0 : index
    %74 = vector.load %arg2[%c1_46, %c0_47, %c0_48] : memref<3x36x36xf32, #tpu.memory_space<vmem>>, vector<1x36x36xf32>
    %75 = vector.shape_cast %74 : vector<1x36x36xf32> to vector<36x36xf32>
    %cst_49 = arith.constant dense<0.000000e+00> : vector<36x16xf32>
    %76 = tpu.matmul %75, %64, %cst_49 {dimension_numbers = #tpu.dot_dimension_numbers<[1], [0], [0], [1], [0, 0, 1, 1], [], []>} : vector<36x36xf32>, vector<36x16xf32>, vector<36x16xf32> -> vector<36x16xf32>
    %77 = arith.truncf %76 : vector<36x16xf32> to vector<36x16xbf16>
    %c4 = arith.constant 4 : index
    %c0_50 = arith.constant 0 : index
    %c0_51 = arith.constant 0 : index
    %78 = vector.load %arg6[%c4, %c0_50, %c0_51] : memref<9x16x16xbf16, #tpu.memory_space<vmem>>, vector<1x16x16xbf16>
    %79 = vector.shape_cast %78 : vector<1x16x16xbf16> to vector<16x16xbf16>
    %cst_52 = arith.constant dense<0.000000e+00> : vector<36x16xf32>
    %80 = tpu.matmul %77, %79, %cst_52 {dimension_numbers = #tpu.dot_dimension_numbers<[1], [0], [0], [1], [0, 0, 1, 1], [], []>} : vector<36x16xbf16>, vector<16x16xbf16>, vector<36x16xf32> -> vector<36x16xf32>
    %81 = arith.addf %73, %80 : vector<36x16xf32>
    %c2_53 = arith.constant 2 : index
    %c0_54 = arith.constant 0 : index
    %c0_55 = arith.constant 0 : index
    %82 = vector.load %arg2[%c2_53, %c0_54, %c0_55] : memref<3x36x36xf32, #tpu.memory_space<vmem>>, vector<1x36x36xf32>
    %83 = vector.shape_cast %82 : vector<1x36x36xf32> to vector<36x36xf32>
    %cst_56 = arith.constant dense<0.000000e+00> : vector<36x16xf32>
    %84 = tpu.matmul %83, %64, %cst_56 {dimension_numbers = #tpu.dot_dimension_numbers<[1], [0], [0], [1], [0, 0, 1, 1], [], []>} : vector<36x36xf32>, vector<36x16xf32>, vector<36x16xf32> -> vector<36x16xf32>
    %85 = arith.truncf %84 : vector<36x16xf32> to vector<36x16xbf16>
    %c5 = arith.constant 5 : index
    %c0_57 = arith.constant 0 : index
    %c0_58 = arith.constant 0 : index
    %86 = vector.load %arg6[%c5, %c0_57, %c0_58] : memref<9x16x16xbf16, #tpu.memory_space<vmem>>, vector<1x16x16xbf16>
    %87 = vector.shape_cast %86 : vector<1x16x16xbf16> to vector<16x16xbf16>
    %cst_59 = arith.constant dense<0.000000e+00> : vector<36x16xf32>
    %88 = tpu.matmul %85, %87, %cst_59 {dimension_numbers = #tpu.dot_dimension_numbers<[1], [0], [0], [1], [0, 0, 1, 1], [], []>} : vector<36x16xbf16>, vector<16x16xbf16>, vector<36x16xf32> -> vector<36x16xf32>
    %89 = arith.addf %81, %88 : vector<36x16xf32>
    %c1_60 = arith.constant 1 : index
    %c0_61 = arith.constant 0 : index
    %c0_62 = arith.constant 0 : index
    %90 = vector.load %arg7[%c1_60, %c0_61, %c0_62] : memref<3x3x16xf32, #tpu.memory_space<vmem>>, vector<1x3x16xf32>
    %91 = vector.shape_cast %90 : vector<1x3x16xf32> to vector<3x16xf32>
    %92 = vector.extract_strided_slice %91 {offsets = [0, 0], sizes = [1, 16], strides = [1, 1]} : vector<3x16xf32> to vector<1x16xf32>
    %93 = vector.broadcast %92 : vector<1x16xf32> to vector<36x16xf32>
    %94 = arith.addf %89, %93 : vector<36x16xf32>
    %cst_63 = arith.constant 0.000000e+00 : f32
    %95 = vector.broadcast %cst_63 : f32 to vector<36x16xf32>
    %96 = arith.maximumf %94, %95 : vector<36x16xf32>
    %97 = vector.extract_strided_slice %91 {offsets = [1, 0], sizes = [1, 16], strides = [1, 1]} : vector<3x16xf32> to vector<1x16xf32>
    %98 = vector.broadcast %97 : vector<1x16xf32> to vector<36x16xf32>
    %99 = arith.mulf %96, %98 : vector<36x16xf32>
    %100 = vector.extract_strided_slice %91 {offsets = [2, 0], sizes = [1, 16], strides = [1, 1]} : vector<3x16xf32> to vector<1x16xf32>
    %101 = vector.broadcast %100 : vector<1x16xf32> to vector<36x16xf32>
    %102 = arith.addf %99, %101 : vector<36x16xf32>
    %103 = arith.truncf %102 : vector<36x16xf32> to vector<36x16xbf16>
    %c32 = arith.constant 32 : index
    %c0_64 = arith.constant 0 : index
    %104 = vector.load %arg8[%c32, %c0_64] : memref<64x64xbf16, #tpu.memory_space<vmem>>, vector<16x64xbf16>
    %cst_65 = arith.constant dense<0.000000e+00> : vector<36x64xf32>
    %105 = tpu.matmul %103, %104, %cst_65 {dimension_numbers = #tpu.dot_dimension_numbers<[1], [0], [0], [1], [0, 0, 1, 1], [], []>} : vector<36x16xbf16>, vector<16x64xbf16>, vector<36x64xf32> -> vector<36x64xf32>
    %106 = arith.addf %62, %105 : vector<36x64xf32>
    %107 = vector.extract_strided_slice %15 {offsets = [0, 48], sizes = [36, 16], strides = [1, 1]} : vector<36x64xf32> to vector<36x16xf32>
    %108 = arith.addf %107, %102 : vector<36x16xf32>
    %cst_66 = arith.constant 0.000000e+00 : f32
    %109 = vector.broadcast %cst_66 : f32 to vector<36x16xf32>
    %c0_67 = arith.constant 0 : index
    %c0_68 = arith.constant 0 : index
    %c0_69 = arith.constant 0 : index
    %110 = vector.load %arg2[%c0_67, %c0_68, %c0_69] : memref<3x36x36xf32, #tpu.memory_space<vmem>>, vector<1x36x36xf32>
    %111 = vector.shape_cast %110 : vector<1x36x36xf32> to vector<36x36xf32>
    %cst_70 = arith.constant dense<0.000000e+00> : vector<36x16xf32>
    %112 = tpu.matmul %111, %108, %cst_70 {dimension_numbers = #tpu.dot_dimension_numbers<[1], [0], [0], [1], [0, 0, 1, 1], [], []>} : vector<36x36xf32>, vector<36x16xf32>, vector<36x16xf32> -> vector<36x16xf32>
    %113 = arith.truncf %112 : vector<36x16xf32> to vector<36x16xbf16>
    %c6 = arith.constant 6 : index
    %c0_71 = arith.constant 0 : index
    %c0_72 = arith.constant 0 : index
    %114 = vector.load %arg6[%c6, %c0_71, %c0_72] : memref<9x16x16xbf16, #tpu.memory_space<vmem>>, vector<1x16x16xbf16>
    %115 = vector.shape_cast %114 : vector<1x16x16xbf16> to vector<16x16xbf16>
    %cst_73 = arith.constant dense<0.000000e+00> : vector<36x16xf32>
    %116 = tpu.matmul %113, %115, %cst_73 {dimension_numbers = #tpu.dot_dimension_numbers<[1], [0], [0], [1], [0, 0, 1, 1], [], []>} : vector<36x16xbf16>, vector<16x16xbf16>, vector<36x16xf32> -> vector<36x16xf32>
    %117 = arith.addf %109, %116 : vector<36x16xf32>
    %c1_74 = arith.constant 1 : index
    %c0_75 = arith.constant 0 : index
    %c0_76 = arith.constant 0 : index
    %118 = vector.load %arg2[%c1_74, %c0_75, %c0_76] : memref<3x36x36xf32, #tpu.memory_space<vmem>>, vector<1x36x36xf32>
    %119 = vector.shape_cast %118 : vector<1x36x36xf32> to vector<36x36xf32>
    %cst_77 = arith.constant dense<0.000000e+00> : vector<36x16xf32>
    %120 = tpu.matmul %119, %108, %cst_77 {dimension_numbers = #tpu.dot_dimension_numbers<[1], [0], [0], [1], [0, 0, 1, 1], [], []>} : vector<36x36xf32>, vector<36x16xf32>, vector<36x16xf32> -> vector<36x16xf32>
    %121 = arith.truncf %120 : vector<36x16xf32> to vector<36x16xbf16>
    %c7 = arith.constant 7 : index
    %c0_78 = arith.constant 0 : index
    %c0_79 = arith.constant 0 : index
    %122 = vector.load %arg6[%c7, %c0_78, %c0_79] : memref<9x16x16xbf16, #tpu.memory_space<vmem>>, vector<1x16x16xbf16>
    %123 = vector.shape_cast %122 : vector<1x16x16xbf16> to vector<16x16xbf16>
    %cst_80 = arith.constant dense<0.000000e+00> : vector<36x16xf32>
    %124 = tpu.matmul %121, %123, %cst_80 {dimension_numbers = #tpu.dot_dimension_numbers<[1], [0], [0], [1], [0, 0, 1, 1], [], []>} : vector<36x16xbf16>, vector<16x16xbf16>, vector<36x16xf32> -> vector<36x16xf32>
    %125 = arith.addf %117, %124 : vector<36x16xf32>
    %c2_81 = arith.constant 2 : index
    %c0_82 = arith.constant 0 : index
    %c0_83 = arith.constant 0 : index
    %126 = vector.load %arg2[%c2_81, %c0_82, %c0_83] : memref<3x36x36xf32, #tpu.memory_space<vmem>>, vector<1x36x36xf32>
    %127 = vector.shape_cast %126 : vector<1x36x36xf32> to vector<36x36xf32>
    %cst_84 = arith.constant dense<0.000000e+00> : vector<36x16xf32>
    %128 = tpu.matmul %127, %108, %cst_84 {dimension_numbers = #tpu.dot_dimension_numbers<[1], [0], [0], [1], [0, 0, 1, 1], [], []>} : vector<36x36xf32>, vector<36x16xf32>, vector<36x16xf32> -> vector<36x16xf32>
    %129 = arith.truncf %128 : vector<36x16xf32> to vector<36x16xbf16>
    %c8 = arith.constant 8 : index
    %c0_85 = arith.constant 0 : index
    %c0_86 = arith.constant 0 : index
    %130 = vector.load %arg6[%c8, %c0_85, %c0_86] : memref<9x16x16xbf16, #tpu.memory_space<vmem>>, vector<1x16x16xbf16>
    %131 = vector.shape_cast %130 : vector<1x16x16xbf16> to vector<16x16xbf16>
    %cst_87 = arith.constant dense<0.000000e+00> : vector<36x16xf32>
    %132 = tpu.matmul %129, %131, %cst_87 {dimension_numbers = #tpu.dot_dimension_numbers<[1], [0], [0], [1], [0, 0, 1, 1], [], []>} : vector<36x16xbf16>, vector<16x16xbf16>, vector<36x16xf32> -> vector<36x16xf32>
    %133 = arith.addf %125, %132 : vector<36x16xf32>
    %c2_88 = arith.constant 2 : index
    %c0_89 = arith.constant 0 : index
    %c0_90 = arith.constant 0 : index
    %134 = vector.load %arg7[%c2_88, %c0_89, %c0_90] : memref<3x3x16xf32, #tpu.memory_space<vmem>>, vector<1x3x16xf32>
    %135 = vector.shape_cast %134 : vector<1x3x16xf32> to vector<3x16xf32>
    %136 = vector.extract_strided_slice %135 {offsets = [0, 0], sizes = [1, 16], strides = [1, 1]} : vector<3x16xf32> to vector<1x16xf32>
    %137 = vector.broadcast %136 : vector<1x16xf32> to vector<36x16xf32>
    %138 = arith.addf %133, %137 : vector<36x16xf32>
    %cst_91 = arith.constant 0.000000e+00 : f32
    %139 = vector.broadcast %cst_91 : f32 to vector<36x16xf32>
    %140 = arith.maximumf %138, %139 : vector<36x16xf32>
    %141 = vector.extract_strided_slice %135 {offsets = [1, 0], sizes = [1, 16], strides = [1, 1]} : vector<3x16xf32> to vector<1x16xf32>
    %142 = vector.broadcast %141 : vector<1x16xf32> to vector<36x16xf32>
    %143 = arith.mulf %140, %142 : vector<36x16xf32>
    %144 = vector.extract_strided_slice %135 {offsets = [2, 0], sizes = [1, 16], strides = [1, 1]} : vector<3x16xf32> to vector<1x16xf32>
    %145 = vector.broadcast %144 : vector<1x16xf32> to vector<36x16xf32>
    %146 = arith.addf %143, %145 : vector<36x16xf32>
    %147 = arith.truncf %146 : vector<36x16xf32> to vector<36x16xbf16>
    %c48 = arith.constant 48 : index
    %c0_92 = arith.constant 0 : index
    %148 = vector.load %arg8[%c48, %c0_92] : memref<64x64xbf16, #tpu.memory_space<vmem>>, vector<16x64xbf16>
    %cst_93 = arith.constant dense<0.000000e+00> : vector<36x64xf32>
    %149 = tpu.matmul %147, %148, %cst_93 {dimension_numbers = #tpu.dot_dimension_numbers<[1], [0], [0], [1], [0, 0, 1, 1], [], []>} : vector<36x16xbf16>, vector<16x64xbf16>, vector<36x64xf32> -> vector<36x64xf32>
    %150 = arith.addf %106, %149 : vector<36x64xf32>
    %c0_94 = arith.constant 0 : index
    %c0_95 = arith.constant 0 : index
    %151 = vector.load %arg9[%c0_94, %c0_95] : memref<3x64xf32, #tpu.memory_space<vmem>>, vector<3x64xf32>
    %152 = vector.extract_strided_slice %151 {offsets = [0, 0], sizes = [1, 64], strides = [1, 1]} : vector<3x64xf32> to vector<1x64xf32>
    %153 = vector.broadcast %152 : vector<1x64xf32> to vector<36x64xf32>
    %154 = arith.addf %150, %153 : vector<36x64xf32>
    %cst_96 = arith.constant 0.000000e+00 : f32
    %155 = vector.broadcast %cst_96 : f32 to vector<36x64xf32>
    %156 = arith.maximumf %154, %155 : vector<36x64xf32>
    %157 = vector.extract_strided_slice %151 {offsets = [1, 0], sizes = [1, 64], strides = [1, 1]} : vector<3x64xf32> to vector<1x64xf32>
    %158 = vector.broadcast %157 : vector<1x64xf32> to vector<36x64xf32>
    %159 = arith.mulf %156, %158 : vector<36x64xf32>
    %160 = vector.extract_strided_slice %151 {offsets = [2, 0], sizes = [1, 64], strides = [1, 1]} : vector<3x64xf32> to vector<1x64xf32>
    %161 = vector.broadcast %160 : vector<1x64xf32> to vector<36x64xf32>
    %162 = arith.addf %159, %161 : vector<36x64xf32>
    %c0_97 = arith.constant 0 : index
    %c0_98 = arith.constant 0 : index
    %163 = vector.load %arg3[%c0_97, %c0_98] : memref<36x36xf32, #tpu.memory_space<vmem>>, vector<36x36xf32>
    %cst_99 = arith.constant dense<0.000000e+00> : vector<36x64xf32>
    %164 = tpu.matmul %163, %162, %cst_99 {dimension_numbers = #tpu.dot_dimension_numbers<[1], [0], [0], [1], [0, 0, 1, 1], [], []>} : vector<36x36xf32>, vector<36x64xf32>, vector<36x64xf32> -> vector<36x64xf32>
    %165 = arith.truncf %164 : vector<36x64xf32> to vector<36x64xbf16>
    %c0_100 = arith.constant 0 : index
    %c0_101 = arith.constant 0 : index
    %166 = vector.load %arg10[%c0_100, %c0_101] : memref<64x32xbf16, #tpu.memory_space<vmem>>, vector<64x32xbf16>
    %cst_102 = arith.constant dense<0.000000e+00> : vector<36x32xf32>
    %167 = tpu.matmul %165, %166, %cst_102 {dimension_numbers = #tpu.dot_dimension_numbers<[1], [0], [0], [1], [0, 0, 1, 1], [], []>} : vector<36x64xbf16>, vector<64x32xbf16>, vector<36x32xf32> -> vector<36x32xf32>
    %c0_103 = arith.constant 0 : index
    %c0_104 = arith.constant 0 : index
    %168 = vector.load %arg11[%c0_103, %c0_104] : memref<1x32xf32, #tpu.memory_space<vmem>>, vector<1x32xf32>
    %169 = vector.broadcast %168 : vector<1x32xf32> to vector<36x32xf32>
    %170 = arith.addf %167, %169 : vector<36x32xf32>
    %cst_105 = arith.constant 0.000000e+00 : f32
    %171 = vector.broadcast %cst_105 : f32 to vector<36x32xf32>
    %172 = arith.maximumf %170, %171 : vector<36x32xf32>
    %173 = arith.truncf %172 : vector<36x32xf32> to vector<36x32xbf16>
    %c0_106 = arith.constant 0 : index
    %c0_107 = arith.constant 0 : index
    %174 = vector.load %arg12[%c0_106, %c0_107] : memref<32x64xbf16, #tpu.memory_space<vmem>>, vector<32x64xbf16>
    %cst_108 = arith.constant dense<0.000000e+00> : vector<36x64xf32>
    %175 = tpu.matmul %173, %174, %cst_108 {dimension_numbers = #tpu.dot_dimension_numbers<[1], [0], [0], [1], [0, 0, 1, 1], [], []>} : vector<36x32xbf16>, vector<32x64xbf16>, vector<36x64xf32> -> vector<36x64xf32>
    %c0_109 = arith.constant 0 : index
    %c0_110 = arith.constant 0 : index
    %176 = vector.load %arg13[%c0_109, %c0_110] : memref<1x64xf32, #tpu.memory_space<vmem>>, vector<1x64xf32>
    %177 = vector.broadcast %176 : vector<1x64xf32> to vector<36x64xf32>
    %178 = arith.addf %175, %177 : vector<36x64xf32>
    %179 = arith.negf %178 : vector<36x64xf32>
    %180 = math.exp %179 : vector<36x64xf32>
    %cst_111 = arith.constant 1.000000e+00 : f32
    %181 = vector.broadcast %cst_111 : f32 to vector<36x64xf32>
    %182 = arith.addf %181, %180 : vector<36x64xf32>
    %183 = arith.divf %181, %182 : vector<36x64xf32>
    %184 = arith.mulf %162, %183 : vector<36x64xf32>
    %185 = arith.addf %184, %0 : vector<36x64xf32>
    %c0_112 = arith.constant 0 : index
    %c0_113 = arith.constant 0 : index
    %186 = vector.load %arg14[%c0_112, %c0_113] : memref<36x64xf32, #tpu.memory_space<vmem>>, vector<36x64xf32>
    tpu.vector_store %arg14[%c0_112, %c0_113], %185 {strides = array<i32>} : memref<36x64xf32, #tpu.memory_space<vmem>>, vector<36x64xf32>,
    return
  }
  func.func @transform_0(%arg0: i32) -> (i32, i32) {
    %c0_i32 = arith.constant 0 : i32
    %c0_i32_0 = arith.constant 0 : i32
    %c0_i32_1 = arith.constant 0 : i32
    return %c0_i32, %c0_i32_0 : i32, i32
  }
  func.func @transform_1(%arg0: i32) -> (i32, i32, i32) {
    %c0_i32 = arith.constant 0 : i32
    %c0_i32_0 = arith.constant 0 : i32
    %c0_i32_1 = arith.constant 0 : i32
    %c0_i32_2 = arith.constant 0 : i32
    return %c0_i32, %c0_i32_0, %c0_i32_1 : i32, i32, i32
  }
  func.func @transform_2(%arg0: i32) -> (i32, i32) {
    %c0_i32 = arith.constant 0 : i32
    %c0_i32_0 = arith.constant 0 : i32
    %c0_i32_1 = arith.constant 0 : i32
    return %c0_i32, %c0_i32_0 : i32, i32
  }
  func.func @transform_3(%arg0: i32) -> (i32, i32) {
    %c0_i32 = arith.constant 0 : i32
    %c0_i32_0 = arith.constant 0 : i32
    %c0_i32_1 = arith.constant 0 : i32
    return %c0_i32, %c0_i32_0 : i32, i32
  }
  func.func @transform_4(%arg0: i32) -> (i32, i32) {
    %c0_i32 = arith.constant 0 : i32
    %c0_i32_0 = arith.constant 0 : i32
    %c0_i32_1 = arith.constant 0 : i32
    return %c0_i32, %c0_i32_0 : i32, i32
  }
  func.func @transform_5(%arg0: i32) -> (i32, i32, i32) {
    %c0_i32 = arith.constant 0 : i32
    %c0_i32_0 = arith.constant 0 : i32
    %c0_i32_1 = arith.constant 0 : i32
    %c0_i32_2 = arith.constant 0 : i32
    return %c0_i32, %c0_i32_0, %c0_i32_1 : i32, i32, i32
  }
  func.func @transform_6(%arg0: i32) -> (i32, i32, i32) {
    %c0_i32 = arith.constant 0 : i32
    %c0_i32_0 = arith.constant 0 : i32
    %c0_i32_1 = arith.constant 0 : i32
    %c0_i32_2 = arith.constant 0 : i32
    return %c0_i32, %c0_i32_0, %c0_i32_1 : i32, i32, i32
  }
  func.func @transform_7(%arg0: i32) -> (i32, i32) {
    %c0_i32 = arith.constant 0 : i32
    %c0_i32_0 = arith.constant 0 : i32
    %c0_i32_1 = arith.constant 0 : i32
    return %c0_i32, %c0_i32_0 : i32, i32
  }
  func.func @transform_8(%arg0: i32) -> (i32, i32) {
    %c0_i32 = arith.constant 0 : i32
    %c0_i32_0 = arith.constant 0 : i32
    %c0_i32_1 = arith.constant 0 : i32
    return %c0_i32, %c0_i32_0 : i32, i32
  }
  func.func @transform_9(%arg0: i32) -> (i32, i32) {
    %c0_i32 = arith.constant 0 : i32
    %c0_i32_0 = arith.constant 0 : i32
    %c0_i32_1 = arith.constant 0 : i32
    return %c0_i32, %c0_i32_0 : i32, i32
  }
  func.func @transform_10(%arg0: i32) -> (i32, i32) {
    %c0_i32 = arith.constant 0 : i32
    %c0_i32_0 = arith.constant 0 : i32
    %c0_i32_1 = arith.constant 0 : i32
    return %c0_i32, %c0_i32_0 : i32, i32
  }
  func.func @transform_11(%arg0: i32) -> (i32, i32) {
    %c0_i32 = arith.constant 0 : i32
    %c0_i32_0 = arith.constant 0 : i32
    %c0_i32_1 = arith.constant 0 : i32
    return %c0_i32, %c0_i32_0 : i32, i32
  }
  func.func @transform_12(%arg0: i32) -> (i32, i32) {
    %c0_i32 = arith.constant 0 : i32
    %c0_i32_0 = arith.constant 0 : i32
    %c0_i32_1 = arith.constant 0 : i32
    return %c0_i32, %c0_i32_0 : i32, i32
  }
  func.func @transform_13(%arg0: i32) -> (i32, i32) {
    %c0_i32 = arith.constant 0 : i32
    %c0_i32_0 = arith.constant 0 : i32
    %c0_i32_1 = arith.constant 0 : i32
    return %c0_i32, %c0_i32_0 : i32, i32
  }
}

module attributes {stable_mosaic.version = 11 : i64} {
  func.func @_se_res2net_kernel(%arg0: i32, %arg1: memref<36x64xf32, #tpu.memory_space<vmem>>, %arg2: memref<3x36x36xf32, #tpu.memory_space<vmem>>, %arg3: memref<36x36xf32, #tpu.memory_space<vmem>>, %arg4: memref<64x64xbf16, #tpu.memory_space<vmem>>, %arg5: memref<3x64xf32, #tpu.memory_space<vmem>>, %arg6: memref<9x16x16xbf16, #tpu.memory_space<vmem>>, %arg7: memref<3x3x16xf32, #tpu.memory_space<vmem>>, %arg8: memref<64x64xbf16, #tpu.memory_space<vmem>>, %arg9: memref<3x64xf32, #tpu.memory_space<vmem>>, %arg10: memref<64x32xbf16, #tpu.memory_space<vmem>>, %arg11: memref<1x32xf32, #tpu.memory_space<vmem>>, %arg12: memref<32x64xbf16, #tpu.memory_space<vmem>>, %arg13: memref<1x64xf32, #tpu.memory_space<vmem>>, %arg14: memref<36x64xf32, #tpu.memory_space<vmem>>) attributes {dimension_semantics = [#tpu.dimension_semantics<arbitrary>], iteration_bounds = array<i64: 1>, scalar_prefetch = 0 : i64, scratch_operands = 0 : i64, tpu.core_type = #tpu.core_type<tc>, window_params = [{pipeline_mode = #tpu.pipeline_mode<synchronous>, transform_indices = @transform_0, window_bounds = array<i64: 36, 64>}, {pipeline_mode = #tpu.pipeline_mode<synchronous>, transform_indices = @transform_1, window_bounds = array<i64: 3, 36, 36>}, {pipeline_mode = #tpu.pipeline_mode<synchronous>, transform_indices = @transform_2, window_bounds = array<i64: 36, 36>}, {pipeline_mode = #tpu.pipeline_mode<synchronous>, transform_indices = @transform_3, window_bounds = array<i64: 64, 64>}, {pipeline_mode = #tpu.pipeline_mode<synchronous>, transform_indices = @transform_4, window_bounds = array<i64: 3, 64>}, {pipeline_mode = #tpu.pipeline_mode<synchronous>, transform_indices = @transform_5, window_bounds = array<i64: 9, 16, 16>}, {pipeline_mode = #tpu.pipeline_mode<synchronous>, transform_indices = @transform_6, window_bounds = array<i64: 3, 3, 16>}, {pipeline_mode = #tpu.pipeline_mode<synchronous>, transform_indices = @transform_7, window_bounds = array<i64: 64, 64>}, {pipeline_mode = #tpu.pipeline_mode<synchronous>, transform_indices = @transform_8, window_bounds = array<i64: 3, 64>}, {pipeline_mode = #tpu.pipeline_mode<synchronous>, transform_indices = @transform_9, window_bounds = array<i64: 64, 32>}, {pipeline_mode = #tpu.pipeline_mode<synchronous>, transform_indices = @transform_10, window_bounds = array<i64: 1, 32>}, {pipeline_mode = #tpu.pipeline_mode<synchronous>, transform_indices = @transform_11, window_bounds = array<i64: 32, 64>}, {pipeline_mode = #tpu.pipeline_mode<synchronous>, transform_indices = @transform_12, window_bounds = array<i64: 1, 64>}, {pipeline_mode = #tpu.pipeline_mode<synchronous>, transform_indices = @transform_13, window_bounds = array<i64: 36, 64>}]} {
    %c0 = arith.constant 0 : index
    %c0_0 = arith.constant 0 : index
    %0 = vector.load %arg1[%c0, %c0_0] : memref<36x64xf32, #tpu.memory_space<vmem>>, vector<36x64xf32>
    %1 = arith.truncf %0 : vector<36x64xf32> to vector<36x64xbf16>
    %c0_1 = arith.constant 0 : index
    %c0_2 = arith.constant 0 : index
    %2 = vector.load %arg4[%c0_1, %c0_2] : memref<64x64xbf16, #tpu.memory_space<vmem>>, vector<64x64xbf16>
    %cst = arith.constant dense<0.000000e+00> : vector<36x64xf32>
    %3 = tpu.matmul %1, %2, %cst {dimension_numbers = #tpu.dot_dimension_numbers<[1], [0], [0], [1], [0, 0, 1, 1], [], []>} : vector<36x64xbf16>, vector<64x64xbf16>, vector<36x64xf32> -> vector<36x64xf32>
    %c0_3 = arith.constant 0 : index
    %c0_4 = arith.constant 0 : index
    %4 = vector.load %arg5[%c0_3, %c0_4] : memref<3x64xf32, #tpu.memory_space<vmem>>, vector<3x64xf32>
    %5 = vector.extract_strided_slice %4 {offsets = [0, 0], sizes = [1, 64], strides = [1, 1]} : vector<3x64xf32> to vector<1x64xf32>
    %6 = vector.broadcast %5 : vector<1x64xf32> to vector<36x64xf32>
    %7 = arith.addf %3, %6 : vector<36x64xf32>
    %cst_5 = arith.constant 0.000000e+00 : f32
    %8 = vector.broadcast %cst_5 : f32 to vector<36x64xf32>
    %9 = arith.maximumf %7, %8 : vector<36x64xf32>
    %10 = vector.extract_strided_slice %4 {offsets = [1, 0], sizes = [1, 64], strides = [1, 1]} : vector<3x64xf32> to vector<1x64xf32>
    %11 = vector.broadcast %10 : vector<1x64xf32> to vector<36x64xf32>
    %12 = arith.mulf %9, %11 : vector<36x64xf32>
    %13 = vector.extract_strided_slice %4 {offsets = [2, 0], sizes = [1, 64], strides = [1, 1]} : vector<3x64xf32> to vector<1x64xf32>
    %14 = vector.broadcast %13 : vector<1x64xf32> to vector<36x64xf32>
    %15 = arith.addf %12, %14 : vector<36x64xf32>
    %16 = vector.extract_strided_slice %15 {offsets = [0, 0], sizes = [36, 16], strides = [1, 1]} : vector<36x64xf32> to vector<36x16xf32>
    %17 = arith.truncf %16 : vector<36x16xf32> to vector<36x16xbf16>
    %c0_6 = arith.constant 0 : index
    %c0_7 = arith.constant 0 : index
    %18 = vector.load %arg8[%c0_6, %c0_7] : memref<64x64xbf16, #tpu.memory_space<vmem>>, vector<16x64xbf16>
    %cst_8 = arith.constant dense<0.000000e+00> : vector<36x64xf32>
    %19 = tpu.matmul %17, %18, %cst_8 {dimension_numbers = #tpu.dot_dimension_numbers<[1], [0], [0], [1], [0, 0, 1, 1], [], []>} : vector<36x16xbf16>, vector<16x64xbf16>, vector<36x64xf32> -> vector<36x64xf32>
    %20 = vector.extract_strided_slice %15 {offsets = [0, 16], sizes = [36, 16], strides = [1, 1]} : vector<36x64xf32> to vector<36x16xf32>
    %cst_9 = arith.constant 0.000000e+00 : f32
    %21 = vector.broadcast %cst_9 : f32 to vector<36x16xf32>
    %c0_10 = arith.constant 0 : index
    %c0_11 = arith.constant 0 : index
    %c0_12 = arith.constant 0 : index
    %22 = vector.load %arg2[%c0_10, %c0_11, %c0_12] : memref<3x36x36xf32, #tpu.memory_space<vmem>>, vector<1x36x36xf32>
    %23 = vector.shape_cast %22 : vector<1x36x36xf32> to vector<36x36xf32>
    %cst_13 = arith.constant dense<0.000000e+00> : vector<36x16xf32>
    %24 = tpu.matmul %23, %20, %cst_13 {dimension_numbers = #tpu.dot_dimension_numbers<[1], [0], [0], [1], [0, 0, 1, 1], [], []>} : vector<36x36xf32>, vector<36x16xf32>, vector<36x16xf32> -> vector<36x16xf32>
    %25 = arith.truncf %24 : vector<36x16xf32> to vector<36x16xbf16>
    %c0_14 = arith.constant 0 : index
    %c0_15 = arith.constant 0 : index
    %c0_16 = arith.constant 0 : index
    %26 = vector.load %arg6[%c0_14, %c0_15, %c0_16] : memref<9x16x16xbf16, #tpu.memory_space<vmem>>, vector<1x16x16xbf16>
    %27 = vector.shape_cast %26 : vector<1x16x16xbf16> to vector<16x16xbf16>
    %cst_17 = arith.constant dense<0.000000e+00> : vector<36x16xf32>
    %28 = tpu.matmul %25, %27, %cst_17 {dimension_numbers = #tpu.dot_dimension_numbers<[1], [0], [0], [1], [0, 0, 1, 1], [], []>} : vector<36x16xbf16>, vector<16x16xbf16>, vector<36x16xf32> -> vector<36x16xf32>
    %29 = arith.addf %21, %28 : vector<36x16xf32>
    %c1 = arith.constant 1 : index
    %c0_18 = arith.constant 0 : index
    %c0_19 = arith.constant 0 : index
    %30 = vector.load %arg2[%c1, %c0_18, %c0_19] : memref<3x36x36xf32, #tpu.memory_space<vmem>>, vector<1x36x36xf32>
    %31 = vector.shape_cast %30 : vector<1x36x36xf32> to vector<36x36xf32>
    %cst_20 = arith.constant dense<0.000000e+00> : vector<36x16xf32>
    %32 = tpu.matmul %31, %20, %cst_20 {dimension_numbers = #tpu.dot_dimension_numbers<[1], [0], [0], [1], [0, 0, 1, 1], [], []>} : vector<36x36xf32>, vector<36x16xf32>, vector<36x16xf32> -> vector<36x16xf32>
    %33 = arith.truncf %32 : vector<36x16xf32> to vector<36x16xbf16>
    %c1_21 = arith.constant 1 : index
    %c0_22 = arith.constant 0 : index
    %c0_23 = arith.constant 0 : index
    %34 = vector.load %arg6[%c1_21, %c0_22, %c0_23] : memref<9x16x16xbf16, #tpu.memory_space<vmem>>, vector<1x16x16xbf16>
    %35 = vector.shape_cast %34 : vector<1x16x16xbf16> to vector<16x16xbf16>
    %cst_24 = arith.constant dense<0.000000e+00> : vector<36x16xf32>
    %36 = tpu.matmul %33, %35, %cst_24 {dimension_numbers = #tpu.dot_dimension_numbers<[1], [0], [0], [1], [0, 0, 1, 1], [], []>} : vector<36x16xbf16>, vector<16x16xbf16>, vector<36x16xf32> -> vector<36x16xf32>
    %37 = arith.addf %29, %36 : vector<36x16xf32>
    %c2 = arith.constant 2 : index
    %c0_25 = arith.constant 0 : index
    %c0_26 = arith.constant 0 : index
    %38 = vector.load %arg2[%c2, %c0_25, %c0_26] : memref<3x36x36xf32, #tpu.memory_space<vmem>>, vector<1x36x36xf32>
    %39 = vector.shape_cast %38 : vector<1x36x36xf32> to vector<36x36xf32>
    %cst_27 = arith.constant dense<0.000000e+00> : vector<36x16xf32>
    %40 = tpu.matmul %39, %20, %cst_27 {dimension_numbers = #tpu.dot_dimension_numbers<[1], [0], [0], [1], [0, 0, 1, 1], [], []>} : vector<36x36xf32>, vector<36x16xf32>, vector<36x16xf32> -> vector<36x16xf32>
    %41 = arith.truncf %40 : vector<36x16xf32> to vector<36x16xbf16>
    %c2_28 = arith.constant 2 : index
    %c0_29 = arith.constant 0 : index
    %c0_30 = arith.constant 0 : index
    %42 = vector.load %arg6[%c2_28, %c0_29, %c0_30] : memref<9x16x16xbf16, #tpu.memory_space<vmem>>, vector<1x16x16xbf16>
    %43 = vector.shape_cast %42 : vector<1x16x16xbf16> to vector<16x16xbf16>
    %cst_31 = arith.constant dense<0.000000e+00> : vector<36x16xf32>
    %44 = tpu.matmul %41, %43, %cst_31 {dimension_numbers = #tpu.dot_dimension_numbers<[1], [0], [0], [1], [0, 0, 1, 1], [], []>} : vector<36x16xbf16>, vector<16x16xbf16>, vector<36x16xf32> -> vector<36x16xf32>
    %45 = arith.addf %37, %44 : vector<36x16xf32>
    %c0_32 = arith.constant 0 : index
    %c0_33 = arith.constant 0 : index
    %c0_34 = arith.constant 0 : index
    %46 = vector.load %arg7[%c0_32, %c0_33, %c0_34] : memref<3x3x16xf32, #tpu.memory_space<vmem>>, vector<1x3x16xf32>
    %47 = vector.shape_cast %46 : vector<1x3x16xf32> to vector<3x16xf32>
    %48 = vector.extract_strided_slice %47 {offsets = [0, 0], sizes = [1, 16], strides = [1, 1]} : vector<3x16xf32> to vector<1x16xf32>
    %49 = vector.broadcast %48 : vector<1x16xf32> to vector<36x16xf32>
    %50 = arith.addf %45, %49 : vector<36x16xf32>
    %cst_35 = arith.constant 0.000000e+00 : f32
    %51 = vector.broadcast %cst_35 : f32 to vector<36x16xf32>
    %52 = arith.maximumf %50, %51 : vector<36x16xf32>
    %53 = vector.extract_strided_slice %47 {offsets = [1, 0], sizes = [1, 16], strides = [1, 1]} : vector<3x16xf32> to vector<1x16xf32>
    %54 = vector.broadcast %53 : vector<1x16xf32> to vector<36x16xf32>
    %55 = arith.mulf %52, %54 : vector<36x16xf32>
    %56 = vector.extract_strided_slice %47 {offsets = [2, 0], sizes = [1, 16], strides = [1, 1]} : vector<3x16xf32> to vector<1x16xf32>
    %57 = vector.broadcast %56 : vector<1x16xf32> to vector<36x16xf32>
    %58 = arith.addf %55, %57 : vector<36x16xf32>
    %59 = arith.truncf %58 : vector<36x16xf32> to vector<36x16xbf16>
    %c16 = arith.constant 16 : index
    %c0_36 = arith.constant 0 : index
    %60 = vector.load %arg8[%c16, %c0_36] : memref<64x64xbf16, #tpu.memory_space<vmem>>, vector<16x64xbf16>
    %cst_37 = arith.constant dense<0.000000e+00> : vector<36x64xf32>
    %61 = tpu.matmul %59, %60, %cst_37 {dimension_numbers = #tpu.dot_dimension_numbers<[1], [0], [0], [1], [0, 0, 1, 1], [], []>} : vector<36x16xbf16>, vector<16x64xbf16>, vector<36x64xf32> -> vector<36x64xf32>
    %62 = arith.addf %19, %61 : vector<36x64xf32>
    %63 = vector.extract_strided_slice %15 {offsets = [0, 32], sizes = [36, 16], strides = [1, 1]} : vector<36x64xf32> to vector<36x16xf32>
    %64 = arith.addf %63, %58 : vector<36x16xf32>
    %cst_38 = arith.constant 0.000000e+00 : f32
    %65 = vector.broadcast %cst_38 : f32 to vector<36x16xf32>
    %c0_39 = arith.constant 0 : index
    %c0_40 = arith.constant 0 : index
    %c0_41 = arith.constant 0 : index
    %66 = vector.load %arg2[%c0_39, %c0_40, %c0_41] : memref<3x36x36xf32, #tpu.memory_space<vmem>>, vector<1x36x36xf32>
    %67 = vector.shape_cast %66 : vector<1x36x36xf32> to vector<36x36xf32>
    %cst_42 = arith.constant dense<0.000000e+00> : vector<36x16xf32>
    %68 = tpu.matmul %67, %64, %cst_42 {dimension_numbers = #tpu.dot_dimension_numbers<[1], [0], [0], [1], [0, 0, 1, 1], [], []>} : vector<36x36xf32>, vector<36x16xf32>, vector<36x16xf32> -> vector<36x16xf32>
    %69 = arith.truncf %68 : vector<36x16xf32> to vector<36x16xbf16>
    %c3 = arith.constant 3 : index
    %c0_43 = arith.constant 0 : index
    %c0_44 = arith.constant 0 : index
    %70 = vector.load %arg6[%c3, %c0_43, %c0_44] : memref<9x16x16xbf16, #tpu.memory_space<vmem>>, vector<1x16x16xbf16>
    %71 = vector.shape_cast %70 : vector<1x16x16xbf16> to vector<16x16xbf16>
    %cst_45 = arith.constant dense<0.000000e+00> : vector<36x16xf32>
    %72 = tpu.matmul %69, %71, %cst_45 {dimension_numbers = #tpu.dot_dimension_numbers<[1], [0], [0], [1], [0, 0, 1, 1], [], []>} : vector<36x16xbf16>, vector<16x16xbf16>, vector<36x16xf32> -> vector<36x16xf32>
    %73 = arith.addf %65, %72 : vector<36x16xf32>
    %c1_46 = arith.constant 1 : index
    %c0_47 = arith.constant 0 : index
    %c0_48 = arith.constant 0 : index
    %74 = vector.load %arg2[%c1_46, %c0_47, %c0_48] : memref<3x36x36xf32, #tpu.memory_space<vmem>>, vector<1x36x36xf32>
    %75 = vector.shape_cast %74 : vector<1x36x36xf32> to vector<36x36xf32>
    %cst_49 = arith.constant dense<0.000000e+00> : vector<36x16xf32>
    %76 = tpu.matmul %75, %64, %cst_49 {dimension_numbers = #tpu.dot_dimension_numbers<[1], [0], [0], [1], [0, 0, 1, 1], [], []>} : vector<36x36xf32>, vector<36x16xf32>, vector<36x16xf32> -> vector<36x16xf32>
    %77 = arith.truncf %76 : vector<36x16xf32> to vector<36x16xbf16>
    %c4 = arith.constant 4 : index
    %c0_50 = arith.constant 0 : index
    %c0_51 = arith.constant 0 : index
    %78 = vector.load %arg6[%c4, %c0_50, %c0_51] : memref<9x16x16xbf16, #tpu.memory_space<vmem>>, vector<1x16x16xbf16>
    %79 = vector.shape_cast %78 : vector<1x16x16xbf16> to vector<16x16xbf16>
    %cst_52 = arith.constant dense<0.000000e+00> : vector<36x16xf32>
    %80 = tpu.matmul %77, %79, %cst_52 {dimension_numbers = #tpu.dot_dimension_numbers<[1], [0], [0], [1], [0, 0, 1, 1], [], []>} : vector<36x16xbf16>, vector<16x16xbf16>, vector<36x16xf32> -> vector<36x16xf32>
    %81 = arith.addf %73, %80 : vector<36x16xf32>
    %c2_53 = arith.constant 2 : index
    %c0_54 = arith.constant 0 : index
    %c0_55 = arith.constant 0 : index
    %82 = vector.load %arg2[%c2_53, %c0_54, %c0_55] : memref<3x36x36xf32, #tpu.memory_space<vmem>>, vector<1x36x36xf32>
    %83 = vector.shape_cast %82 : vector<1x36x36xf32> to vector<36x36xf32>
    %cst_56 = arith.constant dense<0.000000e+00> : vector<36x16xf32>
    %84 = tpu.matmul %83, %64, %cst_56 {dimension_numbers = #tpu.dot_dimension_numbers<[1], [0], [0], [1], [0, 0, 1, 1], [], []>} : vector<36x36xf32>, vector<36x16xf32>, vector<36x16xf32> -> vector<36x16xf32>
    %85 = arith.truncf %84 : vector<36x16xf32> to vector<36x16xbf16>
    %c5 = arith.constant 5 : index
    %c0_57 = arith.constant 0 : index
    %c0_58 = arith.constant 0 : index
    %86 = vector.load %arg6[%c5, %c0_57, %c0_58] : memref<9x16x16xbf16, #tpu.memory_space<vmem>>, vector<1x16x16xbf16>
    %87 = vector.shape_cast %86 : vector<1x16x16xbf16> to vector<16x16xbf16>
    %cst_59 = arith.constant dense<0.000000e+00> : vector<36x16xf32>
    %88 = tpu.matmul %85, %87, %cst_59 {dimension_numbers = #tpu.dot_dimension_numbers<[1], [0], [0], [1], [0, 0, 1, 1], [], []>} : vector<36x16xbf16>, vector<16x16xbf16>, vector<36x16xf32> -> vector<36x16xf32>
    %89 = arith.addf %81, %88 : vector<36x16xf32>
    %c1_60 = arith.constant 1 : index
    %c0_61 = arith.constant 0 : index
    %c0_62 = arith.constant 0 : index
    %90 = vector.load %arg7[%c1_60, %c0_61, %c0_62] : memref<3x3x16xf32, #tpu.memory_space<vmem>>, vector<1x3x16xf32>
    %91 = vector.shape_cast %90 : vector<1x3x16xf32> to vector<3x16xf32>
    %92 = vector.extract_strided_slice %91 {offsets = [0, 0], sizes = [1, 16], strides = [1, 1]} : vector<3x16xf32> to vector<1x16xf32>
    %93 = vector.broadcast %92 : vector<1x16xf32> to vector<36x16xf32>
    %94 = arith.addf %89, %93 : vector<36x16xf32>
    %cst_63 = arith.constant 0.000000e+00 : f32
    %95 = vector.broadcast %cst_63 : f32 to vector<36x16xf32>
    %96 = arith.maximumf %94, %95 : vector<36x16xf32>
    %97 = vector.extract_strided_slice %91 {offsets = [1, 0], sizes = [1, 16], strides = [1, 1]} : vector<3x16xf32> to vector<1x16xf32>
    %98 = vector.broadcast %97 : vector<1x16xf32> to vector<36x16xf32>
    %99 = arith.mulf %96, %98 : vector<36x16xf32>
    %100 = vector.extract_strided_slice %91 {offsets = [2, 0], sizes = [1, 16], strides = [1, 1]} : vector<3x16xf32> to vector<1x16xf32>
    %101 = vector.broadcast %100 : vector<1x16xf32> to vector<36x16xf32>
    %102 = arith.addf %99, %101 : vector<36x16xf32>
    %103 = arith.truncf %102 : vector<36x16xf32> to vector<36x16xbf16>
    %c32 = arith.constant 32 : index
    %c0_64 = arith.constant 0 : index
    %104 = vector.load %arg8[%c32, %c0_64] : memref<64x64xbf16, #tpu.memory_space<vmem>>, vector<16x64xbf16>
    %cst_65 = arith.constant dense<0.000000e+00> : vector<36x64xf32>
    %105 = tpu.matmul %103, %104, %cst_65 {dimension_numbers = #tpu.dot_dimension_numbers<[1], [0], [0], [1], [0, 0, 1, 1], [], []>} : vector<36x16xbf16>, vector<16x64xbf16>, vector<36x64xf32> -> vector<36x64xf32>
    %106 = arith.addf %62, %105 : vector<36x64xf32>
    %107 = vector.extract_strided_slice %15 {offsets = [0, 48], sizes = [36, 16], strides = [1, 1]} : vector<36x64xf32> to vector<36x16xf32>
    %108 = arith.addf %107, %102 : vector<36x16xf32>
    %cst_66 = arith.constant 0.000000e+00 : f32
    %109 = vector.broadcast %cst_66 : f32 to vector<36x16xf32>
    %c0_67 = arith.constant 0 : index
    %c0_68 = arith.constant 0 : index
    %c0_69 = arith.constant 0 : index
    %110 = vector.load %arg2[%c0_67, %c0_68, %c0_69] : memref<3x36x36xf32, #tpu.memory_space<vmem>>, vector<1x36x36xf32>
    %111 = vector.shape_cast %110 : vector<1x36x36xf32> to vector<36x36xf32>
    %cst_70 = arith.constant dense<0.000000e+00> : vector<36x16xf32>
    %112 = tpu.matmul %111, %108, %cst_70 {dimension_numbers = #tpu.dot_dimension_numbers<[1], [0], [0], [1], [0, 0, 1, 1], [], []>} : vector<36x36xf32>, vector<36x16xf32>, vector<36x16xf32> -> vector<36x16xf32>
    %113 = arith.truncf %112 : vector<36x16xf32> to vector<36x16xbf16>
    %c6 = arith.constant 6 : index
    %c0_71 = arith.constant 0 : index
    %c0_72 = arith.constant 0 : index
    %114 = vector.load %arg6[%c6, %c0_71, %c0_72] : memref<9x16x16xbf16, #tpu.memory_space<vmem>>, vector<1x16x16xbf16>
    %115 = vector.shape_cast %114 : vector<1x16x16xbf16> to vector<16x16xbf16>
    %cst_73 = arith.constant dense<0.000000e+00> : vector<36x16xf32>
    %116 = tpu.matmul %113, %115, %cst_73 {dimension_numbers = #tpu.dot_dimension_numbers<[1], [0], [0], [1], [0, 0, 1, 1], [], []>} : vector<36x16xbf16>, vector<16x16xbf16>, vector<36x16xf32> -> vector<36x16xf32>
    %117 = arith.addf %109, %116 : vector<36x16xf32>
    %c1_74 = arith.constant 1 : index
    %c0_75 = arith.constant 0 : index
    %c0_76 = arith.constant 0 : index
    %118 = vector.load %arg2[%c1_74, %c0_75, %c0_76] : memref<3x36x36xf32, #tpu.memory_space<vmem>>, vector<1x36x36xf32>
    %119 = vector.shape_cast %118 : vector<1x36x36xf32> to vector<36x36xf32>
    %cst_77 = arith.constant dense<0.000000e+00> : vector<36x16xf32>
    %120 = tpu.matmul %119, %108, %cst_77 {dimension_numbers = #tpu.dot_dimension_numbers<[1], [0], [0], [1], [0, 0, 1, 1], [], []>} : vector<36x36xf32>, vector<36x16xf32>, vector<36x16xf32> -> vector<36x16xf32>
    %121 = arith.truncf %120 : vector<36x16xf32> to vector<36x16xbf16>
    %c7 = arith.constant 7 : index
    %c0_78 = arith.constant 0 : index
    %c0_79 = arith.constant 0 : index
    %122 = vector.load %arg6[%c7, %c0_78, %c0_79] : memref<9x16x16xbf16, #tpu.memory_space<vmem>>, vector<1x16x16xbf16>
    %123 = vector.shape_cast %122 : vector<1x16x16xbf16> to vector<16x16xbf16>
    %cst_80 = arith.constant dense<0.000000e+00> : vector<36x16xf32>
    %124 = tpu.matmul %121, %123, %cst_80 {dimension_numbers = #tpu.dot_dimension_numbers<[1], [0], [0], [1], [0, 0, 1, 1], [], []>} : vector<36x16xbf16>, vector<16x16xbf16>, vector<36x16xf32> -> vector<36x16xf32>
    %125 = arith.addf %117, %124 : vector<36x16xf32>
    %c2_81 = arith.constant 2 : index
    %c0_82 = arith.constant 0 : index
    %c0_83 = arith.constant 0 : index
    %126 = vector.load %arg2[%c2_81, %c0_82, %c0_83] : memref<3x36x36xf32, #tpu.memory_space<vmem>>, vector<1x36x36xf32>
    %127 = vector.shape_cast %126 : vector<1x36x36xf32> to vector<36x36xf32>
    %cst_84 = arith.constant dense<0.000000e+00> : vector<36x16xf32>
    %128 = tpu.matmul %127, %108, %cst_84 {dimension_numbers = #tpu.dot_dimension_numbers<[1], [0], [0], [1], [0, 0, 1, 1], [], []>} : vector<36x36xf32>, vector<36x16xf32>, vector<36x16xf32> -> vector<36x16xf32>
    %129 = arith.truncf %128 : vector<36x16xf32> to vector<36x16xbf16>
    %c8 = arith.constant 8 : index
    %c0_85 = arith.constant 0 : index
    %c0_86 = arith.constant 0 : index
    %130 = vector.load %arg6[%c8, %c0_85, %c0_86] : memref<9x16x16xbf16, #tpu.memory_space<vmem>>, vector<1x16x16xbf16>
    %131 = vector.shape_cast %130 : vector<1x16x16xbf16> to vector<16x16xbf16>
    %cst_87 = arith.constant dense<0.000000e+00> : vector<36x16xf32>
    %132 = tpu.matmul %129, %131, %cst_87 {dimension_numbers = #tpu.dot_dimension_numbers<[1], [0], [0], [1], [0, 0, 1, 1], [], []>} : vector<36x16xbf16>, vector<16x16xbf16>, vector<36x16xf32> -> vector<36x16xf32>
    %133 = arith.addf %125, %132 : vector<36x16xf32>
    %c2_88 = arith.constant 2 : index
    %c0_89 = arith.constant 0 : index
    %c0_90 = arith.constant 0 : index
    %134 = vector.load %arg7[%c2_88, %c0_89, %c0_90] : memref<3x3x16xf32, #tpu.memory_space<vmem>>, vector<1x3x16xf32>
    %135 = vector.shape_cast %134 : vector<1x3x16xf32> to vector<3x16xf32>
    %136 = vector.extract_strided_slice %135 {offsets = [0, 0], sizes = [1, 16], strides = [1, 1]} : vector<3x16xf32> to vector<1x16xf32>
    %137 = vector.broadcast %136 : vector<1x16xf32> to vector<36x16xf32>
    %138 = arith.addf %133, %137 : vector<36x16xf32>
    %cst_91 = arith.constant 0.000000e+00 : f32
    %139 = vector.broadcast %cst_91 : f32 to vector<36x16xf32>
    %140 = arith.maximumf %138, %139 : vector<36x16xf32>
    %141 = vector.extract_strided_slice %135 {offsets = [1, 0], sizes = [1, 16], strides = [1, 1]} : vector<3x16xf32> to vector<1x16xf32>
    %142 = vector.broadcast %141 : vector<1x16xf32> to vector<36x16xf32>
    %143 = arith.mulf %140, %142 : vector<36x16xf32>
    %144 = vector.extract_strided_slice %135 {offsets = [2, 0], sizes = [1, 16], strides = [1, 1]} : vector<3x16xf32> to vector<1x16xf32>
    %145 = vector.broadcast %144 : vector<1x16xf32> to vector<36x16xf32>
    %146 = arith.addf %143, %145 : vector<36x16xf32>
    %147 = arith.truncf %146 : vector<36x16xf32> to vector<36x16xbf16>
    %c48 = arith.constant 48 : index
    %c0_92 = arith.constant 0 : index
    %148 = vector.load %arg8[%c48, %c0_92] : memref<64x64xbf16, #tpu.memory_space<vmem>>, vector<16x64xbf16>
    %cst_93 = arith.constant dense<0.000000e+00> : vector<36x64xf32>
    %149 = tpu.matmul %147, %148, %cst_93 {dimension_numbers = #tpu.dot_dimension_numbers<[1], [0], [0], [1], [0, 0, 1, 1], [], []>} : vector<36x16xbf16>, vector<16x64xbf16>, vector<36x64xf32> -> vector<36x64xf32>
    %150 = arith.addf %106, %149 : vector<36x64xf32>
    %c0_94 = arith.constant 0 : index
    %c0_95 = arith.constant 0 : index
    %151 = vector.load %arg9[%c0_94, %c0_95] : memref<3x64xf32, #tpu.memory_space<vmem>>, vector<3x64xf32>
    %152 = vector.extract_strided_slice %151 {offsets = [0, 0], sizes = [1, 64], strides = [1, 1]} : vector<3x64xf32> to vector<1x64xf32>
    %153 = vector.broadcast %152 : vector<1x64xf32> to vector<36x64xf32>
    %154 = arith.addf %150, %153 : vector<36x64xf32>
    %cst_96 = arith.constant 0.000000e+00 : f32
    %155 = vector.broadcast %cst_96 : f32 to vector<36x64xf32>
    %156 = arith.maximumf %154, %155 : vector<36x64xf32>
    %157 = vector.extract_strided_slice %151 {offsets = [1, 0], sizes = [1, 64], strides = [1, 1]} : vector<3x64xf32> to vector<1x64xf32>
    %158 = vector.broadcast %157 : vector<1x64xf32> to vector<36x64xf32>
    %159 = arith.mulf %156, %158 : vector<36x64xf32>
    %160 = vector.extract_strided_slice %151 {offsets = [2, 0], sizes = [1, 64], strides = [1, 1]} : vector<3x64xf32> to vector<1x64xf32>
    %161 = vector.broadcast %160 : vector<1x64xf32> to vector<36x64xf32>
    %162 = arith.addf %159, %161 : vector<36x64xf32>
    %c0_97 = arith.constant 0 : index
    %c0_98 = arith.constant 0 : index
    %163 = vector.load %arg3[%c0_97, %c0_98] : memref<36x36xf32, #tpu.memory_space<vmem>>, vector<36x36xf32>
    %cst_99 = arith.constant dense<0.000000e+00> : vector<36x64xf32>
    %164 = tpu.matmul %163, %162, %cst_99 {dimension_numbers = #tpu.dot_dimension_numbers<[1], [0], [0], [1], [0, 0, 1, 1], [], []>} : vector<36x36xf32>, vector<36x64xf32>, vector<36x64xf32> -> vector<36x64xf32>
    %165 = arith.truncf %164 : vector<36x64xf32> to vector<36x64xbf16>
    %c0_100 = arith.constant 0 : index
    %c0_101 = arith.constant 0 : index
    %166 = vector.load %arg10[%c0_100, %c0_101] : memref<64x32xbf16, #tpu.memory_space<vmem>>, vector<64x32xbf16>
    %cst_102 = arith.constant dense<0.000000e+00> : vector<36x32xf32>
    %167 = tpu.matmul %165, %166, %cst_102 {dimension_numbers = #tpu.dot_dimension_numbers<[1], [0], [0], [1], [0, 0, 1, 1], [], []>} : vector<36x64xbf16>, vector<64x32xbf16>, vector<36x32xf32> -> vector<36x32xf32>
    %c0_103 = arith.constant 0 : index
    %c0_104 = arith.constant 0 : index
    %168 = vector.load %arg11[%c0_103, %c0_104] : memref<1x32xf32, #tpu.memory_space<vmem>>, vector<1x32xf32>
    %169 = vector.broadcast %168 : vector<1x32xf32> to vector<36x32xf32>
    %170 = arith.addf %167, %169 : vector<36x32xf32>
    %cst_105 = arith.constant 0.000000e+00 : f32
    %171 = vector.broadcast %cst_105 : f32 to vector<36x32xf32>
    %172 = arith.maximumf %170, %171 : vector<36x32xf32>
    %173 = arith.truncf %172 : vector<36x32xf32> to vector<36x32xbf16>
    %c0_106 = arith.constant 0 : index
    %c0_107 = arith.constant 0 : index
    %174 = vector.load %arg12[%c0_106, %c0_107] : memref<32x64xbf16, #tpu.memory_space<vmem>>, vector<32x64xbf16>
    %cst_108 = arith.constant dense<0.000000e+00> : vector<36x64xf32>
    %175 = tpu.matmul %173, %174, %cst_108 {dimension_numbers = #tpu.dot_dimension_numbers<[1], [0], [0], [1], [0, 0, 1, 1], [], []>} : vector<36x32xbf16>, vector<32x64xbf16>, vector<36x64xf32> -> vector<36x64xf32>
    %c0_109 = arith.constant 0 : index
    %c0_110 = arith.constant 0 : index
    %176 = vector.load %arg13[%c0_109, %c0_110] : memref<1x64xf32, #tpu.memory_space<vmem>>, vector<1x64xf32>
    %177 = vector.broadcast %176 : vector<1x64xf32> to vector<36x64xf32>
    %178 = arith.addf %175, %177 : vector<36x64xf32>
    %179 = arith.negf %178 : vector<36x64xf32>
    %180 = math.exp %179 : vector<36x64xf32>
    %cst_111 = arith.constant 1.000000e+00 : f32
    %181 = vector.broadcast %cst_111 : f32 to vector<36x64xf32>
    %182 = arith.addf %181, %180 : vector<36x64xf32>
    %183 = arith.divf %181, %182 : vector<36x64xf32>
    %184 = arith.mulf %162, %183 : vector<36x64xf32>
    %185 = arith.addf %184, %0 : vector<36x64xf32>
    %c0_112 = arith.constant 0 : index
    %c0_113 = arith.constant 0 : index
    %186 = vector.load %arg14[%c0_112, %c0_113] : memref<36x64xf32, #tpu.memory_space<vmem>>, vector<36x64xf32>
    tpu.vector_store %arg14[%c0_112, %c0_113], %185 {strides = array<i32>} : memref<36x64xf32, #tpu.memory_space<vmem>>, vector<36x64xf32>,
    return
  }
  func.func @transform_0(%arg0: i32) -> (i32, i32) {
    %c0_i32 = arith.constant 0 : i32
    %c0_i32_0 = arith.constant 0 : i32
    %c0_i32_1 = arith.constant 0 : i32
    return %c0_i32, %c0_i32_0 : i32, i32
  }
  func.func @transform_1(%arg0: i32) -> (i32, i32, i32) {
    %c0_i32 = arith.constant 0 : i32
    %c0_i32_0 = arith.constant 0 : i32
    %c0_i32_1 = arith.constant 0 : i32
    %c0_i32_2 = arith.constant 0 : i32
    return %c0_i32, %c0_i32_0, %c0_i32_1 : i32, i32, i32
  }
  func.func @transform_2(%arg0: i32) -> (i32, i32) {
    %c0_i32 = arith.constant 0 : i32
    %c0_i32_0 = arith.constant 0 : i32
    %c0_i32_1 = arith.constant 0 : i32
    return %c0_i32, %c0_i32_0 : i32, i32
  }
  func.func @transform_3(%arg0: i32) -> (i32, i32) {
    %c0_i32 = arith.constant 0 : i32
    %c0_i32_0 = arith.constant 0 : i32
    %c0_i32_1 = arith.constant 0 : i32
    return %c0_i32, %c0_i32_0 : i32, i32
  }
  func.func @transform_4(%arg0: i32) -> (i32, i32) {
    %c0_i32 = arith.constant 0 : i32
    %c0_i32_0 = arith.constant 0 : i32
    %c0_i32_1 = arith.constant 0 : i32
    return %c0_i32, %c0_i32_0 : i32, i32
  }
  func.func @transform_5(%arg0: i32) -> (i32, i32, i32) {
    %c0_i32 = arith.constant 0 : i32
    %c0_i32_0 = arith.constant 0 : i32
    %c0_i32_1 = arith.constant 0 : i32
    %c0_i32_2 = arith.constant 0 : i32
    return %c0_i32, %c0_i32_0, %c0_i32_1 : i32, i32, i32
  }
  func.func @transform_6(%arg0: i32) -> (i32, i32, i32) {
    %c0_i32 = arith.constant 0 : i32
    %c0_i32_0 = arith.constant 0 : i32
    %c0_i32_1 = arith.constant 0 : i32
    %c0_i32_2 = arith.constant 0 : i32
    return %c0_i32, %c0_i32_0, %c0_i32_1 : i32, i32, i32
  }
  func.func @transform_7(%arg0: i32) -> (i32, i32) {
    %c0_i32 = arith.constant 0 : i32
    %c0_i32_0 = arith.constant 0 : i32
    %c0_i32_1 = arith.constant 0 : i32
    return %c0_i32, %c0_i32_0 : i32, i32
  }
  func.func @transform_8(%arg0: i32) -> (i32, i32) {
    %c0_i32 = arith.constant 0 : i32
    %c0_i32_0 = arith.constant 0 : i32
    %c0_i32_1 = arith.constant 0 : i32
    return %c0_i32, %c0_i32_0 : i32, i32
  }
  func.func @transform_9(%arg0: i32) -> (i32, i32) {
    %c0_i32 = arith.constant 0 : i32
    %c0_i32_0 = arith.constant 0 : i32
    %c0_i32_1 = arith.constant 0 : i32
    return %c0_i32, %c0_i32_0 : i32, i32
  }
  func.func @transform_10(%arg0: i32) -> (i32, i32) {
    %c0_i32 = arith.constant 0 : i32
    %c0_i32_0 = arith.constant 0 : i32
    %c0_i32_1 = arith.constant 0 : i32
    return %c0_i32, %c0_i32_0 : i32, i32
  }
  func.func @transform_11(%arg0: i32) -> (i32, i32) {
    %c0_i32 = arith.constant 0 : i32
    %c0_i32_0 = arith.constant 0 : i32
    %c0_i32_1 = arith.constant 0 : i32
    return %c0_i32, %c0_i32_0 : i32, i32
  }
  func.func @transform_12(%arg0: i32) -> (i32, i32) {
    %c0_i32 = arith.constant 0 : i32
    %c0_i32_0 = arith.constant 0 : i32
    %c0_i32_1 = arith.constant 0 : i32
    return %c0_i32, %c0_i32_0 : i32, i32
  }
  func.func @transform_13(%arg0: i32) -> (i32, i32) {
    %c0_i32 = arith.constant 0 : i32
    %c0_i32_0 = arith.constant 0 : i32
    %c0_i32_1 = arith.constant 0 : i32
    return %c0_i32, %c0_i32_0 : i32, i32
  }
}

module attributes {stable_mosaic.version = 11 : i64} {
  func.func @_tail_kernel(%arg0: i32, %arg1: memref<36x64xf32, #tpu.memory_space<vmem>>, %arg2: memref<36x64xf32, #tpu.memory_space<vmem>>, %arg3: memref<36x64xf32, #tpu.memory_space<vmem>>, %arg4: memref<36x36xf32, #tpu.memory_space<vmem>>, %arg5: memref<36x36xf32, #tpu.memory_space<vmem>>, %arg6: memref<2x36xf32, #tpu.memory_space<vmem>>, %arg7: memref<192x192xbf16, #tpu.memory_space<vmem>>, %arg8: memref<3x192xf32, #tpu.memory_space<vmem>>, %arg9: memref<576x32xbf16, #tpu.memory_space<vmem>>, %arg10: memref<3x32xf32, #tpu.memory_space<vmem>>, %arg11: memref<32x192xbf16, #tpu.memory_space<vmem>>, %arg12: memref<1x192xf32, #tpu.memory_space<vmem>>, %arg13: memref<4x192xf32, #tpu.memory_space<vmem>>, %arg14: memref<192x192xbf16, #tpu.memory_space<vmem>>, %arg15: memref<192x192xbf16, #tpu.memory_space<vmem>>, %arg16: memref<1x192xf32, #tpu.memory_space<vmem>>, %arg17: memref<2x192xf32, #tpu.memory_space<vmem>>) attributes {dimension_semantics = [#tpu.dimension_semantics<arbitrary>], iteration_bounds = array<i64: 1>, scalar_prefetch = 0 : i64, scratch_operands = 0 : i64, tpu.core_type = #tpu.core_type<tc>, window_params = [{pipeline_mode = #tpu.pipeline_mode<synchronous>, transform_indices = @transform_0, window_bounds = array<i64: 36, 64>}, {pipeline_mode = #tpu.pipeline_mode<synchronous>, transform_indices = @transform_1, window_bounds = array<i64: 36, 64>}, {pipeline_mode = #tpu.pipeline_mode<synchronous>, transform_indices = @transform_2, window_bounds = array<i64: 36, 64>}, {pipeline_mode = #tpu.pipeline_mode<synchronous>, transform_indices = @transform_3, window_bounds = array<i64: 36, 36>}, {pipeline_mode = #tpu.pipeline_mode<synchronous>, transform_indices = @transform_4, window_bounds = array<i64: 36, 36>}, {pipeline_mode = #tpu.pipeline_mode<synchronous>, transform_indices = @transform_5, window_bounds = array<i64: 2, 36>}, {pipeline_mode = #tpu.pipeline_mode<synchronous>, transform_indices = @transform_6, window_bounds = array<i64: 192, 192>}, {pipeline_mode = #tpu.pipeline_mode<synchronous>, transform_indices = @transform_7, window_bounds = array<i64: 3, 192>}, {pipeline_mode = #tpu.pipeline_mode<synchronous>, transform_indices = @transform_8, window_bounds = array<i64: 576, 32>}, {pipeline_mode = #tpu.pipeline_mode<synchronous>, transform_indices = @transform_9, window_bounds = array<i64: 3, 32>}, {pipeline_mode = #tpu.pipeline_mode<synchronous>, transform_indices = @transform_10, window_bounds = array<i64: 32, 192>}, {pipeline_mode = #tpu.pipeline_mode<synchronous>, transform_indices = @transform_11, window_bounds = array<i64: 1, 192>}, {pipeline_mode = #tpu.pipeline_mode<synchronous>, transform_indices = @transform_12, window_bounds = array<i64: 4, 192>}, {pipeline_mode = #tpu.pipeline_mode<synchronous>, transform_indices = @transform_13, window_bounds = array<i64: 192, 192>}, {pipeline_mode = #tpu.pipeline_mode<synchronous>, transform_indices = @transform_14, window_bounds = array<i64: 192, 192>}, {pipeline_mode = #tpu.pipeline_mode<synchronous>, transform_indices = @transform_15, window_bounds = array<i64: 1, 192>}, {pipeline_mode = #tpu.pipeline_mode<synchronous>, transform_indices = @transform_16, window_bounds = array<i64: 2, 192>}]} {
    %c0 = arith.constant 0 : index
    %c0_0 = arith.constant 0 : index
    %0 = vector.load %arg1[%c0, %c0_0] : memref<36x64xf32, #tpu.memory_space<vmem>>, vector<36x64xf32>
    %1 = arith.truncf %0 : vector<36x64xf32> to vector<36x64xbf16>
    %c0_1 = arith.constant 0 : index
    %c0_2 = arith.constant 0 : index
    %2 = vector.load %arg2[%c0_1, %c0_2] : memref<36x64xf32, #tpu.memory_space<vmem>>, vector<36x64xf32>
    %3 = arith.truncf %2 : vector<36x64xf32> to vector<36x64xbf16>
    %c0_3 = arith.constant 0 : index
    %c0_4 = arith.constant 0 : index
    %4 = vector.load %arg3[%c0_3, %c0_4] : memref<36x64xf32, #tpu.memory_space<vmem>>, vector<36x64xf32>
    %5 = arith.truncf %4 : vector<36x64xf32> to vector<36x64xbf16>
    %c0_5 = arith.constant 0 : index
    %c0_6 = arith.constant 0 : index
    %6 = vector.load %arg7[%c0_5, %c0_6] : memref<192x192xbf16, #tpu.memory_space<vmem>>, vector<64x192xbf16>
    %cst = arith.constant dense<0.000000e+00> : vector<36x192xf32>
    %7 = tpu.matmul %1, %6, %cst {dimension_numbers = #tpu.dot_dimension_numbers<[1], [0], [0], [1], [0, 0, 1, 1], [], []>} : vector<36x64xbf16>, vector<64x192xbf16>, vector<36x192xf32> -> vector<36x192xf32>
    %c64 = arith.constant 64 : index
    %c0_7 = arith.constant 0 : index
    %8 = vector.load %arg7[%c64, %c0_7] : memref<192x192xbf16, #tpu.memory_space<vmem>>, vector<64x192xbf16>
    %cst_8 = arith.constant dense<0.000000e+00> : vector<36x192xf32>
    %9 = tpu.matmul %3, %8, %cst_8 {dimension_numbers = #tpu.dot_dimension_numbers<[1], [0], [0], [1], [0, 0, 1, 1], [], []>} : vector<36x64xbf16>, vector<64x192xbf16>, vector<36x192xf32> -> vector<36x192xf32>
    %10 = arith.addf %7, %9 : vector<36x192xf32>
    %c128 = arith.constant 128 : index
    %c0_9 = arith.constant 0 : index
    %11 = vector.load %arg7[%c128, %c0_9] : memref<192x192xbf16, #tpu.memory_space<vmem>>, vector<64x192xbf16>
    %cst_10 = arith.constant dense<0.000000e+00> : vector<36x192xf32>
    %12 = tpu.matmul %5, %11, %cst_10 {dimension_numbers = #tpu.dot_dimension_numbers<[1], [0], [0], [1], [0, 0, 1, 1], [], []>} : vector<36x64xbf16>, vector<64x192xbf16>, vector<36x192xf32> -> vector<36x192xf32>
    %13 = arith.addf %10, %12 : vector<36x192xf32>
    %c0_11 = arith.constant 0 : index
    %c0_12 = arith.constant 0 : index
    %14 = vector.load %arg8[%c0_11, %c0_12] : memref<3x192xf32, #tpu.memory_space<vmem>>, vector<3x192xf32>
    %15 = vector.extract_strided_slice %14 {offsets = [0, 0], sizes = [1, 192], strides = [1, 1]} : vector<3x192xf32> to vector<1x192xf32>
    %16 = vector.broadcast %15 : vector<1x192xf32> to vector<36x192xf32>
    %17 = arith.addf %13, %16 : vector<36x192xf32>
    %cst_13 = arith.constant 0.000000e+00 : f32
    %18 = vector.broadcast %cst_13 : f32 to vector<36x192xf32>
    %19 = arith.maximumf %17, %18 : vector<36x192xf32>
    %20 = vector.extract_strided_slice %14 {offsets = [1, 0], sizes = [1, 192], strides = [1, 1]} : vector<3x192xf32> to vector<1x192xf32>
    %21 = vector.broadcast %20 : vector<1x192xf32> to vector<36x192xf32>
    %22 = arith.mulf %19, %21 : vector<36x192xf32>
    %23 = vector.extract_strided_slice %14 {offsets = [2, 0], sizes = [1, 192], strides = [1, 1]} : vector<3x192xf32> to vector<1x192xf32>
    %24 = vector.broadcast %23 : vector<1x192xf32> to vector<36x192xf32>
    %25 = arith.addf %22, %24 : vector<36x192xf32>
    %c0_14 = arith.constant 0 : index
    %c0_15 = arith.constant 0 : index
    %26 = vector.load %arg4[%c0_14, %c0_15] : memref<36x36xf32, #tpu.memory_space<vmem>>, vector<36x36xf32>
    %cst_16 = arith.constant dense<0.000000e+00> : vector<36x192xf32>
    %27 = tpu.matmul %26, %25, %cst_16 {dimension_numbers = #tpu.dot_dimension_numbers<[1], [0], [0], [1], [0, 0, 1, 1], [], []>} : vector<36x36xf32>, vector<36x192xf32>, vector<36x192xf32> -> vector<36x192xf32>
    %c0_17 = arith.constant 0 : index
    %c0_18 = arith.constant 0 : index
    %28 = vector.load %arg4[%c0_17, %c0_18] : memref<36x36xf32, #tpu.memory_space<vmem>>, vector<36x36xf32>
    %29 = arith.subf %25, %27 : vector<36x192xf32>
    %30 = arith.mulf %29, %29 : vector<36x192xf32>
    %cst_19 = arith.constant dense<0.000000e+00> : vector<36x192xf32>
    %31 = tpu.matmul %28, %30, %cst_19 {dimension_numbers = #tpu.dot_dimension_numbers<[1], [0], [0], [1], [0, 0, 1, 1], [], []>} : vector<36x36xf32>, vector<36x192xf32>, vector<36x192xf32> -> vector<36x192xf32>
    %cst_20 = arith.constant 9.99999996E-13 : f32
    %32 = vector.broadcast %cst_20 : f32 to vector<36x192xf32>
    %33 = arith.maximumf %31, %32 : vector<36x192xf32>
    %34 = math.sqrt %33 : vector<36x192xf32>
    %35 = arith.truncf %25 : vector<36x192xf32> to vector<36x192xbf16>
    %c0_21 = arith.constant 0 : index
    %c0_22 = arith.constant 0 : index
    %36 = vector.load %arg9[%c0_21, %c0_22] : memref<576x32xbf16, #tpu.memory_space<vmem>>, vector<192x32xbf16>
    %cst_23 = arith.constant dense<0.000000e+00> : vector<36x32xf32>
    %37 = tpu.matmul %35, %36, %cst_23 {dimension_numbers = #tpu.dot_dimension_numbers<[1], [0], [0], [1], [0, 0, 1, 1], [], []>} : vector<36x192xbf16>, vector<192x32xbf16>, vector<36x32xf32> -> vector<36x32xf32>
    %38 = arith.truncf %27 : vector<36x192xf32> to vector<36x192xbf16>
    %c192 = arith.constant 192 : index
    %c0_24 = arith.constant 0 : index
    %39 = vector.load %arg9[%c192, %c0_24] : memref<576x32xbf16, #tpu.memory_space<vmem>>, vector<192x32xbf16>
    %cst_25 = arith.constant dense<0.000000e+00> : vector<36x32xf32>
    %40 = tpu.matmul %38, %39, %cst_25 {dimension_numbers = #tpu.dot_dimension_numbers<[1], [0], [0], [1], [0, 0, 1, 1], [], []>} : vector<36x192xbf16>, vector<192x32xbf16>, vector<36x32xf32> -> vector<36x32xf32>
    %41 = arith.addf %37, %40 : vector<36x32xf32>
    %42 = arith.truncf %34 : vector<36x192xf32> to vector<36x192xbf16>
    %c384 = arith.constant 384 : index
    %c0_26 = arith.constant 0 : index
    %43 = vector.load %arg9[%c384, %c0_26] : memref<576x32xbf16, #tpu.memory_space<vmem>>, vector<192x32xbf16>
    %cst_27 = arith.constant dense<0.000000e+00> : vector<36x32xf32>
    %44 = tpu.matmul %42, %43, %cst_27 {dimension_numbers = #tpu.dot_dimension_numbers<[1], [0], [0], [1], [0, 0, 1, 1], [], []>} : vector<36x192xbf16>, vector<192x32xbf16>, vector<36x32xf32> -> vector<36x32xf32>
    %45 = arith.addf %41, %44 : vector<36x32xf32>
    %c0_28 = arith.constant 0 : index
    %c0_29 = arith.constant 0 : index
    %46 = vector.load %arg10[%c0_28, %c0_29] : memref<3x32xf32, #tpu.memory_space<vmem>>, vector<3x32xf32>
    %47 = vector.extract_strided_slice %46 {offsets = [0, 0], sizes = [1, 32], strides = [1, 1]} : vector<3x32xf32> to vector<1x32xf32>
    %48 = vector.broadcast %47 : vector<1x32xf32> to vector<36x32xf32>
    %49 = arith.addf %45, %48 : vector<36x32xf32>
    %cst_30 = arith.constant 0.000000e+00 : f32
    %50 = vector.broadcast %cst_30 : f32 to vector<36x32xf32>
    %51 = arith.maximumf %49, %50 : vector<36x32xf32>
    %52 = vector.extract_strided_slice %46 {offsets = [1, 0], sizes = [1, 32], strides = [1, 1]} : vector<3x32xf32> to vector<1x32xf32>
    %53 = vector.broadcast %52 : vector<1x32xf32> to vector<36x32xf32>
    %54 = arith.mulf %51, %53 : vector<36x32xf32>
    %55 = vector.extract_strided_slice %46 {offsets = [2, 0], sizes = [1, 32], strides = [1, 1]} : vector<3x32xf32> to vector<1x32xf32>
    %56 = vector.broadcast %55 : vector<1x32xf32> to vector<36x32xf32>
    %57 = arith.addf %54, %56 : vector<36x32xf32>
    %58 = math.tanh %57 : vector<36x32xf32>
    %59 = arith.truncf %58 : vector<36x32xf32> to vector<36x32xbf16>
    %c0_31 = arith.constant 0 : index
    %c0_32 = arith.constant 0 : index
    %60 = vector.load %arg11[%c0_31, %c0_32] : memref<32x192xbf16, #tpu.memory_space<vmem>>, vector<32x192xbf16>
    %cst_33 = arith.constant dense<0.000000e+00> : vector<36x192xf32>
    %61 = tpu.matmul %59, %60, %cst_33 {dimension_numbers = #tpu.dot_dimension_numbers<[1], [0], [0], [1], [0, 0, 1, 1], [], []>} : vector<36x32xbf16>, vector<32x192xbf16>, vector<36x192xf32> -> vector<36x192xf32>
    %c0_34 = arith.constant 0 : index
    %c0_35 = arith.constant 0 : index
    %62 = vector.load %arg12[%c0_34, %c0_35] : memref<1x192xf32, #tpu.memory_space<vmem>>, vector<1x192xf32>
    %63 = vector.broadcast %62 : vector<1x192xf32> to vector<36x192xf32>
    %64 = arith.addf %61, %63 : vector<36x192xf32>
    %65 = vector.shape_cast %64 : vector<36x192xf32> to vector<1x36x192xf32>
    %cst_36 = arith.constant dense<0xFF800000> : vector<1xf32>
    %66 = vector.multi_reduction <maximumf>, %65, %cst_36 [1, 2] : vector<1x36x192xf32> to vector<1xf32>
    %67 = vector.shape_cast %66 : vector<1xf32> to vector<1x1x1xf32>
    %68 = vector.extract %67[0, 0, 0] : f32 from vector<1x1x1xf32>
    %69 = vector.broadcast %68 : f32 to vector<36x192xf32>
    %70 = arith.subf %64, %69 : vector<36x192xf32>
    %71 = math.exp %70 : vector<36x192xf32>
    %c0_37 = arith.constant 0 : index
    %c0_38 = arith.constant 0 : index
    %72 = vector.load %arg5[%c0_37, %c0_38] : memref<36x36xf32, #tpu.memory_space<vmem>>, vector<36x36xf32>
    %cst_39 = arith.constant dense<0.000000e+00> : vector<36x192xf32>
    %73 = tpu.matmul %72, %71, %cst_39 {dimension_numbers = #tpu.dot_dimension_numbers<[1], [0], [0], [1], [0, 0, 1, 1], [], []>} : vector<36x36xf32>, vector<36x192xf32>, vector<36x192xf32> -> vector<36x192xf32>
    %74 = arith.divf %71, %73 : vector<36x192xf32>
    %75 = arith.mulf %74, %25 : vector<36x192xf32>
    %c0_40 = arith.constant 0 : index
    %c0_41 = arith.constant 0 : index
    %76 = vector.load %arg5[%c0_40, %c0_41] : memref<36x36xf32, #tpu.memory_space<vmem>>, vector<36x36xf32>
    %cst_42 = arith.constant dense<0.000000e+00> : vector<36x192xf32>
    %77 = tpu.matmul %76, %75, %cst_42 {dimension_numbers = #tpu.dot_dimension_numbers<[1], [0], [0], [1], [0, 0, 1, 1], [], []>} : vector<36x36xf32>, vector<36x192xf32>, vector<36x192xf32> -> vector<36x192xf32>
    %c0_43 = arith.constant 0 : index
    %c0_44 = arith.constant 0 : index
    %78 = vector.load %arg6[%c0_43, %c0_44] : memref<2x36xf32, #tpu.memory_space<vmem>>, vector<2x36xf32>
    %cst_45 = arith.constant dense<0.000000e+00> : vector<2x192xf32>
    %79 = tpu.matmul %78, %75, %cst_45 {dimension_numbers = #tpu.dot_dimension_numbers<[1], [0], [0], [1], [0, 0, 1, 1], [], []>} : vector<2x36xf32>, vector<36x192xf32>, vector<2x192xf32> -> vector<2x192xf32>
    %c0_46 = arith.constant 0 : index
    %c0_47 = arith.constant 0 : index
    %80 = vector.load %arg6[%c0_46, %c0_47] : memref<2x36xf32, #tpu.memory_space<vmem>>, vector<2x36xf32>
    %81 = arith.subf %25, %77 : vector<36x192xf32>
    %82 = arith.mulf %81, %81 : vector<36x192xf32>
    %83 = arith.mulf %74, %82 : vector<36x192xf32>
    %cst_48 = arith.constant dense<0.000000e+00> : vector<2x192xf32>
    %84 = tpu.matmul %80, %83, %cst_48 {dimension_numbers = #tpu.dot_dimension_numbers<[1], [0], [0], [1], [0, 0, 1, 1], [], []>} : vector<2x36xf32>, vector<36x192xf32>, vector<2x192xf32> -> vector<2x192xf32>
    %cst_49 = arith.constant 9.99999996E-13 : f32
    %85 = vector.broadcast %cst_49 : f32 to vector<2x192xf32>
    %86 = arith.maximumf %84, %85 : vector<2x192xf32>
    %87 = math.sqrt %86 : vector<2x192xf32>
    %c0_50 = arith.constant 0 : index
    %c0_51 = arith.constant 0 : index
    %88 = vector.load %arg13[%c0_50, %c0_51] : memref<4x192xf32, #tpu.memory_space<vmem>>, vector<4x192xf32>
    %89 = vector.extract_strided_slice %88 {offsets = [0, 0], sizes = [1, 192], strides = [1, 1]} : vector<4x192xf32> to vector<1x192xf32>
    %90 = vector.broadcast %89 : vector<1x192xf32> to vector<2x192xf32>
    %91 = arith.mulf %79, %90 : vector<2x192xf32>
    %92 = vector.extract_strided_slice %88 {offsets = [1, 0], sizes = [1, 192], strides = [1, 1]} : vector<4x192xf32> to vector<1x192xf32>
    %93 = vector.broadcast %92 : vector<1x192xf32> to vector<2x192xf32>
    %94 = arith.addf %91, %93 : vector<2x192xf32>
    %95 = vector.extract_strided_slice %88 {offsets = [2, 0], sizes = [1, 192], strides = [1, 1]} : vector<4x192xf32> to vector<1x192xf32>
    %96 = vector.broadcast %95 : vector<1x192xf32> to vector<2x192xf32>
    %97 = arith.mulf %87, %96 : vector<2x192xf32>
    %98 = vector.extract_strided_slice %88 {offsets = [3, 0], sizes = [1, 192], strides = [1, 1]} : vector<4x192xf32> to vector<1x192xf32>
    %99 = vector.broadcast %98 : vector<1x192xf32> to vector<2x192xf32>
    %100 = arith.addf %97, %99 : vector<2x192xf32>
    %101 = arith.truncf %94 : vector<2x192xf32> to vector<2x192xbf16>
    %c0_52 = arith.constant 0 : index
    %c0_53 = arith.constant 0 : index
    %102 = vector.load %arg14[%c0_52, %c0_53] : memref<192x192xbf16, #tpu.memory_space<vmem>>, vector<192x192xbf16>
    %cst_54 = arith.constant dense<0.000000e+00> : vector<2x192xf32>
    %103 = tpu.matmul %101, %102, %cst_54 {dimension_numbers = #tpu.dot_dimension_numbers<[1], [0], [0], [1], [0, 0, 1, 1], [], []>} : vector<2x192xbf16>, vector<192x192xbf16>, vector<2x192xf32> -> vector<2x192xf32>
    %104 = arith.truncf %100 : vector<2x192xf32> to vector<2x192xbf16>
    %c0_55 = arith.constant 0 : index
    %c0_56 = arith.constant 0 : index
    %105 = vector.load %arg15[%c0_55, %c0_56] : memref<192x192xbf16, #tpu.memory_space<vmem>>, vector<192x192xbf16>
    %cst_57 = arith.constant dense<0.000000e+00> : vector<2x192xf32>
    %106 = tpu.matmul %104, %105, %cst_57 {dimension_numbers = #tpu.dot_dimension_numbers<[1], [0], [0], [1], [0, 0, 1, 1], [], []>} : vector<2x192xbf16>, vector<192x192xbf16>, vector<2x192xf32> -> vector<2x192xf32>
    %107 = arith.addf %103, %106 : vector<2x192xf32>
    %c0_58 = arith.constant 0 : index
    %c0_59 = arith.constant 0 : index
    %108 = vector.load %arg16[%c0_58, %c0_59] : memref<1x192xf32, #tpu.memory_space<vmem>>, vector<1x192xf32>
    %109 = vector.broadcast %108 : vector<1x192xf32> to vector<2x192xf32>
    %110 = arith.addf %107, %109 : vector<2x192xf32>
    %c0_60 = arith.constant 0 : index
    %c0_61 = arith.constant 0 : index
    %111 = vector.load %arg17[%c0_60, %c0_61] : memref<2x192xf32, #tpu.memory_space<vmem>>, vector<2x192xf32>
    tpu.vector_store %arg17[%c0_60, %c0_61], %110 {strides = array<i32>} : memref<2x192xf32, #tpu.memory_space<vmem>>, vector<2x192xf32>,
    return
  }
  func.func @transform_0(%arg0: i32) -> (i32, i32) {
    %c0_i32 = arith.constant 0 : i32
    %c0_i32_0 = arith.constant 0 : i32
    %c0_i32_1 = arith.constant 0 : i32
    return %c0_i32, %c0_i32_0 : i32, i32
  }
  func.func @transform_1(%arg0: i32) -> (i32, i32) {
    %c0_i32 = arith.constant 0 : i32
    %c0_i32_0 = arith.constant 0 : i32
    %c0_i32_1 = arith.constant 0 : i32
    return %c0_i32, %c0_i32_0 : i32, i32
  }
  func.func @transform_2(%arg0: i32) -> (i32, i32) {
    %c0_i32 = arith.constant 0 : i32
    %c0_i32_0 = arith.constant 0 : i32
    %c0_i32_1 = arith.constant 0 : i32
    return %c0_i32, %c0_i32_0 : i32, i32
  }
  func.func @transform_3(%arg0: i32) -> (i32, i32) {
    %c0_i32 = arith.constant 0 : i32
    %c0_i32_0 = arith.constant 0 : i32
    %c0_i32_1 = arith.constant 0 : i32
    return %c0_i32, %c0_i32_0 : i32, i32
  }
  func.func @transform_4(%arg0: i32) -> (i32, i32) {
    %c0_i32 = arith.constant 0 : i32
    %c0_i32_0 = arith.constant 0 : i32
    %c0_i32_1 = arith.constant 0 : i32
    return %c0_i32, %c0_i32_0 : i32, i32
  }
  func.func @transform_5(%arg0: i32) -> (i32, i32) {
    %c0_i32 = arith.constant 0 : i32
    %c0_i32_0 = arith.constant 0 : i32
    %c0_i32_1 = arith.constant 0 : i32
    return %c0_i32, %c0_i32_0 : i32, i32
  }
  func.func @transform_6(%arg0: i32) -> (i32, i32) {
    %c0_i32 = arith.constant 0 : i32
    %c0_i32_0 = arith.constant 0 : i32
    %c0_i32_1 = arith.constant 0 : i32
    return %c0_i32, %c0_i32_0 : i32, i32
  }
  func.func @transform_7(%arg0: i32) -> (i32, i32) {
    %c0_i32 = arith.constant 0 : i32
    %c0_i32_0 = arith.constant 0 : i32
    %c0_i32_1 = arith.constant 0 : i32
    return %c0_i32, %c0_i32_0 : i32, i32
  }
  func.func @transform_8(%arg0: i32) -> (i32, i32) {
    %c0_i32 = arith.constant 0 : i32
    %c0_i32_0 = arith.constant 0 : i32
    %c0_i32_1 = arith.constant 0 : i32
    return %c0_i32, %c0_i32_0 : i32, i32
  }
  func.func @transform_9(%arg0: i32) -> (i32, i32) {
    %c0_i32 = arith.constant 0 : i32
    %c0_i32_0 = arith.constant 0 : i32
    %c0_i32_1 = arith.constant 0 : i32
    return %c0_i32, %c0_i32_0 : i32, i32
  }
  func.func @transform_10(%arg0: i32) -> (i32, i32) {
    %c0_i32 = arith.constant 0 : i32
    %c0_i32_0 = arith.constant 0 : i32
    %c0_i32_1 = arith.constant 0 : i32
    return %c0_i32, %c0_i32_0 : i32, i32
  }
  func.func @transform_11(%arg0: i32) -> (i32, i32) {
    %c0_i32 = arith.constant 0 : i32
    %c0_i32_0 = arith.constant 0 : i32
    %c0_i32_1 = arith.constant 0 : i32
    return %c0_i32, %c0_i32_0 : i32, i32
  }
  func.func @transform_12(%arg0: i32) -> (i32, i32) {
    %c0_i32 = arith.constant 0 : i32
    %c0_i32_0 = arith.constant 0 : i32
    %c0_i32_1 = arith.constant 0 : i32
    return %c0_i32, %c0_i32_0 : i32, i32
  }
  func.func @transform_13(%arg0: i32) -> (i32, i32) {
    %c0_i32 = arith.constant 0 : i32
    %c0_i32_0 = arith.constant 0 : i32
    %c0_i32_1 = arith.constant 0 : i32
    return %c0_i32, %c0_i32_0 : i32, i32
  }
  func.func @transform_14(%arg0: i32) -> (i32, i32) {
    %c0_i32 = arith.constant 0 : i32
    %c0_i32_0 = arith.constant 0 : i32
    %c0_i32_1 = arith.constant 0 : i32
    return %c0_i32, %c0_i32_0 : i32, i32
  }
  func.func @transform_15(%arg0: i32) -> (i32, i32) {
    %c0_i32 = arith.constant 0 : i32
    %c0_i32_0 = arith.constant 0 : i32
    %c0_i32_1 = arith.constant 0 : i32
    return %c0_i32, %c0_i32_0 : i32, i32
  }
  func.func @transform_16(%arg0: i32) -> (i32, i32) {
    %c0_i32 = arith.constant 0 : i32
    %c0_i32_0 = arith.constant 0 : i32
    %c0_i32_1 = arith.constant 0 : i32
    return %c0_i32, %c0_i32_0 : i32, i32
  }
}

</mosaic_0001>

<llo_original>
// kernel: reverser_forward.6
$region0: #{reverser_forward.6}
  #allocation0 [shape = 'u32[]', space=smem, size = 0x4, offset = 0x4, fixed_abs, tag = 'smem constant byte address 0x4 - core index']
  #allocation1 [shape = 'u32[144,128]{1,0:T(1,128)}', space=vmem, size = 0x12000, scoped, tag = 'internal scratch']
  %s0 = inlined_call_operand.vmem [shape: f32[36,64], index: 0, kind: input, shape index: {}]
  %s1 = inlined_call_operand.vmem [shape: f32[3,36,36], index: 1, kind: input, shape index: {}]
  %s2 = inlined_call_operand.vmem [shape: f32[36,36], index: 2, kind: input, shape index: {}]
  %s3 = inlined_call_operand.vmem [shape: bf16[64,64], index: 3, kind: input, shape index: {}]
  %s4 = inlined_call_operand.vmem [shape: f32[3,64], index: 4, kind: input, shape index: {}]
  %s5 = inlined_call_operand.vmem [shape: bf16[9,16,16], index: 5, kind: input, shape index: {}]
  %s6 = inlined_call_operand.vmem [shape: f32[3,3,16], index: 6, kind: input, shape index: {}]
  %s7 = inlined_call_operand.vmem [shape: bf16[64,64], index: 7, kind: input, shape index: {}]
  %s8 = inlined_call_operand.vmem [shape: f32[3,64], index: 8, kind: input, shape index: {}]
  %s9 = inlined_call_operand.vmem [shape: bf16[64,32], index: 9, kind: input, shape index: {}]
  %s10 = inlined_call_operand.hbm [shape: f32[1,32], index: 10, kind: input, shape index: {}]
  %s11 = inlined_call_operand.vmem [shape: bf16[32,64], index: 11, kind: input, shape index: {}]
  %s12 = inlined_call_operand.hbm [shape: f32[1,64], index: 12, kind: input, shape index: {}]
  %s13 = inlined_call_operand.vmem [shape: f32[36,64], index: 13, kind: output, shape index: {}]
  %s14 = sld [smem:[#allocation0]]
  $region70: #{reverser_forward.6} parent=0
    _
  %s16 = ssub.s32 1, %s14
  %s17 = scalar_select 0, %s16, %s14
  $region1: #{reverser_forward.6} parent=0
    #allocation2 [shape = 'u8[512]{0}', space=vmem, size = 0x400, scoped, tag = 'input window, operand 10, single buffered']
    #allocation3 [shape = 's32[1]{0}', space=sflag, size = 0x4, scoped, tag = 'scoped memory for reverser_forward.6']
    #allocation4 [shape = 'u8[512]{0}', space=vmem, size = 0x400, scoped, tag = 'input window, operand 12, single buffered']
    #allocation5 [shape = 's32[1]{0}', space=sflag, size = 0x4, scoped, tag = 'scoped memory for reverser_forward.6']
    %18 = vsyncpa [#allocation3], 0
    %19 = vsyncpa [#allocation5], 0
    // Predicated region
    $region2: #{reverser_forward.6} parent=1 // pred_check
      _
    $region3: #{reverser_forward.6} parent=1 // pred_check_branch
      %21 = sbr.rel (0) target = $region5
    $region4: #{reverser_forward.6} parent=1 // pred_region
      _
    $region5: #{reverser_forward.6} parent=1 // pred_fallthru
      _
    // Predicated region
    $region6: #{reverser_forward.6} parent=1 // pred_check
      _
    $region7: #{reverser_forward.6} parent=1 // pred_check_branch
      %23 = sbr.rel (0) target = $region9
    $region8: #{reverser_forward.6} parent=1 // pred_region
      _
    $region9: #{reverser_forward.6} parent=1 // pred_fallthru
      _
    // Predicated region
    $region10: #{reverser_forward.6} parent=1 // pred_check
      _
    $region11: #{reverser_forward.6} parent=1 // pred_check_branch
      %25 = sbr.rel (0) target = $region13
    $region12: #{reverser_forward.6} parent=1 // pred_region
      _
    $region13: #{reverser_forward.6} parent=1 // pred_fallthru
      _
    // Predicated region
    $region14: #{reverser_forward.6} parent=1 // pred_check
      _
    $region15: #{reverser_forward.6} parent=1 // pred_check_branch
      %27 = sbr.rel (0) target = $region17
    $region16: #{reverser_forward.6} parent=1 // pred_region
      _
    $region17: #{reverser_forward.6} parent=1 // pred_fallthru
      _
    // Predicated region
    $region18: #{reverser_forward.6} parent=1 // pred_check
      _
    $region19: #{reverser_forward.6} parent=1 // pred_check_branch
      %29 = sbr.rel (0) target = $region21
    $region20: #{reverser_forward.6} parent=1 // pred_region
      _
    $region21: #{reverser_forward.6} parent=1 // pred_fallthru
      _
    // Predicated region
    $region22: #{reverser_forward.6} parent=1 // pred_check
      _
    $region23: #{reverser_forward.6} parent=1 // pred_check_branch
      %31 = sbr.rel (0) target = $region25
    $region24: #{reverser_forward.6} parent=1 // pred_region
      _
    $region25: #{reverser_forward.6} parent=1 // pred_fallthru
      _
    // Predicated region
    $region26: #{reverser_forward.6} parent=1 // pred_check
      _
    $region27: #{reverser_forward.6} parent=1 // pred_check_branch
      %33 = sbr.rel (0) target = $region29
    $region28: #{reverser_forward.6} parent=1 // pred_region
      _
    $region29: #{reverser_forward.6} parent=1 // pred_fallthru
      _
    // Predicated region
    $region30: #{reverser_forward.6} parent=1 // pred_check
      _
    $region31: #{reverser_forward.6} parent=1 // pred_check_branch
      %35 = sbr.rel (0) target = $region33
    $region32: #{reverser_forward.6} parent=1 // pred_region
      _
    $region33: #{reverser_forward.6} parent=1 // pred_fallthru
      _
    // Predicated region
    $region34: #{reverser_forward.6} parent=1 // pred_check
      _
    $region35: #{reverser_forward.6} parent=1 // pred_check_branch
      %37 = sbr.rel (0) target = $region37
    $region36: #{reverser_forward.6} parent=1 // pred_region
      _
    $region37: #{reverser_forward.6} parent=1 // pred_fallthru
      _
    // Predicated region
    $region38: #{reverser_forward.6} parent=1 // pred_check
      _
    $region39: #{reverser_forward.6} parent=1 // pred_check_branch
      %39 = sbr.rel (0) target = $region41
    $region40: #{reverser_forward.6} parent=1 // pred_region
      _
    $region41: #{reverser_forward.6} parent=1 // pred_fallthru
      _
    // Predicated region
    $region42: #{reverser_forward.6} parent=1 // pred_check
      _
    $region43: #{reverser_forward.6} parent=1 // pred_check_branch
      %41 = sbr.rel (0) target = $region45
    $region44: #{reverser_forward.6} parent=1 // pred_region
      %s43 = ssub.s32 16, 16
      %44 = vsyncadd [#allocation3], %s43
      %s46 = sshll.u32 [#allocation2], 4
      %s47 = int_to_ptr.vmem [resolvable:$true] %s46
      %49 = dma.hbm_to_vmem [thread:$0]  %s10, 16, %s47, [#allocation3]
    $region45: #{reverser_forward.6} parent=1 // pred_fallthru
      _
    // Predicated region
    $region46: #{reverser_forward.6} parent=1 // pred_check
      _
    $region47: #{reverser_forward.6} parent=1 // pred_check_branch
      %51 = sbr.rel (0) target = $region49
    $region48: #{reverser_forward.6} parent=1 // pred_region
      _
    $region49: #{reverser_forward.6} parent=1 // pred_fallthru
      _
    // Predicated region
    $region50: #{reverser_forward.6} parent=1 // pred_check
      _
    $region51: #{reverser_forward.6} parent=1 // pred_check_branch
      %53 = sbr.rel (0) target = $region53
    $region52: #{reverser_forward.6} parent=1 // pred_region
      %s55 = ssub.s32 16, 16
      %56 = vsyncadd [#allocation5], %s55
      %s58 = sshll.u32 [#allocation4], 4
      %s59 = int_to_ptr.vmem [resolvable:$true] %s58
      %61 = dma.hbm_to_vmem [thread:$0]  %s12, 16, %s59, [#allocation5]
    $region53: #{reverser_forward.6} parent=1 // pred_fallthru
      _
    // Predicated region
    $region54: #{reverser_forward.6} parent=1 // pred_check
      _
    $region55: #{reverser_forward.6} parent=1 // pred_check_branch
      %63 = sbr.rel (0) target = $region57
    $region56: #{reverser_forward.6} parent=1 // pred_region
      %64 = dma.done [#allocation3], 16
    $region57: #{reverser_forward.6} parent=1 // pred_fallthru
      _
    // Predicated region
    $region58: #{reverser_forward.6} parent=1 // pred_check
      _
    $region59: #{reverser_forward.6} parent=1 // pred_check_branch
      %66 = sbr.rel (0) target = $region61
    $region60: #{reverser_forward.6} parent=1 // pred_region
      %67 = dma.done [#allocation5], 16
    $region61: #{reverser_forward.6} parent=1 // pred_fallthru
      _
    %v69 = vld [vmem:[%s0] sm:$0xff]
    %v70 = vld [vmem:[%s0 + $0x8] sm:$0xff]
    %v71 = vld [vmem:[%s0 + $0x10] sm:$0xff]
    %v72 = vld [vmem:[%s0 + $0x18] sm:$0xff]
    %v73 = vld [vmem:[%s0 + $0x20] sm:$0xf]
    %v74 = vpack.c.bf16 %v70, %v69
    %v75 = vpack.c.bf16 %v72, %v71
    %v76 = vpack.c.bf16 %v73, %v73
    %v77 = vld [vmem:[%s3] sm:$0xf]
    %v78 = vld [vmem:[%s3 + $0x4] sm:$0xf]
    %v79 = vld [vmem:[%s3 + $0x8] sm:$0xf]
    %v80 = vld [vmem:[%s3 + $0xc] sm:$0xf]
    %v81 = vld [vmem:[%s3 + $0x10] sm:$0xf]
    %v82 = vld [vmem:[%s3 + $0x14] sm:$0xf]
    %v83 = vld [vmem:[%s3 + $0x18] sm:$0xf]
    %v84 = vld [vmem:[%s3 + $0x1c] sm:$0xf]
    %v85 = vld [vmem:[%s4] sm:$0x7]
    %v86 = vlaneseq
    %v87 = vshrl.u32 %v86, 7
    %v88 = vsub.s32 0, %v87
    %v89 = vrot.slane %v85, %v88
    %v98 = vunpack.c.l.b16 %v77
    %v99 = vunpack.c.l.b16 %v78
    %v100 = vunpack.c.l.b16 %v79
    %v101 = vunpack.c.l.b16 %v80
    %v102 = vunpack.c.l.b16 %v81
    %v103 = vunpack.c.l.b16 %v82
    %v104 = vunpack.c.l.b16 %v83
    %v105 = vunpack.c.l.b16 %v84
    %v106 = vpack.c.b16 %v99, %v98
    %v107 = vpack.c.b16 %v101, %v100
    %v108 = vpack.c.b16 %v103, %v102
    %v109 = vpack.c.b16 %v105, %v104
    %vm114 = vcmask 523264
    %v116 = vsel %vm114, %v74, 0
    %v119 = vsel %vm114, %v75, 0
    %v122 = vsel %vm114, %v76, 0
    %124 = vmatprep.subr.bf16.mxu0 0
    %125 = vmatpush1.bf16.msra.mxu0 0
    %126 = vmatprep.subr.bf16.mxu0 0
    %127 = vmatpush1.bf16.msra.mxu0 0
    %128 = vmatprep.subr.bf16.mxu0 0
    %129 = vmatpush1.bf16.msra.mxu0 0
    %130 = vmatprep.subr.bf16.mxu0 0
    %131 = vmatpush1.bf16.msra.mxu0 0
    %132 = vmatprep.subr.bf16.mxu0 0
    %133 = vmatpush1.bf16.msra.mxu0 %v109
    %134 = vmatprep.subr.bf16.mxu0 0
    %135 = vmatpush1.bf16.msra.mxu0 %v108
    %136 = vmatprep.subr.bf16.mxu0 0
    %137 = vmatpush1.bf16.msra.mxu0 %v107
    %138 = vmatprep.subr.bf16.mxu0 0
    %139 = vmatpush1.bf16.msra.mxu0 %v106
    %140 = vmatprep.subr.bf16.mxu0 0
    %141 = vmatpush2.bf16.msra.mxu0 0
    %142 = vmatprep.subr.bf16.mxu0 0
    %143 = vmatpush2.bf16.msra.mxu0 0
    %144 = vmatprep.subr.bf16.mxu0 0
    %145 = vmatpush2.bf16.msra.mxu0 0
    %146 = vmatprep.subr.bf16.mxu0 0
    %147 = vmatpush2.bf16.msra.mxu0 0
    %148 = vmatprep.subr.bf16.mxu0 0
    %149 = vmatpush2.bf16.msra.mxu0 0
    %150 = vmatprep.subr.bf16.mxu0 0
    %151 = vmatpush2.bf16.msra.mxu0 0
    %152 = vmatprep.subr.bf16.mxu0 0
    %153 = vmatpush2.bf16.msra.mxu0 0
    %154 = vmatprep.subr.bf16.mxu0 0
    %155 = vmatpush2.bf16.msra.mxu0 0
    %156 = vmatprep.mubr.bf16.mxu0 0
    %157 = vmatmul.mubr.bf16.gmra.mxu0 %v116
    %v158 = vpop.f32.mrf.mxu0
    %v159 = vadd.f32 %v89, %v158
    %v160 = vpop.f32.mrf.mxu0
    %v161 = vpop.f32.mrf.mxu0
    %v162 = vadd.f32 %v89, %v161
    %v163 = vpop.f32.mrf.mxu0
    %164 = vmatprep.mubr.bf16.mxu0 0
    %165 = vmatmul.mubr.bf16.gmra.mxu0 %v119
    %v166 = vpop.f32.mrf.mxu0
    %v167 = vadd.f32 %v89, %v166
    %v168 = vpop.f32.mrf.mxu0
    %v169 = vpop.f32.mrf.mxu0
    %v170 = vadd.f32 %v89, %v169
    %v171 = vpop.f32.mrf.mxu0
    %172 = vmatprep.mubr.bf16.mxu0 0
    %173 = vmatmul.mubr.bf16.gmra.mxu0 %v122
    %v174 = vpop.f32.mrf.mxu0
    %v175 = vadd.f32 %v89, %v174
    %v176 = vpop.f32.mrf.mxu0
    %v177 = vpop.f32.mrf.mxu0
    %v178 = vpop.f32.mrf.mxu0
    %179 = vdwg.mxu0
    %v180 = vmax.f32 %v159, 0.0
    %v181 = vmax.f32 %v162, 0.0
    %v182 = vmax.f32 %v167, 0.0
    %v183 = vmax.f32 %v170, 0.0
    %v184 = vmax.f32 %v175, 0.0
    %v185 = vlaneseq
    %v186 = vshrl.u32 %v185, 7
    %v187 = vsub.s32 1, %v186
    %v188 = vrot.slane %v85, %v187
    %v189 = vmul.f32 %v180, %v188
    %v190 = vmul.f32 %v181, %v188
    %v191 = vmul.f32 %v182, %v188
    %v192 = vmul.f32 %v183, %v188
    %v193 = vmul.f32 %v184, %v188
    %v194 = vlaneseq
    %v195 = vshrl.u32 %v194, 7
    %v196 = vsub.s32 2, %v195
    %v197 = vrot.slane %v85, %v196
    %v198 = vadd.f32 %v189, %v197
    %v199 = vadd.f32 %v190, %v197
    %v200 = vadd.f32 %v191, %v197
    %v201 = vadd.f32 %v192, %v197
    %v202 = vadd.f32 %v193, %v197
    %v203 = vpack.c.bf16 %v199, %v198
    %v204 = vpack.c.bf16 %v201, %v200
    %v205 = vpack.c.bf16 %v202, %v202
    %v206 = vld [vmem:[%s7] sm:$0xf]
    %v207 = vld [vmem:[%s7 + $0x4] sm:$0xf]
    %v208 = vld [vmem:[%s1] sm:$0xff]
    %v209 = vld [vmem:[%s1 + $0x8] sm:$0xff]
    %v210 = vld [vmem:[%s1 + $0x10] sm:$0xff]
    %v211 = vld [vmem:[%s1 + $0x18] sm:$0xff]
    %v212 = vld [vmem:[%s1 + $0x20] sm:$0xf]
    %218 = vrot.lane.b32.xlu0 %v198, 112
    %v219 = vpop.permute.xlu0 %218
    %220 = vrot.lane.b32.xlu0 %v199, 112
    %v221 = vpop.permute.xlu0 %220
    %222 = vrot.lane.b32.xlu0 %v200, 112
    %v223 = vpop.permute.xlu0 %222
    %224 = vrot.lane.b32.xlu0 %v201, 112
    %v225 = vpop.permute.xlu0 %224
    %226 = vrot.lane.b32.xlu0 %v202, 112
    %v227 = vpop.permute.xlu0 %226
    %vm232 = vcmask 293888
    %v234 = vsel %vm232, %v208, 0
    %v237 = vsel %vm232, %v209, 0
    %v240 = vsel %vm232, %v210, 0
    %v243 = vsel %vm232, %v211, 0
    %v246 = vsel %vm232, %v212, 0
    %vm248 = vcmask 1043456
    %v249 = vsel %vm248, %v227, 0
    %251 = vmatprep.subr.mxu0 0.0
    %252 = vmatpush1.msra.mxu0 0.0
    %253 = vmatprep.subr.mxu0 0.0
    %254 = vmatpush1.msra.mxu0 0.0
    %255 = vmatprep.subr.mxu0 0.0
    %256 = vmatpush1.msra.mxu0 0.0
    %257 = vmatprep.subr.mxu0 0.0
    %258 = vmatpush1.msra.mxu0 0.0
    %259 = vmatprep.subr.mxu0 0.0
    %260 = vmatpush1.msra.mxu0 0.0
    %261 = vmatprep.subr.mxu0 0.0
    %262 = vmatpush1.msra.mxu0 0.0
    %263 = vmatprep.subr.mxu0 0.0
    %264 = vmatpush1.msra.mxu0 0.0
    %265 = vmatprep.subr.mxu0 0.0
    %266 = vmatpush1.msra.mxu0 0.0
    %267 = vmatprep.subr.mxu0 0.0
    %268 = vmatpush1.msra.mxu0 0.0
    %269 = vmatprep.subr.mxu0 0.0
    %270 = vmatpush1.msra.mxu0 0.0
    %271 = vmatprep.subr.mxu0 0.0
    %272 = vmatpush1.msra.mxu0 0.0
    %273 = vmatprep.subr.mxu0 0.0
    %274 = vmatpush1.msra.mxu0 %v249
    %275 = vmatprep.subr.mxu0 0.0
    %276 = vmatpush1.msra.mxu0 %v225
    %277 = vmatprep.subr.mxu0 0.0
    %278 = vmatpush1.msra.mxu0 %v223
    %279 = vmatprep.subr.mxu0 0.0
    %280 = vmatpush1.msra.mxu0 %v221
    %281 = vmatprep.subr.mxu0 0.0
    %282 = vmatpush1.msra.mxu0 %v219
    %283 = vmatprep.subr.mxu0 0.0
    %284 = vmatpush2.msra.mxu0 0.0
    %285 = vmatprep.subr.mxu0 0.0
    %286 = vmatpush2.msra.mxu0 0.0
    %287 = vmatprep.subr.mxu0 0.0
    %288 = vmatpush2.msra.mxu0 0.0
    %289 = vmatprep.subr.mxu0 0.0
    %290 = vmatpush2.msra.mxu0 0.0
    %291 = vmatprep.subr.mxu0 0.0
    %292 = vmatpush2.msra.mxu0 0.0
    %293 = vmatprep.subr.mxu0 0.0
    %294 = vmatpush2.msra.mxu0 0.0
    %295 = vmatprep.subr.mxu0 0.0
    %296 = vmatpush2.msra.mxu0 0.0
    %297 = vmatprep.subr.mxu0 0.0
    %298 = vmatpush2.msra.mxu0 0.0
    %299 = vmatprep.subr.mxu0 0.0
    %300 = vmatpush2.msra.mxu0 0.0
    %301 = vmatprep.subr.mxu0 0.0
    %302 = vmatpush2.msra.mxu0 0.0
    %303 = vmatprep.subr.mxu0 0.0
    %304 = vmatpush2.msra.mxu0 0.0
    %305 = vmatprep.subr.mxu0 0.0
    %306 = vmatpush2.msra.mxu0 0.0
    %307 = vmatprep.subr.mxu0 0.0
    %308 = vmatpush2.msra.mxu0 0.0
    %309 = vmatprep.subr.mxu0 0.0
    %310 = vmatpush2.msra.mxu0 0.0
    %311 = vmatprep.subr.mxu0 0.0
    %312 = vmatpush2.msra.mxu0 0.0
    %313 = vmatprep.subr.mxu0 0.0
    %314 = vmatpush2.msra.mxu0 0.0
    %315 = vmatprep.mubr.f32.mxu0 0.0
    %316 = vmatmul.mubr.f32.gmra.mxu0 %v234
    %v317 = vpop.f32.mrf.mxu0
    %v318 = vadd.f32 0.0, %v317
    %v319 = vpop.f32.mrf.mxu0
    %320 = vmatprep.mubr.f32.mxu0 0.0
    %321 = vmatmul.mubr.f32.gmra.mxu0 %v237
    %v322 = vpop.f32.mrf.mxu0
    %v323 = vadd.f32 0.0, %v322
    %v324 = vpop.f32.mrf.mxu0
    %325 = vmatprep.mubr.f32.mxu0 0.0
    %326 = vmatmul.mubr.f32.gmra.mxu0 %v240
    %v327 = vpop.f32.mrf.mxu0
    %v328 = vadd.f32 0.0, %v327
    %v329 = vpop.f32.mrf.mxu0
    %330 = vmatprep.mubr.f32.mxu0 0.0
    %331 = vmatmul.mubr.f32.gmra.mxu0 %v243
    %v332 = vpop.f32.mrf.mxu0
    %v333 = vadd.f32 0.0, %v332
    %v334 = vpop.f32.mrf.mxu0
    %335 = vmatprep.mubr.f32.mxu0 0.0
    %336 = vmatmul.mubr.f32.gmra.mxu0 %v246
    %v337 = vpop.f32.mrf.mxu0
    %v338 = vadd.f32 0.0, %v337
    %v339 = vpop.f32.mrf.mxu0
    %340 = vdwg.mxu0
    %v341 = vpack.c.bf16 %v323, %v318
    %v342 = vpack.c.bf16 %v333, %v328
    %v343 = vpack.c.bf16 %v338, %v338
    %v344 = vld [vmem:[%s5] sm:$0xf]
    %v345 = vld [vmem:[%s5 + $0x4] sm:$0xf]
    %s346 = scalar_lea.vmem %s1, 40
    %v347 = vld [vmem:[%s346] sm:$0xff]
    %v348 = vld [vmem:[%s346 + $0x8] sm:$0xff]
    %v349 = vld [vmem:[%s346 + $0x10] sm:$0xff]
    %v350 = vld [vmem:[%s346 + $0x18] sm:$0xff]
    %v351 = vld [vmem:[%s346 + $0x20] sm:$0xf]
    %v353 = vsel %vm232, %v347, 0
    %v356 = vsel %vm232, %v348, 0
    %v359 = vsel %vm232, %v349, 0
    %v362 = vsel %vm232, %v350, 0
    %v365 = vsel %vm232, %v351, 0
    %367 = vmatprep.subr.mxu0 0.0
    %368 = vmatpush1.msra.mxu0 0.0
    %369 = vmatprep.subr.mxu0 0.0
    %370 = vmatpush1.msra.mxu0 0.0
    %371 = vmatprep.subr.mxu0 0.0
    %372 = vmatpush1.msra.mxu0 0.0
    %373 = vmatprep.subr.mxu0 0.0
    %374 = vmatpush1.msra.mxu0 0.0
    %375 = vmatprep.subr.mxu0 0.0
    %376 = vmatpush1.msra.mxu0 0.0
    %377 = vmatprep.subr.mxu0 0.0
    %378 = vmatpush1.msra.mxu0 0.0
    %379 = vmatprep.subr.mxu0 0.0
    %380 = vmatpush1.msra.mxu0 0.0
    %381 = vmatprep.subr.mxu0 0.0
    %382 = vmatpush1.msra.mxu0 0.0
    %383 = vmatprep.subr.mxu0 0.0
    %384 = vmatpush1.msra.mxu0 0.0
    %385 = vmatprep.subr.mxu0 0.0
    %386 = vmatpush1.msra.mxu0 0.0
    %387 = vmatprep.subr.mxu0 0.0
    %388 = vmatpush1.msra.mxu0 0.0
    %389 = vmatprep.subr.mxu0 0.0
    %390 = vmatpush1.msra.mxu0 %v249
    %391 = vmatprep.subr.mxu0 0.0
    %392 = vmatpush1.msra.mxu0 %v225
    %393 = vmatprep.subr.mxu0 0.0
    %394 = vmatpush1.msra.mxu0 %v223
    %395 = vmatprep.subr.mxu0 0.0
    %396 = vmatpush1.msra.mxu0 %v221
    %397 = vmatprep.subr.mxu0 0.0
    %398 = vmatpush1.msra.mxu0 %v219
    %399 = vmatprep.subr.mxu0 0.0
    %400 = vmatpush2.msra.mxu0 0.0
    %401 = vmatprep.subr.mxu0 0.0
    %402 = vmatpush2.msra.mxu0 0.0
    %403 = vmatprep.subr.mxu0 0.0
    %404 = vmatpush2.msra.mxu0 0.0
    %405 = vmatprep.subr.mxu0 0.0
    %406 = vmatpush2.msra.mxu0 0.0
    %407 = vmatprep.subr.mxu0 0.0
    %408 = vmatpush2.msra.mxu0 0.0
    %409 = vmatprep.subr.mxu0 0.0
    %410 = vmatpush2.msra.mxu0 0.0
    %411 = vmatprep.subr.mxu0 0.0
    %412 = vmatpush2.msra.mxu0 0.0
    %413 = vmatprep.subr.mxu0 0.0
    %414 = vmatpush2.msra.mxu0 0.0
    %415 = vmatprep.subr.mxu0 0.0
    %416 = vmatpush2.msra.mxu0 0.0
    %417 = vmatprep.subr.mxu0 0.0
    %418 = vmatpush2.msra.mxu0 0.0
    %419 = vmatprep.subr.mxu0 0.0
    %420 = vmatpush2.msra.mxu0 0.0
    %421 = vmatprep.subr.mxu0 0.0
    %422 = vmatpush2.msra.mxu0 0.0
    %423 = vmatprep.subr.mxu0 0.0
    %424 = vmatpush2.msra.mxu0 0.0
    %425 = vmatprep.subr.mxu0 0.0
    %426 = vmatpush2.msra.mxu0 0.0
    %427 = vmatprep.subr.mxu0 0.0
    %428 = vmatpush2.msra.mxu0 0.0
    %429 = vmatprep.subr.mxu0 0.0
    %430 = vmatpush2.msra.mxu0 0.0
    %431 = vmatprep.mubr.f32.mxu0 0.0
    %432 = vmatmul.mubr.f32.gmra.mxu0 %v353
    %v433 = vpop.f32.mrf.mxu0
    %v434 = vadd.f32 0.0, %v433
    %v435 = vpop.f32.mrf.mxu0
    %436 = vmatprep.mubr.f32.mxu0 0.0
    %437 = vmatmul.mubr.f32.gmra.mxu0 %v356
    %v438 = vpop.f32.mrf.mxu0
    %v439 = vadd.f32 0.0, %v438
    %v440 = vpop.f32.mrf.mxu0
    %441 = vmatprep.mubr.f32.mxu0 0.0
    %442 = vmatmul.mubr.f32.gmra.mxu0 %v359
    %v443 = vpop.f32.mrf.mxu0
    %v444 = vadd.f32 0.0, %v443
    %v445 = vpop.f32.mrf.mxu0
    %446 = vmatprep.mubr.f32.mxu0 0.0
    %447 = vmatmul.mubr.f32.gmra.mxu0 %v362
    %v448 = vpop.f32.mrf.mxu0
    %v449 = vadd.f32 0.0, %v448
    %v450 = vpop.f32.mrf.mxu0
    %451 = vmatprep.mubr.f32.mxu0 0.0
    %452 = vmatmul.mubr.f32.gmra.mxu0 %v365
    %v453 = vpop.f32.mrf.mxu0
    %v454 = vadd.f32 0.0, %v453
    %v455 = vpop.f32.mrf.mxu0
    %456 = vdwg.mxu0
    %v457 = vpack.c.bf16 %v439, %v434
    %v458 = vpack.c.bf16 %v449, %v444
    %v459 = vpack.c.bf16 %v454, %v454
    %s460 = scalar_lea.vmem %s5, 8
    %v461 = vld [vmem:[%s460] sm:$0xf]
    %v462 = vld [vmem:[%s460 + $0x4] sm:$0xf]
    %v465 = vunpack.c.l.b16 %v461
    %v466 = vunpack.c.l.b16 %v462
    %v467 = vpack.c.b16 %v466, %v465
    %vm469 = vcmask 130048
    %v471 = vsel %vm469, %v457, 0
    %v474 = vsel %vm469, %v458, 0
    %v477 = vsel %vm469, %v459, 0
    %479 = vmatprep.subr.bf16.mxu0 0
    %480 = vmatpush1.bf16.msra.mxu0 0
    %481 = vmatprep.subr.bf16.mxu0 0
    %482 = vmatpush1.bf16.msra.mxu0 0
    %483 = vmatprep.subr.bf16.mxu0 0
    %484 = vmatpush1.bf16.msra.mxu0 0
    %485 = vmatprep.subr.bf16.mxu0 0
    %486 = vmatpush1.bf16.msra.mxu0 0
    %487 = vmatprep.subr.bf16.mxu0 0
    %488 = vmatpush1.bf16.msra.mxu0 0
    %489 = vmatprep.subr.bf16.mxu0 0
    %490 = vmatpush1.bf16.msra.mxu0 0
    %491 = vmatprep.subr.bf16.mxu0 0
    %492 = vmatpush1.bf16.msra.mxu0 0
    %493 = vmatprep.subr.bf16.mxu0 0
    %494 = vmatpush1.bf16.msra.mxu0 %v467
    %495 = vmatprep.subr.bf16.mxu0 0
    %496 = vmatpush2.bf16.msra.mxu0 0
    %497 = vmatprep.subr.bf16.mxu0 0
    %498 = vmatpush2.bf16.msra.mxu0 0
    %499 = vmatprep.subr.bf16.mxu0 0
    %500 = vmatpush2.bf16.msra.mxu0 0
    %501 = vmatprep.subr.bf16.mxu0 0
    %502 = vmatpush2.bf16.msra.mxu0 0
    %503 = vmatprep.subr.bf16.mxu0 0
    %504 = vmatpush2.bf16.msra.mxu0 0
    %505 = vmatprep.subr.bf16.mxu0 0
    %506 = vmatpush2.bf16.msra.mxu0 0
    %507 = vmatprep.subr.bf16.mxu0 0
    %508 = vmatpush2.bf16.msra.mxu0 0
    %509 = vmatprep.subr.bf16.mxu0 0
    %510 = vmatpush2.bf16.msra.mxu0 0
    %511 = vmatprep.mubr.bf16.mxu0 0
    %512 = vmatmul.mubr.bf16.gmra.mxu0 %v471
    %v513 = vpop.f32.mrf.mxu0
    %v514 = vadd.f32 0.0, %v513
    %v515 = vpop.f32.mrf.mxu0
    %v516 = vpop.f32.mrf.mxu0
    %v517 = vadd.f32 0.0, %v516
    %v518 = vpop.f32.mrf.mxu0
    %519 = vmatprep.mubr.bf16.mxu0 0
    %520 = vmatmul.mubr.bf16.gmra.mxu0 %v474
    %v521 = vpop.f32.mrf.mxu0
    %v522 = vadd.f32 0.0, %v521
    %v523 = vpop.f32.mrf.mxu0
    %v524 = vpop.f32.mrf.mxu0
    %v525 = vadd.f32 0.0, %v524
    %v526 = vpop.f32.mrf.mxu0
    %527 = vmatprep.mubr.bf16.mxu0 0
    %528 = vmatmul.mubr.bf16.gmra.mxu0 %v477
    %v529 = vpop.f32.mrf.mxu0
    %v530 = vadd.f32 0.0, %v529
    %v531 = vpop.f32.mrf.mxu0
    %v532 = vpop.f32.mrf.mxu0
    %v533 = vpop.f32.mrf.mxu0
    %534 = vdwg.mxu0
    %v537 = vunpack.c.l.b16 %v344
    %v538 = vunpack.c.l.b16 %v345
    %v539 = vpack.c.b16 %v538, %v537
    %v542 = vsel %vm469, %v341, 0
    %v545 = vsel %vm469, %v342, 0
    %v548 = vsel %vm469, %v343, 0
    %550 = vmatprep.subr.bf16.mxu0 0
    %551 = vmatpush1.bf16.msra.mxu0 0
    %552 = vmatprep.subr.bf16.mxu0 0
    %553 = vmatpush1.bf16.msra.mxu0 0
    %554 = vmatprep.subr.bf16.mxu0 0
    %555 = vmatpush1.bf16.msra.mxu0 0
    %556 = vmatprep.subr.bf16.mxu0 0
    %557 = vmatpush1.bf16.msra.mxu0 0
    %558 = vmatprep.subr.bf16.mxu0 0
    %559 = vmatpush1.bf16.msra.mxu0 0
    %560 = vmatprep.subr.bf16.mxu0 0
    %561 = vmatpush1.bf16.msra.mxu0 0
    %562 = vmatprep.subr.bf16.mxu0 0
    %563 = vmatpush1.bf16.msra.mxu0 0
    %564 = vmatprep.subr.bf16.mxu0 0
    %565 = vmatpush1.bf16.msra.mxu0 %v539
    %566 = vmatprep.subr.bf16.mxu0 0
    %567 = vmatpush2.bf16.msra.mxu0 0
    %568 = vmatprep.subr.bf16.mxu0 0
    %569 = vmatpush2.bf16.msra.mxu0 0
    %570 = vmatprep.subr.bf16.mxu0 0
    %571 = vmatpush2.bf16.msra.mxu0 0
    %572 = vmatprep.subr.bf16.mxu0 0
    %573 = vmatpush2.bf16.msra.mxu0 0
    %574 = vmatprep.subr.bf16.mxu0 0
    %575 = vmatpush2.bf16.msra.mxu0 0
    %576 = vmatprep.subr.bf16.mxu0 0
    %577 = vmatpush2.bf16.msra.mxu0 0
    %578 = vmatprep.subr.bf16.mxu0 0
    %579 = vmatpush2.bf16.msra.mxu0 0
    %580 = vmatprep.subr.bf16.mxu0 0
    %581 = vmatpush2.bf16.msra.mxu0 0
    %582 = vmatprep.mubr.bf16.mxu0 0
    %583 = vmatmul.mubr.bf16.gmra.mxu0 %v542
    %v584 = vpop.f32.mrf.mxu0
    %v585 = vadd.f32 %v514, %v584
    %v586 = vpop.f32.mrf.mxu0
    %v587 = vpop.f32.mrf.mxu0
    %v588 = vadd.f32 %v517, %v587
    %v589 = vpop.f32.mrf.mxu0
    %590 = vmatprep.mubr.bf16.mxu0 0
    %591 = vmatmul.mubr.bf16.gmra.mxu0 %v545
    %v592 = vpop.f32.mrf.mxu0
    %v593 = vadd.f32 %v522, %v592
    %v594 = vpop.f32.mrf.mxu0
    %v595 = vpop.f32.mrf.mxu0
    %v596 = vadd.f32 %v525, %v595
    %v597 = vpop.f32.mrf.mxu0
    %598 = vmatprep.mubr.bf16.mxu0 0
    %599 = vmatmul.mubr.bf16.gmra.mxu0 %v548
    %v600 = vpop.f32.mrf.mxu0
    %v601 = vadd.f32 %v530, %v600
    %v602 = vpop.f32.mrf.mxu0
    %v603 = vpop.f32.mrf.mxu0
    %v604 = vpop.f32.mrf.mxu0
    %605 = vdwg.mxu0
    %s606 = scalar_lea.vmem %s1, 80
    %v607 = vld [vmem:[%s606] sm:$0xff]
    %v608 = vld [vmem:[%s606 + $0x8] sm:$0xff]
    %v609 = vld [vmem:[%s606 + $0x10] sm:$0xff]
    %v610 = vld [vmem:[%s606 + $0x18] sm:$0xff]
    %v611 = vld [vmem:[%s606 + $0x20] sm:$0xf]
    %v613 = vsel %vm232, %v607, 0
    %v616 = vsel %vm232, %v608, 0
    %v619 = vsel %vm232, %v609, 0
    %v622 = vsel %vm232, %v610, 0
    %v625 = vsel %vm232, %v611, 0
    %627 = vmatprep.subr.mxu0 0.0
    %628 = vmatpush1.msra.mxu0 0.0
    %629 = vmatprep.subr.mxu0 0.0
    %630 = vmatpush1.msra.mxu0 0.0
    %631 = vmatprep.subr.mxu0 0.0
    %632 = vmatpush1.msra.mxu0 0.0
    %633 = vmatprep.subr.mxu0 0.0
    %634 = vmatpush1.msra.mxu0 0.0
    %635 = vmatprep.subr.mxu0 0.0
    %636 = vmatpush1.msra.mxu0 0.0
    %637 = vmatprep.subr.mxu0 0.0
    %638 = vmatpush1.msra.mxu0 0.0
    %639 = vmatprep.subr.mxu0 0.0
    %640 = vmatpush1.msra.mxu0 0.0
    %641 = vmatprep.subr.mxu0 0.0
    %642 = vmatpush1.msra.mxu0 0.0
    %643 = vmatprep.subr.mxu0 0.0
    %644 = vmatpush1.msra.mxu0 0.0
    %645 = vmatprep.subr.mxu0 0.0
    %646 = vmatpush1.msra.mxu0 0.0
    %647 = vmatprep.subr.mxu0 0.0
    %648 = vmatpush1.msra.mxu0 0.0
    %649 = vmatprep.subr.mxu0 0.0
    %650 = vmatpush1.msra.mxu0 %v249
    %651 = vmatprep.subr.mxu0 0.0
    %652 = vmatpush1.msra.mxu0 %v225
    %653 = vmatprep.subr.mxu0 0.0
    %654 = vmatpush1.msra.mxu0 %v223
    %655 = vmatprep.subr.mxu0 0.0
    %656 = vmatpush1.msra.mxu0 %v221
    %657 = vmatprep.subr.mxu0 0.0
    %658 = vmatpush1.msra.mxu0 %v219
    %659 = vmatprep.subr.mxu0 0.0
    %660 = vmatpush2.msra.mxu0 0.0
    %661 = vmatprep.subr.mxu0 0.0
    %662 = vmatpush2.msra.mxu0 0.0
    %663 = vmatprep.subr.mxu0 0.0
    %664 = vmatpush2.msra.mxu0 0.0
    %665 = vmatprep.subr.mxu0 0.0
    %666 = vmatpush2.msra.mxu0 0.0
    %667 = vmatprep.subr.mxu0 0.0
    %668 = vmatpush2.msra.mxu0 0.0
    %669 = vmatprep.subr.mxu0 0.0
    %670 = vmatpush2.msra.mxu0 0.0
    %671 = vmatprep.subr.mxu0 0.0
    %672 = vmatpush2.msra.mxu0 0.0
    %673 = vmatprep.subr.mxu0 0.0
    %674 = vmatpush2.msra.mxu0 0.0
    %675 = vmatprep.subr.mxu0 0.0
    %676 = vmatpush2.msra.mxu0 0.0
    %677 = vmatprep.subr.mxu0 0.0
    %678 = vmatpush2.msra.mxu0 0.0
    %679 = vmatprep.subr.mxu0 0.0
    %680 = vmatpush2.msra.mxu0 0.0
    %681 = vmatprep.subr.mxu0 0.0
    %682 = vmatpush2.msra.mxu0 0.0
    %683 = vmatprep.subr.mxu0 0.0
    %684 = vmatpush2.msra.mxu0 0.0
    %685 = vmatprep.subr.mxu0 0.0
    %686 = vmatpush2.msra.mxu0 0.0
    %687 = vmatprep.subr.mxu0 0.0
    %688 = vmatpush2.msra.mxu0 0.0
    %689 = vmatprep.subr.mxu0 0.0
    %690 = vmatpush2.msra.mxu0 0.0
    %691 = vmatprep.mubr.f32.mxu0 0.0
    %692 = vmatmul.mubr.f32.gmra.mxu0 %v613
    %v693 = vpop.f32.mrf.mxu0
    %v694 = vadd.f32 0.0, %v693
    %v695 = vpop.f32.mrf.mxu0
    %696 = vmatprep.mubr.f32.mxu0 0.0
    %697 = vmatmul.mubr.f32.gmra.mxu0 %v616
    %v698 = vpop.f32.mrf.mxu0
    %v699 = vadd.f32 0.0, %v698
    %v700 = vpop.f32.mrf.mxu0
    %701 = vmatprep.mubr.f32.mxu0 0.0
    %702 = vmatmul.mubr.f32.gmra.mxu0 %v619
    %v703 = vpop.f32.mrf.mxu0
    %v704 = vadd.f32 0.0, %v703
    %v705 = vpop.f32.mrf.mxu0
    %706 = vmatprep.mubr.f32.mxu0 0.0
    %707 = vmatmul.mubr.f32.gmra.mxu0 %v622
    %v708 = vpop.f32.mrf.mxu0
    %v709 = vadd.f32 0.0, %v708
    %v710 = vpop.f32.mrf.mxu0
    %711 = vmatprep.mubr.f32.mxu0 0.0
    %712 = vmatmul.mubr.f32.gmra.mxu0 %v625
    %v713 = vpop.f32.mrf.mxu0
    %v714 = vadd.f32 0.0, %v713
    %v715 = vpop.f32.mrf.mxu0
    %716 = vdwg.mxu0
    %v717 = vpack.c.bf16 %v699, %v694
    %v718 = vpack.c.bf16 %v709, %v704
    %v719 = vpack.c.bf16 %v714, %v714
    %s720 = scalar_lea.vmem %s5, 16
    %v721 = vld [vmem:[%s720] sm:$0xf]
    %v722 = vld [vmem:[%s720 + $0x4] sm:$0xf]
    %v725 = vunpack.c.l.b16 %v721
    %v726 = vunpack.c.l.b16 %v722
    %v727 = vpack.c.b16 %v726, %v725
    %v730 = vsel %vm469, %v717, 0
    %v733 = vsel %vm469, %v718, 0
    %v736 = vsel %vm469, %v719, 0
    %738 = vmatprep.subr.bf16.mxu0 0
    %739 = vmatpush1.bf16.msra.mxu0 0
    %740 = vmatprep.subr.bf16.mxu0 0
    %741 = vmatpush1.bf16.msra.mxu0 0
    %742 = vmatprep.subr.bf16.mxu0 0
    %743 = vmatpush1.bf16.msra.mxu0 0
    %744 = vmatprep.subr.bf16.mxu0 0
    %745 = vmatpush1.bf16.msra.mxu0 0
    %746 = vmatprep.subr.bf16.mxu0 0
    %747 = vmatpush1.bf16.msra.mxu0 0
    %748 = vmatprep.subr.bf16.mxu0 0
    %749 = vmatpush1.bf16.msra.mxu0 0
    %750 = vmatprep.subr.bf16.mxu0 0
    %751 = vmatpush1.bf16.msra.mxu0 0
    %752 = vmatprep.subr.bf16.mxu0 0
    %753 = vmatpush1.bf16.msra.mxu0 %v727
    %754 = vmatprep.subr.bf16.mxu0 0
    %755 = vmatpush2.bf16.msra.mxu0 0
    %756 = vmatprep.subr.bf16.mxu0 0
    %757 = vmatpush2.bf16.msra.mxu0 0
    %758 = vmatprep.subr.bf16.mxu0 0
    %759 = vmatpush2.bf16.msra.mxu0 0
    %760 = vmatprep.subr.bf16.mxu0 0
    %761 = vmatpush2.bf16.msra.mxu0 0
    %762 = vmatprep.subr.bf16.mxu0 0
    %763 = vmatpush2.bf16.msra.mxu0 0
    %764 = vmatprep.subr.bf16.mxu0 0
    %765 = vmatpush2.bf16.msra.mxu0 0
    %766 = vmatprep.subr.bf16.mxu0 0
    %767 = vmatpush2.bf16.msra.mxu0 0
    %768 = vmatprep.subr.bf16.mxu0 0
    %769 = vmatpush2.bf16.msra.mxu0 0
    %770 = vmatprep.mubr.bf16.mxu0 0
    %771 = vmatmul.mubr.bf16.gmra.mxu0 %v730
    %v772 = vpop.f32.mrf.mxu0
    %v773 = vadd.f32 0.0, %v772
    %v774 = vpop.f32.mrf.mxu0
    %v775 = vpop.f32.mrf.mxu0
    %v776 = vadd.f32 0.0, %v775
    %v777 = vpop.f32.mrf.mxu0
    %778 = vmatprep.mubr.bf16.mxu0 0
    %779 = vmatmul.mubr.bf16.gmra.mxu0 %v733
    %v780 = vpop.f32.mrf.mxu0
    %v781 = vadd.f32 0.0, %v780
    %v782 = vpop.f32.mrf.mxu0
    %v783 = vpop.f32.mrf.mxu0
    %v784 = vadd.f32 0.0, %v783
    %v785 = vpop.f32.mrf.mxu0
    %786 = vmatprep.mubr.bf16.mxu0 0
    %787 = vmatmul.mubr.bf16.gmra.mxu0 %v736
    %v788 = vpop.f32.mrf.mxu0
    %v789 = vadd.f32 0.0, %v788
    %v790 = vpop.f32.mrf.mxu0
    %v791 = vpop.f32.mrf.mxu0
    %v792 = vpop.f32.mrf.mxu0
    %793 = vdwg.mxu0
    %v794 = vadd.f32 %v585, %v773
    %v795 = vadd.f32 %v588, %v776
    %v796 = vadd.f32 %v593, %v781
    %v797 = vadd.f32 %v596, %v784
    %v798 = vadd.f32 %v601, %v789
    %v799 = vld [vmem:[%s6] sm:$0x7]
    %v800 = vlaneseq
    %v801 = vshrl.u32 %v800, 7
    %v802 = vsub.s32 0, %v801
    %v803 = vrot.slane %v799, %v802
    %v804 = vadd.f32 %v794, %v803
    %v805 = vadd.f32 %v795, %v803
    %v806 = vadd.f32 %v796, %v803
    %v807 = vadd.f32 %v797, %v803
    %v808 = vadd.f32 %v798, %v803
    %v809 = vmax.f32 %v804, 0.0
    %v810 = vmax.f32 %v805, 0.0
    %v811 = vmax.f32 %v806, 0.0
    %v812 = vmax.f32 %v807, 0.0
    %v813 = vmax.f32 %v808, 0.0
    %v814 = vlaneseq
    %v815 = vshrl.u32 %v814, 7
    %v816 = vsub.s32 1, %v815
    %v817 = vrot.slane %v799, %v816
    %v818 = vmul.f32 %v809, %v817
    %v819 = vmul.f32 %v810, %v817
    %v820 = vmul.f32 %v811, %v817
    %v821 = vmul.f32 %v812, %v817
    %v822 = vmul.f32 %v813, %v817
    %v823 = vlaneseq
    %v824 = vshrl.u32 %v823, 7
    %v825 = vsub.s32 2, %v824
    %v826 = vrot.slane %v799, %v825
    %v827 = vadd.f32 %v818, %v826
    %v828 = vadd.f32 %v819, %v826
    %v829 = vadd.f32 %v820, %v826
    %v830 = vadd.f32 %v821, %v826
    %v831 = vadd.f32 %v822, %v826
    %v832 = vpack.c.bf16 %v828, %v827
    %v833 = vpack.c.bf16 %v830, %v829
    %v834 = vpack.c.bf16 %v831, %v831
    %v835 = vld [vmem:[%s7 + $0x8] sm:$0xf]
    %v836 = vld [vmem:[%s7 + $0xc] sm:$0xf]
    %v839 = vunpack.c.l.b16 %v835
    %v840 = vunpack.c.l.b16 %v836
    %v841 = vpack.c.b16 %v840, %v839
    %v844 = vsel %vm469, %v832, 0
    %v847 = vsel %vm469, %v833, 0
    %v850 = vsel %vm469, %v834, 0
    %852 = vmatprep.subr.bf16.mxu0 0
    %853 = vmatpush1.bf16.msra.mxu0 0
    %854 = vmatprep.subr.bf16.mxu0 0
    %855 = vmatpush1.bf16.msra.mxu0 0
    %856 = vmatprep.subr.bf16.mxu0 0
    %857 = vmatpush1.bf16.msra.mxu0 0
    %858 = vmatprep.subr.bf16.mxu0 0
    %859 = vmatpush1.bf16.msra.mxu0 0
    %860 = vmatprep.subr.bf16.mxu0 0
    %861 = vmatpush1.bf16.msra.mxu0 0
    %862 = vmatprep.subr.bf16.mxu0 0
    %863 = vmatpush1.bf16.msra.mxu0 0
    %864 = vmatprep.subr.bf16.mxu0 0
    %865 = vmatpush1.bf16.msra.mxu0 0
    %866 = vmatprep.subr.bf16.mxu0 0
    %867 = vmatpush1.bf16.msra.mxu0 %v841
    %868 = vmatprep.subr.bf16.mxu0 0
    %869 = vmatpush2.bf16.msra.mxu0 0
    %870 = vmatprep.subr.bf16.mxu0 0
    %871 = vmatpush2.bf16.msra.mxu0 0
    %872 = vmatprep.subr.bf16.mxu0 0
    %873 = vmatpush2.bf16.msra.mxu0 0
    %874 = vmatprep.subr.bf16.mxu0 0
    %875 = vmatpush2.bf16.msra.mxu0 0
    %876 = vmatprep.subr.bf16.mxu0 0
    %877 = vmatpush2.bf16.msra.mxu0 0
    %878 = vmatprep.subr.bf16.mxu0 0
    %879 = vmatpush2.bf16.msra.mxu0 0
    %880 = vmatprep.subr.bf16.mxu0 0
    %881 = vmatpush2.bf16.msra.mxu0 0
    %882 = vmatprep.subr.bf16.mxu0 0
    %883 = vmatpush2.bf16.msra.mxu0 0
    %884 = vmatprep.mubr.bf16.mxu0 0
    %885 = vmatmul.mubr.bf16.gmra.mxu0 %v844
    %v886 = vpop.f32.mrf.mxu0
    %v887 = vadd.f32 0.0, %v886
    %v888 = vpop.f32.mrf.mxu0
    %v889 = vpop.f32.mrf.mxu0
    %v890 = vadd.f32 0.0, %v889
    %v891 = vpop.f32.mrf.mxu0
    %892 = vmatprep.mubr.bf16.mxu0 0
    %893 = vmatmul.mubr.bf16.gmra.mxu0 %v847
    %v894 = vpop.f32.mrf.mxu0
    %v895 = vadd.f32 0.0, %v894
    %v896 = vpop.f32.mrf.mxu0
    %v897 = vpop.f32.mrf.mxu0
    %v898 = vadd.f32 0.0, %v897
    %v899 = vpop.f32.mrf.mxu0
    %900 = vmatprep.mubr.bf16.mxu0 0
    %901 = vmatmul.mubr.bf16.gmra.mxu0 %v850
    %v902 = vpop.f32.mrf.mxu0
    %v903 = vadd.f32 0.0, %v902
    %v904 = vpop.f32.mrf.mxu0
    %v905 = vpop.f32.mrf.mxu0
    %v906 = vpop.f32.mrf.mxu0
    %907 = vdwg.mxu0
    %v910 = vunpack.c.l.b16 %v206
    %v911 = vunpack.c.l.b16 %v207
    %v912 = vpack.c.b16 %v911, %v910
    %v915 = vsel %vm469, %v203, 0
    %v918 = vsel %vm469, %v204, 0
    %v921 = vsel %vm469, %v205, 0
    %923 = vmatprep.subr.bf16.mxu0 0
    %924 = vmatpush1.bf16.msra.mxu0 0
    %925 = vmatprep.subr.bf16.mxu0 0
    %926 = vmatpush1.bf16.msra.mxu0 0
    %927 = vmatprep.subr.bf16.mxu0 0
    %928 = vmatpush1.bf16.msra.mxu0 0
    %929 = vmatprep.subr.bf16.mxu0 0
    %930 = vmatpush1.bf16.msra.mxu0 0
    %931 = vmatprep.subr.bf16.mxu0 0
    %932 = vmatpush1.bf16.msra.mxu0 0
    %933 = vmatprep.subr.bf16.mxu0 0
    %934 = vmatpush1.bf16.msra.mxu0 0
    %935 = vmatprep.subr.bf16.mxu0 0
    %936 = vmatpush1.bf16.msra.mxu0 0
    %937 = vmatprep.subr.bf16.mxu0 0
    %938 = vmatpush1.bf16.msra.mxu0 %v912
    %939 = vmatprep.subr.bf16.mxu0 0
    %940 = vmatpush2.bf16.msra.mxu0 0
    %941 = vmatprep.subr.bf16.mxu0 0
    %942 = vmatpush2.bf16.msra.mxu0 0
    %943 = vmatprep.subr.bf16.mxu0 0
    %944 = vmatpush2.bf16.msra.mxu0 0
    %945 = vmatprep.subr.bf16.mxu0 0
    %946 = vmatpush2.bf16.msra.mxu0 0
    %947 = vmatprep.subr.bf16.mxu0 0
    %948 = vmatpush2.bf16.msra.mxu0 0
    %949 = vmatprep.subr.bf16.mxu0 0
    %950 = vmatpush2.bf16.msra.mxu0 0
    %951 = vmatprep.subr.bf16.mxu0 0
    %952 = vmatpush2.bf16.msra.mxu0 0
    %953 = vmatprep.subr.bf16.mxu0 0
    %954 = vmatpush2.bf16.msra.mxu0 0
    %955 = vmatprep.mubr.bf16.mxu0 0
    %956 = vmatmul.mubr.bf16.gmra.mxu0 %v915
    %v957 = vpop.f32.mrf.mxu0
    %v958 = vadd.f32 %v887, %v957
    %v959 = vpop.f32.mrf.mxu0
    %v960 = vpop.f32.mrf.mxu0
    %v961 = vadd.f32 %v890, %v960
    %v962 = vpop.f32.mrf.mxu0
    %963 = vmatprep.mubr.bf16.mxu0 0
    %964 = vmatmul.mubr.bf16.gmra.mxu0 %v918
    %v965 = vpop.f32.mrf.mxu0
    %v966 = vadd.f32 %v895, %v965
    %v967 = vpop.f32.mrf.mxu0
    %v968 = vpop.f32.mrf.mxu0
    %v969 = vadd.f32 %v898, %v968
    %v970 = vpop.f32.mrf.mxu0
    %971 = vmatprep.mubr.bf16.mxu0 0
    %972 = vmatmul.mubr.bf16.gmra.mxu0 %v921
    %v973 = vpop.f32.mrf.mxu0
    %v974 = vadd.f32 %v903, %v973
    %v975 = vpop.f32.mrf.mxu0
    %v976 = vpop.f32.mrf.mxu0
    %v977 = vpop.f32.mrf.mxu0
    %978 = vdwg.mxu0
    %984 = vrot.lane.b32.xlu0 %v827, 32
    %v985 = vpop.permute.xlu0 %984
    %986 = vrot.lane.b32.xlu0 %v828, 32
    %v987 = vpop.permute.xlu0 %986
    %988 = vrot.lane.b32.xlu0 %v829, 32
    %v989 = vpop.permute.xlu0 %988
    %990 = vrot.lane.b32.xlu0 %v830, 32
    %v991 = vpop.permute.xlu0 %990
    %992 = vrot.lane.b32.xlu0 %v831, 32
    %v993 = vpop.permute.xlu0 %992
    %v999 = vadd.f32 %v198, %v985
    %v1000 = vadd.f32 %v199, %v987
    %v1001 = vadd.f32 %v200, %v989
    %v1002 = vadd.f32 %v201, %v991
    %v1003 = vadd.f32 %v202, %v993
    %1009 = vrot.lane.b32.xlu0 %v999, 96
    %v1010 = vpop.permute.xlu0 %1009
    %1011 = vrot.lane.b32.xlu0 %v1000, 96
    %v1012 = vpop.permute.xlu0 %1011
    %1013 = vrot.lane.b32.xlu0 %v1001, 96
    %v1014 = vpop.permute.xlu0 %1013
    %1015 = vrot.lane.b32.xlu0 %v1002, 96
    %v1016 = vpop.permute.xlu0 %1015
    %1017 = vrot.lane.b32.xlu0 %v1003, 96
    %v1018 = vpop.permute.xlu0 %1017
    %v1023 = vsel %vm248, %v1018, 0
    %1025 = vmatprep.subr.mxu0 0.0
    %1026 = vmatpush1.msra.mxu0 0.0
    %1027 = vmatprep.subr.mxu0 0.0
    %1028 = vmatpush1.msra.mxu0 0.0
    %1029 = vmatprep.subr.mxu0 0.0
    %1030 = vmatpush1.msra.mxu0 0.0
    %1031 = vmatprep.subr.mxu0 0.0
    %1032 = vmatpush1.msra.mxu0 0.0
    %1033 = vmatprep.subr.mxu0 0.0
    %1034 = vmatpush1.msra.mxu0 0.0
    %1035 = vmatprep.subr.mxu0 0.0
    %1036 = vmatpush1.msra.mxu0 0.0
    %1037 = vmatprep.subr.mxu0 0.0
    %1038 = vmatpush1.msra.mxu0 0.0
    %1039 = vmatprep.subr.mxu0 0.0
    %1040 = vmatpush1.msra.mxu0 0.0
    %1041 = vmatprep.subr.mxu0 0.0
    %1042 = vmatpush1.msra.mxu0 0.0
    %1043 = vmatprep.subr.mxu0 0.0
    %1044 = vmatpush1.msra.mxu0 0.0
    %1045 = vmatprep.subr.mxu0 0.0
    %1046 = vmatpush1.msra.mxu0 0.0
    %1047 = vmatprep.subr.mxu0 0.0
    %1048 = vmatpush1.msra.mxu0 %v1023
    %1049 = vmatprep.subr.mxu0 0.0
    %1050 = vmatpush1.msra.mxu0 %v1016
    %1051 = vmatprep.subr.mxu0 0.0
    %1052 = vmatpush1.msra.mxu0 %v1014
    %1053 = vmatprep.subr.mxu0 0.0
    %1054 = vmatpush1.msra.mxu0 %v1012
    %1055 = vmatprep.subr.mxu0 0.0
    %1056 = vmatpush1.msra.mxu0 %v1010
    %1057 = vmatprep.subr.mxu0 0.0
    %1058 = vmatpush2.msra.mxu0 0.0
    %1059 = vmatprep.subr.mxu0 0.0
    %1060 = vmatpush2.msra.mxu0 0.0
    %1061 = vmatprep.subr.mxu0 0.0
    %1062 = vmatpush2.msra.mxu0 0.0
    %1063 = vmatprep.subr.mxu0 0.0
    %1064 = vmatpush2.msra.mxu0 0.0
    %1065 = vmatprep.subr.mxu0 0.0
    %1066 = vmatpush2.msra.mxu0 0.0
    %1067 = vmatprep.subr.mxu0 0.0
    %1068 = vmatpush2.msra.mxu0 0.0
    %1069 = vmatprep.subr.mxu0 0.0
    %1070 = vmatpush2.msra.mxu0 0.0
    %1071 = vmatprep.subr.mxu0 0.0
    %1072 = vmatpush2.msra.mxu0 0.0
    %1073 = vmatprep.subr.mxu0 0.0
    %1074 = vmatpush2.msra.mxu0 0.0
    %1075 = vmatprep.subr.mxu0 0.0
    %1076 = vmatpush2.msra.mxu0 0.0
    %1077 = vmatprep.subr.mxu0 0.0
    %1078 = vmatpush2.msra.mxu0 0.0
    %1079 = vmatprep.subr.mxu0 0.0
    %1080 = vmatpush2.msra.mxu0 0.0
    %1081 = vmatprep.subr.mxu0 0.0
    %1082 = vmatpush2.msra.mxu0 0.0
    %1083 = vmatprep.subr.mxu0 0.0
    %1084 = vmatpush2.msra.mxu0 0.0
    %1085 = vmatprep.subr.mxu0 0.0
    %1086 = vmatpush2.msra.mxu0 0.0
    %1087 = vmatprep.subr.mxu0 0.0
    %1088 = vmatpush2.msra.mxu0 0.0
    %1089 = vmatprep.mubr.f32.mxu0 0.0
    %1090 = vmatmul.mubr.f32.gmra.mxu0 %v234
    %v1091 = vpop.f32.mrf.mxu0
    %v1092 = vadd.f32 0.0, %v1091
    %v1093 = vpop.f32.mrf.mxu0
    %1094 = vmatprep.mubr.f32.mxu0 0.0
    %1095 = vmatmul.mubr.f32.gmra.mxu0 %v237
    %v1096 = vpop.f32.mrf.mxu0
    %v1097 = vadd.f32 0.0, %v1096
    %v1098 = vpop.f32.mrf.mxu0
    %1099 = vmatprep.mubr.f32.mxu0 0.0
    %1100 = vmatmul.mubr.f32.gmra.mxu0 %v240
    %v1101 = vpop.f32.mrf.mxu0
    %v1102 = vadd.f32 0.0, %v1101
    %v1103 = vpop.f32.mrf.mxu0
    %1104 = vmatprep.mubr.f32.mxu0 0.0
    %1105 = vmatmul.mubr.f32.gmra.mxu0 %v243
    %v1106 = vpop.f32.mrf.mxu0
    %v1107 = vadd.f32 0.0, %v1106
    %v1108 = vpop.f32.mrf.mxu0
    %1109 = vmatprep.mubr.f32.mxu0 0.0
    %1110 = vmatmul.mubr.f32.gmra.mxu0 %v246
    %v1111 = vpop.f32.mrf.mxu0
    %v1112 = vadd.f32 0.0, %v1111
    %v1113 = vpop.f32.mrf.mxu0
    %1114 = vdwg.mxu0
    %v1115 = vpack.c.bf16 %v1097, %v1092
    %v1116 = vpack.c.bf16 %v1107, %v1102
    %v1117 = vpack.c.bf16 %v1112, %v1112
    %s1118 = scalar_lea.vmem %s5, 24
    %v1119 = vld [vmem:[%s1118] sm:$0xf]
    %v1120 = vld [vmem:[%s1118 + $0x4] sm:$0xf]
    %1121 = vmatprep.subr.mxu0 0.0
    %1122 = vmatpush1.msra.mxu0 0.0
    %1123 = vmatprep.subr.mxu0 0.0
    %1124 = vmatpush1.msra.mxu0 0.0
    %1125 = vmatprep.subr.mxu0 0.0
    %1126 = vmatpush1.msra.mxu0 0.0
    %1127 = vmatprep.subr.mxu0 0.0
    %1128 = vmatpush1.msra.mxu0 0.0
    %1129 = vmatprep.subr.mxu0 0.0
    %1130 = vmatpush1.msra.mxu0 0.0
    %1131 = vmatprep.subr.mxu0 0.0
    %1132 = vmatpush1.msra.mxu0 0.0
    %1133 = vmatprep.subr.mxu0 0.0
    %1134 = vmatpush1.msra.mxu0 0.0
    %1135 = vmatprep.subr.mxu0 0.0
    %1136 = vmatpush1.msra.mxu0 0.0
    %1137 = vmatprep.subr.mxu0 0.0
    %1138 = vmatpush1.msra.mxu0 0.0
    %1139 = vmatprep.subr.mxu0 0.0
    %1140 = vmatpush1.msra.mxu0 0.0
    %1141 = vmatprep.subr.mxu0 0.0
    %1142 = vmatpush1.msra.mxu0 0.0
    %1143 = vmatprep.subr.mxu0 0.0
    %1144 = vmatpush1.msra.mxu0 %v1023
    %1145 = vmatprep.subr.mxu0 0.0
    %1146 = vmatpush1.msra.mxu0 %v1016
    %1147 = vmatprep.subr.mxu0 0.0
    %1148 = vmatpush1.msra.mxu0 %v1014
    %1149 = vmatprep.subr.mxu0 0.0
    %1150 = vmatpush1.msra.mxu0 %v1012
    %1151 = vmatprep.subr.mxu0 0.0
    %1152 = vmatpush1.msra.mxu0 %v1010
    %1153 = vmatprep.subr.mxu0 0.0
    %1154 = vmatpush2.msra.mxu0 0.0
    %1155 = vmatprep.subr.mxu0 0.0
    %1156 = vmatpush2.msra.mxu0 0.0
    %1157 = vmatprep.subr.mxu0 0.0
    %1158 = vmatpush2.msra.mxu0 0.0
    %1159 = vmatprep.subr.mxu0 0.0
    %1160 = vmatpush2.msra.mxu0 0.0
    %1161 = vmatprep.subr.mxu0 0.0
    %1162 = vmatpush2.msra.mxu0 0.0
    %1163 = vmatprep.subr.mxu0 0.0
    %1164 = vmatpush2.msra.mxu0 0.0
    %1165 = vmatprep.subr.mxu0 0.0
    %1166 = vmatpush2.msra.mxu0 0.0
    %1167 = vmatprep.subr.mxu0 0.0
    %1168 = vmatpush2.msra.mxu0 0.0
    %1169 = vmatprep.subr.mxu0 0.0
    %1170 = vmatpush2.msra.mxu0 0.0
    %1171 = vmatprep.subr.mxu0 0.0
    %1172 = vmatpush2.msra.mxu0 0.0
    %1173 = vmatprep.subr.mxu0 0.0
    %1174 = vmatpush2.msra.mxu0 0.0
    %1175 = vmatprep.subr.mxu0 0.0
    %1176 = vmatpush2.msra.mxu0 0.0
    %1177 = vmatprep.subr.mxu0 0.0
    %1178 = vmatpush2.msra.mxu0 0.0
    %1179 = vmatprep.subr.mxu0 0.0
    %1180 = vmatpush2.msra.mxu0 0.0
    %1181 = vmatprep.subr.mxu0 0.0
    %1182 = vmatpush2.msra.mxu0 0.0
    %1183 = vmatprep.subr.mxu0 0.0
    %1184 = vmatpush2.msra.mxu0 0.0
    %1185 = vmatprep.mubr.f32.mxu0 0.0
    %1186 = vmatmul.mubr.f32.gmra.mxu0 %v353
    %v1187 = vpop.f32.mrf.mxu0
    %v1188 = vadd.f32 0.0, %v1187
    %v1189 = vpop.f32.mrf.mxu0
    %1190 = vmatprep.mubr.f32.mxu0 0.0
    %1191 = vmatmul.mubr.f32.gmra.mxu0 %v356
    %v1192 = vpop.f32.mrf.mxu0
    %v1193 = vadd.f32 0.0, %v1192
    %v1194 = vpop.f32.mrf.mxu0
    %1195 = vmatprep.mubr.f32.mxu0 0.0
    %1196 = vmatmul.mubr.f32.gmra.mxu0 %v359
    %v1197 = vpop.f32.mrf.mxu0
    %v1198 = vadd.f32 0.0, %v1197
    %v1199 = vpop.f32.mrf.mxu0
    %1200 = vmatprep.mubr.f32.mxu0 0.0
    %1201 = vmatmul.mubr.f32.gmra.mxu0 %v362
    %v1202 = vpop.f32.mrf.mxu0
    %v1203 = vadd.f32 0.0, %v1202
    %v1204 = vpop.f32.mrf.mxu0
    %1205 = vmatprep.mubr.f32.mxu0 0.0
    %1206 = vmatmul.mubr.f32.gmra.mxu0 %v365
    %v1207 = vpop.f32.mrf.mxu0
    %v1208 = vadd.f32 0.0, %v1207
    %v1209 = vpop.f32.mrf.mxu0
    %1210 = vdwg.mxu0
    %v1211 = vpack.c.bf16 %v1193, %v1188
    %v1212 = vpack.c.bf16 %v1203, %v1198
    %v1213 = vpack.c.bf16 %v1208, %v1208
    %s1214 = scalar_lea.vmem %s5, 32
    %v1215 = vld [vmem:[%s1214] sm:$0xf]
    %v1216 = vld [vmem:[%s1214 + $0x4] sm:$0xf]
    %v1219 = vunpack.c.l.b16 %v1215
    %v1220 = vunpack.c.l.b16 %v1216
    %v1221 = vpack.c.b16 %v1220, %v1219
    %v1224 = vsel %vm469, %v1211, 0
    %v1227 = vsel %vm469, %v1212, 0
    %v1230 = vsel %vm469, %v1213, 0
    %1232 = vmatprep.subr.bf16.mxu0 0
    %1233 = vmatpush1.bf16.msra.mxu0 0
    %1234 = vmatprep.subr.bf16.mxu0 0
    %1235 = vmatpush1.bf16.msra.mxu0 0
    %1236 = vmatprep.subr.bf16.mxu0 0
    %1237 = vmatpush1.bf16.msra.mxu0 0
    %1238 = vmatprep.subr.bf16.mxu0 0
    %1239 = vmatpush1.bf16.msra.mxu0 0
    %1240 = vmatprep.subr.bf16.mxu0 0
    %1241 = vmatpush1.bf16.msra.mxu0 0
    %1242 = vmatprep.subr.bf16.mxu0 0
    %1243 = vmatpush1.bf16.msra.mxu0 0
    %1244 = vmatprep.subr.bf16.mxu0 0
    %1245 = vmatpush1.bf16.msra.mxu0 0
    %1246 = vmatprep.subr.bf16.mxu0 0
    %1247 = vmatpush1.bf16.msra.mxu0 %v1221
    %1248 = vmatprep.subr.bf16.mxu0 0
    %1249 = vmatpush2.bf16.msra.mxu0 0
    %1250 = vmatprep.subr.bf16.mxu0 0
    %1251 = vmatpush2.bf16.msra.mxu0 0
    %1252 = vmatprep.subr.bf16.mxu0 0
    %1253 = vmatpush2.bf16.msra.mxu0 0
    %1254 = vmatprep.subr.bf16.mxu0 0
    %1255 = vmatpush2.bf16.msra.mxu0 0
    %1256 = vmatprep.subr.bf16.mxu0 0
    %1257 = vmatpush2.bf16.msra.mxu0 0
    %1258 = vmatprep.subr.bf16.mxu0 0
    %1259 = vmatpush2.bf16.msra.mxu0 0
    %1260 = vmatprep.subr.bf16.mxu0 0
    %1261 = vmatpush2.bf16.msra.mxu0 0
    %1262 = vmatprep.subr.bf16.mxu0 0
    %1263 = vmatpush2.bf16.msra.mxu0 0
    %1264 = vmatprep.mubr.bf16.mxu0 0
    %1265 = vmatmul.mubr.bf16.gmra.mxu0 %v1224
    %v1266 = vpop.f32.mrf.mxu0
    %v1267 = vadd.f32 0.0, %v1266
    %v1268 = vpop.f32.mrf.mxu0
    %v1269 = vpop.f32.mrf.mxu0
    %v1270 = vadd.f32 0.0, %v1269
    %v1271 = vpop.f32.mrf.mxu0
    %1272 = vmatprep.mubr.bf16.mxu0 0
    %1273 = vmatmul.mubr.bf16.gmra.mxu0 %v1227
    %v1274 = vpop.f32.mrf.mxu0
    %v1275 = vadd.f32 0.0, %v1274
    %v1276 = vpop.f32.mrf.mxu0
    %v1277 = vpop.f32.mrf.mxu0
    %v1278 = vadd.f32 0.0, %v1277
    %v1279 = vpop.f32.mrf.mxu0
    %1280 = vmatprep.mubr.bf16.mxu0 0
    %1281 = vmatmul.mubr.bf16.gmra.mxu0 %v1230
    %v1282 = vpop.f32.mrf.mxu0
    %v1283 = vadd.f32 0.0, %v1282
    %v1284 = vpop.f32.mrf.mxu0
    %v1285 = vpop.f32.mrf.mxu0
    %v1286 = vpop.f32.mrf.mxu0
    %1287 = vdwg.mxu0
    %v1290 = vunpack.c.l.b16 %v1119
    %v1291 = vunpack.c.l.b16 %v1120
    %v1292 = vpack.c.b16 %v1291, %v1290
    %v1295 = vsel %vm469, %v1115, 0
    %v1298 = vsel %vm469, %v1116, 0
    %v1301 = vsel %vm469, %v1117, 0
    %1303 = vmatprep.subr.bf16.mxu0 0
    %1304 = vmatpush1.bf16.msra.mxu0 0
    %1305 = vmatprep.subr.bf16.mxu0 0
    %1306 = vmatpush1.bf16.msra.mxu0 0
    %1307 = vmatprep.subr.bf16.mxu0 0
    %1308 = vmatpush1.bf16.msra.mxu0 0
    %1309 = vmatprep.subr.bf16.mxu0 0
    %1310 = vmatpush1.bf16.msra.mxu0 0
    %1311 = vmatprep.subr.bf16.mxu0 0
    %1312 = vmatpush1.bf16.msra.mxu0 0
    %1313 = vmatprep.subr.bf16.mxu0 0
    %1314 = vmatpush1.bf16.msra.mxu0 0
    %1315 = vmatprep.subr.bf16.mxu0 0
    %1316 = vmatpush1.bf16.msra.mxu0 0
    %1317 = vmatprep.subr.bf16.mxu0 0
    %1318 = vmatpush1.bf16.msra.mxu0 %v1292
    %1319 = vmatprep.subr.bf16.mxu0 0
    %1320 = vmatpush2.bf16.msra.mxu0 0
    %1321 = vmatprep.subr.bf16.mxu0 0
    %1322 = vmatpush2.bf16.msra.mxu0 0
    %1323 = vmatprep.subr.bf16.mxu0 0
    %1324 = vmatpush2.bf16.msra.mxu0 0
    %1325 = vmatprep.subr.bf16.mxu0 0
    %1326 = vmatpush2.bf16.msra.mxu0 0
    %1327 = vmatprep.subr.bf16.mxu0 0
    %1328 = vmatpush2.bf16.msra.mxu0 0
    %1329 = vmatprep.subr.bf16.mxu0 0
    %1330 = vmatpush2.bf16.msra.mxu0 0
    %1331 = vmatprep.subr.bf16.mxu0 0
    %1332 = vmatpush2.bf16.msra.mxu0 0
    %1333 = vmatprep.subr.bf16.mxu0 0
    %1334 = vmatpush2.bf16.msra.mxu0 0
    %1335 = vmatprep.mubr.bf16.mxu0 0
    %1336 = vmatmul.mubr.bf16.gmra.mxu0 %v1295
    %v1337 = vpop.f32.mrf.mxu0
    %v1338 = vadd.f32 %v1267, %v1337
    %v1339 = vpop.f32.mrf.mxu0
    %v1340 = vpop.f32.mrf.mxu0
    %v1341 = vadd.f32 %v1270, %v1340
    %v1342 = vpop.f32.mrf.mxu0
    %1343 = vmatprep.mubr.bf16.mxu0 0
    %1344 = vmatmul.mubr.bf16.gmra.mxu0 %v1298
    %v1345 = vpop.f32.mrf.mxu0
    %v1346 = vadd.f32 %v1275, %v1345
    %v1347 = vpop.f32.mrf.mxu0
    %v1348 = vpop.f32.mrf.mxu0
    %v1349 = vadd.f32 %v1278, %v1348
    %v1350 = vpop.f32.mrf.mxu0
    %1351 = vmatprep.mubr.bf16.mxu0 0
    %1352 = vmatmul.mubr.bf16.gmra.mxu0 %v1301
    %v1353 = vpop.f32.mrf.mxu0
    %v1354 = vadd.f32 %v1283, %v1353
    %v1355 = vpop.f32.mrf.mxu0
    %v1356 = vpop.f32.mrf.mxu0
    %v1357 = vpop.f32.mrf.mxu0
    %1358 = vdwg.mxu0
    %1359 = vmatprep.subr.mxu0 0.0
    %1360 = vmatpush1.msra.mxu0 0.0
    %1361 = vmatprep.subr.mxu0 0.0
    %1362 = vmatpush1.msra.mxu0 0.0
    %1363 = vmatprep.subr.mxu0 0.0
    %1364 = vmatpush1.msra.mxu0 0.0
    %1365 = vmatprep.subr.mxu0 0.0
    %1366 = vmatpush1.msra.mxu0 0.0
    %1367 = vmatprep.subr.mxu0 0.0
    %1368 = vmatpush1.msra.mxu0 0.0
    %1369 = vmatprep.subr.mxu0 0.0
    %1370 = vmatpush1.msra.mxu0 0.0
    %1371 = vmatprep.subr.mxu0 0.0
    %1372 = vmatpush1.msra.mxu0 0.0
    %1373 = vmatprep.subr.mxu0 0.0
    %1374 = vmatpush1.msra.mxu0 0.0
    %1375 = vmatprep.subr.mxu0 0.0
    %1376 = vmatpush1.msra.mxu0 0.0
    %1377 = vmatprep.subr.mxu0 0.0
    %1378 = vmatpush1.msra.mxu0 0.0
    %1379 = vmatprep.subr.mxu0 0.0
    %1380 = vmatpush1.msra.mxu0 0.0
    %1381 = vmatprep.subr.mxu0 0.0
    %1382 = vmatpush1.msra.mxu0 %v1023
    %1383 = vmatprep.subr.mxu0 0.0
    %1384 = vmatpush1.msra.mxu0 %v1016
    %1385 = vmatprep.subr.mxu0 0.0
    %1386 = vmatpush1.msra.mxu0 %v1014
    %1387 = vmatprep.subr.mxu0 0.0
    %1388 = vmatpush1.msra.mxu0 %v1012
    %1389 = vmatprep.subr.mxu0 0.0
    %1390 = vmatpush1.msra.mxu0 %v1010
    %1391 = vmatprep.subr.mxu0 0.0
    %1392 = vmatpush2.msra.mxu0 0.0
    %1393 = vmatprep.subr.mxu0 0.0
    %1394 = vmatpush2.msra.mxu0 0.0
    %1395 = vmatprep.subr.mxu0 0.0
    %1396 = vmatpush2.msra.mxu0 0.0
    %1397 = vmatprep.subr.mxu0 0.0
    %1398 = vmatpush2.msra.mxu0 0.0
    %1399 = vmatprep.subr.mxu0 0.0
    %1400 = vmatpush2.msra.mxu0 0.0
    %1401 = vmatprep.subr.mxu0 0.0
    %1402 = vmatpush2.msra.mxu0 0.0
    %1403 = vmatprep.subr.mxu0 0.0
    %1404 = vmatpush2.msra.mxu0 0.0
    %1405 = vmatprep.subr.mxu0 0.0
    %1406 = vmatpush2.msra.mxu0 0.0
    %1407 = vmatprep.subr.mxu0 0.0
    %1408 = vmatpush2.msra.mxu0 0.0
    %1409 = vmatprep.subr.mxu0 0.0
    %1410 = vmatpush2.msra.mxu0 0.0
    %1411 = vmatprep.subr.mxu0 0.0
    %1412 = vmatpush2.msra.mxu0 0.0
    %1413 = vmatprep.subr.mxu0 0.0
    %1414 = vmatpush2.msra.mxu0 0.0
    %1415 = vmatprep.subr.mxu0 0.0
    %1416 = vmatpush2.msra.mxu0 0.0
    %1417 = vmatprep.subr.mxu0 0.0
    %1418 = vmatpush2.msra.mxu0 0.0
    %1419 = vmatprep.subr.mxu0 0.0
    %1420 = vmatpush2.msra.mxu0 0.0
    %1421 = vmatprep.subr.mxu0 0.0
    %1422 = vmatpush2.msra.mxu0 0.0
    %1423 = vmatprep.mubr.f32.mxu0 0.0
    %1424 = vmatmul.mubr.f32.gmra.mxu0 %v613
    %v1425 = vpop.f32.mrf.mxu0
    %v1426 = vadd.f32 0.0, %v1425
    %v1427 = vpop.f32.mrf.mxu0
    %1428 = vmatprep.mubr.f32.mxu0 0.0
    %1429 = vmatmul.mubr.f32.gmra.mxu0 %v616
    %v1430 = vpop.f32.mrf.mxu0
    %v1431 = vadd.f32 0.0, %v1430
    %v1432 = vpop.f32.mrf.mxu0
    %1433 = vmatprep.mubr.f32.mxu0 0.0
    %1434 = vmatmul.mubr.f32.gmra.mxu0 %v619
    %v1435 = vpop.f32.mrf.mxu0
    %v1436 = vadd.f32 0.0, %v1435
    %v1437 = vpop.f32.mrf.mxu0
    %1438 = vmatprep.mubr.f32.mxu0 0.0
    %1439 = vmatmul.mubr.f32.gmra.mxu0 %v622
    %v1440 = vpop.f32.mrf.mxu0
    %v1441 = vadd.f32 0.0, %v1440
    %v1442 = vpop.f32.mrf.mxu0
    %1443 = vmatprep.mubr.f32.mxu0 0.0
    %1444 = vmatmul.mubr.f32.gmra.mxu0 %v625
    %v1445 = vpop.f32.mrf.mxu0
    %v1446 = vadd.f32 0.0, %v1445
    %v1447 = vpop.f32.mrf.mxu0
    %1448 = vdwg.mxu0
    %v1449 = vpack.c.bf16 %v1431, %v1426
    %v1450 = vpack.c.bf16 %v1441, %v1436
    %v1451 = vpack.c.bf16 %v1446, %v1446
    %s1452 = scalar_lea.vmem %s5, 40
    %v1453 = vld [vmem:[%s1452] sm:$0xf]
    %v1454 = vld [vmem:[%s1452 + $0x4] sm:$0xf]
    %v1457 = vunpack.c.l.b16 %v1453
    %v1458 = vunpack.c.l.b16 %v1454
    %v1459 = vpack.c.b16 %v1458, %v1457
    %v1462 = vsel %vm469, %v1449, 0
    %v1465 = vsel %vm469, %v1450, 0
    %v1468 = vsel %vm469, %v1451, 0
    %1470 = vmatprep.subr.bf16.mxu0 0
    %1471 = vmatpush1.bf16.msra.mxu0 0
    %1472 = vmatprep.subr.bf16.mxu0 0
    %1473 = vmatpush1.bf16.msra.mxu0 0
    %1474 = vmatprep.subr.bf16.mxu0 0
    %1475 = vmatpush1.bf16.msra.mxu0 0
    %1476 = vmatprep.subr.bf16.mxu0 0
    %1477 = vmatpush1.bf16.msra.mxu0 0
    %1478 = vmatprep.subr.bf16.mxu0 0
    %1479 = vmatpush1.bf16.msra.mxu0 0
    %1480 = vmatprep.subr.bf16.mxu0 0
    %1481 = vmatpush1.bf16.msra.mxu0 0
    %1482 = vmatprep.subr.bf16.mxu0 0
    %1483 = vmatpush1.bf16.msra.mxu0 0
    %1484 = vmatprep.subr.bf16.mxu0 0
    %1485 = vmatpush1.bf16.msra.mxu0 %v1459
    %1486 = vmatprep.subr.bf16.mxu0 0
    %1487 = vmatpush2.bf16.msra.mxu0 0
    %1488 = vmatprep.subr.bf16.mxu0 0
    %1489 = vmatpush2.bf16.msra.mxu0 0
    %1490 = vmatprep.subr.bf16.mxu0 0
    %1491 = vmatpush2.bf16.msra.mxu0 0
    %1492 = vmatprep.subr.bf16.mxu0 0
    %1493 = vmatpush2.bf16.msra.mxu0 0
    %1494 = vmatprep.subr.bf16.mxu0 0
    %1495 = vmatpush2.bf16.msra.mxu0 0
    %1496 = vmatprep.subr.bf16.mxu0 0
    %1497 = vmatpush2.bf16.msra.mxu0 0
    %1498 = vmatprep.subr.bf16.mxu0 0
    %1499 = vmatpush2.bf16.msra.mxu0 0
    %1500 = vmatprep.subr.bf16.mxu0 0
    %1501 = vmatpush2.bf16.msra.mxu0 0
    %1502 = vmatprep.mubr.bf16.mxu0 0
    %1503 = vmatmul.mubr.bf16.gmra.mxu0 %v1462
    %v1504 = vpop.f32.mrf.mxu0
    %v1505 = vadd.f32 0.0, %v1504
    %v1506 = vpop.f32.mrf.mxu0
    %v1507 = vpop.f32.mrf.mxu0
    %v1508 = vadd.f32 0.0, %v1507
    %v1509 = vpop.f32.mrf.mxu0
    %1510 = vmatprep.mubr.bf16.mxu0 0
    %1511 = vmatmul.mubr.bf16.gmra.mxu0 %v1465
    %v1512 = vpop.f32.mrf.mxu0
    %v1513 = vadd.f32 0.0, %v1512
    %v1514 = vpop.f32.mrf.mxu0
    %v1515 = vpop.f32.mrf.mxu0
    %v1516 = vadd.f32 0.0, %v1515
    %v1517 = vpop.f32.mrf.mxu0
    %1518 = vmatprep.mubr.bf16.mxu0 0
    %1519 = vmatmul.mubr.bf16.gmra.mxu0 %v1468
    %v1520 = vpop.f32.mrf.mxu0
    %v1521 = vadd.f32 0.0, %v1520
    %v1522 = vpop.f32.mrf.mxu0
    %v1523 = vpop.f32.mrf.mxu0
    %v1524 = vpop.f32.mrf.mxu0
    %1525 = vdwg.mxu0
    %v1526 = vadd.f32 %v1338, %v1505
    %v1527 = vadd.f32 %v1341, %v1508
    %v1528 = vadd.f32 %v1346, %v1513
    %v1529 = vadd.f32 %v1349, %v1516
    %v1530 = vadd.f32 %v1354, %v1521
    %s1531 = scalar_lea.vmem %s6, 4
    %v1532 = vld [vmem:[%s1531] sm:$0x7]
    %v1533 = vlaneseq
    %v1534 = vshrl.u32 %v1533, 7
    %v1535 = vsub.s32 0, %v1534
    %v1536 = vrot.slane %v1532, %v1535
    %v1537 = vadd.f32 %v1526, %v1536
    %v1538 = vadd.f32 %v1527, %v1536
    %v1539 = vadd.f32 %v1528, %v1536
    %v1540 = vadd.f32 %v1529, %v1536
    %v1541 = vadd.f32 %v1530, %v1536
    %v1542 = vmax.f32 %v1537, 0.0
    %v1543 = vmax.f32 %v1538, 0.0
    %v1544 = vmax.f32 %v1539, 0.0
    %v1545 = vmax.f32 %v1540, 0.0
    %v1546 = vmax.f32 %v1541, 0.0
    %v1547 = vlaneseq
    %v1548 = vshrl.u32 %v1547, 7
    %v1549 = vsub.s32 1, %v1548
    %v1550 = vrot.slane %v1532, %v1549
    %v1551 = vmul.f32 %v1542, %v1550
    %v1552 = vmul.f32 %v1543, %v1550
    %v1553 = vmul.f32 %v1544, %v1550
    %v1554 = vmul.f32 %v1545, %v1550
    %v1555 = vmul.f32 %v1546, %v1550
    %v1556 = vlaneseq
    %v1557 = vshrl.u32 %v1556, 7
    %v1558 = vsub.s32 2, %v1557
    %v1559 = vrot.slane %v1532, %v1558
    %v1560 = vadd.f32 %v1551, %v1559
    %v1561 = vadd.f32 %v1552, %v1559
    %v1562 = vadd.f32 %v1553, %v1559
    %v1563 = vadd.f32 %v1554, %v1559
    %v1564 = vadd.f32 %v1555, %v1559
    %v1565 = vpack.c.bf16 %v1561, %v1560
    %v1566 = vpack.c.bf16 %v1563, %v1562
    %v1567 = vpack.c.bf16 %v1564, %v1564
    %v1568 = vld [vmem:[%s7 + $0x10] sm:$0xf]
    %v1569 = vld [vmem:[%s7 + $0x14] sm:$0xf]
    %v1572 = vunpack.c.l.b16 %v1568
    %v1573 = vunpack.c.l.b16 %v1569
    %v1574 = vpack.c.b16 %v1573, %v1572
    %v1577 = vsel %vm469, %v1565, 0
    %v1580 = vsel %vm469, %v1566, 0
    %v1583 = vsel %vm469, %v1567, 0
    %1585 = vmatprep.subr.bf16.mxu0 0
    %1586 = vmatpush1.bf16.msra.mxu0 0
    %1587 = vmatprep.subr.bf16.mxu0 0
    %1588 = vmatpush1.bf16.msra.mxu0 0
    %1589 = vmatprep.subr.bf16.mxu0 0
    %1590 = vmatpush1.bf16.msra.mxu0 0
    %1591 = vmatprep.subr.bf16.mxu0 0
    %1592 = vmatpush1.bf16.msra.mxu0 0
    %1593 = vmatprep.subr.bf16.mxu0 0
    %1594 = vmatpush1.bf16.msra.mxu0 0
    %1595 = vmatprep.subr.bf16.mxu0 0
    %1596 = vmatpush1.bf16.msra.mxu0 0
    %1597 = vmatprep.subr.bf16.mxu0 0
    %1598 = vmatpush1.bf16.msra.mxu0 0
    %1599 = vmatprep.subr.bf16.mxu0 0
    %1600 = vmatpush1.bf16.msra.mxu0 %v1574
    %1601 = vmatprep.subr.bf16.mxu0 0
    %1602 = vmatpush2.bf16.msra.mxu0 0
    %1603 = vmatprep.subr.bf16.mxu0 0
    %1604 = vmatpush2.bf16.msra.mxu0 0
    %1605 = vmatprep.subr.bf16.mxu0 0
    %1606 = vmatpush2.bf16.msra.mxu0 0
    %1607 = vmatprep.subr.bf16.mxu0 0
    %1608 = vmatpush2.bf16.msra.mxu0 0
    %1609 = vmatprep.subr.bf16.mxu0 0
    %1610 = vmatpush2.bf16.msra.mxu0 0
    %1611 = vmatprep.subr.bf16.mxu0 0
    %1612 = vmatpush2.bf16.msra.mxu0 0
    %1613 = vmatprep.subr.bf16.mxu0 0
    %1614 = vmatpush2.bf16.msra.mxu0 0
    %1615 = vmatprep.subr.bf16.mxu0 0
    %1616 = vmatpush2.bf16.msra.mxu0 0
    %1617 = vmatprep.mubr.bf16.mxu0 0
    %1618 = vmatmul.mubr.bf16.gmra.mxu0 %v1577
    %v1619 = vpop.f32.mrf.mxu0
    %v1620 = vadd.f32 0.0, %v1619
    %v1621 = vpop.f32.mrf.mxu0
    %v1622 = vpop.f32.mrf.mxu0
    %v1623 = vadd.f32 0.0, %v1622
    %v1624 = vpop.f32.mrf.mxu0
    %1625 = vmatprep.mubr.bf16.mxu0 0
    %1626 = vmatmul.mubr.bf16.gmra.mxu0 %v1580
    %v1627 = vpop.f32.mrf.mxu0
    %v1628 = vadd.f32 0.0, %v1627
    %v1629 = vpop.f32.mrf.mxu0
    %v1630 = vpop.f32.mrf.mxu0
    %v1631 = vadd.f32 0.0, %v1630
    %v1632 = vpop.f32.mrf.mxu0
    %1633 = vmatprep.mubr.bf16.mxu0 0
    %1634 = vmatmul.mubr.bf16.gmra.mxu0 %v1583
    %v1635 = vpop.f32.mrf.mxu0
    %v1636 = vadd.f32 0.0, %v1635
    %v1637 = vpop.f32.mrf.mxu0
    %v1638 = vpop.f32.mrf.mxu0
    %v1639 = vpop.f32.mrf.mxu0
    %1640 = vdwg.mxu0
    %v1641 = vadd.f32 %v958, %v1620
    %v1642 = vadd.f32 %v961, %v1623
    %v1643 = vadd.f32 %v966, %v1628
    %v1644 = vadd.f32 %v969, %v1631
    %v1645 = vadd.f32 %v974, %v1636
    %1651 = vrot.lane.b32.xlu0 %v1560, 48
    %v1652 = vpop.permute.xlu0 %1651
    %1653 = vrot.lane.b32.xlu0 %v1561, 48
    %v1654 = vpop.permute.xlu0 %1653
    %1655 = vrot.lane.b32.xlu0 %v1562, 48
    %v1656 = vpop.permute.xlu0 %1655
    %1657 = vrot.lane.b32.xlu0 %v1563, 48
    %v1658 = vpop.permute.xlu0 %1657
    %1659 = vrot.lane.b32.xlu0 %v1564, 48
    %v1660 = vpop.permute.xlu0 %1659
    %v1666 = vadd.f32 %v198, %v1652
    %v1667 = vadd.f32 %v199, %v1654
    %v1668 = vadd.f32 %v200, %v1656
    %v1669 = vadd.f32 %v201, %v1658
    %v1670 = vadd.f32 %v202, %v1660
    %1676 = vrot.lane.b32.xlu0 %v1666, 80
    %v1677 = vpop.permute.xlu0 %1676
    %1678 = vrot.lane.b32.xlu0 %v1667, 80
    %v1679 = vpop.permute.xlu0 %1678
    %1680 = vrot.lane.b32.xlu0 %v1668, 80
    %v1681 = vpop.permute.xlu0 %1680
    %1682 = vrot.lane.b32.xlu0 %v1669, 80
    %v1683 = vpop.permute.xlu0 %1682
    %1684 = vrot.lane.b32.xlu0 %v1670, 80
    %v1685 = vpop.permute.xlu0 %1684
    %v1690 = vsel %vm248, %v1685, 0
    %1692 = vmatprep.subr.mxu0 0.0
    %1693 = vmatpush1.msra.mxu0 0.0
    %1694 = vmatprep.subr.mxu0 0.0
    %1695 = vmatpush1.msra.mxu0 0.0
    %1696 = vmatprep.subr.mxu0 0.0
    %1697 = vmatpush1.msra.mxu0 0.0
    %1698 = vmatprep.subr.mxu0 0.0
    %1699 = vmatpush1.msra.mxu0 0.0
    %1700 = vmatprep.subr.mxu0 0.0
    %1701 = vmatpush1.msra.mxu0 0.0
    %1702 = vmatprep.subr.mxu0 0.0
    %1703 = vmatpush1.msra.mxu0 0.0
    %1704 = vmatprep.subr.mxu0 0.0
    %1705 = vmatpush1.msra.mxu0 0.0
    %1706 = vmatprep.subr.mxu0 0.0
    %1707 = vmatpush1.msra.mxu0 0.0
    %1708 = vmatprep.subr.mxu0 0.0
    %1709 = vmatpush1.msra.mxu0 0.0
    %1710 = vmatprep.subr.mxu0 0.0
    %1711 = vmatpush1.msra.mxu0 0.0
    %1712 = vmatprep.subr.mxu0 0.0
    %1713 = vmatpush1.msra.mxu0 0.0
    %1714 = vmatprep.subr.mxu0 0.0
    %1715 = vmatpush1.msra.mxu0 %v1690
    %1716 = vmatprep.subr.mxu0 0.0
    %1717 = vmatpush1.msra.mxu0 %v1683
    %1718 = vmatprep.subr.mxu0 0.0
    %1719 = vmatpush1.msra.mxu0 %v1681
    %1720 = vmatprep.subr.mxu0 0.0
    %1721 = vmatpush1.msra.mxu0 %v1679
    %1722 = vmatprep.subr.mxu0 0.0
    %1723 = vmatpush1.msra.mxu0 %v1677
    %1724 = vmatprep.subr.mxu0 0.0
    %1725 = vmatpush2.msra.mxu0 0.0
    %1726 = vmatprep.subr.mxu0 0.0
    %1727 = vmatpush2.msra.mxu0 0.0
    %1728 = vmatprep.subr.mxu0 0.0
    %1729 = vmatpush2.msra.mxu0 0.0
    %1730 = vmatprep.subr.mxu0 0.0
    %1731 = vmatpush2.msra.mxu0 0.0
    %1732 = vmatprep.subr.mxu0 0.0
    %1733 = vmatpush2.msra.mxu0 0.0
    %1734 = vmatprep.subr.mxu0 0.0
    %1735 = vmatpush2.msra.mxu0 0.0
    %1736 = vmatprep.subr.mxu0 0.0
    %1737 = vmatpush2.msra.mxu0 0.0
    %1738 = vmatprep.subr.mxu0 0.0
    %1739 = vmatpush2.msra.mxu0 0.0
    %1740 = vmatprep.subr.mxu0 0.0
    %1741 = vmatpush2.msra.mxu0 0.0
    %1742 = vmatprep.subr.mxu0 0.0
    %1743 = vmatpush2.msra.mxu0 0.0
    %1744 = vmatprep.subr.mxu0 0.0
    %1745 = vmatpush2.msra.mxu0 0.0
    %1746 = vmatprep.subr.mxu0 0.0
    %1747 = vmatpush2.msra.mxu0 0.0
    %1748 = vmatprep.subr.mxu0 0.0
    %1749 = vmatpush2.msra.mxu0 0.0
    %1750 = vmatprep.subr.mxu0 0.0
    %1751 = vmatpush2.msra.mxu0 0.0
    %1752 = vmatprep.subr.mxu0 0.0
    %1753 = vmatpush2.msra.mxu0 0.0
    %1754 = vmatprep.subr.mxu0 0.0
    %1755 = vmatpush2.msra.mxu0 0.0
    %1756 = vmatprep.mubr.f32.mxu0 0.0
    %1757 = vmatmul.mubr.f32.gmra.mxu0 %v234
    %v1758 = vpop.f32.mrf.mxu0
    %v1759 = vadd.f32 0.0, %v1758
    %v1760 = vpop.f32.mrf.mxu0
    %1761 = vmatprep.mubr.f32.mxu0 0.0
    %1762 = vmatmul.mubr.f32.gmra.mxu0 %v237
    %v1763 = vpop.f32.mrf.mxu0
    %v1764 = vadd.f32 0.0, %v1763
    %v1765 = vpop.f32.mrf.mxu0
    %1766 = vmatprep.mubr.f32.mxu0 0.0
    %1767 = vmatmul.mubr.f32.gmra.mxu0 %v240
    %v1768 = vpop.f32.mrf.mxu0
    %v1769 = vadd.f32 0.0, %v1768
    %v1770 = vpop.f32.mrf.mxu0
    %1771 = vmatprep.mubr.f32.mxu0 0.0
    %1772 = vmatmul.mubr.f32.gmra.mxu0 %v243
    %v1773 = vpop.f32.mrf.mxu0
    %v1774 = vadd.f32 0.0, %v1773
    %v1775 = vpop.f32.mrf.mxu0
    %1776 = vmatprep.mubr.f32.mxu0 0.0
    %1777 = vmatmul.mubr.f32.gmra.mxu0 %v246
    %v1778 = vpop.f32.mrf.mxu0
    %v1779 = vadd.f32 0.0, %v1778
    %v1780 = vpop.f32.mrf.mxu0
    %1781 = vdwg.mxu0
    %v1782 = vpack.c.bf16 %v1764, %v1759
    %v1783 = vpack.c.bf16 %v1774, %v1769
    %v1784 = vpack.c.bf16 %v1779, %v1779
    %s1785 = scalar_lea.vmem %s5, 48
    %v1786 = vld [vmem:[%s1785] sm:$0xf]
    %v1787 = vld [vmem:[%s1785 + $0x4] sm:$0xf]
    %1788 = vmatprep.subr.mxu0 0.0
    %1789 = vmatpush1.msra.mxu0 0.0
    %1790 = vmatprep.subr.mxu0 0.0
    %1791 = vmatpush1.msra.mxu0 0.0
    %1792 = vmatprep.subr.mxu0 0.0
    %1793 = vmatpush1.msra.mxu0 0.0
    %1794 = vmatprep.subr.mxu0 0.0
    %1795 = vmatpush1.msra.mxu0 0.0
    %1796 = vmatprep.subr.mxu0 0.0
    %1797 = vmatpush1.msra.mxu0 0.0
    %1798 = vmatprep.subr.mxu0 0.0
    %1799 = vmatpush1.msra.mxu0 0.0
    %1800 = vmatprep.subr.mxu0 0.0
    %1801 = vmatpush1.msra.mxu0 0.0
    %1802 = vmatprep.subr.mxu0 0.0
    %1803 = vmatpush1.msra.mxu0 0.0
    %1804 = vmatprep.subr.mxu0 0.0
    %1805 = vmatpush1.msra.mxu0 0.0
    %1806 = vmatprep.subr.mxu0 0.0
    %1807 = vmatpush1.msra.mxu0 0.0
    %1808 = vmatprep.subr.mxu0 0.0
    %1809 = vmatpush1.msra.mxu0 0.0
    %1810 = vmatprep.subr.mxu0 0.0
    %1811 = vmatpush1.msra.mxu0 %v1690
    %1812 = vmatprep.subr.mxu0 0.0
    %1813 = vmatpush1.msra.mxu0 %v1683
    %1814 = vmatprep.subr.mxu0 0.0
    %1815 = vmatpush1.msra.mxu0 %v1681
    %1816 = vmatprep.subr.mxu0 0.0
    %1817 = vmatpush1.msra.mxu0 %v1679
    %1818 = vmatprep.subr.mxu0 0.0
    %1819 = vmatpush1.msra.mxu0 %v1677
    %1820 = vmatprep.subr.mxu0 0.0
    %1821 = vmatpush2.msra.mxu0 0.0
    %1822 = vmatprep.subr.mxu0 0.0
    %1823 = vmatpush2.msra.mxu0 0.0
    %1824 = vmatprep.subr.mxu0 0.0
    %1825 = vmatpush2.msra.mxu0 0.0
    %1826 = vmatprep.subr.mxu0 0.0
    %1827 = vmatpush2.msra.mxu0 0.0
    %1828 = vmatprep.subr.mxu0 0.0
    %1829 = vmatpush2.msra.mxu0 0.0
    %1830 = vmatprep.subr.mxu0 0.0
    %1831 = vmatpush2.msra.mxu0 0.0
    %1832 = vmatprep.subr.mxu0 0.0
    %1833 = vmatpush2.msra.mxu0 0.0
    %1834 = vmatprep.subr.mxu0 0.0
    %1835 = vmatpush2.msra.mxu0 0.0
    %1836 = vmatprep.subr.mxu0 0.0
    %1837 = vmatpush2.msra.mxu0 0.0
    %1838 = vmatprep.subr.mxu0 0.0
    %1839 = vmatpush2.msra.mxu0 0.0
    %1840 = vmatprep.subr.mxu0 0.0
    %1841 = vmatpush2.msra.mxu0 0.0
    %1842 = vmatprep.subr.mxu0 0.0
    %1843 = vmatpush2.msra.mxu0 0.0
    %1844 = vmatprep.subr.mxu0 0.0
    %1845 = vmatpush2.msra.mxu0 0.0
    %1846 = vmatprep.subr.mxu0 0.0
    %1847 = vmatpush2.msra.mxu0 0.0
    %1848 = vmatprep.subr.mxu0 0.0
    %1849 = vmatpush2.msra.mxu0 0.0
    %1850 = vmatprep.subr.mxu0 0.0
    %1851 = vmatpush2.msra.mxu0 0.0
    %1852 = vmatprep.mubr.f32.mxu0 0.0
    %1853 = vmatmul.mubr.f32.gmra.mxu0 %v353
    %v1854 = vpop.f32.mrf.mxu0
    %v1855 = vadd.f32 0.0, %v1854
    %v1856 = vpop.f32.mrf.mxu0
    %1857 = vmatprep.mubr.f32.mxu0 0.0
    %1858 = vmatmul.mubr.f32.gmra.mxu0 %v356
    %v1859 = vpop.f32.mrf.mxu0
    %v1860 = vadd.f32 0.0, %v1859
    %v1861 = vpop.f32.mrf.mxu0
    %1862 = vmatprep.mubr.f32.mxu0 0.0
    %1863 = vmatmul.mubr.f32.gmra.mxu0 %v359
    %v1864 = vpop.f32.mrf.mxu0
    %v1865 = vadd.f32 0.0, %v1864
    %v1866 = vpop.f32.mrf.mxu0
    %1867 = vmatprep.mubr.f32.mxu0 0.0
    %1868 = vmatmul.mubr.f32.gmra.mxu0 %v362
    %v1869 = vpop.f32.mrf.mxu0
    %v1870 = vadd.f32 0.0, %v1869
    %v1871 = vpop.f32.mrf.mxu0
    %1872 = vmatprep.mubr.f32.mxu0 0.0
    %1873 = vmatmul.mubr.f32.gmra.mxu0 %v365
    %v1874 = vpop.f32.mrf.mxu0
    %v1875 = vadd.f32 0.0, %v1874
    %v1876 = vpop.f32.mrf.mxu0
    %1877 = vdwg.mxu0
    %v1878 = vpack.c.bf16 %v1860, %v1855
    %v1879 = vpack.c.bf16 %v1870, %v1865
    %v1880 = vpack.c.bf16 %v1875, %v1875
    %s1881 = scalar_lea.vmem %s5, 56
    %v1882 = vld [vmem:[%s1881] sm:$0xf]
    %v1883 = vld [vmem:[%s1881 + $0x4] sm:$0xf]
    %v1886 = vunpack.c.l.b16 %v1882
    %v1887 = vunpack.c.l.b16 %v1883
    %v1888 = vpack.c.b16 %v1887, %v1886
    %v1891 = vsel %vm469, %v1878, 0
    %v1894 = vsel %vm469, %v1879, 0
    %v1897 = vsel %vm469, %v1880, 0
    %1899 = vmatprep.subr.bf16.mxu0 0
    %1900 = vmatpush1.bf16.msra.mxu0 0
    %1901 = vmatprep.subr.bf16.mxu0 0
    %1902 = vmatpush1.bf16.msra.mxu0 0
    %1903 = vmatprep.subr.bf16.mxu0 0
    %1904 = vmatpush1.bf16.msra.mxu0 0
    %1905 = vmatprep.subr.bf16.mxu0 0
    %1906 = vmatpush1.bf16.msra.mxu0 0
    %1907 = vmatprep.subr.bf16.mxu0 0
    %1908 = vmatpush1.bf16.msra.mxu0 0
    %1909 = vmatprep.subr.bf16.mxu0 0
    %1910 = vmatpush1.bf16.msra.mxu0 0
    %1911 = vmatprep.subr.bf16.mxu0 0
    %1912 = vmatpush1.bf16.msra.mxu0 0
    %1913 = vmatprep.subr.bf16.mxu0 0
    %1914 = vmatpush1.bf16.msra.mxu0 %v1888
    %1915 = vmatprep.subr.bf16.mxu0 0
    %1916 = vmatpush2.bf16.msra.mxu0 0
    %1917 = vmatprep.subr.bf16.mxu0 0
    %1918 = vmatpush2.bf16.msra.mxu0 0
    %1919 = vmatprep.subr.bf16.mxu0 0
    %1920 = vmatpush2.bf16.msra.mxu0 0
    %1921 = vmatprep.subr.bf16.mxu0 0
    %1922 = vmatpush2.bf16.msra.mxu0 0
    %1923 = vmatprep.subr.bf16.mxu0 0
    %1924 = vmatpush2.bf16.msra.mxu0 0
    %1925 = vmatprep.subr.bf16.mxu0 0
    %1926 = vmatpush2.bf16.msra.mxu0 0
    %1927 = vmatprep.subr.bf16.mxu0 0
    %1928 = vmatpush2.bf16.msra.mxu0 0
    %1929 = vmatprep.subr.bf16.mxu0 0
    %1930 = vmatpush2.bf16.msra.mxu0 0
    %1931 = vmatprep.mubr.bf16.mxu0 0
    %1932 = vmatmul.mubr.bf16.gmra.mxu0 %v1891
    %v1933 = vpop.f32.mrf.mxu0
    %v1934 = vadd.f32 0.0, %v1933
    %v1935 = vpop.f32.mrf.mxu0
    %v1936 = vpop.f32.mrf.mxu0
    %v1937 = vadd.f32 0.0, %v1936
    %v1938 = vpop.f32.mrf.mxu0
    %1939 = vmatprep.mubr.bf16.mxu0 0
    %1940 = vmatmul.mubr.bf16.gmra.mxu0 %v1894
    %v1941 = vpop.f32.mrf.mxu0
    %v1942 = vadd.f32 0.0, %v1941
    %v1943 = vpop.f32.mrf.mxu0
    %v1944 = vpop.f32.mrf.mxu0
    %v1945 = vadd.f32 0.0, %v1944
    %v1946 = vpop.f32.mrf.mxu0
    %1947 = vmatprep.mubr.bf16.mxu0 0
    %1948 = vmatmul.mubr.bf16.gmra.mxu0 %v1897
    %v1949 = vpop.f32.mrf.mxu0
    %v1950 = vadd.f32 0.0, %v1949
    %v1951 = vpop.f32.mrf.mxu0
    %v1952 = vpop.f32.mrf.mxu0
    %v1953 = vpop.f32.mrf.mxu0
    %1954 = vdwg.mxu0
    %v1957 = vunpack.c.l.b16 %v1786
    %v1958 = vunpack.c.l.b16 %v1787
    %v1959 = vpack.c.b16 %v1958, %v1957
    %v1962 = vsel %vm469, %v1782, 0
    %v1965 = vsel %vm469, %v1783, 0
    %v1968 = vsel %vm469, %v1784, 0
    %1970 = vmatprep.subr.bf16.mxu0 0
    %1971 = vmatpush1.bf16.msra.mxu0 0
    %1972 = vmatprep.subr.bf16.mxu0 0
    %1973 = vmatpush1.bf16.msra.mxu0 0
    %1974 = vmatprep.subr.bf16.mxu0 0
    %1975 = vmatpush1.bf16.msra.mxu0 0
    %1976 = vmatprep.subr.bf16.mxu0 0
    %1977 = vmatpush1.bf16.msra.mxu0 0
    %1978 = vmatprep.subr.bf16.mxu0 0
    %1979 = vmatpush1.bf16.msra.mxu0 0
    %1980 = vmatprep.subr.bf16.mxu0 0
    %1981 = vmatpush1.bf16.msra.mxu0 0
    %1982 = vmatprep.subr.bf16.mxu0 0
    %1983 = vmatpush1.bf16.msra.mxu0 0
    %1984 = vmatprep.subr.bf16.mxu0 0
    %1985 = vmatpush1.bf16.msra.mxu0 %v1959
    %1986 = vmatprep.subr.bf16.mxu0 0
    %1987 = vmatpush2.bf16.msra.mxu0 0
    %1988 = vmatprep.subr.bf16.mxu0 0
    %1989 = vmatpush2.bf16.msra.mxu0 0
    %1990 = vmatprep.subr.bf16.mxu0 0
    %1991 = vmatpush2.bf16.msra.mxu0 0
    %1992 = vmatprep.subr.bf16.mxu0 0
    %1993 = vmatpush2.bf16.msra.mxu0 0
    %1994 = vmatprep.subr.bf16.mxu0 0
    %1995 = vmatpush2.bf16.msra.mxu0 0
    %1996 = vmatprep.subr.bf16.mxu0 0
    %1997 = vmatpush2.bf16.msra.mxu0 0
    %1998 = vmatprep.subr.bf16.mxu0 0
    %1999 = vmatpush2.bf16.msra.mxu0 0
    %2000 = vmatprep.subr.bf16.mxu0 0
    %2001 = vmatpush2.bf16.msra.mxu0 0
    %2002 = vmatprep.mubr.bf16.mxu0 0
    %2003 = vmatmul.mubr.bf16.gmra.mxu0 %v1962
    %v2004 = vpop.f32.mrf.mxu0
    %v2005 = vadd.f32 %v1934, %v2004
    %v2006 = vpop.f32.mrf.mxu0
    %v2007 = vpop.f32.mrf.mxu0
    %v2008 = vadd.f32 %v1937, %v2007
    %v2009 = vpop.f32.mrf.mxu0
    %2010 = vmatprep.mubr.bf16.mxu0 0
    %2011 = vmatmul.mubr.bf16.gmra.mxu0 %v1965
    %v2012 = vpop.f32.mrf.mxu0
    %v2013 = vadd.f32 %v1942, %v2012
    %v2014 = vpop.f32.mrf.mxu0
    %v2015 = vpop.f32.mrf.mxu0
    %v2016 = vadd.f32 %v1945, %v2015
    %v2017 = vpop.f32.mrf.mxu0
    %2018 = vmatprep.mubr.bf16.mxu0 0
    %2019 = vmatmul.mubr.bf16.gmra.mxu0 %v1968
    %v2020 = vpop.f32.mrf.mxu0
    %v2021 = vadd.f32 %v1950, %v2020
    %v2022 = vpop.f32.mrf.mxu0
    %v2023 = vpop.f32.mrf.mxu0
    %v2024 = vpop.f32.mrf.mxu0
    %2025 = vdwg.mxu0
    %2026 = vmatprep.subr.mxu0 0.0
    %2027 = vmatpush1.msra.mxu0 0.0
    %2028 = vmatprep.subr.mxu0 0.0
    %2029 = vmatpush1.msra.mxu0 0.0
    %2030 = vmatprep.subr.mxu0 0.0
    %2031 = vmatpush1.msra.mxu0 0.0
    %2032 = vmatprep.subr.mxu0 0.0
    %2033 = vmatpush1.msra.mxu0 0.0
    %2034 = vmatprep.subr.mxu0 0.0
    %2035 = vmatpush1.msra.mxu0 0.0
    %2036 = vmatprep.subr.mxu0 0.0
    %2037 = vmatpush1.msra.mxu0 0.0
    %2038 = vmatprep.subr.mxu0 0.0
    %2039 = vmatpush1.msra.mxu0 0.0
    %2040 = vmatprep.subr.mxu0 0.0
    %2041 = vmatpush1.msra.mxu0 0.0
    %2042 = vmatprep.subr.mxu0 0.0
    %2043 = vmatpush1.msra.mxu0 0.0
    %2044 = vmatprep.subr.mxu0 0.0
    %2045 = vmatpush1.msra.mxu0 0.0
    %2046 = vmatprep.subr.mxu0 0.0
    %2047 = vmatpush1.msra.mxu0 0.0
    %2048 = vmatprep.subr.mxu0 0.0
    %2049 = vmatpush1.msra.mxu0 %v1690
    %2050 = vmatprep.subr.mxu0 0.0
    %2051 = vmatpush1.msra.mxu0 %v1683
    %2052 = vmatprep.subr.mxu0 0.0
    %2053 = vmatpush1.msra.mxu0 %v1681
    %2054 = vmatprep.subr.mxu0 0.0
    %2055 = vmatpush1.msra.mxu0 %v1679
    %2056 = vmatprep.subr.mxu0 0.0
    %2057 = vmatpush1.msra.mxu0 %v1677
    %2058 = vmatprep.subr.mxu0 0.0
    %2059 = vmatpush2.msra.mxu0 0.0
    %2060 = vmatprep.subr.mxu0 0.0
    %2061 = vmatpush2.msra.mxu0 0.0
    %2062 = vmatprep.subr.mxu0 0.0
    %2063 = vmatpush2.msra.mxu0 0.0
    %2064 = vmatprep.subr.mxu0 0.0
    %2065 = vmatpush2.msra.mxu0 0.0
    %2066 = vmatprep.subr.mxu0 0.0
    %2067 = vmatpush2.msra.mxu0 0.0
    %2068 = vmatprep.subr.mxu0 0.0
    %2069 = vmatpush2.msra.mxu0 0.0
    %2070 = vmatprep.subr.mxu0 0.0
    %2071 = vmatpush2.msra.mxu0 0.0
    %2072 = vmatprep.subr.mxu0 0.0
    %2073 = vmatpush2.msra.mxu0 0.0
    %2074 = vmatprep.subr.mxu0 0.0
    %2075 = vmatpush2.msra.mxu0 0.0
    %2076 = vmatprep.subr.mxu0 0.0
    %2077 = vmatpush2.msra.mxu0 0.0
    %2078 = vmatprep.subr.mxu0 0.0
    %2079 = vmatpush2.msra.mxu0 0.0
    %2080 = vmatprep.subr.mxu0 0.0
    %2081 = vmatpush2.msra.mxu0 0.0
    %2082 = vmatprep.subr.mxu0 0.0
    %2083 = vmatpush2.msra.mxu0 0.0
    %2084 = vmatprep.subr.mxu0 0.0
    %2085 = vmatpush2.msra.mxu0 0.0
    %2086 = vmatprep.subr.mxu0 0.0
    %2087 = vmatpush2.msra.mxu0 0.0
    %2088 = vmatprep.subr.mxu0 0.0
    %2089 = vmatpush2.msra.mxu0 0.0
    %2090 = vmatprep.mubr.f32.mxu0 0.0
    %2091 = vmatmul.mubr.f32.gmra.mxu0 %v613
    %v2092 = vpop.f32.mrf.mxu0
    %v2093 = vadd.f32 0.0, %v2092
    %v2094 = vpop.f32.mrf.mxu0
    %2095 = vmatprep.mubr.f32.mxu0 0.0
    %2096 = vmatmul.mubr.f32.gmra.mxu0 %v616
    %v2097 = vpop.f32.mrf.mxu0
    %v2098 = vadd.f32 0.0, %v2097
    %v2099 = vpop.f32.mrf.mxu0
    %2100 = vmatprep.mubr.f32.mxu0 0.0
    %2101 = vmatmul.mubr.f32.gmra.mxu0 %v619
    %v2102 = vpop.f32.mrf.mxu0
    %v2103 = vadd.f32 0.0, %v2102
    %v2104 = vpop.f32.mrf.mxu0
    %2105 = vmatprep.mubr.f32.mxu0 0.0
    %2106 = vmatmul.mubr.f32.gmra.mxu0 %v622
    %v2107 = vpop.f32.mrf.mxu0
    %v2108 = vadd.f32 0.0, %v2107
    %v2109 = vpop.f32.mrf.mxu0
    %2110 = vmatprep.mubr.f32.mxu0 0.0
    %2111 = vmatmul.mubr.f32.gmra.mxu0 %v625
    %v2112 = vpop.f32.mrf.mxu0
    %v2113 = vadd.f32 0.0, %v2112
    %v2114 = vpop.f32.mrf.mxu0
    %2115 = vdwg.mxu0
    %v2116 = vpack.c.bf16 %v2098, %v2093
    %v2117 = vpack.c.bf16 %v2108, %v2103
    %v2118 = vpack.c.bf16 %v2113, %v2113
    %s2119 = scalar_lea.vmem %s5, 64
    %v2120 = vld [vmem:[%s2119] sm:$0xf]
    %v2121 = vld [vmem:[%s2119 + $0x4] sm:$0xf]
    %v2124 = vunpack.c.l.b16 %v2120
    %v2125 = vunpack.c.l.b16 %v2121
    %v2126 = vpack.c.b16 %v2125, %v2124
    %v2129 = vsel %vm469, %v2116, 0
    %v2132 = vsel %vm469, %v2117, 0
    %v2135 = vsel %vm469, %v2118, 0
    %2137 = vmatprep.subr.bf16.mxu0 0
    %2138 = vmatpush1.bf16.msra.mxu0 0
    %2139 = vmatprep.subr.bf16.mxu0 0
    %2140 = vmatpush1.bf16.msra.mxu0 0
    %2141 = vmatprep.subr.bf16.mxu0 0
    %2142 = vmatpush1.bf16.msra.mxu0 0
    %2143 = vmatprep.subr.bf16.mxu0 0
    %2144 = vmatpush1.bf16.msra.mxu0 0
    %2145 = vmatprep.subr.bf16.mxu0 0
    %2146 = vmatpush1.bf16.msra.mxu0 0
    %2147 = vmatprep.subr.bf16.mxu0 0
    %2148 = vmatpush1.bf16.msra.mxu0 0
    %2149 = vmatprep.subr.bf16.mxu0 0
    %2150 = vmatpush1.bf16.msra.mxu0 0
    %2151 = vmatprep.subr.bf16.mxu0 0
    %2152 = vmatpush1.bf16.msra.mxu0 %v2126
    %2153 = vmatprep.subr.bf16.mxu0 0
    %2154 = vmatpush2.bf16.msra.mxu0 0
    %2155 = vmatprep.subr.bf16.mxu0 0
    %2156 = vmatpush2.bf16.msra.mxu0 0
    %2157 = vmatprep.subr.bf16.mxu0 0
    %2158 = vmatpush2.bf16.msra.mxu0 0
    %2159 = vmatprep.subr.bf16.mxu0 0
    %2160 = vmatpush2.bf16.msra.mxu0 0
    %2161 = vmatprep.subr.bf16.mxu0 0
    %2162 = vmatpush2.bf16.msra.mxu0 0
    %2163 = vmatprep.subr.bf16.mxu0 0
    %2164 = vmatpush2.bf16.msra.mxu0 0
    %2165 = vmatprep.subr.bf16.mxu0 0
    %2166 = vmatpush2.bf16.msra.mxu0 0
    %2167 = vmatprep.subr.bf16.mxu0 0
    %2168 = vmatpush2.bf16.msra.mxu0 0
    %2169 = vmatprep.mubr.bf16.mxu0 0
    %2170 = vmatmul.mubr.bf16.gmra.mxu0 %v2129
    %v2171 = vpop.f32.mrf.mxu0
    %v2172 = vadd.f32 0.0, %v2171
    %v2173 = vpop.f32.mrf.mxu0
    %v2174 = vpop.f32.mrf.mxu0
    %v2175 = vadd.f32 0.0, %v2174
    %v2176 = vpop.f32.mrf.mxu0
    %2177 = vmatprep.mubr.bf16.mxu0 0
    %2178 = vmatmul.mubr.bf16.gmra.mxu0 %v2132
    %v2179 = vpop.f32.mrf.mxu0
    %v2180 = vadd.f32 0.0, %v2179
    %v2181 = vpop.f32.mrf.mxu0
    %v2182 = vpop.f32.mrf.mxu0
    %v2183 = vadd.f32 0.0, %v2182
    %v2184 = vpop.f32.mrf.mxu0
    %2185 = vmatprep.mubr.bf16.mxu0 0
    %2186 = vmatmul.mubr.bf16.gmra.mxu0 %v2135
    %v2187 = vpop.f32.mrf.mxu0
    %v2188 = vadd.f32 0.0, %v2187
    %v2189 = vpop.f32.mrf.mxu0
    %v2190 = vpop.f32.mrf.mxu0
    %v2191 = vpop.f32.mrf.mxu0
    %2192 = vdwg.mxu0
    %v2193 = vadd.f32 %v2005, %v2172
    %v2194 = vadd.f32 %v2008, %v2175
    %v2195 = vadd.f32 %v2013, %v2180
    %v2196 = vadd.f32 %v2016, %v2183
    %v2197 = vadd.f32 %v2021, %v2188
    %s2198 = scalar_lea.vmem %s6, 8
    %v2199 = vld [vmem:[%s2198] sm:$0x7]
    %v2200 = vlaneseq
    %v2201 = vshrl.u32 %v2200, 7
    %v2202 = vsub.s32 0, %v2201
    %v2203 = vrot.slane %v2199, %v2202
    %v2204 = vadd.f32 %v2193, %v2203
    %v2205 = vadd.f32 %v2194, %v2203
    %v2206 = vadd.f32 %v2195, %v2203
    %v2207 = vadd.f32 %v2196, %v2203
    %v2208 = vadd.f32 %v2197, %v2203
    %v2209 = vmax.f32 %v2204, 0.0
    %v2210 = vmax.f32 %v2205, 0.0
    %v2211 = vmax.f32 %v2206, 0.0
    %v2212 = vmax.f32 %v2207, 0.0
    %v2213 = vmax.f32 %v2208, 0.0
    %v2214 = vlaneseq
    %v2215 = vshrl.u32 %v2214, 7
    %v2216 = vsub.s32 1, %v2215
    %v2217 = vrot.slane %v2199, %v2216
    %v2218 = vmul.f32 %v2209, %v2217
    %v2219 = vmul.f32 %v2210, %v2217
    %v2220 = vmul.f32 %v2211, %v2217
    %v2221 = vmul.f32 %v2212, %v2217
    %v2222 = vmul.f32 %v2213, %v2217
    %v2223 = vlaneseq
    %v2224 = vshrl.u32 %v2223, 7
    %v2225 = vsub.s32 2, %v2224
    %v2226 = vrot.slane %v2199, %v2225
    %v2227 = vadd.f32 %v2218, %v2226
    %v2228 = vadd.f32 %v2219, %v2226
    %v2229 = vadd.f32 %v2220, %v2226
    %v2230 = vadd.f32 %v2221, %v2226
    %v2231 = vadd.f32 %v2222, %v2226
    %v2232 = vpack.c.bf16 %v2228, %v2227
    %v2233 = vpack.c.bf16 %v2230, %v2229
    %v2234 = vpack.c.bf16 %v2231, %v2231
    %v2235 = vld [vmem:[%s7 + $0x18] sm:$0xf]
    %v2236 = vld [vmem:[%s7 + $0x1c] sm:$0xf]
    %v2239 = vunpack.c.l.b16 %v2235
    %v2240 = vunpack.c.l.b16 %v2236
    %v2241 = vpack.c.b16 %v2240, %v2239
    %v2244 = vsel %vm469, %v2232, 0
    %v2247 = vsel %vm469, %v2233, 0
    %v2250 = vsel %vm469, %v2234, 0
    %2252 = vmatprep.subr.bf16.mxu0 0
    %2253 = vmatpush1.bf16.msra.mxu0 0
    %2254 = vmatprep.subr.bf16.mxu0 0
    %2255 = vmatpush1.bf16.msra.mxu0 0
    %2256 = vmatprep.subr.bf16.mxu0 0
    %2257 = vmatpush1.bf16.msra.mxu0 0
    %2258 = vmatprep.subr.bf16.mxu0 0
    %2259 = vmatpush1.bf16.msra.mxu0 0
    %2260 = vmatprep.subr.bf16.mxu0 0
    %2261 = vmatpush1.bf16.msra.mxu0 0
    %2262 = vmatprep.subr.bf16.mxu0 0
    %2263 = vmatpush1.bf16.msra.mxu0 0
    %2264 = vmatprep.subr.bf16.mxu0 0
    %2265 = vmatpush1.bf16.msra.mxu0 0
    %2266 = vmatprep.subr.bf16.mxu0 0
    %2267 = vmatpush1.bf16.msra.mxu0 %v2241
    %2268 = vmatprep.subr.bf16.mxu0 0
    %2269 = vmatpush2.bf16.msra.mxu0 0
    %2270 = vmatprep.subr.bf16.mxu0 0
    %2271 = vmatpush2.bf16.msra.mxu0 0
    %2272 = vmatprep.subr.bf16.mxu0 0
    %2273 = vmatpush2.bf16.msra.mxu0 0
    %2274 = vmatprep.subr.bf16.mxu0 0
    %2275 = vmatpush2.bf16.msra.mxu0 0
    %2276 = vmatprep.subr.bf16.mxu0 0
    %2277 = vmatpush2.bf16.msra.mxu0 0
    %2278 = vmatprep.subr.bf16.mxu0 0
    %2279 = vmatpush2.bf16.msra.mxu0 0
    %2280 = vmatprep.subr.bf16.mxu0 0
    %2281 = vmatpush2.bf16.msra.mxu0 0
    %2282 = vmatprep.subr.bf16.mxu0 0
    %2283 = vmatpush2.bf16.msra.mxu0 0
    %2284 = vmatprep.mubr.bf16.mxu0 0
    %2285 = vmatmul.mubr.bf16.gmra.mxu0 %v2244
    %v2286 = vpop.f32.mrf.mxu0
    %v2287 = vadd.f32 0.0, %v2286
    %v2288 = vpop.f32.mrf.mxu0
    %v2289 = vpop.f32.mrf.mxu0
    %v2290 = vadd.f32 0.0, %v2289
    %v2291 = vpop.f32.mrf.mxu0
    %2292 = vmatprep.mubr.bf16.mxu0 0
    %2293 = vmatmul.mubr.bf16.gmra.mxu0 %v2247
    %v2294 = vpop.f32.mrf.mxu0
    %v2295 = vadd.f32 0.0, %v2294
    %v2296 = vpop.f32.mrf.mxu0
    %v2297 = vpop.f32.mrf.mxu0
    %v2298 = vadd.f32 0.0, %v2297
    %v2299 = vpop.f32.mrf.mxu0
    %2300 = vmatprep.mubr.bf16.mxu0 0
    %2301 = vmatmul.mubr.bf16.gmra.mxu0 %v2250
    %v2302 = vpop.f32.mrf.mxu0
    %v2303 = vadd.f32 0.0, %v2302
    %v2304 = vpop.f32.mrf.mxu0
    %v2305 = vpop.f32.mrf.mxu0
    %v2306 = vpop.f32.mrf.mxu0
    %2307 = vdwg.mxu0
    %v2308 = vadd.f32 %v1641, %v2287
    %v2309 = vadd.f32 %v1642, %v2290
    %v2310 = vadd.f32 %v1643, %v2295
    %v2311 = vadd.f32 %v1644, %v2298
    %v2312 = vadd.f32 %v1645, %v2303
    %v2313 = vld [vmem:[%s8] sm:$0x7]
    %v2314 = vlaneseq
    %v2315 = vshrl.u32 %v2314, 7
    %v2316 = vsub.s32 0, %v2315
    %v2317 = vrot.slane %v2313, %v2316
    %v2318 = vadd.f32 %v2308, %v2317
    %v2319 = vadd.f32 %v2309, %v2317
    %v2320 = vadd.f32 %v2310, %v2317
    %v2321 = vadd.f32 %v2311, %v2317
    %v2322 = vadd.f32 %v2312, %v2317
    %v2323 = vmax.f32 %v2318, 0.0
    %v2324 = vmax.f32 %v2319, 0.0
    %v2325 = vmax.f32 %v2320, 0.0
    %v2326 = vmax.f32 %v2321, 0.0
    %v2327 = vmax.f32 %v2322, 0.0
    %v2328 = vlaneseq
    %v2329 = vshrl.u32 %v2328, 7
    %v2330 = vsub.s32 1, %v2329
    %v2331 = vrot.slane %v2313, %v2330
    %v2332 = vmul.f32 %v2323, %v2331
    %v2333 = vmul.f32 %v2324, %v2331
    %v2334 = vmul.f32 %v2325, %v2331
    %v2335 = vmul.f32 %v2326, %v2331
    %v2336 = vmul.f32 %v2327, %v2331
    %v2337 = vlaneseq
    %v2338 = vshrl.u32 %v2337, 7
    %v2339 = vsub.s32 2, %v2338
    %v2340 = vrot.slane %v2313, %v2339
    %v2341 = vadd.f32 %v2332, %v2340
    %v2342 = vadd.f32 %v2333, %v2340
    %v2343 = vadd.f32 %v2334, %v2340
    %v2344 = vadd.f32 %v2335, %v2340
    %v2345 = vadd.f32 %v2336, %v2340
    %v2346 = vld [vmem:[%s2] sm:$0xff]
    %v2347 = vld [vmem:[%s2 + $0x8] sm:$0xff]
    %v2348 = vld [vmem:[%s2 + $0x10] sm:$0xff]
    %v2349 = vld [vmem:[%s2 + $0x18] sm:$0xff]
    %v2350 = vld [vmem:[%s2 + $0x20] sm:$0xf]
    %v2352 = vsel %vm232, %v2346, 0
    %v2355 = vsel %vm232, %v2347, 0
    %v2358 = vsel %vm232, %v2348, 0
    %v2361 = vsel %vm232, %v2349, 0
    %v2364 = vsel %vm232, %v2350, 0
    %v2367 = vsel %vm248, %v2345, 0
    %2369 = vmatprep.subr.mxu0 0.0
    %2370 = vmatpush1.msra.mxu0 0.0
    %2371 = vmatprep.subr.mxu0 0.0
    %2372 = vmatpush1.msra.mxu0 0.0
    %2373 = vmatprep.subr.mxu0 0.0
    %2374 = vmatpush1.msra.mxu0 0.0
    %2375 = vmatprep.subr.mxu0 0.0
    %2376 = vmatpush1.msra.mxu0 0.0
    %2377 = vmatprep.subr.mxu0 0.0
    %2378 = vmatpush1.msra.mxu0 0.0
    %2379 = vmatprep.subr.mxu0 0.0
    %2380 = vmatpush1.msra.mxu0 0.0
    %2381 = vmatprep.subr.mxu0 0.0
    %2382 = vmatpush1.msra.mxu0 0.0
    %2383 = vmatprep.subr.mxu0 0.0
    %2384 = vmatpush1.msra.mxu0 0.0
    %2385 = vmatprep.subr.mxu0 0.0
    %2386 = vmatpush1.msra.mxu0 0.0
    %2387 = vmatprep.subr.mxu0 0.0
    %2388 = vmatpush1.msra.mxu0 0.0
    %2389 = vmatprep.subr.mxu0 0.0
    %2390 = vmatpush1.msra.mxu0 0.0
    %2391 = vmatprep.subr.mxu0 0.0
    %2392 = vmatpush1.msra.mxu0 %v2367
    %2393 = vmatprep.subr.mxu0 0.0
    %2394 = vmatpush1.msra.mxu0 %v2344
    %2395 = vmatprep.subr.mxu0 0.0
    %2396 = vmatpush1.msra.mxu0 %v2343
    %2397 = vmatprep.subr.mxu0 0.0
    %2398 = vmatpush1.msra.mxu0 %v2342
    %2399 = vmatprep.subr.mxu0 0.0
    %2400 = vmatpush1.msra.mxu0 %v2341
    %2401 = vmatprep.subr.mxu0 0.0
    %2402 = vmatpush2.msra.mxu0 0.0
    %2403 = vmatprep.subr.mxu0 0.0
    %2404 = vmatpush2.msra.mxu0 0.0
    %2405 = vmatprep.subr.mxu0 0.0
    %2406 = vmatpush2.msra.mxu0 0.0
    %2407 = vmatprep.subr.mxu0 0.0
    %2408 = vmatpush2.msra.mxu0 0.0
    %2409 = vmatprep.subr.mxu0 0.0
    %2410 = vmatpush2.msra.mxu0 0.0
    %2411 = vmatprep.subr.mxu0 0.0
    %2412 = vmatpush2.msra.mxu0 0.0
    %2413 = vmatprep.subr.mxu0 0.0
    %2414 = vmatpush2.msra.mxu0 0.0
    %2415 = vmatprep.subr.mxu0 0.0
    %2416 = vmatpush2.msra.mxu0 0.0
    %2417 = vmatprep.subr.mxu0 0.0
    %2418 = vmatpush2.msra.mxu0 0.0
    %2419 = vmatprep.subr.mxu0 0.0
    %2420 = vmatpush2.msra.mxu0 0.0
    %2421 = vmatprep.subr.mxu0 0.0
    %2422 = vmatpush2.msra.mxu0 0.0
    %2423 = vmatprep.subr.mxu0 0.0
    %2424 = vmatpush2.msra.mxu0 0.0
    %2425 = vmatprep.subr.mxu0 0.0
    %2426 = vmatpush2.msra.mxu0 0.0
    %2427 = vmatprep.subr.mxu0 0.0
    %2428 = vmatpush2.msra.mxu0 0.0
    %2429 = vmatprep.subr.mxu0 0.0
    %2430 = vmatpush2.msra.mxu0 0.0
    %2431 = vmatprep.subr.mxu0 0.0
    %2432 = vmatpush2.msra.mxu0 0.0
    %2433 = vmatprep.mubr.f32.mxu0 0.0
    %2434 = vmatmul.mubr.f32.gmra.mxu0 %v2352
    %v2435 = vpop.f32.mrf.mxu0
    %v2436 = vadd.f32 0.0, %v2435
    %v2437 = vpop.f32.mrf.mxu0
    %2438 = vmatprep.mubr.f32.mxu0 0.0
    %2439 = vmatmul.mubr.f32.gmra.mxu0 %v2355
    %v2440 = vpop.f32.mrf.mxu0
    %v2441 = vadd.f32 0.0, %v2440
    %v2442 = vpop.f32.mrf.mxu0
    %2443 = vmatprep.mubr.f32.mxu0 0.0
    %2444 = vmatmul.mubr.f32.gmra.mxu0 %v2358
    %v2445 = vpop.f32.mrf.mxu0
    %v2446 = vadd.f32 0.0, %v2445
    %v2447 = vpop.f32.mrf.mxu0
    %2448 = vmatprep.mubr.f32.mxu0 0.0
    %2449 = vmatmul.mubr.f32.gmra.mxu0 %v2361
    %v2450 = vpop.f32.mrf.mxu0
    %v2451 = vadd.f32 0.0, %v2450
    %v2452 = vpop.f32.mrf.mxu0
    %2453 = vmatprep.mubr.f32.mxu0 0.0
    %2454 = vmatmul.mubr.f32.gmra.mxu0 %v2364
    %v2455 = vpop.f32.mrf.mxu0
    %v2456 = vadd.f32 0.0, %v2455
    %v2457 = vpop.f32.mrf.mxu0
    %2458 = vdwg.mxu0
    %v2459 = vpack.c.bf16 %v2441, %v2436
    %v2460 = vpack.c.bf16 %v2451, %v2446
    %v2461 = vpack.c.bf16 %v2456, %v2456
    %v2462 = vld [vmem:[%s9] sm:$0xf]
    %v2463 = vld [vmem:[%s9 + $0x4] sm:$0xf]
    %v2464 = vld [vmem:[%s9 + $0x8] sm:$0xf]
    %v2465 = vld [vmem:[%s9 + $0xc] sm:$0xf]
    %v2466 = vld [vmem:[%s9 + $0x10] sm:$0xf]
    %v2467 = vld [vmem:[%s9 + $0x14] sm:$0xf]
    %v2468 = vld [vmem:[%s9 + $0x18] sm:$0xf]
    %v2469 = vld [vmem:[%s9 + $0x1c] sm:$0xf]
    %v2470 = vld [vmem:[#allocation2] sm:$0x1]
    %v2472 = vlaneseq
    %v2473 = vshrl.u32 %v2472, 7
    %v2474 = vsub.s32 0, %v2473
    %v2475 = vrot.slane %v2470, %v2474
    %v2485 = vunpack.c.l.b16 %v2462
    %v2486 = vunpack.c.l.b16 %v2463
    %v2487 = vunpack.c.l.b16 %v2464
    %v2488 = vunpack.c.l.b16 %v2465
    %v2489 = vunpack.c.l.b16 %v2466
    %v2490 = vunpack.c.l.b16 %v2467
    %v2491 = vunpack.c.l.b16 %v2468
    %v2492 = vunpack.c.l.b16 %v2469
    %v2493 = vpack.c.b16 %v2486, %v2485
    %v2494 = vpack.c.b16 %v2488, %v2487
    %v2495 = vpack.c.b16 %v2490, %v2489
    %v2496 = vpack.c.b16 %v2492, %v2491
    %v2502 = vsel %vm114, %v2459, 0
    %v2505 = vsel %vm114, %v2460, 0
    %v2508 = vsel %vm114, %v2461, 0
    %2510 = vmatprep.subr.bf16.mxu0 0
    %2511 = vmatpush1.bf16.msra.mxu0 0
    %2512 = vmatprep.subr.bf16.mxu0 0
    %2513 = vmatpush1.bf16.msra.mxu0 0
    %2514 = vmatprep.subr.bf16.mxu0 0
    %2515 = vmatpush1.bf16.msra.mxu0 0
    %2516 = vmatprep.subr.bf16.mxu0 0
    %2517 = vmatpush1.bf16.msra.mxu0 0
    %2518 = vmatprep.subr.bf16.mxu0 0
    %2519 = vmatpush1.bf16.msra.mxu0 %v2496
    %2520 = vmatprep.subr.bf16.mxu0 0
    %2521 = vmatpush1.bf16.msra.mxu0 %v2495
    %2522 = vmatprep.subr.bf16.mxu0 0
    %2523 = vmatpush1.bf16.msra.mxu0 %v2494
    %2524 = vmatprep.subr.bf16.mxu0 0
    %2525 = vmatpush1.bf16.msra.mxu0 %v2493
    %2526 = vmatprep.subr.bf16.mxu0 0
    %2527 = vmatpush2.bf16.msra.mxu0 0
    %2528 = vmatprep.subr.bf16.mxu0 0
    %2529 = vmatpush2.bf16.msra.mxu0 0
    %2530 = vmatprep.subr.bf16.mxu0 0
    %2531 = vmatpush2.bf16.msra.mxu0 0
    %2532 = vmatprep.subr.bf16.mxu0 0
    %2533 = vmatpush2.bf16.msra.mxu0 0
    %2534 = vmatprep.subr.bf16.mxu0 0
    %2535 = vmatpush2.bf16.msra.mxu0 0
    %2536 = vmatprep.subr.bf16.mxu0 0
    %2537 = vmatpush2.bf16.msra.mxu0 0
    %2538 = vmatprep.subr.bf16.mxu0 0
    %2539 = vmatpush2.bf16.msra.mxu0 0
    %2540 = vmatprep.subr.bf16.mxu0 0
    %2541 = vmatpush2.bf16.msra.mxu0 0
    %2542 = vmatprep.mubr.bf16.mxu0 0
    %2543 = vmatmul.mubr.bf16.gmra.mxu0 %v2502
    %v2544 = vpop.f32.mrf.mxu0
    %v2545 = vadd.f32 %v2475, %v2544
    %v2546 = vpop.f32.mrf.mxu0
    %v2547 = vpop.f32.mrf.mxu0
    %v2548 = vadd.f32 %v2475, %v2547
    %v2549 = vpop.f32.mrf.mxu0
    %2550 = vmatprep.mubr.bf16.mxu0 0
    %2551 = vmatmul.mubr.bf16.gmra.mxu0 %v2505
    %v2552 = vpop.f32.mrf.mxu0
    %v2553 = vadd.f32 %v2475, %v2552
    %v2554 = vpop.f32.mrf.mxu0
    %v2555 = vpop.f32.mrf.mxu0
    %v2556 = vadd.f32 %v2475, %v2555
    %v2557 = vpop.f32.mrf.mxu0
    %2558 = vmatprep.mubr.bf16.mxu0 0
    %2559 = vmatmul.mubr.bf16.gmra.mxu0 %v2508
    %v2560 = vpop.f32.mrf.mxu0
    %v2561 = vadd.f32 %v2475, %v2560
    %v2562 = vpop.f32.mrf.mxu0
    %v2563 = vpop.f32.mrf.mxu0
    %v2564 = vpop.f32.mrf.mxu0
    %2565 = vdwg.mxu0
    %v2566 = vmax.f32 %v2545, 0.0
    %v2567 = vmax.f32 %v2548, 0.0
    %v2568 = vmax.f32 %v2553, 0.0
    %v2569 = vmax.f32 %v2556, 0.0
    %v2570 = vmax.f32 %v2561, 0.0
    %v2571 = vpack.c.bf16 %v2567, %v2566
    %v2572 = vpack.c.bf16 %v2569, %v2568
    %v2573 = vpack.c.bf16 %v2570, %v2570
    %v2574 = vld [vmem:[%s11] sm:$0xf]
    %v2575 = vld [vmem:[%s11 + $0x4] sm:$0xf]
    %v2576 = vld [vmem:[%s11 + $0x8] sm:$0xf]
    %v2577 = vld [vmem:[%s11 + $0xc] sm:$0xf]
    %v2578 = vld [vmem:[#allocation4] sm:$0x1]
    %v2580 = vlaneseq
    %v2581 = vshrl.u32 %v2580, 7
    %v2582 = vsub.s32 0, %v2581
    %v2583 = vrot.slane %v2578, %v2582
    %v2589 = vunpack.c.l.b16 %v2574
    %v2590 = vunpack.c.l.b16 %v2575
    %v2591 = vunpack.c.l.b16 %v2576
    %v2592 = vunpack.c.l.b16 %v2577
    %v2593 = vpack.c.b16 %v2590, %v2589
    %v2594 = vpack.c.b16 %v2592, %v2591
    %vm2597 = vcmask 261120
    %v2599 = vsel %vm2597, %v2571, 0
    %v2602 = vsel %vm2597, %v2572, 0
    %v2605 = vsel %vm2597, %v2573, 0
    %2607 = vmatprep.subr.bf16.mxu0 0
    %2608 = vmatpush1.bf16.msra.mxu0 0
    %2609 = vmatprep.subr.bf16.mxu0 0
    %2610 = vmatpush1.bf16.msra.mxu0 0
    %2611 = vmatprep.subr.bf16.mxu0 0
    %2612 = vmatpush1.bf16.msra.mxu0 0
    %2613 = vmatprep.subr.bf16.mxu0 0
    %2614 = vmatpush1.bf16.msra.mxu0 0
    %2615 = vmatprep.subr.bf16.mxu0 0
    %2616 = vmatpush1.bf16.msra.mxu0 0
    %2617 = vmatprep.subr.bf16.mxu0 0
    %2618 = vmatpush1.bf16.msra.mxu0 0
    %2619 = vmatprep.subr.bf16.mxu0 0
    %2620 = vmatpush1.bf16.msra.mxu0 %v2594
    %2621 = vmatprep.subr.bf16.mxu0 0
    %2622 = vmatpush1.bf16.msra.mxu0 %v2593
    %2623 = vmatprep.subr.bf16.mxu0 0
    %2624 = vmatpush2.bf16.msra.mxu0 0
    %2625 = vmatprep.subr.bf16.mxu0 0
    %2626 = vmatpush2.bf16.msra.mxu0 0
    %2627 = vmatprep.subr.bf16.mxu0 0
    %2628 = vmatpush2.bf16.msra.mxu0 0
    %2629 = vmatprep.subr.bf16.mxu0 0
    %2630 = vmatpush2.bf16.msra.mxu0 0
    %2631 = vmatprep.subr.bf16.mxu0 0
    %2632 = vmatpush2.bf16.msra.mxu0 0
    %2633 = vmatprep.subr.bf16.mxu0 0
    %2634 = vmatpush2.bf16.msra.mxu0 0
    %2635 = vmatprep.subr.bf16.mxu0 0
    %2636 = vmatpush2.bf16.msra.mxu0 0
    %2637 = vmatprep.subr.bf16.mxu0 0
    %2638 = vmatpush2.bf16.msra.mxu0 0
    %2639 = vmatprep.mubr.bf16.mxu0 0
    %2640 = vmatmul.mubr.bf16.gmra.mxu0 %v2599
    %v2641 = vpop.f32.mrf.mxu0
    %v2642 = vadd.f32 %v2583, %v2641
    %v2643 = vpop.f32.mrf.mxu0
    %v2644 = vpop.f32.mrf.mxu0
    %v2645 = vadd.f32 %v2583, %v2644
    %v2646 = vpop.f32.mrf.mxu0
    %2647 = vmatprep.mubr.bf16.mxu0 0
    %2648 = vmatmul.mubr.bf16.gmra.mxu0 %v2602
    %v2649 = vpop.f32.mrf.mxu0
    %v2650 = vadd.f32 %v2583, %v2649
    %v2651 = vpop.f32.mrf.mxu0
    %v2652 = vpop.f32.mrf.mxu0
    %v2653 = vadd.f32 %v2583, %v2652
    %v2654 = vpop.f32.mrf.mxu0
    %2655 = vmatprep.mubr.bf16.mxu0 0
    %2656 = vmatmul.mubr.bf16.gmra.mxu0 %v2605
    %v2657 = vpop.f32.mrf.mxu0
    %v2658 = vadd.f32 %v2583, %v2657
    %v2659 = vpop.f32.mrf.mxu0
    %v2660 = vpop.f32.mrf.mxu0
    %v2661 = vpop.f32.mrf.mxu0
    %2662 = vdwg.mxu0
    %v2663 = vxor.u32 %v2642, 2147483648
    %v2664 = vxor.u32 %v2645, 2147483648
    %v2665 = vxor.u32 %v2650, 2147483648
    %v2666 = vxor.u32 %v2653, 2147483648
    %v2667 = vxor.u32 %v2658, 2147483648
    %v2668 = vmul.f32 %v2663, 1.442695
    %v2669 = vpow.pop %v2668
    %v2670 = vmul.f32 %v2664, 1.442695
    %v2671 = vpow.pop %v2670
    %v2672 = vmul.f32 %v2665, 1.442695
    %v2673 = vpow.pop %v2672
    %v2674 = vmul.f32 %v2666, 1.442695
    %v2675 = vpow.pop %v2674
    %v2676 = vmul.f32 %v2667, 1.442695
    %v2677 = vpow.pop %v2676
    %v2678 = vadd.f32 %v2669, 1.0
    %v2679 = vadd.f32 %v2671, 1.0
    %v2680 = vadd.f32 %v2673, 1.0
    %v2681 = vadd.f32 %v2675, 1.0
    %v2682 = vadd.f32 %v2677, 1.0
    %v2683 = vrcp.pop %v2678
    %v2684 = vmul.f32 1.0, %v2683
    %v2685 = vrcp.pop %v2679
    %v2686 = vmul.f32 1.0, %v2685
    %v2687 = vrcp.pop %v2680
    %v2688 = vmul.f32 1.0, %v2687
    %v2689 = vrcp.pop %v2681
    %v2690 = vmul.f32 1.0, %v2689
    %v2691 = vrcp.pop %v2682
    %v2692 = vmul.f32 1.0, %v2691
    %v2693 = vmul.f32 %v2341, %v2684
    %v2694 = vmul.f32 %v2342, %v2686
    %v2695 = vmul.f32 %v2343, %v2688
    %v2696 = vmul.f32 %v2344, %v2690
    %v2697 = vmul.f32 %v2345, %v2692
    %v2698 = vadd.f32 %v2693, %v69
    %v2699 = vadd.f32 %v2694, %v70
    %v2700 = vadd.f32 %v2695, %v71
    %v2701 = vadd.f32 %v2696, %v72
    %v2702 = vadd.f32 %v2697, %v73
    %2703 = vst.msk [vmem:[%s13] sm:$0xff] %vm114, %v2698
    %2704 = vst.msk [vmem:[%s13 + $0x8] sm:$0xff] %vm114, %v2699
    %2705 = vst.msk [vmem:[%s13 + $0x10] sm:$0xff] %vm114, %v2700
    %2706 = vst.msk [vmem:[%s13 + $0x18] sm:$0xff] %vm114, %v2701
    %vm2707 = vcmask 519168
    %2708 = vst.msk [vmem:[%s13 + $0x20] sm:$0xf] %vm2707, %v2702
    // Predicated region
    $region62: #{reverser_forward.6} parent=1 // pred_check
      _
    $region63: #{reverser_forward.6} parent=1 // pred_check_branch
      %2710 = sbr.rel (0) target = $region65
    $region64: #{reverser_forward.6} parent=1 // pred_region
      _
    $region65: #{reverser_forward.6} parent=1 // pred_fallthru
      _
    // Predicated region
    $region66: #{reverser_forward.6} parent=1 // pred_check
      _
    $region67: #{reverser_forward.6} parent=1 // pred_check_branch
      %2712 = sbr.rel (0) target = $region69
    $region68: #{reverser_forward.6} parent=1 // pred_region
      _
    $region69: #{reverser_forward.6} parent=1 // pred_fallthru
      _
    %2713 = vsyncpa [#allocation3], 1
    %2714 = vsyncpa [#allocation5], 1

// kernel: reverser_forward.8
$region0: #{reverser_forward.8}
  #allocation0 [shape = 'u32[]', space=smem, size = 0x4, offset = 0x4, fixed_abs, tag = 'smem constant byte address 0x4 - core index']
  #allocation1 [shape = 'u32[144,128]{1,0:T(1,128)}', space=vmem, size = 0x12000, scoped, tag = 'internal scratch']
  %s0 = inlined_call_operand.vmem [shape: f32[36,64], index: 0, kind: input, shape index: {}]
  %s1 = inlined_call_operand.vmem [shape: f32[3,36,36], index: 1, kind: input, shape index: {}]
  %s2 = inlined_call_operand.vmem [shape: f32[36,36], index: 2, kind: input, shape index: {}]
  %s3 = inlined_call_operand.vmem [shape: bf16[64,64], index: 3, kind: input, shape index: {}]
  %s4 = inlined_call_operand.vmem [shape: f32[3,64], index: 4, kind: input, shape index: {}]
  %s5 = inlined_call_operand.vmem [shape: bf16[9,16,16], index: 5, kind: input, shape index: {}]
  %s6 = inlined_call_operand.vmem [shape: f32[3,3,16], index: 6, kind: input, shape index: {}]
  %s7 = inlined_call_operand.vmem [shape: bf16[64,64], index: 7, kind: input, shape index: {}]
  %s8 = inlined_call_operand.hbm [shape: f32[3,64], index: 8, kind: input, shape index: {}]
  %s9 = inlined_call_operand.vmem [shape: bf16[64,32], index: 9, kind: input, shape index: {}]
  %s10 = inlined_call_operand.hbm [shape: f32[1,32], index: 10, kind: input, shape index: {}]
  %s11 = inlined_call_operand.vmem [shape: bf16[32,64], index: 11, kind: input, shape index: {}]
  %s12 = inlined_call_operand.hbm [shape: f32[1,64], index: 12, kind: input, shape index: {}]
  %s13 = inlined_call_operand.vmem [shape: f32[36,64], index: 13, kind: output, shape index: {}]
  %s14 = sld [smem:[#allocation0]]
  $region74: #{reverser_forward.8} parent=0
    _
  %s16 = ssub.s32 1, %s14
  %s17 = scalar_select 0, %s16, %s14
  $region1: #{reverser_forward.8} parent=0
    #allocation2 [shape = 'u8[2048]{0}', space=vmem, size = 0x800, scoped, tag = 'input window, operand 8, single buffered']
    #allocation3 [shape = 's32[1]{0}', space=sflag, size = 0x4, scoped, tag = 'scoped memory for reverser_forward.8']
    #allocation4 [shape = 'u8[512]{0}', space=vmem, size = 0x400, scoped, tag = 'input window, operand 10, single buffered']
    #allocation5 [shape = 's32[1]{0}', space=sflag, size = 0x4, scoped, tag = 'scoped memory for reverser_forward.8']
    #allocation6 [shape = 'u8[512]{0}', space=vmem, size = 0x400, scoped, tag = 'input window, operand 12, single buffered']
    %18 = vsyncpa [#allocation3], 0
    %19 = vsyncpa [#allocation5], 0
    // Predicated region
    $region2: #{reverser_forward.8} parent=1 // pred_check
      _
    $region3: #{reverser_forward.8} parent=1 // pred_check_branch
      %21 = sbr.rel (0) target = $region5
    $region4: #{reverser_forward.8} parent=1 // pred_region
      _
    $region5: #{reverser_forward.8} parent=1 // pred_fallthru
      _
    // Predicated region
    $region6: #{reverser_forward.8} parent=1 // pred_check
      _
    $region7: #{reverser_forward.8} parent=1 // pred_check_branch
      %23 = sbr.rel (0) target = $region9
    $region8: #{reverser_forward.8} parent=1 // pred_region
      _
    $region9: #{reverser_forward.8} parent=1 // pred_fallthru
      _
    // Predicated region
    $region10: #{reverser_forward.8} parent=1 // pred_check
      _
    $region11: #{reverser_forward.8} parent=1 // pred_check_branch
      %25 = sbr.rel (0) target = $region13
    $region12: #{reverser_forward.8} parent=1 // pred_region
      _
    $region13: #{reverser_forward.8} parent=1 // pred_fallthru
      _
    // Predicated region
    $region14: #{reverser_forward.8} parent=1 // pred_check
      _
    $region15: #{reverser_forward.8} parent=1 // pred_check_branch
      %27 = sbr.rel (0) target = $region17
    $region16: #{reverser_forward.8} parent=1 // pred_region
      _
    $region17: #{reverser_forward.8} parent=1 // pred_fallthru
      _
    // Predicated region
    $region18: #{reverser_forward.8} parent=1 // pred_check
      _
    $region19: #{reverser_forward.8} parent=1 // pred_check_branch
      %29 = sbr.rel (0) target = $region21
    $region20: #{reverser_forward.8} parent=1 // pred_region
      _
    $region21: #{reverser_forward.8} parent=1 // pred_fallthru
      _
    // Predicated region
    $region22: #{reverser_forward.8} parent=1 // pred_check
      _
    $region23: #{reverser_forward.8} parent=1 // pred_check_branch
      %31 = sbr.rel (0) target = $region25
    $region24: #{reverser_forward.8} parent=1 // pred_region
      _
    $region25: #{reverser_forward.8} parent=1 // pred_fallthru
      _
    // Predicated region
    $region26: #{reverser_forward.8} parent=1 // pred_check
      _
    $region27: #{reverser_forward.8} parent=1 // pred_check_branch
      %33 = sbr.rel (0) target = $region29
    $region28: #{reverser_forward.8} parent=1 // pred_region
      _
    $region29: #{reverser_forward.8} parent=1 // pred_fallthru
      _
    // Predicated region
    $region30: #{reverser_forward.8} parent=1 // pred_check
      _
    $region31: #{reverser_forward.8} parent=1 // pred_check_branch
      %35 = sbr.rel (0) target = $region33
    $region32: #{reverser_forward.8} parent=1 // pred_region
      _
    $region33: #{reverser_forward.8} parent=1 // pred_fallthru
      _
    // Predicated region
    $region34: #{reverser_forward.8} parent=1 // pred_check
      _
    $region35: #{reverser_forward.8} parent=1 // pred_check_branch
      %37 = sbr.rel (0) target = $region37
    $region36: #{reverser_forward.8} parent=1 // pred_region
      %s39 = ssub.s32 64, 64
      %40 = vsyncadd [#allocation3], %s39
      %s42 = sshll.u32 [#allocation2], 4
      %s43 = int_to_ptr.vmem [resolvable:$true] %s42
      %45 = dma.hbm_to_vmem [thread:$0]  %s8, 64, %s43, [#allocation3]
    $region37: #{reverser_forward.8} parent=1 // pred_fallthru
      _
    // Predicated region
    $region38: #{reverser_forward.8} parent=1 // pred_check
      _
    $region39: #{reverser_forward.8} parent=1 // pred_check_branch
      %47 = sbr.rel (0) target = $region41
    $region40: #{reverser_forward.8} parent=1 // pred_region
      _
    $region41: #{reverser_forward.8} parent=1 // pred_fallthru
      _
    // Predicated region
    $region42: #{reverser_forward.8} parent=1 // pred_check
      _
    $region43: #{reverser_forward.8} parent=1 // pred_check_branch
      %49 = sbr.rel (0) target = $region45
    $region44: #{reverser_forward.8} parent=1 // pred_region
      %s51 = ssub.s32 16, 16
      %52 = vsyncadd [#allocation5], %s51
      %s54 = sshll.u32 [#allocation4], 4
      %s55 = int_to_ptr.vmem [resolvable:$true] %s54
      %57 = dma.hbm_to_vmem [thread:$0]  %s10, 16, %s55, [#allocation5]
    $region45: #{reverser_forward.8} parent=1 // pred_fallthru
      _
    // Predicated region
    $region46: #{reverser_forward.8} parent=1 // pred_check
      _
    $region47: #{reverser_forward.8} parent=1 // pred_check_branch
      %59 = sbr.rel (0) target = $region49
    $region48: #{reverser_forward.8} parent=1 // pred_region
      _
    $region49: #{reverser_forward.8} parent=1 // pred_fallthru
      _
    // Predicated region
    $region50: #{reverser_forward.8} parent=1 // pred_check
      _
    $region51: #{reverser_forward.8} parent=1 // pred_check_branch
      %61 = sbr.rel (0) target = $region53
    $region52: #{reverser_forward.8} parent=1 // pred_region
      %s63 = ssub.s32 16, 16
      %64 = vsyncadd [#allocation5], %s63
      %s66 = sshll.u32 [#allocation6], 4
      %s67 = int_to_ptr.vmem [resolvable:$true] %s66
      %69 = dma.hbm_to_vmem [thread:$0]  %s12, 16, %s67, [#allocation5]
    $region53: #{reverser_forward.8} parent=1 // pred_fallthru
      _
    // Predicated region
    $region54: #{reverser_forward.8} parent=1 // pred_check
      _
    $region55: #{reverser_forward.8} parent=1 // pred_check_branch
      %71 = sbr.rel (0) target = $region57
    $region56: #{reverser_forward.8} parent=1 // pred_region
      %72 = dma.done [#allocation3], 64
    $region57: #{reverser_forward.8} parent=1 // pred_fallthru
      _
    // Predicated region
    $region58: #{reverser_forward.8} parent=1 // pred_check
      _
    $region59: #{reverser_forward.8} parent=1 // pred_check_branch
      %74 = sbr.rel (0) target = $region61
    $region60: #{reverser_forward.8} parent=1 // pred_region
      %75 = dma.done [#allocation5], 16
    $region61: #{reverser_forward.8} parent=1 // pred_fallthru
      _
    // Predicated region
    $region62: #{reverser_forward.8} parent=1 // pred_check
      _
    $region63: #{reverser_forward.8} parent=1 // pred_check_branch
      %77 = sbr.rel (0) target = $region65
    $region64: #{reverser_forward.8} parent=1 // pred_region
      %78 = dma.done [#allocation5], 16
    $region65: #{reverser_forward.8} parent=1 // pred_fallthru
      _
    %v80 = vld [vmem:[%s0] sm:$0xff]
    %v81 = vld [vmem:[%s0 + $0x8] sm:$0xff]
    %v82 = vld [vmem:[%s0 + $0x10] sm:$0xff]
    %v83 = vld [vmem:[%s0 + $0x18] sm:$0xff]
    %v84 = vld [vmem:[%s0 + $0x20] sm:$0xf]
    %v85 = vpack.c.bf16 %v81, %v80
    %v86 = vpack.c.bf16 %v83, %v82
    %v87 = vpack.c.bf16 %v84, %v84
    %v88 = vld [vmem:[%s3] sm:$0xf]
    %v89 = vld [vmem:[%s3 + $0x4] sm:$0xf]
    %v90 = vld [vmem:[%s3 + $0x8] sm:$0xf]
    %v91 = vld [vmem:[%s3 + $0xc] sm:$0xf]
    %v92 = vld [vmem:[%s3 + $0x10] sm:$0xf]
    %v93 = vld [vmem:[%s3 + $0x14] sm:$0xf]
    %v94 = vld [vmem:[%s3 + $0x18] sm:$0xf]
    %v95 = vld [vmem:[%s3 + $0x1c] sm:$0xf]
    %v96 = vld [vmem:[%s4] sm:$0x7]
    %v97 = vlaneseq
    %v98 = vshrl.u32 %v97, 7
    %v99 = vsub.s32 0, %v98
    %v100 = vrot.slane %v96, %v99
    %v109 = vunpack.c.l.b16 %v88
    %v110 = vunpack.c.l.b16 %v89
    %v111 = vunpack.c.l.b16 %v90
    %v112 = vunpack.c.l.b16 %v91
    %v113 = vunpack.c.l.b16 %v92
    %v114 = vunpack.c.l.b16 %v93
    %v115 = vunpack.c.l.b16 %v94
    %v116 = vunpack.c.l.b16 %v95
    %v117 = vpack.c.b16 %v110, %v109
    %v118 = vpack.c.b16 %v112, %v111
    %v119 = vpack.c.b16 %v114, %v113
    %v120 = vpack.c.b16 %v116, %v115
    %vm125 = vcmask 523264
    %v127 = vsel %vm125, %v85, 0
    %v130 = vsel %vm125, %v86, 0
    %v133 = vsel %vm125, %v87, 0
    %135 = vmatprep.subr.bf16.mxu0 0
    %136 = vmatpush1.bf16.msra.mxu0 0
    %137 = vmatprep.subr.bf16.mxu0 0
    %138 = vmatpush1.bf16.msra.mxu0 0
    %139 = vmatprep.subr.bf16.mxu0 0
    %140 = vmatpush1.bf16.msra.mxu0 0
    %141 = vmatprep.subr.bf16.mxu0 0
    %142 = vmatpush1.bf16.msra.mxu0 0
    %143 = vmatprep.subr.bf16.mxu0 0
    %144 = vmatpush1.bf16.msra.mxu0 %v120
    %145 = vmatprep.subr.bf16.mxu0 0
    %146 = vmatpush1.bf16.msra.mxu0 %v119
    %147 = vmatprep.subr.bf16.mxu0 0
    %148 = vmatpush1.bf16.msra.mxu0 %v118
    %149 = vmatprep.subr.bf16.mxu0 0
    %150 = vmatpush1.bf16.msra.mxu0 %v117
    %151 = vmatprep.subr.bf16.mxu0 0
    %152 = vmatpush2.bf16.msra.mxu0 0
    %153 = vmatprep.subr.bf16.mxu0 0
    %154 = vmatpush2.bf16.msra.mxu0 0
    %155 = vmatprep.subr.bf16.mxu0 0
    %156 = vmatpush2.bf16.msra.mxu0 0
    %157 = vmatprep.subr.bf16.mxu0 0
    %158 = vmatpush2.bf16.msra.mxu0 0
    %159 = vmatprep.subr.bf16.mxu0 0
    %160 = vmatpush2.bf16.msra.mxu0 0
    %161 = vmatprep.subr.bf16.mxu0 0
    %162 = vmatpush2.bf16.msra.mxu0 0
    %163 = vmatprep.subr.bf16.mxu0 0
    %164 = vmatpush2.bf16.msra.mxu0 0
    %165 = vmatprep.subr.bf16.mxu0 0
    %166 = vmatpush2.bf16.msra.mxu0 0
    %167 = vmatprep.mubr.bf16.mxu0 0
    %168 = vmatmul.mubr.bf16.gmra.mxu0 %v127
    %v169 = vpop.f32.mrf.mxu0
    %v170 = vadd.f32 %v100, %v169
    %v171 = vpop.f32.mrf.mxu0
    %v172 = vpop.f32.mrf.mxu0
    %v173 = vadd.f32 %v100, %v172
    %v174 = vpop.f32.mrf.mxu0
    %175 = vmatprep.mubr.bf16.mxu0 0
    %176 = vmatmul.mubr.bf16.gmra.mxu0 %v130
    %v177 = vpop.f32.mrf.mxu0
    %v178 = vadd.f32 %v100, %v177
    %v179 = vpop.f32.mrf.mxu0
    %v180 = vpop.f32.mrf.mxu0
    %v181 = vadd.f32 %v100, %v180
    %v182 = vpop.f32.mrf.mxu0
    %183 = vmatprep.mubr.bf16.mxu0 0
    %184 = vmatmul.mubr.bf16.gmra.mxu0 %v133
    %v185 = vpop.f32.mrf.mxu0
    %v186 = vadd.f32 %v100, %v185
    %v187 = vpop.f32.mrf.mxu0
    %v188 = vpop.f32.mrf.mxu0
    %v189 = vpop.f32.mrf.mxu0
    %190 = vdwg.mxu0
    %v191 = vmax.f32 %v170, 0.0
    %v192 = vmax.f32 %v173, 0.0
    %v193 = vmax.f32 %v178, 0.0
    %v194 = vmax.f32 %v181, 0.0
    %v195 = vmax.f32 %v186, 0.0
    %v196 = vlaneseq
    %v197 = vshrl.u32 %v196, 7
    %v198 = vsub.s32 1, %v197
    %v199 = vrot.slane %v96, %v198
    %v200 = vmul.f32 %v191, %v199
    %v201 = vmul.f32 %v192, %v199
    %v202 = vmul.f32 %v193, %v199
    %v203 = vmul.f32 %v194, %v199
    %v204 = vmul.f32 %v195, %v199
    %v205 = vlaneseq
    %v206 = vshrl.u32 %v205, 7
    %v207 = vsub.s32 2, %v206
    %v208 = vrot.slane %v96, %v207
    %v209 = vadd.f32 %v200, %v208
    %v210 = vadd.f32 %v201, %v208
    %v211 = vadd.f32 %v202, %v208
    %v212 = vadd.f32 %v203, %v208
    %v213 = vadd.f32 %v204, %v208
    %v214 = vpack.c.bf16 %v210, %v209
    %v215 = vpack.c.bf16 %v212, %v211
    %v216 = vpack.c.bf16 %v213, %v213
    %v217 = vld [vmem:[%s7] sm:$0xf]
    %v218 = vld [vmem:[%s7 + $0x4] sm:$0xf]
    %v219 = vld [vmem:[%s1] sm:$0xff]
    %v220 = vld [vmem:[%s1 + $0x8] sm:$0xff]
    %v221 = vld [vmem:[%s1 + $0x10] sm:$0xff]
    %v222 = vld [vmem:[%s1 + $0x18] sm:$0xff]
    %v223 = vld [vmem:[%s1 + $0x20] sm:$0xf]
    %229 = vrot.lane.b32.xlu0 %v209, 112
    %v230 = vpop.permute.xlu0 %229
    %231 = vrot.lane.b32.xlu0 %v210, 112
    %v232 = vpop.permute.xlu0 %231
    %233 = vrot.lane.b32.xlu0 %v211, 112
    %v234 = vpop.permute.xlu0 %233
    %235 = vrot.lane.b32.xlu0 %v212, 112
    %v236 = vpop.permute.xlu0 %235
    %237 = vrot.lane.b32.xlu0 %v213, 112
    %v238 = vpop.permute.xlu0 %237
    %vm243 = vcmask 293888
    %v245 = vsel %vm243, %v219, 0
    %v248 = vsel %vm243, %v220, 0
    %v251 = vsel %vm243, %v221, 0
    %v254 = vsel %vm243, %v222, 0
    %v257 = vsel %vm243, %v223, 0
    %vm259 = vcmask 1043456
    %v260 = vsel %vm259, %v238, 0
    %262 = vmatprep.subr.mxu0 0.0
    %263 = vmatpush1.msra.mxu0 0.0
    %264 = vmatprep.subr.mxu0 0.0
    %265 = vmatpush1.msra.mxu0 0.0
    %266 = vmatprep.subr.mxu0 0.0
    %267 = vmatpush1.msra.mxu0 0.0
    %268 = vmatprep.subr.mxu0 0.0
    %269 = vmatpush1.msra.mxu0 0.0
    %270 = vmatprep.subr.mxu0 0.0
    %271 = vmatpush1.msra.mxu0 0.0
    %272 = vmatprep.subr.mxu0 0.0
    %273 = vmatpush1.msra.mxu0 0.0
    %274 = vmatprep.subr.mxu0 0.0
    %275 = vmatpush1.msra.mxu0 0.0
    %276 = vmatprep.subr.mxu0 0.0
    %277 = vmatpush1.msra.mxu0 0.0
    %278 = vmatprep.subr.mxu0 0.0
    %279 = vmatpush1.msra.mxu0 0.0
    %280 = vmatprep.subr.mxu0 0.0
    %281 = vmatpush1.msra.mxu0 0.0
    %282 = vmatprep.subr.mxu0 0.0
    %283 = vmatpush1.msra.mxu0 0.0
    %284 = vmatprep.subr.mxu0 0.0
    %285 = vmatpush1.msra.mxu0 %v260
    %286 = vmatprep.subr.mxu0 0.0
    %287 = vmatpush1.msra.mxu0 %v236
    %288 = vmatprep.subr.mxu0 0.0
    %289 = vmatpush1.msra.mxu0 %v234
    %290 = vmatprep.subr.mxu0 0.0
    %291 = vmatpush1.msra.mxu0 %v232
    %292 = vmatprep.subr.mxu0 0.0
    %293 = vmatpush1.msra.mxu0 %v230
    %294 = vmatprep.subr.mxu0 0.0
    %295 = vmatpush2.msra.mxu0 0.0
    %296 = vmatprep.subr.mxu0 0.0
    %297 = vmatpush2.msra.mxu0 0.0
    %298 = vmatprep.subr.mxu0 0.0
    %299 = vmatpush2.msra.mxu0 0.0
    %300 = vmatprep.subr.mxu0 0.0
    %301 = vmatpush2.msra.mxu0 0.0
    %302 = vmatprep.subr.mxu0 0.0
    %303 = vmatpush2.msra.mxu0 0.0
    %304 = vmatprep.subr.mxu0 0.0
    %305 = vmatpush2.msra.mxu0 0.0
    %306 = vmatprep.subr.mxu0 0.0
    %307 = vmatpush2.msra.mxu0 0.0
    %308 = vmatprep.subr.mxu0 0.0
    %309 = vmatpush2.msra.mxu0 0.0
    %310 = vmatprep.subr.mxu0 0.0
    %311 = vmatpush2.msra.mxu0 0.0
    %312 = vmatprep.subr.mxu0 0.0
    %313 = vmatpush2.msra.mxu0 0.0
    %314 = vmatprep.subr.mxu0 0.0
    %315 = vmatpush2.msra.mxu0 0.0
    %316 = vmatprep.subr.mxu0 0.0
    %317 = vmatpush2.msra.mxu0 0.0
    %318 = vmatprep.subr.mxu0 0.0
    %319 = vmatpush2.msra.mxu0 0.0
    %320 = vmatprep.subr.mxu0 0.0
    %321 = vmatpush2.msra.mxu0 0.0
    %322 = vmatprep.subr.mxu0 0.0
    %323 = vmatpush2.msra.mxu0 0.0
    %324 = vmatprep.subr.mxu0 0.0
    %325 = vmatpush2.msra.mxu0 0.0
    %326 = vmatprep.mubr.f32.mxu0 0.0
    %327 = vmatmul.mubr.f32.gmra.mxu0 %v245
    %v328 = vpop.f32.mrf.mxu0
    %v329 = vadd.f32 0.0, %v328
    %v330 = vpop.f32.mrf.mxu0
    %331 = vmatprep.mubr.f32.mxu0 0.0
    %332 = vmatmul.mubr.f32.gmra.mxu0 %v248
    %v333 = vpop.f32.mrf.mxu0
    %v334 = vadd.f32 0.0, %v333
    %v335 = vpop.f32.mrf.mxu0
    %336 = vmatprep.mubr.f32.mxu0 0.0
    %337 = vmatmul.mubr.f32.gmra.mxu0 %v251
    %v338 = vpop.f32.mrf.mxu0
    %v339 = vadd.f32 0.0, %v338
    %v340 = vpop.f32.mrf.mxu0
    %341 = vmatprep.mubr.f32.mxu0 0.0
    %342 = vmatmul.mubr.f32.gmra.mxu0 %v254
    %v343 = vpop.f32.mrf.mxu0
    %v344 = vadd.f32 0.0, %v343
    %v345 = vpop.f32.mrf.mxu0
    %346 = vmatprep.mubr.f32.mxu0 0.0
    %347 = vmatmul.mubr.f32.gmra.mxu0 %v257
    %v348 = vpop.f32.mrf.mxu0
    %v349 = vadd.f32 0.0, %v348
    %v350 = vpop.f32.mrf.mxu0
    %351 = vdwg.mxu0
    %v352 = vpack.c.bf16 %v334, %v329
    %v353 = vpack.c.bf16 %v344, %v339
    %v354 = vpack.c.bf16 %v349, %v349
    %v355 = vld [vmem:[%s5] sm:$0xf]
    %v356 = vld [vmem:[%s5 + $0x4] sm:$0xf]
    %s357 = scalar_lea.vmem %s1, 40
    %v358 = vld [vmem:[%s357] sm:$0xff]
    %v359 = vld [vmem:[%s357 + $0x8] sm:$0xff]
    %v360 = vld [vmem:[%s357 + $0x10] sm:$0xff]
    %v361 = vld [vmem:[%s357 + $0x18] sm:$0xff]
    %v362 = vld [vmem:[%s357 + $0x20] sm:$0xf]
    %v364 = vsel %vm243, %v358, 0
    %v367 = vsel %vm243, %v359, 0
    %v370 = vsel %vm243, %v360, 0
    %v373 = vsel %vm243, %v361, 0
    %v376 = vsel %vm243, %v362, 0
    %378 = vmatprep.subr.mxu0 0.0
    %379 = vmatpush1.msra.mxu0 0.0
    %380 = vmatprep.subr.mxu0 0.0
    %381 = vmatpush1.msra.mxu0 0.0
    %382 = vmatprep.subr.mxu0 0.0
    %383 = vmatpush1.msra.mxu0 0.0
    %384 = vmatprep.subr.mxu0 0.0
    %385 = vmatpush1.msra.mxu0 0.0
    %386 = vmatprep.subr.mxu0 0.0
    %387 = vmatpush1.msra.mxu0 0.0
    %388 = vmatprep.subr.mxu0 0.0
    %389 = vmatpush1.msra.mxu0 0.0
    %390 = vmatprep.subr.mxu0 0.0
    %391 = vmatpush1.msra.mxu0 0.0
    %392 = vmatprep.subr.mxu0 0.0
    %393 = vmatpush1.msra.mxu0 0.0
    %394 = vmatprep.subr.mxu0 0.0
    %395 = vmatpush1.msra.mxu0 0.0
    %396 = vmatprep.subr.mxu0 0.0
    %397 = vmatpush1.msra.mxu0 0.0
    %398 = vmatprep.subr.mxu0 0.0
    %399 = vmatpush1.msra.mxu0 0.0
    %400 = vmatprep.subr.mxu0 0.0
    %401 = vmatpush1.msra.mxu0 %v260
    %402 = vmatprep.subr.mxu0 0.0
    %403 = vmatpush1.msra.mxu0 %v236
    %404 = vmatprep.subr.mxu0 0.0
    %405 = vmatpush1.msra.mxu0 %v234
    %406 = vmatprep.subr.mxu0 0.0
    %407 = vmatpush1.msra.mxu0 %v232
    %408 = vmatprep.subr.mxu0 0.0
    %409 = vmatpush1.msra.mxu0 %v230
    %410 = vmatprep.subr.mxu0 0.0
    %411 = vmatpush2.msra.mxu0 0.0
    %412 = vmatprep.subr.mxu0 0.0
    %413 = vmatpush2.msra.mxu0 0.0
    %414 = vmatprep.subr.mxu0 0.0
    %415 = vmatpush2.msra.mxu0 0.0
    %416 = vmatprep.subr.mxu0 0.0
    %417 = vmatpush2.msra.mxu0 0.0
    %418 = vmatprep.subr.mxu0 0.0
    %419 = vmatpush2.msra.mxu0 0.0
    %420 = vmatprep.subr.mxu0 0.0
    %421 = vmatpush2.msra.mxu0 0.0
    %422 = vmatprep.subr.mxu0 0.0
    %423 = vmatpush2.msra.mxu0 0.0
    %424 = vmatprep.subr.mxu0 0.0
    %425 = vmatpush2.msra.mxu0 0.0
    %426 = vmatprep.subr.mxu0 0.0
    %427 = vmatpush2.msra.mxu0 0.0
    %428 = vmatprep.subr.mxu0 0.0
    %429 = vmatpush2.msra.mxu0 0.0
    %430 = vmatprep.subr.mxu0 0.0
    %431 = vmatpush2.msra.mxu0 0.0
    %432 = vmatprep.subr.mxu0 0.0
    %433 = vmatpush2.msra.mxu0 0.0
    %434 = vmatprep.subr.mxu0 0.0
    %435 = vmatpush2.msra.mxu0 0.0
    %436 = vmatprep.subr.mxu0 0.0
    %437 = vmatpush2.msra.mxu0 0.0
    %438 = vmatprep.subr.mxu0 0.0
    %439 = vmatpush2.msra.mxu0 0.0
    %440 = vmatprep.subr.mxu0 0.0
    %441 = vmatpush2.msra.mxu0 0.0
    %442 = vmatprep.mubr.f32.mxu0 0.0
    %443 = vmatmul.mubr.f32.gmra.mxu0 %v364
    %v444 = vpop.f32.mrf.mxu0
    %v445 = vadd.f32 0.0, %v444
    %v446 = vpop.f32.mrf.mxu0
    %447 = vmatprep.mubr.f32.mxu0 0.0
    %448 = vmatmul.mubr.f32.gmra.mxu0 %v367
    %v449 = vpop.f32.mrf.mxu0
    %v450 = vadd.f32 0.0, %v449
    %v451 = vpop.f32.mrf.mxu0
    %452 = vmatprep.mubr.f32.mxu0 0.0
    %453 = vmatmul.mubr.f32.gmra.mxu0 %v370
    %v454 = vpop.f32.mrf.mxu0
    %v455 = vadd.f32 0.0, %v454
    %v456 = vpop.f32.mrf.mxu0
    %457 = vmatprep.mubr.f32.mxu0 0.0
    %458 = vmatmul.mubr.f32.gmra.mxu0 %v373
    %v459 = vpop.f32.mrf.mxu0
    %v460 = vadd.f32 0.0, %v459
    %v461 = vpop.f32.mrf.mxu0
    %462 = vmatprep.mubr.f32.mxu0 0.0
    %463 = vmatmul.mubr.f32.gmra.mxu0 %v376
    %v464 = vpop.f32.mrf.mxu0
    %v465 = vadd.f32 0.0, %v464
    %v466 = vpop.f32.mrf.mxu0
    %467 = vdwg.mxu0
    %v468 = vpack.c.bf16 %v450, %v445
    %v469 = vpack.c.bf16 %v460, %v455
    %v470 = vpack.c.bf16 %v465, %v465
    %s471 = scalar_lea.vmem %s5, 8
    %v472 = vld [vmem:[%s471] sm:$0xf]
    %v473 = vld [vmem:[%s471 + $0x4] sm:$0xf]
    %v476 = vunpack.c.l.b16 %v472
    %v477 = vunpack.c.l.b16 %v473
    %v478 = vpack.c.b16 %v477, %v476
    %vm480 = vcmask 130048
    %v482 = vsel %vm480, %v468, 0
    %v485 = vsel %vm480, %v469, 0
    %v488 = vsel %vm480, %v470, 0
    %490 = vmatprep.subr.bf16.mxu0 0
    %491 = vmatpush1.bf16.msra.mxu0 0
    %492 = vmatprep.subr.bf16.mxu0 0
    %493 = vmatpush1.bf16.msra.mxu0 0
    %494 = vmatprep.subr.bf16.mxu0 0
    %495 = vmatpush1.bf16.msra.mxu0 0
    %496 = vmatprep.subr.bf16.mxu0 0
    %497 = vmatpush1.bf16.msra.mxu0 0
    %498 = vmatprep.subr.bf16.mxu0 0
    %499 = vmatpush1.bf16.msra.mxu0 0
    %500 = vmatprep.subr.bf16.mxu0 0
    %501 = vmatpush1.bf16.msra.mxu0 0
    %502 = vmatprep.subr.bf16.mxu0 0
    %503 = vmatpush1.bf16.msra.mxu0 0
    %504 = vmatprep.subr.bf16.mxu0 0
    %505 = vmatpush1.bf16.msra.mxu0 %v478
    %506 = vmatprep.subr.bf16.mxu0 0
    %507 = vmatpush2.bf16.msra.mxu0 0
    %508 = vmatprep.subr.bf16.mxu0 0
    %509 = vmatpush2.bf16.msra.mxu0 0
    %510 = vmatprep.subr.bf16.mxu0 0
    %511 = vmatpush2.bf16.msra.mxu0 0
    %512 = vmatprep.subr.bf16.mxu0 0
    %513 = vmatpush2.bf16.msra.mxu0 0
    %514 = vmatprep.subr.bf16.mxu0 0
    %515 = vmatpush2.bf16.msra.mxu0 0
    %516 = vmatprep.subr.bf16.mxu0 0
    %517 = vmatpush2.bf16.msra.mxu0 0
    %518 = vmatprep.subr.bf16.mxu0 0
    %519 = vmatpush2.bf16.msra.mxu0 0
    %520 = vmatprep.subr.bf16.mxu0 0
    %521 = vmatpush2.bf16.msra.mxu0 0
    %522 = vmatprep.mubr.bf16.mxu0 0
    %523 = vmatmul.mubr.bf16.gmra.mxu0 %v482
    %v524 = vpop.f32.mrf.mxu0
    %v525 = vadd.f32 0.0, %v524
    %v526 = vpop.f32.mrf.mxu0
    %v527 = vpop.f32.mrf.mxu0
    %v528 = vadd.f32 0.0, %v527
    %v529 = vpop.f32.mrf.mxu0
    %530 = vmatprep.mubr.bf16.mxu0 0
    %531 = vmatmul.mubr.bf16.gmra.mxu0 %v485
    %v532 = vpop.f32.mrf.mxu0
    %v533 = vadd.f32 0.0, %v532
    %v534 = vpop.f32.mrf.mxu0
    %v535 = vpop.f32.mrf.mxu0
    %v536 = vadd.f32 0.0, %v535
    %v537 = vpop.f32.mrf.mxu0
    %538 = vmatprep.mubr.bf16.mxu0 0
    %539 = vmatmul.mubr.bf16.gmra.mxu0 %v488
    %v540 = vpop.f32.mrf.mxu0
    %v541 = vadd.f32 0.0, %v540
    %v542 = vpop.f32.mrf.mxu0
    %v543 = vpop.f32.mrf.mxu0
    %v544 = vpop.f32.mrf.mxu0
    %545 = vdwg.mxu0
    %v548 = vunpack.c.l.b16 %v355
    %v549 = vunpack.c.l.b16 %v356
    %v550 = vpack.c.b16 %v549, %v548
    %v553 = vsel %vm480, %v352, 0
    %v556 = vsel %vm480, %v353, 0
    %v559 = vsel %vm480, %v354, 0
    %561 = vmatprep.subr.bf16.mxu0 0
    %562 = vmatpush1.bf16.msra.mxu0 0
    %563 = vmatprep.subr.bf16.mxu0 0
    %564 = vmatpush1.bf16.msra.mxu0 0
    %565 = vmatprep.subr.bf16.mxu0 0
    %566 = vmatpush1.bf16.msra.mxu0 0
    %567 = vmatprep.subr.bf16.mxu0 0
    %568 = vmatpush1.bf16.msra.mxu0 0
    %569 = vmatprep.subr.bf16.mxu0 0
    %570 = vmatpush1.bf16.msra.mxu0 0
    %571 = vmatprep.subr.bf16.mxu0 0
    %572 = vmatpush1.bf16.msra.mxu0 0
    %573 = vmatprep.subr.bf16.mxu0 0
    %574 = vmatpush1.bf16.msra.mxu0 0
    %575 = vmatprep.subr.bf16.mxu0 0
    %576 = vmatpush1.bf16.msra.mxu0 %v550
    %577 = vmatprep.subr.bf16.mxu0 0
    %578 = vmatpush2.bf16.msra.mxu0 0
    %579 = vmatprep.subr.bf16.mxu0 0
    %580 = vmatpush2.bf16.msra.mxu0 0
    %581 = vmatprep.subr.bf16.mxu0 0
    %582 = vmatpush2.bf16.msra.mxu0 0
    %583 = vmatprep.subr.bf16.mxu0 0
    %584 = vmatpush2.bf16.msra.mxu0 0
    %585 = vmatprep.subr.bf16.mxu0 0
    %586 = vmatpush2.bf16.msra.mxu0 0
    %587 = vmatprep.subr.bf16.mxu0 0
    %588 = vmatpush2.bf16.msra.mxu0 0
    %589 = vmatprep.subr.bf16.mxu0 0
    %590 = vmatpush2.bf16.msra.mxu0 0
    %591 = vmatprep.subr.bf16.mxu0 0
    %592 = vmatpush2.bf16.msra.mxu0 0
    %593 = vmatprep.mubr.bf16.mxu0 0
    %594 = vmatmul.mubr.bf16.gmra.mxu0 %v553
    %v595 = vpop.f32.mrf.mxu0
    %v596 = vadd.f32 %v525, %v595
    %v597 = vpop.f32.mrf.mxu0
    %v598 = vpop.f32.mrf.mxu0
    %v599 = vadd.f32 %v528, %v598
    %v600 = vpop.f32.mrf.mxu0
    %601 = vmatprep.mubr.bf16.mxu0 0
    %602 = vmatmul.mubr.bf16.gmra.mxu0 %v556
    %v603 = vpop.f32.mrf.mxu0
    %v604 = vadd.f32 %v533, %v603
    %v605 = vpop.f32.mrf.mxu0
    %v606 = vpop.f32.mrf.mxu0
    %v607 = vadd.f32 %v536, %v606
    %v608 = vpop.f32.mrf.mxu0
    %609 = vmatprep.mubr.bf16.mxu0 0
    %610 = vmatmul.mubr.bf16.gmra.mxu0 %v559
    %v611 = vpop.f32.mrf.mxu0
    %v612 = vadd.f32 %v541, %v611
    %v613 = vpop.f32.mrf.mxu0
    %v614 = vpop.f32.mrf.mxu0
    %v615 = vpop.f32.mrf.mxu0
    %616 = vdwg.mxu0
    %s617 = scalar_lea.vmem %s1, 80
    %v618 = vld [vmem:[%s617] sm:$0xff]
    %v619 = vld [vmem:[%s617 + $0x8] sm:$0xff]
    %v620 = vld [vmem:[%s617 + $0x10] sm:$0xff]
    %v621 = vld [vmem:[%s617 + $0x18] sm:$0xff]
    %v622 = vld [vmem:[%s617 + $0x20] sm:$0xf]
    %v624 = vsel %vm243, %v618, 0
    %v627 = vsel %vm243, %v619, 0
    %v630 = vsel %vm243, %v620, 0
    %v633 = vsel %vm243, %v621, 0
    %v636 = vsel %vm243, %v622, 0
    %638 = vmatprep.subr.mxu0 0.0
    %639 = vmatpush1.msra.mxu0 0.0
    %640 = vmatprep.subr.mxu0 0.0
    %641 = vmatpush1.msra.mxu0 0.0
    %642 = vmatprep.subr.mxu0 0.0
    %643 = vmatpush1.msra.mxu0 0.0
    %644 = vmatprep.subr.mxu0 0.0
    %645 = vmatpush1.msra.mxu0 0.0
    %646 = vmatprep.subr.mxu0 0.0
    %647 = vmatpush1.msra.mxu0 0.0
    %648 = vmatprep.subr.mxu0 0.0
    %649 = vmatpush1.msra.mxu0 0.0
    %650 = vmatprep.subr.mxu0 0.0
    %651 = vmatpush1.msra.mxu0 0.0
    %652 = vmatprep.subr.mxu0 0.0
    %653 = vmatpush1.msra.mxu0 0.0
    %654 = vmatprep.subr.mxu0 0.0
    %655 = vmatpush1.msra.mxu0 0.0
    %656 = vmatprep.subr.mxu0 0.0
    %657 = vmatpush1.msra.mxu0 0.0
    %658 = vmatprep.subr.mxu0 0.0
    %659 = vmatpush1.msra.mxu0 0.0
    %660 = vmatprep.subr.mxu0 0.0
    %661 = vmatpush1.msra.mxu0 %v260
    %662 = vmatprep.subr.mxu0 0.0
    %663 = vmatpush1.msra.mxu0 %v236
    %664 = vmatprep.subr.mxu0 0.0
    %665 = vmatpush1.msra.mxu0 %v234
    %666 = vmatprep.subr.mxu0 0.0
    %667 = vmatpush1.msra.mxu0 %v232
    %668 = vmatprep.subr.mxu0 0.0
    %669 = vmatpush1.msra.mxu0 %v230
    %670 = vmatprep.subr.mxu0 0.0
    %671 = vmatpush2.msra.mxu0 0.0
    %672 = vmatprep.subr.mxu0 0.0
    %673 = vmatpush2.msra.mxu0 0.0
    %674 = vmatprep.subr.mxu0 0.0
    %675 = vmatpush2.msra.mxu0 0.0
    %676 = vmatprep.subr.mxu0 0.0
    %677 = vmatpush2.msra.mxu0 0.0
    %678 = vmatprep.subr.mxu0 0.0
    %679 = vmatpush2.msra.mxu0 0.0
    %680 = vmatprep.subr.mxu0 0.0
    %681 = vmatpush2.msra.mxu0 0.0
    %682 = vmatprep.subr.mxu0 0.0
    %683 = vmatpush2.msra.mxu0 0.0
    %684 = vmatprep.subr.mxu0 0.0
    %685 = vmatpush2.msra.mxu0 0.0
    %686 = vmatprep.subr.mxu0 0.0
    %687 = vmatpush2.msra.mxu0 0.0
    %688 = vmatprep.subr.mxu0 0.0
    %689 = vmatpush2.msra.mxu0 0.0
    %690 = vmatprep.subr.mxu0 0.0
    %691 = vmatpush2.msra.mxu0 0.0
    %692 = vmatprep.subr.mxu0 0.0
    %693 = vmatpush2.msra.mxu0 0.0
    %694 = vmatprep.subr.mxu0 0.0
    %695 = vmatpush2.msra.mxu0 0.0
    %696 = vmatprep.subr.mxu0 0.0
    %697 = vmatpush2.msra.mxu0 0.0
    %698 = vmatprep.subr.mxu0 0.0
    %699 = vmatpush2.msra.mxu0 0.0
    %700 = vmatprep.subr.mxu0 0.0
    %701 = vmatpush2.msra.mxu0 0.0
    %702 = vmatprep.mubr.f32.mxu0 0.0
    %703 = vmatmul.mubr.f32.gmra.mxu0 %v624
    %v704 = vpop.f32.mrf.mxu0
    %v705 = vadd.f32 0.0, %v704
    %v706 = vpop.f32.mrf.mxu0
    %707 = vmatprep.mubr.f32.mxu0 0.0
    %708 = vmatmul.mubr.f32.gmra.mxu0 %v627
    %v709 = vpop.f32.mrf.mxu0
    %v710 = vadd.f32 0.0, %v709
    %v711 = vpop.f32.mrf.mxu0
    %712 = vmatprep.mubr.f32.mxu0 0.0
    %713 = vmatmul.mubr.f32.gmra.mxu0 %v630
    %v714 = vpop.f32.mrf.mxu0
    %v715 = vadd.f32 0.0, %v714
    %v716 = vpop.f32.mrf.mxu0
    %717 = vmatprep.mubr.f32.mxu0 0.0
    %718 = vmatmul.mubr.f32.gmra.mxu0 %v633
    %v719 = vpop.f32.mrf.mxu0
    %v720 = vadd.f32 0.0, %v719
    %v721 = vpop.f32.mrf.mxu0
    %722 = vmatprep.mubr.f32.mxu0 0.0
    %723 = vmatmul.mubr.f32.gmra.mxu0 %v636
    %v724 = vpop.f32.mrf.mxu0
    %v725 = vadd.f32 0.0, %v724
    %v726 = vpop.f32.mrf.mxu0
    %727 = vdwg.mxu0
    %v728 = vpack.c.bf16 %v710, %v705
    %v729 = vpack.c.bf16 %v720, %v715
    %v730 = vpack.c.bf16 %v725, %v725
    %s731 = scalar_lea.vmem %s5, 16
    %v732 = vld [vmem:[%s731] sm:$0xf]
    %v733 = vld [vmem:[%s731 + $0x4] sm:$0xf]
    %v736 = vunpack.c.l.b16 %v732
    %v737 = vunpack.c.l.b16 %v733
    %v738 = vpack.c.b16 %v737, %v736
    %v741 = vsel %vm480, %v728, 0
    %v744 = vsel %vm480, %v729, 0
    %v747 = vsel %vm480, %v730, 0
    %749 = vmatprep.subr.bf16.mxu0 0
    %750 = vmatpush1.bf16.msra.mxu0 0
    %751 = vmatprep.subr.bf16.mxu0 0
    %752 = vmatpush1.bf16.msra.mxu0 0
    %753 = vmatprep.subr.bf16.mxu0 0
    %754 = vmatpush1.bf16.msra.mxu0 0
    %755 = vmatprep.subr.bf16.mxu0 0
    %756 = vmatpush1.bf16.msra.mxu0 0
    %757 = vmatprep.subr.bf16.mxu0 0
    %758 = vmatpush1.bf16.msra.mxu0 0
    %759 = vmatprep.subr.bf16.mxu0 0
    %760 = vmatpush1.bf16.msra.mxu0 0
    %761 = vmatprep.subr.bf16.mxu0 0
    %762 = vmatpush1.bf16.msra.mxu0 0
    %763 = vmatprep.subr.bf16.mxu0 0
    %764 = vmatpush1.bf16.msra.mxu0 %v738
    %765 = vmatprep.subr.bf16.mxu0 0
    %766 = vmatpush2.bf16.msra.mxu0 0
    %767 = vmatprep.subr.bf16.mxu0 0
    %768 = vmatpush2.bf16.msra.mxu0 0
    %769 = vmatprep.subr.bf16.mxu0 0
    %770 = vmatpush2.bf16.msra.mxu0 0
    %771 = vmatprep.subr.bf16.mxu0 0
    %772 = vmatpush2.bf16.msra.mxu0 0
    %773 = vmatprep.subr.bf16.mxu0 0
    %774 = vmatpush2.bf16.msra.mxu0 0
    %775 = vmatprep.subr.bf16.mxu0 0
    %776 = vmatpush2.bf16.msra.mxu0 0
    %777 = vmatprep.subr.bf16.mxu0 0
    %778 = vmatpush2.bf16.msra.mxu0 0
    %779 = vmatprep.subr.bf16.mxu0 0
    %780 = vmatpush2.bf16.msra.mxu0 0
    %781 = vmatprep.mubr.bf16.mxu0 0
    %782 = vmatmul.mubr.bf16.gmra.mxu0 %v741
    %v783 = vpop.f32.mrf.mxu0
    %v784 = vadd.f32 0.0, %v783
    %v785 = vpop.f32.mrf.mxu0
    %v786 = vpop.f32.mrf.mxu0
    %v787 = vadd.f32 0.0, %v786
    %v788 = vpop.f32.mrf.mxu0
    %789 = vmatprep.mubr.bf16.mxu0 0
    %790 = vmatmul.mubr.bf16.gmra.mxu0 %v744
    %v791 = vpop.f32.mrf.mxu0
    %v792 = vadd.f32 0.0, %v791
    %v793 = vpop.f32.mrf.mxu0
    %v794 = vpop.f32.mrf.mxu0
    %v795 = vadd.f32 0.0, %v794
    %v796 = vpop.f32.mrf.mxu0
    %797 = vmatprep.mubr.bf16.mxu0 0
    %798 = vmatmul.mubr.bf16.gmra.mxu0 %v747
    %v799 = vpop.f32.mrf.mxu0
    %v800 = vadd.f32 0.0, %v799
    %v801 = vpop.f32.mrf.mxu0
    %v802 = vpop.f32.mrf.mxu0
    %v803 = vpop.f32.mrf.mxu0
    %804 = vdwg.mxu0
    %v805 = vadd.f32 %v596, %v784
    %v806 = vadd.f32 %v599, %v787
    %v807 = vadd.f32 %v604, %v792
    %v808 = vadd.f32 %v607, %v795
    %v809 = vadd.f32 %v612, %v800
    %v810 = vld [vmem:[%s6] sm:$0x7]
    %v811 = vlaneseq
    %v812 = vshrl.u32 %v811, 7
    %v813 = vsub.s32 0, %v812
    %v814 = vrot.slane %v810, %v813
    %v815 = vadd.f32 %v805, %v814
    %v816 = vadd.f32 %v806, %v814
    %v817 = vadd.f32 %v807, %v814
    %v818 = vadd.f32 %v808, %v814
    %v819 = vadd.f32 %v809, %v814
    %v820 = vmax.f32 %v815, 0.0
    %v821 = vmax.f32 %v816, 0.0
    %v822 = vmax.f32 %v817, 0.0
    %v823 = vmax.f32 %v818, 0.0
    %v824 = vmax.f32 %v819, 0.0
    %v825 = vlaneseq
    %v826 = vshrl.u32 %v825, 7
    %v827 = vsub.s32 1, %v826
    %v828 = vrot.slane %v810, %v827
    %v829 = vmul.f32 %v820, %v828
    %v830 = vmul.f32 %v821, %v828
    %v831 = vmul.f32 %v822, %v828
    %v832 = vmul.f32 %v823, %v828
    %v833 = vmul.f32 %v824, %v828
    %v834 = vlaneseq
    %v835 = vshrl.u32 %v834, 7
    %v836 = vsub.s32 2, %v835
    %v837 = vrot.slane %v810, %v836
    %v838 = vadd.f32 %v829, %v837
    %v839 = vadd.f32 %v830, %v837
    %v840 = vadd.f32 %v831, %v837
    %v841 = vadd.f32 %v832, %v837
    %v842 = vadd.f32 %v833, %v837
    %v843 = vpack.c.bf16 %v839, %v838
    %v844 = vpack.c.bf16 %v841, %v840
    %v845 = vpack.c.bf16 %v842, %v842
    %v846 = vld [vmem:[%s7 + $0x8] sm:$0xf]
    %v847 = vld [vmem:[%s7 + $0xc] sm:$0xf]
    %v850 = vunpack.c.l.b16 %v846
    %v851 = vunpack.c.l.b16 %v847
    %v852 = vpack.c.b16 %v851, %v850
    %v855 = vsel %vm480, %v843, 0
    %v858 = vsel %vm480, %v844, 0
    %v861 = vsel %vm480, %v845, 0
    %863 = vmatprep.subr.bf16.mxu0 0
    %864 = vmatpush1.bf16.msra.mxu0 0
    %865 = vmatprep.subr.bf16.mxu0 0
    %866 = vmatpush1.bf16.msra.mxu0 0
    %867 = vmatprep.subr.bf16.mxu0 0
    %868 = vmatpush1.bf16.msra.mxu0 0
    %869 = vmatprep.subr.bf16.mxu0 0
    %870 = vmatpush1.bf16.msra.mxu0 0
    %871 = vmatprep.subr.bf16.mxu0 0
    %872 = vmatpush1.bf16.msra.mxu0 0
    %873 = vmatprep.subr.bf16.mxu0 0
    %874 = vmatpush1.bf16.msra.mxu0 0
    %875 = vmatprep.subr.bf16.mxu0 0
    %876 = vmatpush1.bf16.msra.mxu0 0
    %877 = vmatprep.subr.bf16.mxu0 0
    %878 = vmatpush1.bf16.msra.mxu0 %v852
    %879 = vmatprep.subr.bf16.mxu0 0
    %880 = vmatpush2.bf16.msra.mxu0 0
    %881 = vmatprep.subr.bf16.mxu0 0
    %882 = vmatpush2.bf16.msra.mxu0 0
    %883 = vmatprep.subr.bf16.mxu0 0
    %884 = vmatpush2.bf16.msra.mxu0 0
    %885 = vmatprep.subr.bf16.mxu0 0
    %886 = vmatpush2.bf16.msra.mxu0 0
    %887 = vmatprep.subr.bf16.mxu0 0
    %888 = vmatpush2.bf16.msra.mxu0 0
    %889 = vmatprep.subr.bf16.mxu0 0
    %890 = vmatpush2.bf16.msra.mxu0 0
    %891 = vmatprep.subr.bf16.mxu0 0
    %892 = vmatpush2.bf16.msra.mxu0 0
    %893 = vmatprep.subr.bf16.mxu0 0
    %894 = vmatpush2.bf16.msra.mxu0 0
    %895 = vmatprep.mubr.bf16.mxu0 0
    %896 = vmatmul.mubr.bf16.gmra.mxu0 %v855
    %v897 = vpop.f32.mrf.mxu0
    %v898 = vadd.f32 0.0, %v897
    %v899 = vpop.f32.mrf.mxu0
    %v900 = vpop.f32.mrf.mxu0
    %v901 = vadd.f32 0.0, %v900
    %v902 = vpop.f32.mrf.mxu0
    %903 = vmatprep.mubr.bf16.mxu0 0
    %904 = vmatmul.mubr.bf16.gmra.mxu0 %v858
    %v905 = vpop.f32.mrf.mxu0
    %v906 = vadd.f32 0.0, %v905
    %v907 = vpop.f32.mrf.mxu0
    %v908 = vpop.f32.mrf.mxu0
    %v909 = vadd.f32 0.0, %v908
    %v910 = vpop.f32.mrf.mxu0
    %911 = vmatprep.mubr.bf16.mxu0 0
    %912 = vmatmul.mubr.bf16.gmra.mxu0 %v861
    %v913 = vpop.f32.mrf.mxu0
    %v914 = vadd.f32 0.0, %v913
    %v915 = vpop.f32.mrf.mxu0
    %v916 = vpop.f32.mrf.mxu0
    %v917 = vpop.f32.mrf.mxu0
    %918 = vdwg.mxu0
    %v921 = vunpack.c.l.b16 %v217
    %v922 = vunpack.c.l.b16 %v218
    %v923 = vpack.c.b16 %v922, %v921
    %v926 = vsel %vm480, %v214, 0
    %v929 = vsel %vm480, %v215, 0
    %v932 = vsel %vm480, %v216, 0
    %934 = vmatprep.subr.bf16.mxu0 0
    %935 = vmatpush1.bf16.msra.mxu0 0
    %936 = vmatprep.subr.bf16.mxu0 0
    %937 = vmatpush1.bf16.msra.mxu0 0
    %938 = vmatprep.subr.bf16.mxu0 0
    %939 = vmatpush1.bf16.msra.mxu0 0
    %940 = vmatprep.subr.bf16.mxu0 0
    %941 = vmatpush1.bf16.msra.mxu0 0
    %942 = vmatprep.subr.bf16.mxu0 0
    %943 = vmatpush1.bf16.msra.mxu0 0
    %944 = vmatprep.subr.bf16.mxu0 0
    %945 = vmatpush1.bf16.msra.mxu0 0
    %946 = vmatprep.subr.bf16.mxu0 0
    %947 = vmatpush1.bf16.msra.mxu0 0
    %948 = vmatprep.subr.bf16.mxu0 0
    %949 = vmatpush1.bf16.msra.mxu0 %v923
    %950 = vmatprep.subr.bf16.mxu0 0
    %951 = vmatpush2.bf16.msra.mxu0 0
    %952 = vmatprep.subr.bf16.mxu0 0
    %953 = vmatpush2.bf16.msra.mxu0 0
    %954 = vmatprep.subr.bf16.mxu0 0
    %955 = vmatpush2.bf16.msra.mxu0 0
    %956 = vmatprep.subr.bf16.mxu0 0
    %957 = vmatpush2.bf16.msra.mxu0 0
    %958 = vmatprep.subr.bf16.mxu0 0
    %959 = vmatpush2.bf16.msra.mxu0 0
    %960 = vmatprep.subr.bf16.mxu0 0
    %961 = vmatpush2.bf16.msra.mxu0 0
    %962 = vmatprep.subr.bf16.mxu0 0
    %963 = vmatpush2.bf16.msra.mxu0 0
    %964 = vmatprep.subr.bf16.mxu0 0
    %965 = vmatpush2.bf16.msra.mxu0 0
    %966 = vmatprep.mubr.bf16.mxu0 0
    %967 = vmatmul.mubr.bf16.gmra.mxu0 %v926
    %v968 = vpop.f32.mrf.mxu0
    %v969 = vadd.f32 %v898, %v968
    %v970 = vpop.f32.mrf.mxu0
    %v971 = vpop.f32.mrf.mxu0
    %v972 = vadd.f32 %v901, %v971
    %v973 = vpop.f32.mrf.mxu0
    %974 = vmatprep.mubr.bf16.mxu0 0
    %975 = vmatmul.mubr.bf16.gmra.mxu0 %v929
    %v976 = vpop.f32.mrf.mxu0
    %v977 = vadd.f32 %v906, %v976
    %v978 = vpop.f32.mrf.mxu0
    %v979 = vpop.f32.mrf.mxu0
    %v980 = vadd.f32 %v909, %v979
    %v981 = vpop.f32.mrf.mxu0
    %982 = vmatprep.mubr.bf16.mxu0 0
    %983 = vmatmul.mubr.bf16.gmra.mxu0 %v932
    %v984 = vpop.f32.mrf.mxu0
    %v985 = vadd.f32 %v914, %v984
    %v986 = vpop.f32.mrf.mxu0
    %v987 = vpop.f32.mrf.mxu0
    %v988 = vpop.f32.mrf.mxu0
    %989 = vdwg.mxu0
    %995 = vrot.lane.b32.xlu0 %v838, 32
    %v996 = vpop.permute.xlu0 %995
    %997 = vrot.lane.b32.xlu0 %v839, 32
    %v998 = vpop.permute.xlu0 %997
    %999 = vrot.lane.b32.xlu0 %v840, 32
    %v1000 = vpop.permute.xlu0 %999
    %1001 = vrot.lane.b32.xlu0 %v841, 32
    %v1002 = vpop.permute.xlu0 %1001
    %1003 = vrot.lane.b32.xlu0 %v842, 32
    %v1004 = vpop.permute.xlu0 %1003
    %v1010 = vadd.f32 %v209, %v996
    %v1011 = vadd.f32 %v210, %v998
    %v1012 = vadd.f32 %v211, %v1000
    %v1013 = vadd.f32 %v212, %v1002
    %v1014 = vadd.f32 %v213, %v1004
    %1020 = vrot.lane.b32.xlu0 %v1010, 96
    %v1021 = vpop.permute.xlu0 %1020
    %1022 = vrot.lane.b32.xlu0 %v1011, 96
    %v1023 = vpop.permute.xlu0 %1022
    %1024 = vrot.lane.b32.xlu0 %v1012, 96
    %v1025 = vpop.permute.xlu0 %1024
    %1026 = vrot.lane.b32.xlu0 %v1013, 96
    %v1027 = vpop.permute.xlu0 %1026
    %1028 = vrot.lane.b32.xlu0 %v1014, 96
    %v1029 = vpop.permute.xlu0 %1028
    %v1034 = vsel %vm259, %v1029, 0
    %1036 = vmatprep.subr.mxu0 0.0
    %1037 = vmatpush1.msra.mxu0 0.0
    %1038 = vmatprep.subr.mxu0 0.0
    %1039 = vmatpush1.msra.mxu0 0.0
    %1040 = vmatprep.subr.mxu0 0.0
    %1041 = vmatpush1.msra.mxu0 0.0
    %1042 = vmatprep.subr.mxu0 0.0
    %1043 = vmatpush1.msra.mxu0 0.0
    %1044 = vmatprep.subr.mxu0 0.0
    %1045 = vmatpush1.msra.mxu0 0.0
    %1046 = vmatprep.subr.mxu0 0.0
    %1047 = vmatpush1.msra.mxu0 0.0
    %1048 = vmatprep.subr.mxu0 0.0
    %1049 = vmatpush1.msra.mxu0 0.0
    %1050 = vmatprep.subr.mxu0 0.0
    %1051 = vmatpush1.msra.mxu0 0.0
    %1052 = vmatprep.subr.mxu0 0.0
    %1053 = vmatpush1.msra.mxu0 0.0
    %1054 = vmatprep.subr.mxu0 0.0
    %1055 = vmatpush1.msra.mxu0 0.0
    %1056 = vmatprep.subr.mxu0 0.0
    %1057 = vmatpush1.msra.mxu0 0.0
    %1058 = vmatprep.subr.mxu0 0.0
    %1059 = vmatpush1.msra.mxu0 %v1034
    %1060 = vmatprep.subr.mxu0 0.0
    %1061 = vmatpush1.msra.mxu0 %v1027
    %1062 = vmatprep.subr.mxu0 0.0
    %1063 = vmatpush1.msra.mxu0 %v1025
    %1064 = vmatprep.subr.mxu0 0.0
    %1065 = vmatpush1.msra.mxu0 %v1023
    %1066 = vmatprep.subr.mxu0 0.0
    %1067 = vmatpush1.msra.mxu0 %v1021
    %1068 = vmatprep.subr.mxu0 0.0
    %1069 = vmatpush2.msra.mxu0 0.0
    %1070 = vmatprep.subr.mxu0 0.0
    %1071 = vmatpush2.msra.mxu0 0.0
    %1072 = vmatprep.subr.mxu0 0.0
    %1073 = vmatpush2.msra.mxu0 0.0
    %1074 = vmatprep.subr.mxu0 0.0
    %1075 = vmatpush2.msra.mxu0 0.0
    %1076 = vmatprep.subr.mxu0 0.0
    %1077 = vmatpush2.msra.mxu0 0.0
    %1078 = vmatprep.subr.mxu0 0.0
    %1079 = vmatpush2.msra.mxu0 0.0
    %1080 = vmatprep.subr.mxu0 0.0
    %1081 = vmatpush2.msra.mxu0 0.0
    %1082 = vmatprep.subr.mxu0 0.0
    %1083 = vmatpush2.msra.mxu0 0.0
    %1084 = vmatprep.subr.mxu0 0.0
    %1085 = vmatpush2.msra.mxu0 0.0
    %1086 = vmatprep.subr.mxu0 0.0
    %1087 = vmatpush2.msra.mxu0 0.0
    %1088 = vmatprep.subr.mxu0 0.0
    %1089 = vmatpush2.msra.mxu0 0.0
    %1090 = vmatprep.subr.mxu0 0.0
    %1091 = vmatpush2.msra.mxu0 0.0
    %1092 = vmatprep.subr.mxu0 0.0
    %1093 = vmatpush2.msra.mxu0 0.0
    %1094 = vmatprep.subr.mxu0 0.0
    %1095 = vmatpush2.msra.mxu0 0.0
    %1096 = vmatprep.subr.mxu0 0.0
    %1097 = vmatpush2.msra.mxu0 0.0
    %1098 = vmatprep.subr.mxu0 0.0
    %1099 = vmatpush2.msra.mxu0 0.0
    %1100 = vmatprep.mubr.f32.mxu0 0.0
    %1101 = vmatmul.mubr.f32.gmra.mxu0 %v245
    %v1102 = vpop.f32.mrf.mxu0
    %v1103 = vadd.f32 0.0, %v1102
    %v1104 = vpop.f32.mrf.mxu0
    %1105 = vmatprep.mubr.f32.mxu0 0.0
    %1106 = vmatmul.mubr.f32.gmra.mxu0 %v248
    %v1107 = vpop.f32.mrf.mxu0
    %v1108 = vadd.f32 0.0, %v1107
    %v1109 = vpop.f32.mrf.mxu0
    %1110 = vmatprep.mubr.f32.mxu0 0.0
    %1111 = vmatmul.mubr.f32.gmra.mxu0 %v251
    %v1112 = vpop.f32.mrf.mxu0
    %v1113 = vadd.f32 0.0, %v1112
    %v1114 = vpop.f32.mrf.mxu0
    %1115 = vmatprep.mubr.f32.mxu0 0.0
    %1116 = vmatmul.mubr.f32.gmra.mxu0 %v254
    %v1117 = vpop.f32.mrf.mxu0
    %v1118 = vadd.f32 0.0, %v1117
    %v1119 = vpop.f32.mrf.mxu0
    %1120 = vmatprep.mubr.f32.mxu0 0.0
    %1121 = vmatmul.mubr.f32.gmra.mxu0 %v257
    %v1122 = vpop.f32.mrf.mxu0
    %v1123 = vadd.f32 0.0, %v1122
    %v1124 = vpop.f32.mrf.mxu0
    %1125 = vdwg.mxu0
    %v1126 = vpack.c.bf16 %v1108, %v1103
    %v1127 = vpack.c.bf16 %v1118, %v1113
    %v1128 = vpack.c.bf16 %v1123, %v1123
    %s1129 = scalar_lea.vmem %s5, 24
    %v1130 = vld [vmem:[%s1129] sm:$0xf]
    %v1131 = vld [vmem:[%s1129 + $0x4] sm:$0xf]
    %1132 = vmatprep.subr.mxu0 0.0
    %1133 = vmatpush1.msra.mxu0 0.0
    %1134 = vmatprep.subr.mxu0 0.0
    %1135 = vmatpush1.msra.mxu0 0.0
    %1136 = vmatprep.subr.mxu0 0.0
    %1137 = vmatpush1.msra.mxu0 0.0
    %1138 = vmatprep.subr.mxu0 0.0
    %1139 = vmatpush1.msra.mxu0 0.0
    %1140 = vmatprep.subr.mxu0 0.0
    %1141 = vmatpush1.msra.mxu0 0.0
    %1142 = vmatprep.subr.mxu0 0.0
    %1143 = vmatpush1.msra.mxu0 0.0
    %1144 = vmatprep.subr.mxu0 0.0
    %1145 = vmatpush1.msra.mxu0 0.0
    %1146 = vmatprep.subr.mxu0 0.0
    %1147 = vmatpush1.msra.mxu0 0.0
    %1148 = vmatprep.subr.mxu0 0.0
    %1149 = vmatpush1.msra.mxu0 0.0
    %1150 = vmatprep.subr.mxu0 0.0
    %1151 = vmatpush1.msra.mxu0 0.0
    %1152 = vmatprep.subr.mxu0 0.0
    %1153 = vmatpush1.msra.mxu0 0.0
    %1154 = vmatprep.subr.mxu0 0.0
    %1155 = vmatpush1.msra.mxu0 %v1034
    %1156 = vmatprep.subr.mxu0 0.0
    %1157 = vmatpush1.msra.mxu0 %v1027
    %1158 = vmatprep.subr.mxu0 0.0
    %1159 = vmatpush1.msra.mxu0 %v1025
    %1160 = vmatprep.subr.mxu0 0.0
    %1161 = vmatpush1.msra.mxu0 %v1023
    %1162 = vmatprep.subr.mxu0 0.0
    %1163 = vmatpush1.msra.mxu0 %v1021
    %1164 = vmatprep.subr.mxu0 0.0
    %1165 = vmatpush2.msra.mxu0 0.0
    %1166 = vmatprep.subr.mxu0 0.0
    %1167 = vmatpush2.msra.mxu0 0.0
    %1168 = vmatprep.subr.mxu0 0.0
    %1169 = vmatpush2.msra.mxu0 0.0
    %1170 = vmatprep.subr.mxu0 0.0
    %1171 = vmatpush2.msra.mxu0 0.0
    %1172 = vmatprep.subr.mxu0 0.0
    %1173 = vmatpush2.msra.mxu0 0.0
    %1174 = vmatprep.subr.mxu0 0.0
    %1175 = vmatpush2.msra.mxu0 0.0
    %1176 = vmatprep.subr.mxu0 0.0
    %1177 = vmatpush2.msra.mxu0 0.0
    %1178 = vmatprep.subr.mxu0 0.0
    %1179 = vmatpush2.msra.mxu0 0.0
    %1180 = vmatprep.subr.mxu0 0.0
    %1181 = vmatpush2.msra.mxu0 0.0
    %1182 = vmatprep.subr.mxu0 0.0
    %1183 = vmatpush2.msra.mxu0 0.0
    %1184 = vmatprep.subr.mxu0 0.0
    %1185 = vmatpush2.msra.mxu0 0.0
    %1186 = vmatprep.subr.mxu0 0.0
    %1187 = vmatpush2.msra.mxu0 0.0
    %1188 = vmatprep.subr.mxu0 0.0
    %1189 = vmatpush2.msra.mxu0 0.0
    %1190 = vmatprep.subr.mxu0 0.0
    %1191 = vmatpush2.msra.mxu0 0.0
    %1192 = vmatprep.subr.mxu0 0.0
    %1193 = vmatpush2.msra.mxu0 0.0
    %1194 = vmatprep.subr.mxu0 0.0
    %1195 = vmatpush2.msra.mxu0 0.0
    %1196 = vmatprep.mubr.f32.mxu0 0.0
    %1197 = vmatmul.mubr.f32.gmra.mxu0 %v364
    %v1198 = vpop.f32.mrf.mxu0
    %v1199 = vadd.f32 0.0, %v1198
    %v1200 = vpop.f32.mrf.mxu0
    %1201 = vmatprep.mubr.f32.mxu0 0.0
    %1202 = vmatmul.mubr.f32.gmra.mxu0 %v367
    %v1203 = vpop.f32.mrf.mxu0
    %v1204 = vadd.f32 0.0, %v1203
    %v1205 = vpop.f32.mrf.mxu0
    %1206 = vmatprep.mubr.f32.mxu0 0.0
    %1207 = vmatmul.mubr.f32.gmra.mxu0 %v370
    %v1208 = vpop.f32.mrf.mxu0
    %v1209 = vadd.f32 0.0, %v1208
    %v1210 = vpop.f32.mrf.mxu0
    %1211 = vmatprep.mubr.f32.mxu0 0.0
    %1212 = vmatmul.mubr.f32.gmra.mxu0 %v373
    %v1213 = vpop.f32.mrf.mxu0
    %v1214 = vadd.f32 0.0, %v1213
    %v1215 = vpop.f32.mrf.mxu0
    %1216 = vmatprep.mubr.f32.mxu0 0.0
    %1217 = vmatmul.mubr.f32.gmra.mxu0 %v376
    %v1218 = vpop.f32.mrf.mxu0
    %v1219 = vadd.f32 0.0, %v1218
    %v1220 = vpop.f32.mrf.mxu0
    %1221 = vdwg.mxu0
    %v1222 = vpack.c.bf16 %v1204, %v1199
    %v1223 = vpack.c.bf16 %v1214, %v1209
    %v1224 = vpack.c.bf16 %v1219, %v1219
    %s1225 = scalar_lea.vmem %s5, 32
    %v1226 = vld [vmem:[%s1225] sm:$0xf]
    %v1227 = vld [vmem:[%s1225 + $0x4] sm:$0xf]
    %v1230 = vunpack.c.l.b16 %v1226
    %v1231 = vunpack.c.l.b16 %v1227
    %v1232 = vpack.c.b16 %v1231, %v1230
    %v1235 = vsel %vm480, %v1222, 0
    %v1238 = vsel %vm480, %v1223, 0
    %v1241 = vsel %vm480, %v1224, 0
    %1243 = vmatprep.subr.bf16.mxu0 0
    %1244 = vmatpush1.bf16.msra.mxu0 0
    %1245 = vmatprep.subr.bf16.mxu0 0
    %1246 = vmatpush1.bf16.msra.mxu0 0
    %1247 = vmatprep.subr.bf16.mxu0 0
    %1248 = vmatpush1.bf16.msra.mxu0 0
    %1249 = vmatprep.subr.bf16.mxu0 0
    %1250 = vmatpush1.bf16.msra.mxu0 0
    %1251 = vmatprep.subr.bf16.mxu0 0
    %1252 = vmatpush1.bf16.msra.mxu0 0
    %1253 = vmatprep.subr.bf16.mxu0 0
    %1254 = vmatpush1.bf16.msra.mxu0 0
    %1255 = vmatprep.subr.bf16.mxu0 0
    %1256 = vmatpush1.bf16.msra.mxu0 0
    %1257 = vmatprep.subr.bf16.mxu0 0
    %1258 = vmatpush1.bf16.msra.mxu0 %v1232
    %1259 = vmatprep.subr.bf16.mxu0 0
    %1260 = vmatpush2.bf16.msra.mxu0 0
    %1261 = vmatprep.subr.bf16.mxu0 0
    %1262 = vmatpush2.bf16.msra.mxu0 0
    %1263 = vmatprep.subr.bf16.mxu0 0
    %1264 = vmatpush2.bf16.msra.mxu0 0
    %1265 = vmatprep.subr.bf16.mxu0 0
    %1266 = vmatpush2.bf16.msra.mxu0 0
    %1267 = vmatprep.subr.bf16.mxu0 0
    %1268 = vmatpush2.bf16.msra.mxu0 0
    %1269 = vmatprep.subr.bf16.mxu0 0
    %1270 = vmatpush2.bf16.msra.mxu0 0
    %1271 = vmatprep.subr.bf16.mxu0 0
    %1272 = vmatpush2.bf16.msra.mxu0 0
    %1273 = vmatprep.subr.bf16.mxu0 0
    %1274 = vmatpush2.bf16.msra.mxu0 0
    %1275 = vmatprep.mubr.bf16.mxu0 0
    %1276 = vmatmul.mubr.bf16.gmra.mxu0 %v1235
    %v1277 = vpop.f32.mrf.mxu0
    %v1278 = vadd.f32 0.0, %v1277
    %v1279 = vpop.f32.mrf.mxu0
    %v1280 = vpop.f32.mrf.mxu0
    %v1281 = vadd.f32 0.0, %v1280
    %v1282 = vpop.f32.mrf.mxu0
    %1283 = vmatprep.mubr.bf16.mxu0 0
    %1284 = vmatmul.mubr.bf16.gmra.mxu0 %v1238
    %v1285 = vpop.f32.mrf.mxu0
    %v1286 = vadd.f32 0.0, %v1285
    %v1287 = vpop.f32.mrf.mxu0
    %v1288 = vpop.f32.mrf.mxu0
    %v1289 = vadd.f32 0.0, %v1288
    %v1290 = vpop.f32.mrf.mxu0
    %1291 = vmatprep.mubr.bf16.mxu0 0
    %1292 = vmatmul.mubr.bf16.gmra.mxu0 %v1241
    %v1293 = vpop.f32.mrf.mxu0
    %v1294 = vadd.f32 0.0, %v1293
    %v1295 = vpop.f32.mrf.mxu0
    %v1296 = vpop.f32.mrf.mxu0
    %v1297 = vpop.f32.mrf.mxu0
    %1298 = vdwg.mxu0
    %v1301 = vunpack.c.l.b16 %v1130
    %v1302 = vunpack.c.l.b16 %v1131
    %v1303 = vpack.c.b16 %v1302, %v1301
    %v1306 = vsel %vm480, %v1126, 0
    %v1309 = vsel %vm480, %v1127, 0
    %v1312 = vsel %vm480, %v1128, 0
    %1314 = vmatprep.subr.bf16.mxu0 0
    %1315 = vmatpush1.bf16.msra.mxu0 0
    %1316 = vmatprep.subr.bf16.mxu0 0
    %1317 = vmatpush1.bf16.msra.mxu0 0
    %1318 = vmatprep.subr.bf16.mxu0 0
    %1319 = vmatpush1.bf16.msra.mxu0 0
    %1320 = vmatprep.subr.bf16.mxu0 0
    %1321 = vmatpush1.bf16.msra.mxu0 0
    %1322 = vmatprep.subr.bf16.mxu0 0
    %1323 = vmatpush1.bf16.msra.mxu0 0
    %1324 = vmatprep.subr.bf16.mxu0 0
    %1325 = vmatpush1.bf16.msra.mxu0 0
    %1326 = vmatprep.subr.bf16.mxu0 0
    %1327 = vmatpush1.bf16.msra.mxu0 0
    %1328 = vmatprep.subr.bf16.mxu0 0
    %1329 = vmatpush1.bf16.msra.mxu0 %v1303
    %1330 = vmatprep.subr.bf16.mxu0 0
    %1331 = vmatpush2.bf16.msra.mxu0 0
    %1332 = vmatprep.subr.bf16.mxu0 0
    %1333 = vmatpush2.bf16.msra.mxu0 0
    %1334 = vmatprep.subr.bf16.mxu0 0
    %1335 = vmatpush2.bf16.msra.mxu0 0
    %1336 = vmatprep.subr.bf16.mxu0 0
    %1337 = vmatpush2.bf16.msra.mxu0 0
    %1338 = vmatprep.subr.bf16.mxu0 0
    %1339 = vmatpush2.bf16.msra.mxu0 0
    %1340 = vmatprep.subr.bf16.mxu0 0
    %1341 = vmatpush2.bf16.msra.mxu0 0
    %1342 = vmatprep.subr.bf16.mxu0 0
    %1343 = vmatpush2.bf16.msra.mxu0 0
    %1344 = vmatprep.subr.bf16.mxu0 0
    %1345 = vmatpush2.bf16.msra.mxu0 0
    %1346 = vmatprep.mubr.bf16.mxu0 0
    %1347 = vmatmul.mubr.bf16.gmra.mxu0 %v1306
    %v1348 = vpop.f32.mrf.mxu0
    %v1349 = vadd.f32 %v1278, %v1348
    %v1350 = vpop.f32.mrf.mxu0
    %v1351 = vpop.f32.mrf.mxu0
    %v1352 = vadd.f32 %v1281, %v1351
    %v1353 = vpop.f32.mrf.mxu0
    %1354 = vmatprep.mubr.bf16.mxu0 0
    %1355 = vmatmul.mubr.bf16.gmra.mxu0 %v1309
    %v1356 = vpop.f32.mrf.mxu0
    %v1357 = vadd.f32 %v1286, %v1356
    %v1358 = vpop.f32.mrf.mxu0
    %v1359 = vpop.f32.mrf.mxu0
    %v1360 = vadd.f32 %v1289, %v1359
    %v1361 = vpop.f32.mrf.mxu0
    %1362 = vmatprep.mubr.bf16.mxu0 0
    %1363 = vmatmul.mubr.bf16.gmra.mxu0 %v1312
    %v1364 = vpop.f32.mrf.mxu0
    %v1365 = vadd.f32 %v1294, %v1364
    %v1366 = vpop.f32.mrf.mxu0
    %v1367 = vpop.f32.mrf.mxu0
    %v1368 = vpop.f32.mrf.mxu0
    %1369 = vdwg.mxu0
    %1370 = vmatprep.subr.mxu0 0.0
    %1371 = vmatpush1.msra.mxu0 0.0
    %1372 = vmatprep.subr.mxu0 0.0
    %1373 = vmatpush1.msra.mxu0 0.0
    %1374 = vmatprep.subr.mxu0 0.0
    %1375 = vmatpush1.msra.mxu0 0.0
    %1376 = vmatprep.subr.mxu0 0.0
    %1377 = vmatpush1.msra.mxu0 0.0
    %1378 = vmatprep.subr.mxu0 0.0
    %1379 = vmatpush1.msra.mxu0 0.0
    %1380 = vmatprep.subr.mxu0 0.0
    %1381 = vmatpush1.msra.mxu0 0.0
    %1382 = vmatprep.subr.mxu0 0.0
    %1383 = vmatpush1.msra.mxu0 0.0
    %1384 = vmatprep.subr.mxu0 0.0
    %1385 = vmatpush1.msra.mxu0 0.0
    %1386 = vmatprep.subr.mxu0 0.0
    %1387 = vmatpush1.msra.mxu0 0.0
    %1388 = vmatprep.subr.mxu0 0.0
    %1389 = vmatpush1.msra.mxu0 0.0
    %1390 = vmatprep.subr.mxu0 0.0
    %1391 = vmatpush1.msra.mxu0 0.0
    %1392 = vmatprep.subr.mxu0 0.0
    %1393 = vmatpush1.msra.mxu0 %v1034
    %1394 = vmatprep.subr.mxu0 0.0
    %1395 = vmatpush1.msra.mxu0 %v1027
    %1396 = vmatprep.subr.mxu0 0.0
    %1397 = vmatpush1.msra.mxu0 %v1025
    %1398 = vmatprep.subr.mxu0 0.0
    %1399 = vmatpush1.msra.mxu0 %v1023
    %1400 = vmatprep.subr.mxu0 0.0
    %1401 = vmatpush1.msra.mxu0 %v1021
    %1402 = vmatprep.subr.mxu0 0.0
    %1403 = vmatpush2.msra.mxu0 0.0
    %1404 = vmatprep.subr.mxu0 0.0
    %1405 = vmatpush2.msra.mxu0 0.0
    %1406 = vmatprep.subr.mxu0 0.0
    %1407 = vmatpush2.msra.mxu0 0.0
    %1408 = vmatprep.subr.mxu0 0.0
    %1409 = vmatpush2.msra.mxu0 0.0
    %1410 = vmatprep.subr.mxu0 0.0
    %1411 = vmatpush2.msra.mxu0 0.0
    %1412 = vmatprep.subr.mxu0 0.0
    %1413 = vmatpush2.msra.mxu0 0.0
    %1414 = vmatprep.subr.mxu0 0.0
    %1415 = vmatpush2.msra.mxu0 0.0
    %1416 = vmatprep.subr.mxu0 0.0
    %1417 = vmatpush2.msra.mxu0 0.0
    %1418 = vmatprep.subr.mxu0 0.0
    %1419 = vmatpush2.msra.mxu0 0.0
    %1420 = vmatprep.subr.mxu0 0.0
    %1421 = vmatpush2.msra.mxu0 0.0
    %1422 = vmatprep.subr.mxu0 0.0
    %1423 = vmatpush2.msra.mxu0 0.0
    %1424 = vmatprep.subr.mxu0 0.0
    %1425 = vmatpush2.msra.mxu0 0.0
    %1426 = vmatprep.subr.mxu0 0.0
    %1427 = vmatpush2.msra.mxu0 0.0
    %1428 = vmatprep.subr.mxu0 0.0
    %1429 = vmatpush2.msra.mxu0 0.0
    %1430 = vmatprep.subr.mxu0 0.0
    %1431 = vmatpush2.msra.mxu0 0.0
    %1432 = vmatprep.subr.mxu0 0.0
    %1433 = vmatpush2.msra.mxu0 0.0
    %1434 = vmatprep.mubr.f32.mxu0 0.0
    %1435 = vmatmul.mubr.f32.gmra.mxu0 %v624
    %v1436 = vpop.f32.mrf.mxu0
    %v1437 = vadd.f32 0.0, %v1436
    %v1438 = vpop.f32.mrf.mxu0
    %1439 = vmatprep.mubr.f32.mxu0 0.0
    %1440 = vmatmul.mubr.f32.gmra.mxu0 %v627
    %v1441 = vpop.f32.mrf.mxu0
    %v1442 = vadd.f32 0.0, %v1441
    %v1443 = vpop.f32.mrf.mxu0
    %1444 = vmatprep.mubr.f32.mxu0 0.0
    %1445 = vmatmul.mubr.f32.gmra.mxu0 %v630
    %v1446 = vpop.f32.mrf.mxu0
    %v1447 = vadd.f32 0.0, %v1446
    %v1448 = vpop.f32.mrf.mxu0
    %1449 = vmatprep.mubr.f32.mxu0 0.0
    %1450 = vmatmul.mubr.f32.gmra.mxu0 %v633
    %v1451 = vpop.f32.mrf.mxu0
    %v1452 = vadd.f32 0.0, %v1451
    %v1453 = vpop.f32.mrf.mxu0
    %1454 = vmatprep.mubr.f32.mxu0 0.0
    %1455 = vmatmul.mubr.f32.gmra.mxu0 %v636
    %v1456 = vpop.f32.mrf.mxu0
    %v1457 = vadd.f32 0.0, %v1456
    %v1458 = vpop.f32.mrf.mxu0
    %1459 = vdwg.mxu0
    %v1460 = vpack.c.bf16 %v1442, %v1437
    %v1461 = vpack.c.bf16 %v1452, %v1447
    %v1462 = vpack.c.bf16 %v1457, %v1457
    %s1463 = scalar_lea.vmem %s5, 40
    %v1464 = vld [vmem:[%s1463] sm:$0xf]
    %v1465 = vld [vmem:[%s1463 + $0x4] sm:$0xf]
    %v1468 = vunpack.c.l.b16 %v1464
    %v1469 = vunpack.c.l.b16 %v1465
    %v1470 = vpack.c.b16 %v1469, %v1468
    %v1473 = vsel %vm480, %v1460, 0
    %v1476 = vsel %vm480, %v1461, 0
    %v1479 = vsel %vm480, %v1462, 0
    %1481 = vmatprep.subr.bf16.mxu0 0
    %1482 = vmatpush1.bf16.msra.mxu0 0
    %1483 = vmatprep.subr.bf16.mxu0 0
    %1484 = vmatpush1.bf16.msra.mxu0 0
    %1485 = vmatprep.subr.bf16.mxu0 0
    %1486 = vmatpush1.bf16.msra.mxu0 0
    %1487 = vmatprep.subr.bf16.mxu0 0
    %1488 = vmatpush1.bf16.msra.mxu0 0
    %1489 = vmatprep.subr.bf16.mxu0 0
    %1490 = vmatpush1.bf16.msra.mxu0 0
    %1491 = vmatprep.subr.bf16.mxu0 0
    %1492 = vmatpush1.bf16.msra.mxu0 0
    %1493 = vmatprep.subr.bf16.mxu0 0
    %1494 = vmatpush1.bf16.msra.mxu0 0
    %1495 = vmatprep.subr.bf16.mxu0 0
    %1496 = vmatpush1.bf16.msra.mxu0 %v1470
    %1497 = vmatprep.subr.bf16.mxu0 0
    %1498 = vmatpush2.bf16.msra.mxu0 0
    %1499 = vmatprep.subr.bf16.mxu0 0
    %1500 = vmatpush2.bf16.msra.mxu0 0
    %1501 = vmatprep.subr.bf16.mxu0 0
    %1502 = vmatpush2.bf16.msra.mxu0 0
    %1503 = vmatprep.subr.bf16.mxu0 0
    %1504 = vmatpush2.bf16.msra.mxu0 0
    %1505 = vmatprep.subr.bf16.mxu0 0
    %1506 = vmatpush2.bf16.msra.mxu0 0
    %1507 = vmatprep.subr.bf16.mxu0 0
    %1508 = vmatpush2.bf16.msra.mxu0 0
    %1509 = vmatprep.subr.bf16.mxu0 0
    %1510 = vmatpush2.bf16.msra.mxu0 0
    %1511 = vmatprep.subr.bf16.mxu0 0
    %1512 = vmatpush2.bf16.msra.mxu0 0
    %1513 = vmatprep.mubr.bf16.mxu0 0
    %1514 = vmatmul.mubr.bf16.gmra.mxu0 %v1473
    %v1515 = vpop.f32.mrf.mxu0
    %v1516 = vadd.f32 0.0, %v1515
    %v1517 = vpop.f32.mrf.mxu0
    %v1518 = vpop.f32.mrf.mxu0
    %v1519 = vadd.f32 0.0, %v1518
    %v1520 = vpop.f32.mrf.mxu0
    %1521 = vmatprep.mubr.bf16.mxu0 0
    %1522 = vmatmul.mubr.bf16.gmra.mxu0 %v1476
    %v1523 = vpop.f32.mrf.mxu0
    %v1524 = vadd.f32 0.0, %v1523
    %v1525 = vpop.f32.mrf.mxu0
    %v1526 = vpop.f32.mrf.mxu0
    %v1527 = vadd.f32 0.0, %v1526
    %v1528 = vpop.f32.mrf.mxu0
    %1529 = vmatprep.mubr.bf16.mxu0 0
    %1530 = vmatmul.mubr.bf16.gmra.mxu0 %v1479
    %v1531 = vpop.f32.mrf.mxu0
    %v1532 = vadd.f32 0.0, %v1531
    %v1533 = vpop.f32.mrf.mxu0
    %v1534 = vpop.f32.mrf.mxu0
    %v1535 = vpop.f32.mrf.mxu0
    %1536 = vdwg.mxu0
    %v1537 = vadd.f32 %v1349, %v1516
    %v1538 = vadd.f32 %v1352, %v1519
    %v1539 = vadd.f32 %v1357, %v1524
    %v1540 = vadd.f32 %v1360, %v1527
    %v1541 = vadd.f32 %v1365, %v1532
    %s1542 = scalar_lea.vmem %s6, 4
    %v1543 = vld [vmem:[%s1542] sm:$0x7]
    %v1544 = vlaneseq
    %v1545 = vshrl.u32 %v1544, 7
    %v1546 = vsub.s32 0, %v1545
    %v1547 = vrot.slane %v1543, %v1546
    %v1548 = vadd.f32 %v1537, %v1547
    %v1549 = vadd.f32 %v1538, %v1547
    %v1550 = vadd.f32 %v1539, %v1547
    %v1551 = vadd.f32 %v1540, %v1547
    %v1552 = vadd.f32 %v1541, %v1547
    %v1553 = vmax.f32 %v1548, 0.0
    %v1554 = vmax.f32 %v1549, 0.0
    %v1555 = vmax.f32 %v1550, 0.0
    %v1556 = vmax.f32 %v1551, 0.0
    %v1557 = vmax.f32 %v1552, 0.0
    %v1558 = vlaneseq
    %v1559 = vshrl.u32 %v1558, 7
    %v1560 = vsub.s32 1, %v1559
    %v1561 = vrot.slane %v1543, %v1560
    %v1562 = vmul.f32 %v1553, %v1561
    %v1563 = vmul.f32 %v1554, %v1561
    %v1564 = vmul.f32 %v1555, %v1561
    %v1565 = vmul.f32 %v1556, %v1561
    %v1566 = vmul.f32 %v1557, %v1561
    %v1567 = vlaneseq
    %v1568 = vshrl.u32 %v1567, 7
    %v1569 = vsub.s32 2, %v1568
    %v1570 = vrot.slane %v1543, %v1569
    %v1571 = vadd.f32 %v1562, %v1570
    %v1572 = vadd.f32 %v1563, %v1570
    %v1573 = vadd.f32 %v1564, %v1570
    %v1574 = vadd.f32 %v1565, %v1570
    %v1575 = vadd.f32 %v1566, %v1570
    %v1576 = vpack.c.bf16 %v1572, %v1571
    %v1577 = vpack.c.bf16 %v1574, %v1573
    %v1578 = vpack.c.bf16 %v1575, %v1575
    %v1579 = vld [vmem:[%s7 + $0x10] sm:$0xf]
    %v1580 = vld [vmem:[%s7 + $0x14] sm:$0xf]
    %v1583 = vunpack.c.l.b16 %v1579
    %v1584 = vunpack.c.l.b16 %v1580
    %v1585 = vpack.c.b16 %v1584, %v1583
    %v1588 = vsel %vm480, %v1576, 0
    %v1591 = vsel %vm480, %v1577, 0
    %v1594 = vsel %vm480, %v1578, 0
    %1596 = vmatprep.subr.bf16.mxu0 0
    %1597 = vmatpush1.bf16.msra.mxu0 0
    %1598 = vmatprep.subr.bf16.mxu0 0
    %1599 = vmatpush1.bf16.msra.mxu0 0
    %1600 = vmatprep.subr.bf16.mxu0 0
    %1601 = vmatpush1.bf16.msra.mxu0 0
    %1602 = vmatprep.subr.bf16.mxu0 0
    %1603 = vmatpush1.bf16.msra.mxu0 0
    %1604 = vmatprep.subr.bf16.mxu0 0
    %1605 = vmatpush1.bf16.msra.mxu0 0
    %1606 = vmatprep.subr.bf16.mxu0 0
    %1607 = vmatpush1.bf16.msra.mxu0 0
    %1608 = vmatprep.subr.bf16.mxu0 0
    %1609 = vmatpush1.bf16.msra.mxu0 0
    %1610 = vmatprep.subr.bf16.mxu0 0
    %1611 = vmatpush1.bf16.msra.mxu0 %v1585
    %1612 = vmatprep.subr.bf16.mxu0 0
    %1613 = vmatpush2.bf16.msra.mxu0 0
    %1614 = vmatprep.subr.bf16.mxu0 0
    %1615 = vmatpush2.bf16.msra.mxu0 0
    %1616 = vmatprep.subr.bf16.mxu0 0
    %1617 = vmatpush2.bf16.msra.mxu0 0
    %1618 = vmatprep.subr.bf16.mxu0 0
    %1619 = vmatpush2.bf16.msra.mxu0 0
    %1620 = vmatprep.subr.bf16.mxu0 0
    %1621 = vmatpush2.bf16.msra.mxu0 0
    %1622 = vmatprep.subr.bf16.mxu0 0
    %1623 = vmatpush2.bf16.msra.mxu0 0
    %1624 = vmatprep.subr.bf16.mxu0 0
    %1625 = vmatpush2.bf16.msra.mxu0 0
    %1626 = vmatprep.subr.bf16.mxu0 0
    %1627 = vmatpush2.bf16.msra.mxu0 0
    %1628 = vmatprep.mubr.bf16.mxu0 0
    %1629 = vmatmul.mubr.bf16.gmra.mxu0 %v1588
    %v1630 = vpop.f32.mrf.mxu0
    %v1631 = vadd.f32 0.0, %v1630
    %v1632 = vpop.f32.mrf.mxu0
    %v1633 = vpop.f32.mrf.mxu0
    %v1634 = vadd.f32 0.0, %v1633
    %v1635 = vpop.f32.mrf.mxu0
    %1636 = vmatprep.mubr.bf16.mxu0 0
    %1637 = vmatmul.mubr.bf16.gmra.mxu0 %v1591
    %v1638 = vpop.f32.mrf.mxu0
    %v1639 = vadd.f32 0.0, %v1638
    %v1640 = vpop.f32.mrf.mxu0
    %v1641 = vpop.f32.mrf.mxu0
    %v1642 = vadd.f32 0.0, %v1641
    %v1643 = vpop.f32.mrf.mxu0
    %1644 = vmatprep.mubr.bf16.mxu0 0
    %1645 = vmatmul.mubr.bf16.gmra.mxu0 %v1594
    %v1646 = vpop.f32.mrf.mxu0
    %v1647 = vadd.f32 0.0, %v1646
    %v1648 = vpop.f32.mrf.mxu0
    %v1649 = vpop.f32.mrf.mxu0
    %v1650 = vpop.f32.mrf.mxu0
    %1651 = vdwg.mxu0
    %v1652 = vadd.f32 %v969, %v1631
    %v1653 = vadd.f32 %v972, %v1634
    %v1654 = vadd.f32 %v977, %v1639
    %v1655 = vadd.f32 %v980, %v1642
    %v1656 = vadd.f32 %v985, %v1647
    %1662 = vrot.lane.b32.xlu0 %v1571, 48
    %v1663 = vpop.permute.xlu0 %1662
    %1664 = vrot.lane.b32.xlu0 %v1572, 48
    %v1665 = vpop.permute.xlu0 %1664
    %1666 = vrot.lane.b32.xlu0 %v1573, 48
    %v1667 = vpop.permute.xlu0 %1666
    %1668 = vrot.lane.b32.xlu0 %v1574, 48
    %v1669 = vpop.permute.xlu0 %1668
    %1670 = vrot.lane.b32.xlu0 %v1575, 48
    %v1671 = vpop.permute.xlu0 %1670
    %v1677 = vadd.f32 %v209, %v1663
    %v1678 = vadd.f32 %v210, %v1665
    %v1679 = vadd.f32 %v211, %v1667
    %v1680 = vadd.f32 %v212, %v1669
    %v1681 = vadd.f32 %v213, %v1671
    %1687 = vrot.lane.b32.xlu0 %v1677, 80
    %v1688 = vpop.permute.xlu0 %1687
    %1689 = vrot.lane.b32.xlu0 %v1678, 80
    %v1690 = vpop.permute.xlu0 %1689
    %1691 = vrot.lane.b32.xlu0 %v1679, 80
    %v1692 = vpop.permute.xlu0 %1691
    %1693 = vrot.lane.b32.xlu0 %v1680, 80
    %v1694 = vpop.permute.xlu0 %1693
    %1695 = vrot.lane.b32.xlu0 %v1681, 80
    %v1696 = vpop.permute.xlu0 %1695
    %v1701 = vsel %vm259, %v1696, 0
    %1703 = vmatprep.subr.mxu0 0.0
    %1704 = vmatpush1.msra.mxu0 0.0
    %1705 = vmatprep.subr.mxu0 0.0
    %1706 = vmatpush1.msra.mxu0 0.0
    %1707 = vmatprep.subr.mxu0 0.0
    %1708 = vmatpush1.msra.mxu0 0.0
    %1709 = vmatprep.subr.mxu0 0.0
    %1710 = vmatpush1.msra.mxu0 0.0
    %1711 = vmatprep.subr.mxu0 0.0
    %1712 = vmatpush1.msra.mxu0 0.0
    %1713 = vmatprep.subr.mxu0 0.0
    %1714 = vmatpush1.msra.mxu0 0.0
    %1715 = vmatprep.subr.mxu0 0.0
    %1716 = vmatpush1.msra.mxu0 0.0
    %1717 = vmatprep.subr.mxu0 0.0
    %1718 = vmatpush1.msra.mxu0 0.0
    %1719 = vmatprep.subr.mxu0 0.0
    %1720 = vmatpush1.msra.mxu0 0.0
    %1721 = vmatprep.subr.mxu0 0.0
    %1722 = vmatpush1.msra.mxu0 0.0
    %1723 = vmatprep.subr.mxu0 0.0
    %1724 = vmatpush1.msra.mxu0 0.0
    %1725 = vmatprep.subr.mxu0 0.0
    %1726 = vmatpush1.msra.mxu0 %v1701
    %1727 = vmatprep.subr.mxu0 0.0
    %1728 = vmatpush1.msra.mxu0 %v1694
    %1729 = vmatprep.subr.mxu0 0.0
    %1730 = vmatpush1.msra.mxu0 %v1692
    %1731 = vmatprep.subr.mxu0 0.0
    %1732 = vmatpush1.msra.mxu0 %v1690
    %1733 = vmatprep.subr.mxu0 0.0
    %1734 = vmatpush1.msra.mxu0 %v1688
    %1735 = vmatprep.subr.mxu0 0.0
    %1736 = vmatpush2.msra.mxu0 0.0
    %1737 = vmatprep.subr.mxu0 0.0
    %1738 = vmatpush2.msra.mxu0 0.0
    %1739 = vmatprep.subr.mxu0 0.0
    %1740 = vmatpush2.msra.mxu0 0.0
    %1741 = vmatprep.subr.mxu0 0.0
    %1742 = vmatpush2.msra.mxu0 0.0
    %1743 = vmatprep.subr.mxu0 0.0
    %1744 = vmatpush2.msra.mxu0 0.0
    %1745 = vmatprep.subr.mxu0 0.0
    %1746 = vmatpush2.msra.mxu0 0.0
    %1747 = vmatprep.subr.mxu0 0.0
    %1748 = vmatpush2.msra.mxu0 0.0
    %1749 = vmatprep.subr.mxu0 0.0
    %1750 = vmatpush2.msra.mxu0 0.0
    %1751 = vmatprep.subr.mxu0 0.0
    %1752 = vmatpush2.msra.mxu0 0.0
    %1753 = vmatprep.subr.mxu0 0.0
    %1754 = vmatpush2.msra.mxu0 0.0
    %1755 = vmatprep.subr.mxu0 0.0
    %1756 = vmatpush2.msra.mxu0 0.0
    %1757 = vmatprep.subr.mxu0 0.0
    %1758 = vmatpush2.msra.mxu0 0.0
    %1759 = vmatprep.subr.mxu0 0.0
    %1760 = vmatpush2.msra.mxu0 0.0
    %1761 = vmatprep.subr.mxu0 0.0
    %1762 = vmatpush2.msra.mxu0 0.0
    %1763 = vmatprep.subr.mxu0 0.0
    %1764 = vmatpush2.msra.mxu0 0.0
    %1765 = vmatprep.subr.mxu0 0.0
    %1766 = vmatpush2.msra.mxu0 0.0
    %1767 = vmatprep.mubr.f32.mxu0 0.0
    %1768 = vmatmul.mubr.f32.gmra.mxu0 %v245
    %v1769 = vpop.f32.mrf.mxu0
    %v1770 = vadd.f32 0.0, %v1769
    %v1771 = vpop.f32.mrf.mxu0
    %1772 = vmatprep.mubr.f32.mxu0 0.0
    %1773 = vmatmul.mubr.f32.gmra.mxu0 %v248
    %v1774 = vpop.f32.mrf.mxu0
    %v1775 = vadd.f32 0.0, %v1774
    %v1776 = vpop.f32.mrf.mxu0
    %1777 = vmatprep.mubr.f32.mxu0 0.0
    %1778 = vmatmul.mubr.f32.gmra.mxu0 %v251
    %v1779 = vpop.f32.mrf.mxu0
    %v1780 = vadd.f32 0.0, %v1779
    %v1781 = vpop.f32.mrf.mxu0
    %1782 = vmatprep.mubr.f32.mxu0 0.0
    %1783 = vmatmul.mubr.f32.gmra.mxu0 %v254
    %v1784 = vpop.f32.mrf.mxu0
    %v1785 = vadd.f32 0.0, %v1784
    %v1786 = vpop.f32.mrf.mxu0
    %1787 = vmatprep.mubr.f32.mxu0 0.0
    %1788 = vmatmul.mubr.f32.gmra.mxu0 %v257
    %v1789 = vpop.f32.mrf.mxu0
    %v1790 = vadd.f32 0.0, %v1789
    %v1791 = vpop.f32.mrf.mxu0
    %1792 = vdwg.mxu0
    %v1793 = vpack.c.bf16 %v1775, %v1770
    %v1794 = vpack.c.bf16 %v1785, %v1780
    %v1795 = vpack.c.bf16 %v1790, %v1790
    %s1796 = scalar_lea.vmem %s5, 48
    %v1797 = vld [vmem:[%s1796] sm:$0xf]
    %v1798 = vld [vmem:[%s1796 + $0x4] sm:$0xf]
    %1799 = vmatprep.subr.mxu0 0.0
    %1800 = vmatpush1.msra.mxu0 0.0
    %1801 = vmatprep.subr.mxu0 0.0
    %1802 = vmatpush1.msra.mxu0 0.0
    %1803 = vmatprep.subr.mxu0 0.0
    %1804 = vmatpush1.msra.mxu0 0.0
    %1805 = vmatprep.subr.mxu0 0.0
    %1806 = vmatpush1.msra.mxu0 0.0
    %1807 = vmatprep.subr.mxu0 0.0
    %1808 = vmatpush1.msra.mxu0 0.0
    %1809 = vmatprep.subr.mxu0 0.0
    %1810 = vmatpush1.msra.mxu0 0.0
    %1811 = vmatprep.subr.mxu0 0.0
    %1812 = vmatpush1.msra.mxu0 0.0
    %1813 = vmatprep.subr.mxu0 0.0
    %1814 = vmatpush1.msra.mxu0 0.0
    %1815 = vmatprep.subr.mxu0 0.0
    %1816 = vmatpush1.msra.mxu0 0.0
    %1817 = vmatprep.subr.mxu0 0.0
    %1818 = vmatpush1.msra.mxu0 0.0
    %1819 = vmatprep.subr.mxu0 0.0
    %1820 = vmatpush1.msra.mxu0 0.0
    %1821 = vmatprep.subr.mxu0 0.0
    %1822 = vmatpush1.msra.mxu0 %v1701
    %1823 = vmatprep.subr.mxu0 0.0
    %1824 = vmatpush1.msra.mxu0 %v1694
    %1825 = vmatprep.subr.mxu0 0.0
    %1826 = vmatpush1.msra.mxu0 %v1692
    %1827 = vmatprep.subr.mxu0 0.0
    %1828 = vmatpush1.msra.mxu0 %v1690
    %1829 = vmatprep.subr.mxu0 0.0
    %1830 = vmatpush1.msra.mxu0 %v1688
    %1831 = vmatprep.subr.mxu0 0.0
    %1832 = vmatpush2.msra.mxu0 0.0
    %1833 = vmatprep.subr.mxu0 0.0
    %1834 = vmatpush2.msra.mxu0 0.0
    %1835 = vmatprep.subr.mxu0 0.0
    %1836 = vmatpush2.msra.mxu0 0.0
    %1837 = vmatprep.subr.mxu0 0.0
    %1838 = vmatpush2.msra.mxu0 0.0
    %1839 = vmatprep.subr.mxu0 0.0
    %1840 = vmatpush2.msra.mxu0 0.0
    %1841 = vmatprep.subr.mxu0 0.0
    %1842 = vmatpush2.msra.mxu0 0.0
    %1843 = vmatprep.subr.mxu0 0.0
    %1844 = vmatpush2.msra.mxu0 0.0
    %1845 = vmatprep.subr.mxu0 0.0
    %1846 = vmatpush2.msra.mxu0 0.0
    %1847 = vmatprep.subr.mxu0 0.0
    %1848 = vmatpush2.msra.mxu0 0.0
    %1849 = vmatprep.subr.mxu0 0.0
    %1850 = vmatpush2.msra.mxu0 0.0
    %1851 = vmatprep.subr.mxu0 0.0
    %1852 = vmatpush2.msra.mxu0 0.0
    %1853 = vmatprep.subr.mxu0 0.0
    %1854 = vmatpush2.msra.mxu0 0.0
    %1855 = vmatprep.subr.mxu0 0.0
    %1856 = vmatpush2.msra.mxu0 0.0
    %1857 = vmatprep.subr.mxu0 0.0
    %1858 = vmatpush2.msra.mxu0 0.0
    %1859 = vmatprep.subr.mxu0 0.0
    %1860 = vmatpush2.msra.mxu0 0.0
    %1861 = vmatprep.subr.mxu0 0.0
    %1862 = vmatpush2.msra.mxu0 0.0
    %1863 = vmatprep.mubr.f32.mxu0 0.0
    %1864 = vmatmul.mubr.f32.gmra.mxu0 %v364
    %v1865 = vpop.f32.mrf.mxu0
    %v1866 = vadd.f32 0.0, %v1865
    %v1867 = vpop.f32.mrf.mxu0
    %1868 = vmatprep.mubr.f32.mxu0 0.0
    %1869 = vmatmul.mubr.f32.gmra.mxu0 %v367
    %v1870 = vpop.f32.mrf.mxu0
    %v1871 = vadd.f32 0.0, %v1870
    %v1872 = vpop.f32.mrf.mxu0
    %1873 = vmatprep.mubr.f32.mxu0 0.0
    %1874 = vmatmul.mubr.f32.gmra.mxu0 %v370
    %v1875 = vpop.f32.mrf.mxu0
    %v1876 = vadd.f32 0.0, %v1875
    %v1877 = vpop.f32.mrf.mxu0
    %1878 = vmatprep.mubr.f32.mxu0 0.0
    %1879 = vmatmul.mubr.f32.gmra.mxu0 %v373
    %v1880 = vpop.f32.mrf.mxu0
    %v1881 = vadd.f32 0.0, %v1880
    %v1882 = vpop.f32.mrf.mxu0
    %1883 = vmatprep.mubr.f32.mxu0 0.0
    %1884 = vmatmul.mubr.f32.gmra.mxu0 %v376
    %v1885 = vpop.f32.mrf.mxu0
    %v1886 = vadd.f32 0.0, %v1885
    %v1887 = vpop.f32.mrf.mxu0
    %1888 = vdwg.mxu0
    %v1889 = vpack.c.bf16 %v1871, %v1866
    %v1890 = vpack.c.bf16 %v1881, %v1876
    %v1891 = vpack.c.bf16 %v1886, %v1886
    %s1892 = scalar_lea.vmem %s5, 56
    %v1893 = vld [vmem:[%s1892] sm:$0xf]
    %v1894 = vld [vmem:[%s1892 + $0x4] sm:$0xf]
    %v1897 = vunpack.c.l.b16 %v1893
    %v1898 = vunpack.c.l.b16 %v1894
    %v1899 = vpack.c.b16 %v1898, %v1897
    %v1902 = vsel %vm480, %v1889, 0
    %v1905 = vsel %vm480, %v1890, 0
    %v1908 = vsel %vm480, %v1891, 0
    %1910 = vmatprep.subr.bf16.mxu0 0
    %1911 = vmatpush1.bf16.msra.mxu0 0
    %1912 = vmatprep.subr.bf16.mxu0 0
    %1913 = vmatpush1.bf16.msra.mxu0 0
    %1914 = vmatprep.subr.bf16.mxu0 0
    %1915 = vmatpush1.bf16.msra.mxu0 0
    %1916 = vmatprep.subr.bf16.mxu0 0
    %1917 = vmatpush1.bf16.msra.mxu0 0
    %1918 = vmatprep.subr.bf16.mxu0 0
    %1919 = vmatpush1.bf16.msra.mxu0 0
    %1920 = vmatprep.subr.bf16.mxu0 0
    %1921 = vmatpush1.bf16.msra.mxu0 0
    %1922 = vmatprep.subr.bf16.mxu0 0
    %1923 = vmatpush1.bf16.msra.mxu0 0
    %1924 = vmatprep.subr.bf16.mxu0 0
    %1925 = vmatpush1.bf16.msra.mxu0 %v1899
    %1926 = vmatprep.subr.bf16.mxu0 0
    %1927 = vmatpush2.bf16.msra.mxu0 0
    %1928 = vmatprep.subr.bf16.mxu0 0
    %1929 = vmatpush2.bf16.msra.mxu0 0
    %1930 = vmatprep.subr.bf16.mxu0 0
    %1931 = vmatpush2.bf16.msra.mxu0 0
    %1932 = vmatprep.subr.bf16.mxu0 0
    %1933 = vmatpush2.bf16.msra.mxu0 0
    %1934 = vmatprep.subr.bf16.mxu0 0
    %1935 = vmatpush2.bf16.msra.mxu0 0
    %1936 = vmatprep.subr.bf16.mxu0 0
    %1937 = vmatpush2.bf16.msra.mxu0 0
    %1938 = vmatprep.subr.bf16.mxu0 0
    %1939 = vmatpush2.bf16.msra.mxu0 0
    %1940 = vmatprep.subr.bf16.mxu0 0
    %1941 = vmatpush2.bf16.msra.mxu0 0
    %1942 = vmatprep.mubr.bf16.mxu0 0
    %1943 = vmatmul.mubr.bf16.gmra.mxu0 %v1902
    %v1944 = vpop.f32.mrf.mxu0
    %v1945 = vadd.f32 0.0, %v1944
    %v1946 = vpop.f32.mrf.mxu0
    %v1947 = vpop.f32.mrf.mxu0
    %v1948 = vadd.f32 0.0, %v1947
    %v1949 = vpop.f32.mrf.mxu0
    %1950 = vmatprep.mubr.bf16.mxu0 0
    %1951 = vmatmul.mubr.bf16.gmra.mxu0 %v1905
    %v1952 = vpop.f32.mrf.mxu0
    %v1953 = vadd.f32 0.0, %v1952
    %v1954 = vpop.f32.mrf.mxu0
    %v1955 = vpop.f32.mrf.mxu0
    %v1956 = vadd.f32 0.0, %v1955
    %v1957 = vpop.f32.mrf.mxu0
    %1958 = vmatprep.mubr.bf16.mxu0 0
    %1959 = vmatmul.mubr.bf16.gmra.mxu0 %v1908
    %v1960 = vpop.f32.mrf.mxu0
    %v1961 = vadd.f32 0.0, %v1960
    %v1962 = vpop.f32.mrf.mxu0
    %v1963 = vpop.f32.mrf.mxu0
    %v1964 = vpop.f32.mrf.mxu0
    %1965 = vdwg.mxu0
    %v1968 = vunpack.c.l.b16 %v1797
    %v1969 = vunpack.c.l.b16 %v1798
    %v1970 = vpack.c.b16 %v1969, %v1968
    %v1973 = vsel %vm480, %v1793, 0
    %v1976 = vsel %vm480, %v1794, 0
    %v1979 = vsel %vm480, %v1795, 0
    %1981 = vmatprep.subr.bf16.mxu0 0
    %1982 = vmatpush1.bf16.msra.mxu0 0
    %1983 = vmatprep.subr.bf16.mxu0 0
    %1984 = vmatpush1.bf16.msra.mxu0 0
    %1985 = vmatprep.subr.bf16.mxu0 0
    %1986 = vmatpush1.bf16.msra.mxu0 0
    %1987 = vmatprep.subr.bf16.mxu0 0
    %1988 = vmatpush1.bf16.msra.mxu0 0
    %1989 = vmatprep.subr.bf16.mxu0 0
    %1990 = vmatpush1.bf16.msra.mxu0 0
    %1991 = vmatprep.subr.bf16.mxu0 0
    %1992 = vmatpush1.bf16.msra.mxu0 0
    %1993 = vmatprep.subr.bf16.mxu0 0
    %1994 = vmatpush1.bf16.msra.mxu0 0
    %1995 = vmatprep.subr.bf16.mxu0 0
    %1996 = vmatpush1.bf16.msra.mxu0 %v1970
    %1997 = vmatprep.subr.bf16.mxu0 0
    %1998 = vmatpush2.bf16.msra.mxu0 0
    %1999 = vmatprep.subr.bf16.mxu0 0
    %2000 = vmatpush2.bf16.msra.mxu0 0
    %2001 = vmatprep.subr.bf16.mxu0 0
    %2002 = vmatpush2.bf16.msra.mxu0 0
    %2003 = vmatprep.subr.bf16.mxu0 0
    %2004 = vmatpush2.bf16.msra.mxu0 0
    %2005 = vmatprep.subr.bf16.mxu0 0
    %2006 = vmatpush2.bf16.msra.mxu0 0
    %2007 = vmatprep.subr.bf16.mxu0 0
    %2008 = vmatpush2.bf16.msra.mxu0 0
    %2009 = vmatprep.subr.bf16.mxu0 0
    %2010 = vmatpush2.bf16.msra.mxu0 0
    %2011 = vmatprep.subr.bf16.mxu0 0
    %2012 = vmatpush2.bf16.msra.mxu0 0
    %2013 = vmatprep.mubr.bf16.mxu0 0
    %2014 = vmatmul.mubr.bf16.gmra.mxu0 %v1973
    %v2015 = vpop.f32.mrf.mxu0
    %v2016 = vadd.f32 %v1945, %v2015
    %v2017 = vpop.f32.mrf.mxu0
    %v2018 = vpop.f32.mrf.mxu0
    %v2019 = vadd.f32 %v1948, %v2018
    %v2020 = vpop.f32.mrf.mxu0
    %2021 = vmatprep.mubr.bf16.mxu0 0
    %2022 = vmatmul.mubr.bf16.gmra.mxu0 %v1976
    %v2023 = vpop.f32.mrf.mxu0
    %v2024 = vadd.f32 %v1953, %v2023
    %v2025 = vpop.f32.mrf.mxu0
    %v2026 = vpop.f32.mrf.mxu0
    %v2027 = vadd.f32 %v1956, %v2026
    %v2028 = vpop.f32.mrf.mxu0
    %2029 = vmatprep.mubr.bf16.mxu0 0
    %2030 = vmatmul.mubr.bf16.gmra.mxu0 %v1979
    %v2031 = vpop.f32.mrf.mxu0
    %v2032 = vadd.f32 %v1961, %v2031
    %v2033 = vpop.f32.mrf.mxu0
    %v2034 = vpop.f32.mrf.mxu0
    %v2035 = vpop.f32.mrf.mxu0
    %2036 = vdwg.mxu0
    %2037 = vmatprep.subr.mxu0 0.0
    %2038 = vmatpush1.msra.mxu0 0.0
    %2039 = vmatprep.subr.mxu0 0.0
    %2040 = vmatpush1.msra.mxu0 0.0
    %2041 = vmatprep.subr.mxu0 0.0
    %2042 = vmatpush1.msra.mxu0 0.0
    %2043 = vmatprep.subr.mxu0 0.0
    %2044 = vmatpush1.msra.mxu0 0.0
    %2045 = vmatprep.subr.mxu0 0.0
    %2046 = vmatpush1.msra.mxu0 0.0
    %2047 = vmatprep.subr.mxu0 0.0
    %2048 = vmatpush1.msra.mxu0 0.0
    %2049 = vmatprep.subr.mxu0 0.0
    %2050 = vmatpush1.msra.mxu0 0.0
    %2051 = vmatprep.subr.mxu0 0.0
    %2052 = vmatpush1.msra.mxu0 0.0
    %2053 = vmatprep.subr.mxu0 0.0
    %2054 = vmatpush1.msra.mxu0 0.0
    %2055 = vmatprep.subr.mxu0 0.0
    %2056 = vmatpush1.msra.mxu0 0.0
    %2057 = vmatprep.subr.mxu0 0.0
    %2058 = vmatpush1.msra.mxu0 0.0
    %2059 = vmatprep.subr.mxu0 0.0
    %2060 = vmatpush1.msra.mxu0 %v1701
    %2061 = vmatprep.subr.mxu0 0.0
    %2062 = vmatpush1.msra.mxu0 %v1694
    %2063 = vmatprep.subr.mxu0 0.0
    %2064 = vmatpush1.msra.mxu0 %v1692
    %2065 = vmatprep.subr.mxu0 0.0
    %2066 = vmatpush1.msra.mxu0 %v1690
    %2067 = vmatprep.subr.mxu0 0.0
    %2068 = vmatpush1.msra.mxu0 %v1688
    %2069 = vmatprep.subr.mxu0 0.0
    %2070 = vmatpush2.msra.mxu0 0.0
    %2071 = vmatprep.subr.mxu0 0.0
    %2072 = vmatpush2.msra.mxu0 0.0
    %2073 = vmatprep.subr.mxu0 0.0
    %2074 = vmatpush2.msra.mxu0 0.0
    %2075 = vmatprep.subr.mxu0 0.0
    %2076 = vmatpush2.msra.mxu0 0.0
    %2077 = vmatprep.subr.mxu0 0.0
    %2078 = vmatpush2.msra.mxu0 0.0
    %2079 = vmatprep.subr.mxu0 0.0
    %2080 = vmatpush2.msra.mxu0 0.0
    %2081 = vmatprep.subr.mxu0 0.0
    %2082 = vmatpush2.msra.mxu0 0.0
    %2083 = vmatprep.subr.mxu0 0.0
    %2084 = vmatpush2.msra.mxu0 0.0
    %2085 = vmatprep.subr.mxu0 0.0
    %2086 = vmatpush2.msra.mxu0 0.0
    %2087 = vmatprep.subr.mxu0 0.0
    %2088 = vmatpush2.msra.mxu0 0.0
    %2089 = vmatprep.subr.mxu0 0.0
    %2090 = vmatpush2.msra.mxu0 0.0
    %2091 = vmatprep.subr.mxu0 0.0
    %2092 = vmatpush2.msra.mxu0 0.0
    %2093 = vmatprep.subr.mxu0 0.0
    %2094 = vmatpush2.msra.mxu0 0.0
    %2095 = vmatprep.subr.mxu0 0.0
    %2096 = vmatpush2.msra.mxu0 0.0
    %2097 = vmatprep.subr.mxu0 0.0
    %2098 = vmatpush2.msra.mxu0 0.0
    %2099 = vmatprep.subr.mxu0 0.0
    %2100 = vmatpush2.msra.mxu0 0.0
    %2101 = vmatprep.mubr.f32.mxu0 0.0
    %2102 = vmatmul.mubr.f32.gmra.mxu0 %v624
    %v2103 = vpop.f32.mrf.mxu0
    %v2104 = vadd.f32 0.0, %v2103
    %v2105 = vpop.f32.mrf.mxu0
    %2106 = vmatprep.mubr.f32.mxu0 0.0
    %2107 = vmatmul.mubr.f32.gmra.mxu0 %v627
    %v2108 = vpop.f32.mrf.mxu0
    %v2109 = vadd.f32 0.0, %v2108
    %v2110 = vpop.f32.mrf.mxu0
    %2111 = vmatprep.mubr.f32.mxu0 0.0
    %2112 = vmatmul.mubr.f32.gmra.mxu0 %v630
    %v2113 = vpop.f32.mrf.mxu0
    %v2114 = vadd.f32 0.0, %v2113
    %v2115 = vpop.f32.mrf.mxu0
    %2116 = vmatprep.mubr.f32.mxu0 0.0
    %2117 = vmatmul.mubr.f32.gmra.mxu0 %v633
    %v2118 = vpop.f32.mrf.mxu0
    %v2119 = vadd.f32 0.0, %v2118
    %v2120 = vpop.f32.mrf.mxu0
    %2121 = vmatprep.mubr.f32.mxu0 0.0
    %2122 = vmatmul.mubr.f32.gmra.mxu0 %v636
    %v2123 = vpop.f32.mrf.mxu0
    %v2124 = vadd.f32 0.0, %v2123
    %v2125 = vpop.f32.mrf.mxu0
    %2126 = vdwg.mxu0
    %v2127 = vpack.c.bf16 %v2109, %v2104
    %v2128 = vpack.c.bf16 %v2119, %v2114
    %v2129 = vpack.c.bf16 %v2124, %v2124
    %s2130 = scalar_lea.vmem %s5, 64
    %v2131 = vld [vmem:[%s2130] sm:$0xf]
    %v2132 = vld [vmem:[%s2130 + $0x4] sm:$0xf]
    %v2135 = vunpack.c.l.b16 %v2131
    %v2136 = vunpack.c.l.b16 %v2132
    %v2137 = vpack.c.b16 %v2136, %v2135
    %v2140 = vsel %vm480, %v2127, 0
    %v2143 = vsel %vm480, %v2128, 0
    %v2146 = vsel %vm480, %v2129, 0
    %2148 = vmatprep.subr.bf16.mxu0 0
    %2149 = vmatpush1.bf16.msra.mxu0 0
    %2150 = vmatprep.subr.bf16.mxu0 0
    %2151 = vmatpush1.bf16.msra.mxu0 0
    %2152 = vmatprep.subr.bf16.mxu0 0
    %2153 = vmatpush1.bf16.msra.mxu0 0
    %2154 = vmatprep.subr.bf16.mxu0 0
    %2155 = vmatpush1.bf16.msra.mxu0 0
    %2156 = vmatprep.subr.bf16.mxu0 0
    %2157 = vmatpush1.bf16.msra.mxu0 0
    %2158 = vmatprep.subr.bf16.mxu0 0
    %2159 = vmatpush1.bf16.msra.mxu0 0
    %2160 = vmatprep.subr.bf16.mxu0 0
    %2161 = vmatpush1.bf16.msra.mxu0 0
    %2162 = vmatprep.subr.bf16.mxu0 0
    %2163 = vmatpush1.bf16.msra.mxu0 %v2137
    %2164 = vmatprep.subr.bf16.mxu0 0
    %2165 = vmatpush2.bf16.msra.mxu0 0
    %2166 = vmatprep.subr.bf16.mxu0 0
    %2167 = vmatpush2.bf16.msra.mxu0 0
    %2168 = vmatprep.subr.bf16.mxu0 0
    %2169 = vmatpush2.bf16.msra.mxu0 0
    %2170 = vmatprep.subr.bf16.mxu0 0
    %2171 = vmatpush2.bf16.msra.mxu0 0
    %2172 = vmatprep.subr.bf16.mxu0 0
    %2173 = vmatpush2.bf16.msra.mxu0 0
    %2174 = vmatprep.subr.bf16.mxu0 0
    %2175 = vmatpush2.bf16.msra.mxu0 0
    %2176 = vmatprep.subr.bf16.mxu0 0
    %2177 = vmatpush2.bf16.msra.mxu0 0
    %2178 = vmatprep.subr.bf16.mxu0 0
    %2179 = vmatpush2.bf16.msra.mxu0 0
    %2180 = vmatprep.mubr.bf16.mxu0 0
    %2181 = vmatmul.mubr.bf16.gmra.mxu0 %v2140
    %v2182 = vpop.f32.mrf.mxu0
    %v2183 = vadd.f32 0.0, %v2182
    %v2184 = vpop.f32.mrf.mxu0
    %v2185 = vpop.f32.mrf.mxu0
    %v2186 = vadd.f32 0.0, %v2185
    %v2187 = vpop.f32.mrf.mxu0
    %2188 = vmatprep.mubr.bf16.mxu0 0
    %2189 = vmatmul.mubr.bf16.gmra.mxu0 %v2143
    %v2190 = vpop.f32.mrf.mxu0
    %v2191 = vadd.f32 0.0, %v2190
    %v2192 = vpop.f32.mrf.mxu0
    %v2193 = vpop.f32.mrf.mxu0
    %v2194 = vadd.f32 0.0, %v2193
    %v2195 = vpop.f32.mrf.mxu0
    %2196 = vmatprep.mubr.bf16.mxu0 0
    %2197 = vmatmul.mubr.bf16.gmra.mxu0 %v2146
    %v2198 = vpop.f32.mrf.mxu0
    %v2199 = vadd.f32 0.0, %v2198
    %v2200 = vpop.f32.mrf.mxu0
    %v2201 = vpop.f32.mrf.mxu0
    %v2202 = vpop.f32.mrf.mxu0
    %2203 = vdwg.mxu0
    %v2204 = vadd.f32 %v2016, %v2183
    %v2205 = vadd.f32 %v2019, %v2186
    %v2206 = vadd.f32 %v2024, %v2191
    %v2207 = vadd.f32 %v2027, %v2194
    %v2208 = vadd.f32 %v2032, %v2199
    %s2209 = scalar_lea.vmem %s6, 8
    %v2210 = vld [vmem:[%s2209] sm:$0x7]
    %v2211 = vlaneseq
    %v2212 = vshrl.u32 %v2211, 7
    %v2213 = vsub.s32 0, %v2212
    %v2214 = vrot.slane %v2210, %v2213
    %v2215 = vadd.f32 %v2204, %v2214
    %v2216 = vadd.f32 %v2205, %v2214
    %v2217 = vadd.f32 %v2206, %v2214
    %v2218 = vadd.f32 %v2207, %v2214
    %v2219 = vadd.f32 %v2208, %v2214
    %v2220 = vmax.f32 %v2215, 0.0
    %v2221 = vmax.f32 %v2216, 0.0
    %v2222 = vmax.f32 %v2217, 0.0
    %v2223 = vmax.f32 %v2218, 0.0
    %v2224 = vmax.f32 %v2219, 0.0
    %v2225 = vlaneseq
    %v2226 = vshrl.u32 %v2225, 7
    %v2227 = vsub.s32 1, %v2226
    %v2228 = vrot.slane %v2210, %v2227
    %v2229 = vmul.f32 %v2220, %v2228
    %v2230 = vmul.f32 %v2221, %v2228
    %v2231 = vmul.f32 %v2222, %v2228
    %v2232 = vmul.f32 %v2223, %v2228
    %v2233 = vmul.f32 %v2224, %v2228
    %v2234 = vlaneseq
    %v2235 = vshrl.u32 %v2234, 7
    %v2236 = vsub.s32 2, %v2235
    %v2237 = vrot.slane %v2210, %v2236
    %v2238 = vadd.f32 %v2229, %v2237
    %v2239 = vadd.f32 %v2230, %v2237
    %v2240 = vadd.f32 %v2231, %v2237
    %v2241 = vadd.f32 %v2232, %v2237
    %v2242 = vadd.f32 %v2233, %v2237
    %v2243 = vpack.c.bf16 %v2239, %v2238
    %v2244 = vpack.c.bf16 %v2241, %v2240
    %v2245 = vpack.c.bf16 %v2242, %v2242
    %v2246 = vld [vmem:[%s7 + $0x18] sm:$0xf]
    %v2247 = vld [vmem:[%s7 + $0x1c] sm:$0xf]
    %v2250 = vunpack.c.l.b16 %v2246
    %v2251 = vunpack.c.l.b16 %v2247
    %v2252 = vpack.c.b16 %v2251, %v2250
    %v2255 = vsel %vm480, %v2243, 0
    %v2258 = vsel %vm480, %v2244, 0
    %v2261 = vsel %vm480, %v2245, 0
    %2263 = vmatprep.subr.bf16.mxu0 0
    %2264 = vmatpush1.bf16.msra.mxu0 0
    %2265 = vmatprep.subr.bf16.mxu0 0
    %2266 = vmatpush1.bf16.msra.mxu0 0
    %2267 = vmatprep.subr.bf16.mxu0 0
    %2268 = vmatpush1.bf16.msra.mxu0 0
    %2269 = vmatprep.subr.bf16.mxu0 0
    %2270 = vmatpush1.bf16.msra.mxu0 0
    %2271 = vmatprep.subr.bf16.mxu0 0
    %2272 = vmatpush1.bf16.msra.mxu0 0
    %2273 = vmatprep.subr.bf16.mxu0 0
    %2274 = vmatpush1.bf16.msra.mxu0 0
    %2275 = vmatprep.subr.bf16.mxu0 0
    %2276 = vmatpush1.bf16.msra.mxu0 0
    %2277 = vmatprep.subr.bf16.mxu0 0
    %2278 = vmatpush1.bf16.msra.mxu0 %v2252
    %2279 = vmatprep.subr.bf16.mxu0 0
    %2280 = vmatpush2.bf16.msra.mxu0 0
    %2281 = vmatprep.subr.bf16.mxu0 0
    %2282 = vmatpush2.bf16.msra.mxu0 0
    %2283 = vmatprep.subr.bf16.mxu0 0
    %2284 = vmatpush2.bf16.msra.mxu0 0
    %2285 = vmatprep.subr.bf16.mxu0 0
    %2286 = vmatpush2.bf16.msra.mxu0 0
    %2287 = vmatprep.subr.bf16.mxu0 0
    %2288 = vmatpush2.bf16.msra.mxu0 0
    %2289 = vmatprep.subr.bf16.mxu0 0
    %2290 = vmatpush2.bf16.msra.mxu0 0
    %2291 = vmatprep.subr.bf16.mxu0 0
    %2292 = vmatpush2.bf16.msra.mxu0 0
    %2293 = vmatprep.subr.bf16.mxu0 0
    %2294 = vmatpush2.bf16.msra.mxu0 0
    %2295 = vmatprep.mubr.bf16.mxu0 0
    %2296 = vmatmul.mubr.bf16.gmra.mxu0 %v2255
    %v2297 = vpop.f32.mrf.mxu0
    %v2298 = vadd.f32 0.0, %v2297
    %v2299 = vpop.f32.mrf.mxu0
    %v2300 = vpop.f32.mrf.mxu0
    %v2301 = vadd.f32 0.0, %v2300
    %v2302 = vpop.f32.mrf.mxu0
    %2303 = vmatprep.mubr.bf16.mxu0 0
    %2304 = vmatmul.mubr.bf16.gmra.mxu0 %v2258
    %v2305 = vpop.f32.mrf.mxu0
    %v2306 = vadd.f32 0.0, %v2305
    %v2307 = vpop.f32.mrf.mxu0
    %v2308 = vpop.f32.mrf.mxu0
    %v2309 = vadd.f32 0.0, %v2308
    %v2310 = vpop.f32.mrf.mxu0
    %2311 = vmatprep.mubr.bf16.mxu0 0
    %2312 = vmatmul.mubr.bf16.gmra.mxu0 %v2261
    %v2313 = vpop.f32.mrf.mxu0
    %v2314 = vadd.f32 0.0, %v2313
    %v2315 = vpop.f32.mrf.mxu0
    %v2316 = vpop.f32.mrf.mxu0
    %v2317 = vpop.f32.mrf.mxu0
    %2318 = vdwg.mxu0
    %v2319 = vadd.f32 %v1652, %v2298
    %v2320 = vadd.f32 %v1653, %v2301
    %v2321 = vadd.f32 %v1654, %v2306
    %v2322 = vadd.f32 %v1655, %v2309
    %v2323 = vadd.f32 %v1656, %v2314
    %v2324 = vld [vmem:[#allocation2] sm:$0x7]
    %v2325 = vlaneseq
    %v2326 = vshrl.u32 %v2325, 7
    %v2327 = vsub.s32 0, %v2326
    %v2328 = vrot.slane %v2324, %v2327
    %v2329 = vadd.f32 %v2319, %v2328
    %v2330 = vadd.f32 %v2320, %v2328
    %v2331 = vadd.f32 %v2321, %v2328
    %v2332 = vadd.f32 %v2322, %v2328
    %v2333 = vadd.f32 %v2323, %v2328
    %v2334 = vmax.f32 %v2329, 0.0
    %v2335 = vmax.f32 %v2330, 0.0
    %v2336 = vmax.f32 %v2331, 0.0
    %v2337 = vmax.f32 %v2332, 0.0
    %v2338 = vmax.f32 %v2333, 0.0
    %v2339 = vlaneseq
    %v2340 = vshrl.u32 %v2339, 7
    %v2341 = vsub.s32 1, %v2340
    %v2342 = vrot.slane %v2324, %v2341
    %v2343 = vmul.f32 %v2334, %v2342
    %v2344 = vmul.f32 %v2335, %v2342
    %v2345 = vmul.f32 %v2336, %v2342
    %v2346 = vmul.f32 %v2337, %v2342
    %v2347 = vmul.f32 %v2338, %v2342
    %v2348 = vlaneseq
    %v2349 = vshrl.u32 %v2348, 7
    %v2350 = vsub.s32 2, %v2349
    %v2351 = vrot.slane %v2324, %v2350
    %v2352 = vadd.f32 %v2343, %v2351
    %v2353 = vadd.f32 %v2344, %v2351
    %v2354 = vadd.f32 %v2345, %v2351
    %v2355 = vadd.f32 %v2346, %v2351
    %v2356 = vadd.f32 %v2347, %v2351
    %v2357 = vld [vmem:[%s2] sm:$0xff]
    %v2358 = vld [vmem:[%s2 + $0x8] sm:$0xff]
    %v2359 = vld [vmem:[%s2 + $0x10] sm:$0xff]
    %v2360 = vld [vmem:[%s2 + $0x18] sm:$0xff]
    %v2361 = vld [vmem:[%s2 + $0x20] sm:$0xf]
    %v2363 = vsel %vm243, %v2357, 0
    %v2366 = vsel %vm243, %v2358, 0
    %v2369 = vsel %vm243, %v2359, 0
    %v2372 = vsel %vm243, %v2360, 0
    %v2375 = vsel %vm243, %v2361, 0
    %v2378 = vsel %vm259, %v2356, 0
    %2380 = vmatprep.subr.mxu0 0.0
    %2381 = vmatpush1.msra.mxu0 0.0
    %2382 = vmatprep.subr.mxu0 0.0
    %2383 = vmatpush1.msra.mxu0 0.0
    %2384 = vmatprep.subr.mxu0 0.0
    %2385 = vmatpush1.msra.mxu0 0.0
    %2386 = vmatprep.subr.mxu0 0.0
    %2387 = vmatpush1.msra.mxu0 0.0
    %2388 = vmatprep.subr.mxu0 0.0
    %2389 = vmatpush1.msra.mxu0 0.0
    %2390 = vmatprep.subr.mxu0 0.0
    %2391 = vmatpush1.msra.mxu0 0.0
    %2392 = vmatprep.subr.mxu0 0.0
    %2393 = vmatpush1.msra.mxu0 0.0
    %2394 = vmatprep.subr.mxu0 0.0
    %2395 = vmatpush1.msra.mxu0 0.0
    %2396 = vmatprep.subr.mxu0 0.0
    %2397 = vmatpush1.msra.mxu0 0.0
    %2398 = vmatprep.subr.mxu0 0.0
    %2399 = vmatpush1.msra.mxu0 0.0
    %2400 = vmatprep.subr.mxu0 0.0
    %2401 = vmatpush1.msra.mxu0 0.0
    %2402 = vmatprep.subr.mxu0 0.0
    %2403 = vmatpush1.msra.mxu0 %v2378
    %2404 = vmatprep.subr.mxu0 0.0
    %2405 = vmatpush1.msra.mxu0 %v2355
    %2406 = vmatprep.subr.mxu0 0.0
    %2407 = vmatpush1.msra.mxu0 %v2354
    %2408 = vmatprep.subr.mxu0 0.0
    %2409 = vmatpush1.msra.mxu0 %v2353
    %2410 = vmatprep.subr.mxu0 0.0
    %2411 = vmatpush1.msra.mxu0 %v2352
    %2412 = vmatprep.subr.mxu0 0.0
    %2413 = vmatpush2.msra.mxu0 0.0
    %2414 = vmatprep.subr.mxu0 0.0
    %2415 = vmatpush2.msra.mxu0 0.0
    %2416 = vmatprep.subr.mxu0 0.0
    %2417 = vmatpush2.msra.mxu0 0.0
    %2418 = vmatprep.subr.mxu0 0.0
    %2419 = vmatpush2.msra.mxu0 0.0
    %2420 = vmatprep.subr.mxu0 0.0
    %2421 = vmatpush2.msra.mxu0 0.0
    %2422 = vmatprep.subr.mxu0 0.0
    %2423 = vmatpush2.msra.mxu0 0.0
    %2424 = vmatprep.subr.mxu0 0.0
    %2425 = vmatpush2.msra.mxu0 0.0
    %2426 = vmatprep.subr.mxu0 0.0
    %2427 = vmatpush2.msra.mxu0 0.0
    %2428 = vmatprep.subr.mxu0 0.0
    %2429 = vmatpush2.msra.mxu0 0.0
    %2430 = vmatprep.subr.mxu0 0.0
    %2431 = vmatpush2.msra.mxu0 0.0
    %2432 = vmatprep.subr.mxu0 0.0
    %2433 = vmatpush2.msra.mxu0 0.0
    %2434 = vmatprep.subr.mxu0 0.0
    %2435 = vmatpush2.msra.mxu0 0.0
    %2436 = vmatprep.subr.mxu0 0.0
    %2437 = vmatpush2.msra.mxu0 0.0
    %2438 = vmatprep.subr.mxu0 0.0
    %2439 = vmatpush2.msra.mxu0 0.0
    %2440 = vmatprep.subr.mxu0 0.0
    %2441 = vmatpush2.msra.mxu0 0.0
    %2442 = vmatprep.subr.mxu0 0.0
    %2443 = vmatpush2.msra.mxu0 0.0
    %2444 = vmatprep.mubr.f32.mxu0 0.0
    %2445 = vmatmul.mubr.f32.gmra.mxu0 %v2363
    %v2446 = vpop.f32.mrf.mxu0
    %v2447 = vadd.f32 0.0, %v2446
    %v2448 = vpop.f32.mrf.mxu0
    %2449 = vmatprep.mubr.f32.mxu0 0.0
    %2450 = vmatmul.mubr.f32.gmra.mxu0 %v2366
    %v2451 = vpop.f32.mrf.mxu0
    %v2452 = vadd.f32 0.0, %v2451
    %v2453 = vpop.f32.mrf.mxu0
    %2454 = vmatprep.mubr.f32.mxu0 0.0
    %2455 = vmatmul.mubr.f32.gmra.mxu0 %v2369
    %v2456 = vpop.f32.mrf.mxu0
    %v2457 = vadd.f32 0.0, %v2456
    %v2458 = vpop.f32.mrf.mxu0
    %2459 = vmatprep.mubr.f32.mxu0 0.0
    %2460 = vmatmul.mubr.f32.gmra.mxu0 %v2372
    %v2461 = vpop.f32.mrf.mxu0
    %v2462 = vadd.f32 0.0, %v2461
    %v2463 = vpop.f32.mrf.mxu0
    %2464 = vmatprep.mubr.f32.mxu0 0.0
    %2465 = vmatmul.mubr.f32.gmra.mxu0 %v2375
    %v2466 = vpop.f32.mrf.mxu0
    %v2467 = vadd.f32 0.0, %v2466
    %v2468 = vpop.f32.mrf.mxu0
    %2469 = vdwg.mxu0
    %v2470 = vpack.c.bf16 %v2452, %v2447
    %v2471 = vpack.c.bf16 %v2462, %v2457
    %v2472 = vpack.c.bf16 %v2467, %v2467
    %v2473 = vld [vmem:[%s9] sm:$0xf]
    %v2474 = vld [vmem:[%s9 + $0x4] sm:$0xf]
    %v2475 = vld [vmem:[%s9 + $0x8] sm:$0xf]
    %v2476 = vld [vmem:[%s9 + $0xc] sm:$0xf]
    %v2477 = vld [vmem:[%s9 + $0x10] sm:$0xf]
    %v2478 = vld [vmem:[%s9 + $0x14] sm:$0xf]
    %v2479 = vld [vmem:[%s9 + $0x18] sm:$0xf]
    %v2480 = vld [vmem:[%s9 + $0x1c] sm:$0xf]
    %v2481 = vld [vmem:[#allocation4] sm:$0x1]
    %v2483 = vlaneseq
    %v2484 = vshrl.u32 %v2483, 7
    %v2485 = vsub.s32 0, %v2484
    %v2486 = vrot.slane %v2481, %v2485
    %v2496 = vunpack.c.l.b16 %v2473
    %v2497 = vunpack.c.l.b16 %v2474
    %v2498 = vunpack.c.l.b16 %v2475
    %v2499 = vunpack.c.l.b16 %v2476
    %v2500 = vunpack.c.l.b16 %v2477
    %v2501 = vunpack.c.l.b16 %v2478
    %v2502 = vunpack.c.l.b16 %v2479
    %v2503 = vunpack.c.l.b16 %v2480
    %v2504 = vpack.c.b16 %v2497, %v2496
    %v2505 = vpack.c.b16 %v2499, %v2498
    %v2506 = vpack.c.b16 %v2501, %v2500
    %v2507 = vpack.c.b16 %v2503, %v2502
    %v2513 = vsel %vm125, %v2470, 0
    %v2516 = vsel %vm125, %v2471, 0
    %v2519 = vsel %vm125, %v2472, 0
    %2521 = vmatprep.subr.bf16.mxu0 0
    %2522 = vmatpush1.bf16.msra.mxu0 0
    %2523 = vmatprep.subr.bf16.mxu0 0
    %2524 = vmatpush1.bf16.msra.mxu0 0
    %2525 = vmatprep.subr.bf16.mxu0 0
    %2526 = vmatpush1.bf16.msra.mxu0 0
    %2527 = vmatprep.subr.bf16.mxu0 0
    %2528 = vmatpush1.bf16.msra.mxu0 0
    %2529 = vmatprep.subr.bf16.mxu0 0
    %2530 = vmatpush1.bf16.msra.mxu0 %v2507
    %2531 = vmatprep.subr.bf16.mxu0 0
    %2532 = vmatpush1.bf16.msra.mxu0 %v2506
    %2533 = vmatprep.subr.bf16.mxu0 0
    %2534 = vmatpush1.bf16.msra.mxu0 %v2505
    %2535 = vmatprep.subr.bf16.mxu0 0
    %2536 = vmatpush1.bf16.msra.mxu0 %v2504
    %2537 = vmatprep.subr.bf16.mxu0 0
    %2538 = vmatpush2.bf16.msra.mxu0 0
    %2539 = vmatprep.subr.bf16.mxu0 0
    %2540 = vmatpush2.bf16.msra.mxu0 0
    %2541 = vmatprep.subr.bf16.mxu0 0
    %2542 = vmatpush2.bf16.msra.mxu0 0
    %2543 = vmatprep.subr.bf16.mxu0 0
    %2544 = vmatpush2.bf16.msra.mxu0 0
    %2545 = vmatprep.subr.bf16.mxu0 0
    %2546 = vmatpush2.bf16.msra.mxu0 0
    %2547 = vmatprep.subr.bf16.mxu0 0
    %2548 = vmatpush2.bf16.msra.mxu0 0
    %2549 = vmatprep.subr.bf16.mxu0 0
    %2550 = vmatpush2.bf16.msra.mxu0 0
    %2551 = vmatprep.subr.bf16.mxu0 0
    %2552 = vmatpush2.bf16.msra.mxu0 0
    %2553 = vmatprep.mubr.bf16.mxu0 0
    %2554 = vmatmul.mubr.bf16.gmra.mxu0 %v2513
    %v2555 = vpop.f32.mrf.mxu0
    %v2556 = vadd.f32 %v2486, %v2555
    %v2557 = vpop.f32.mrf.mxu0
    %v2558 = vpop.f32.mrf.mxu0
    %v2559 = vadd.f32 %v2486, %v2558
    %v2560 = vpop.f32.mrf.mxu0
    %2561 = vmatprep.mubr.bf16.mxu0 0
    %2562 = vmatmul.mubr.bf16.gmra.mxu0 %v2516
    %v2563 = vpop.f32.mrf.mxu0
    %v2564 = vadd.f32 %v2486, %v2563
    %v2565 = vpop.f32.mrf.mxu0
    %v2566 = vpop.f32.mrf.mxu0
    %v2567 = vadd.f32 %v2486, %v2566
    %v2568 = vpop.f32.mrf.mxu0
    %2569 = vmatprep.mubr.bf16.mxu0 0
    %2570 = vmatmul.mubr.bf16.gmra.mxu0 %v2519
    %v2571 = vpop.f32.mrf.mxu0
    %v2572 = vadd.f32 %v2486, %v2571
    %v2573 = vpop.f32.mrf.mxu0
    %v2574 = vpop.f32.mrf.mxu0
    %v2575 = vpop.f32.mrf.mxu0
    %2576 = vdwg.mxu0
    %v2577 = vmax.f32 %v2556, 0.0
    %v2578 = vmax.f32 %v2559, 0.0
    %v2579 = vmax.f32 %v2564, 0.0
    %v2580 = vmax.f32 %v2567, 0.0
    %v2581 = vmax.f32 %v2572, 0.0
    %v2582 = vpack.c.bf16 %v2578, %v2577
    %v2583 = vpack.c.bf16 %v2580, %v2579
    %v2584 = vpack.c.bf16 %v2581, %v2581
    %v2585 = vld [vmem:[%s11] sm:$0xf]
    %v2586 = vld [vmem:[%s11 + $0x4] sm:$0xf]
    %v2587 = vld [vmem:[%s11 + $0x8] sm:$0xf]
    %v2588 = vld [vmem:[%s11 + $0xc] sm:$0xf]
    %v2589 = vld [vmem:[#allocation6] sm:$0x1]
    %v2591 = vlaneseq
    %v2592 = vshrl.u32 %v2591, 7
    %v2593 = vsub.s32 0, %v2592
    %v2594 = vrot.slane %v2589, %v2593
    %v2600 = vunpack.c.l.b16 %v2585
    %v2601 = vunpack.c.l.b16 %v2586
    %v2602 = vunpack.c.l.b16 %v2587
    %v2603 = vunpack.c.l.b16 %v2588
    %v2604 = vpack.c.b16 %v2601, %v2600
    %v2605 = vpack.c.b16 %v2603, %v2602
    %vm2608 = vcmask 261120
    %v2610 = vsel %vm2608, %v2582, 0
    %v2613 = vsel %vm2608, %v2583, 0
    %v2616 = vsel %vm2608, %v2584, 0
    %2618 = vmatprep.subr.bf16.mxu0 0
    %2619 = vmatpush1.bf16.msra.mxu0 0
    %2620 = vmatprep.subr.bf16.mxu0 0
    %2621 = vmatpush1.bf16.msra.mxu0 0
    %2622 = vmatprep.subr.bf16.mxu0 0
    %2623 = vmatpush1.bf16.msra.mxu0 0
    %2624 = vmatprep.subr.bf16.mxu0 0
    %2625 = vmatpush1.bf16.msra.mxu0 0
    %2626 = vmatprep.subr.bf16.mxu0 0
    %2627 = vmatpush1.bf16.msra.mxu0 0
    %2628 = vmatprep.subr.bf16.mxu0 0
    %2629 = vmatpush1.bf16.msra.mxu0 0
    %2630 = vmatprep.subr.bf16.mxu0 0
    %2631 = vmatpush1.bf16.msra.mxu0 %v2605
    %2632 = vmatprep.subr.bf16.mxu0 0
    %2633 = vmatpush1.bf16.msra.mxu0 %v2604
    %2634 = vmatprep.subr.bf16.mxu0 0
    %2635 = vmatpush2.bf16.msra.mxu0 0
    %2636 = vmatprep.subr.bf16.mxu0 0
    %2637 = vmatpush2.bf16.msra.mxu0 0
    %2638 = vmatprep.subr.bf16.mxu0 0
    %2639 = vmatpush2.bf16.msra.mxu0 0
    %2640 = vmatprep.subr.bf16.mxu0 0
    %2641 = vmatpush2.bf16.msra.mxu0 0
    %2642 = vmatprep.subr.bf16.mxu0 0
    %2643 = vmatpush2.bf16.msra.mxu0 0
    %2644 = vmatprep.subr.bf16.mxu0 0
    %2645 = vmatpush2.bf16.msra.mxu0 0
    %2646 = vmatprep.subr.bf16.mxu0 0
    %2647 = vmatpush2.bf16.msra.mxu0 0
    %2648 = vmatprep.subr.bf16.mxu0 0
    %2649 = vmatpush2.bf16.msra.mxu0 0
    %2650 = vmatprep.mubr.bf16.mxu0 0
    %2651 = vmatmul.mubr.bf16.gmra.mxu0 %v2610
    %v2652 = vpop.f32.mrf.mxu0
    %v2653 = vadd.f32 %v2594, %v2652
    %v2654 = vpop.f32.mrf.mxu0
    %v2655 = vpop.f32.mrf.mxu0
    %v2656 = vadd.f32 %v2594, %v2655
    %v2657 = vpop.f32.mrf.mxu0
    %2658 = vmatprep.mubr.bf16.mxu0 0
    %2659 = vmatmul.mubr.bf16.gmra.mxu0 %v2613
    %v2660 = vpop.f32.mrf.mxu0
    %v2661 = vadd.f32 %v2594, %v2660
    %v2662 = vpop.f32.mrf.mxu0
    %v2663 = vpop.f32.mrf.mxu0
    %v2664 = vadd.f32 %v2594, %v2663
    %v2665 = vpop.f32.mrf.mxu0
    %2666 = vmatprep.mubr.bf16.mxu0 0
    %2667 = vmatmul.mubr.bf16.gmra.mxu0 %v2616
    %v2668 = vpop.f32.mrf.mxu0
    %v2669 = vadd.f32 %v2594, %v2668
    %v2670 = vpop.f32.mrf.mxu0
    %v2671 = vpop.f32.mrf.mxu0
    %v2672 = vpop.f32.mrf.mxu0
    %2673 = vdwg.mxu0
    %v2674 = vxor.u32 %v2653, 2147483648
    %v2675 = vxor.u32 %v2656, 2147483648
    %v2676 = vxor.u32 %v2661, 2147483648
    %v2677 = vxor.u32 %v2664, 2147483648
    %v2678 = vxor.u32 %v2669, 2147483648
    %v2679 = vmul.f32 %v2674, 1.442695
    %v2680 = vpow.pop %v2679
    %v2681 = vmul.f32 %v2675, 1.442695
    %v2682 = vpow.pop %v2681
    %v2683 = vmul.f32 %v2676, 1.442695
    %v2684 = vpow.pop %v2683
    %v2685 = vmul.f32 %v2677, 1.442695
    %v2686 = vpow.pop %v2685
    %v2687 = vmul.f32 %v2678, 1.442695
    %v2688 = vpow.pop %v2687
    %v2689 = vadd.f32 %v2680, 1.0
    %v2690 = vadd.f32 %v2682, 1.0
    %v2691 = vadd.f32 %v2684, 1.0
    %v2692 = vadd.f32 %v2686, 1.0
    %v2693 = vadd.f32 %v2688, 1.0
    %v2694 = vrcp.pop %v2689
    %v2695 = vmul.f32 1.0, %v2694
    %v2696 = vrcp.pop %v2690
    %v2697 = vmul.f32 1.0, %v2696
    %v2698 = vrcp.pop %v2691
    %v2699 = vmul.f32 1.0, %v2698
    %v2700 = vrcp.pop %v2692
    %v2701 = vmul.f32 1.0, %v2700
    %v2702 = vrcp.pop %v2693
    %v2703 = vmul.f32 1.0, %v2702
    %v2704 = vmul.f32 %v2352, %v2695
    %v2705 = vmul.f32 %v2353, %v2697
    %v2706 = vmul.f32 %v2354, %v2699
    %v2707 = vmul.f32 %v2355, %v2701
    %v2708 = vmul.f32 %v2356, %v2703
    %v2709 = vadd.f32 %v2704, %v80
    %v2710 = vadd.f32 %v2705, %v81
    %v2711 = vadd.f32 %v2706, %v82
    %v2712 = vadd.f32 %v2707, %v83
    %v2713 = vadd.f32 %v2708, %v84
    %2714 = vst.msk [vmem:[%s13] sm:$0xff] %vm125, %v2709
    %2715 = vst.msk [vmem:[%s13 + $0x8] sm:$0xff] %vm125, %v2710
    %2716 = vst.msk [vmem:[%s13 + $0x10] sm:$0xff] %vm125, %v2711
    %2717 = vst.msk [vmem:[%s13 + $0x18] sm:$0xff] %vm125, %v2712
    %vm2718 = vcmask 519168
    %2719 = vst.msk [vmem:[%s13 + $0x20] sm:$0xf] %vm2718, %v2713
    // Predicated region
    $region66: #{reverser_forward.8} parent=1 // pred_check
      _
    $region67: #{reverser_forward.8} parent=1 // pred_check_branch
      %2721 = sbr.rel (0) target = $region69
    $region68: #{reverser_forward.8} parent=1 // pred_region
      _
    $region69: #{reverser_forward.8} parent=1 // pred_fallthru
      _
    // Predicated region
    $region70: #{reverser_forward.8} parent=1 // pred_check
      _
    $region71: #{reverser_forward.8} parent=1 // pred_check_branch
      %2723 = sbr.rel (0) target = $region73
    $region72: #{reverser_forward.8} parent=1 // pred_region
      _
    $region73: #{reverser_forward.8} parent=1 // pred_fallthru
      _
    %2724 = vsyncpa [#allocation3], 1
    %2725 = vsyncpa [#allocation5], 1

// kernel: reverser_forward.5
$region0: #{reverser_forward.5}
  #allocation0 [shape = 'u32[]', space=smem, size = 0x4, offset = 0x4, fixed_abs, tag = 'smem constant byte address 0x4 - core index']
  #allocation1 [shape = 'u32[144,128]{1,0:T(1,128)}', space=vmem, size = 0x12000, scoped, tag = 'internal scratch']
  %s0 = inlined_call_operand.vmem [shape: f32[36,512], index: 0, kind: input, shape index: {}]
  %s1 = inlined_call_operand.vmem [shape: bf16[512,512], index: 1, kind: input, shape index: {}]
  %s2 = inlined_call_operand.vmem [shape: bf16[256,128], index: 2, kind: input, shape index: {}]
  %s3 = inlined_call_operand.vmem [shape: f32[36,36], index: 3, kind: input, shape index: {}]
  %s4 = inlined_call_operand.vmem [shape: f32[5,36,36], index: 4, kind: input, shape index: {}]
  %s5 = inlined_call_operand.vmem [shape: bf16[5,128,64], index: 5, kind: input, shape index: {}]
  %s6 = inlined_call_operand.vmem [shape: f32[3,64], index: 6, kind: input, shape index: {}]
  %s7 = inlined_call_operand.vmem [shape: f32[36,64], index: 7, kind: output, shape index: {}]
  %s8 = sld [smem:[#allocation0]]
  $region38: #{reverser_forward.5} parent=0
    _
  %s10 = ssub.s32 1, %s8
  %s11 = scalar_select 0, %s10, %s8
  // Predicated region
  $region2: #{reverser_forward.5} parent=0 // pred_check
    _
  $region3: #{reverser_forward.5} parent=0 // pred_check_branch
    %13 = sbr.rel (0) target = $region5
  $region4: #{reverser_forward.5} parent=0 // pred_region
    _
  $region5: #{reverser_forward.5} parent=0 // pred_fallthru
    _
  // Predicated region
  $region6: #{reverser_forward.5} parent=0 // pred_check
    _
  $region7: #{reverser_forward.5} parent=0 // pred_check_branch
    %15 = sbr.rel (0) target = $region9
  $region8: #{reverser_forward.5} parent=0 // pred_region
    _
  $region9: #{reverser_forward.5} parent=0 // pred_fallthru
    _
  // Predicated region
  $region10: #{reverser_forward.5} parent=0 // pred_check
    _
  $region11: #{reverser_forward.5} parent=0 // pred_check_branch
    %17 = sbr.rel (0) target = $region13
  $region12: #{reverser_forward.5} parent=0 // pred_region
    _
  $region13: #{reverser_forward.5} parent=0 // pred_fallthru
    _
  // Predicated region
  $region14: #{reverser_forward.5} parent=0 // pred_check
    _
  $region15: #{reverser_forward.5} parent=0 // pred_check_branch
    %19 = sbr.rel (0) target = $region17
  $region16: #{reverser_forward.5} parent=0 // pred_region
    _
  $region17: #{reverser_forward.5} parent=0 // pred_fallthru
    _
  // Predicated region
  $region18: #{reverser_forward.5} parent=0 // pred_check
    _
  $region19: #{reverser_forward.5} parent=0 // pred_check_branch
    %21 = sbr.rel (0) target = $region21
  $region20: #{reverser_forward.5} parent=0 // pred_region
    _
  $region21: #{reverser_forward.5} parent=0 // pred_fallthru
    _
  // Predicated region
  $region22: #{reverser_forward.5} parent=0 // pred_check
    _
  $region23: #{reverser_forward.5} parent=0 // pred_check_branch
    %23 = sbr.rel (0) target = $region25
  $region24: #{reverser_forward.5} parent=0 // pred_region
    _
  $region25: #{reverser_forward.5} parent=0 // pred_fallthru
    _
  // Predicated region
  $region26: #{reverser_forward.5} parent=0 // pred_check
    _
  $region27: #{reverser_forward.5} parent=0 // pred_check_branch
    %25 = sbr.rel (0) target = $region29
  $region28: #{reverser_forward.5} parent=0 // pred_region
    _
  $region29: #{reverser_forward.5} parent=0 // pred_fallthru
    _
  %v27 = vld [vmem:[%s0] sm:$0xff]
  %v28 = vld [vmem:[%s0 + $0x8] sm:$0xff]
  %v29 = vld [vmem:[%s0 + $0x10] sm:$0xff]
  %v30 = vld [vmem:[%s0 + $0x18] sm:$0xff]
  %v31 = vld [vmem:[%s0 + $0x20] sm:$0xff]
  %v32 = vld [vmem:[%s0 + $0x28] sm:$0xff]
  %v33 = vld [vmem:[%s0 + $0x30] sm:$0xff]
  %v34 = vld [vmem:[%s0 + $0x38] sm:$0xff]
  %v35 = vld [vmem:[%s0 + $0x40] sm:$0xff]
  %v36 = vld [vmem:[%s0 + $0x48] sm:$0xff]
  %v37 = vld [vmem:[%s0 + $0x50] sm:$0xff]
  %v38 = vld [vmem:[%s0 + $0x58] sm:$0xff]
  %v39 = vld [vmem:[%s0 + $0x60] sm:$0xff]
  %v40 = vld [vmem:[%s0 + $0x68] sm:$0xff]
  %v41 = vld [vmem:[%s0 + $0x70] sm:$0xff]
  %v42 = vld [vmem:[%s0 + $0x78] sm:$0xff]
  %v43 = vld [vmem:[%s0 + $0x80] sm:$0xf]
  %v44 = vld [vmem:[%s0 + $0x88] sm:$0xf]
  %v45 = vld [vmem:[%s0 + $0x90] sm:$0xf]
  %v46 = vld [vmem:[%s0 + $0x98] sm:$0xf]
  %v47 = vpack.c.bf16 %v31, %v27
  %v48 = vpack.c.bf16 %v32, %v28
  %v49 = vpack.c.bf16 %v33, %v29
  %v50 = vpack.c.bf16 %v34, %v30
  %v51 = vpack.c.bf16 %v39, %v35
  %v52 = vpack.c.bf16 %v40, %v36
  %v53 = vpack.c.bf16 %v41, %v37
  %v54 = vpack.c.bf16 %v42, %v38
  %v55 = vpack.c.bf16 %v43, %v43
  %v56 = vpack.c.bf16 %v44, %v44
  %v57 = vpack.c.bf16 %v45, %v45
  %v58 = vpack.c.bf16 %v46, %v46
  %v59 = vld [vmem:[%s1] sm:$0xff]
  %v60 = vld [vmem:[%s1 + $0x8] sm:$0xff]
  %v61 = vld [vmem:[%s1 + $0x10] sm:$0xff]
  %v62 = vld [vmem:[%s1 + $0x18] sm:$0xff]
  %v63 = vld [vmem:[%s1 + $0x20] sm:$0xff]
  %v64 = vld [vmem:[%s1 + $0x28] sm:$0xff]
  %v65 = vld [vmem:[%s1 + $0x30] sm:$0xff]
  %v66 = vld [vmem:[%s1 + $0x38] sm:$0xff]
  %v67 = vld [vmem:[%s1 + $0x40] sm:$0xff]
  %v68 = vld [vmem:[%s1 + $0x48] sm:$0xff]
  %v69 = vld [vmem:[%s1 + $0x50] sm:$0xff]
  %v70 = vld [vmem:[%s1 + $0x58] sm:$0xff]
  %v71 = vld [vmem:[%s1 + $0x60] sm:$0xff]
  %v72 = vld [vmem:[%s1 + $0x68] sm:$0xff]
  %v73 = vld [vmem:[%s1 + $0x70] sm:$0xff]
  %v74 = vld [vmem:[%s1 + $0x78] sm:$0xff]
  %v75 = vld [vmem:[%s1 + $0x80] sm:$0xff]
  %v76 = vld [vmem:[%s1 + $0x88] sm:$0xff]
  %v77 = vld [vmem:[%s1 + $0x90] sm:$0xff]
  %v78 = vld [vmem:[%s1 + $0x98] sm:$0xff]
  %v79 = vld [vmem:[%s1 + $0xa0] sm:$0xff]
  %v80 = vld [vmem:[%s1 + $0xa8] sm:$0xff]
  %v81 = vld [vmem:[%s1 + $0xb0] sm:$0xff]
  %v82 = vld [vmem:[%s1 + $0xb8] sm:$0xff]
  %v83 = vld [vmem:[%s1 + $0xc0] sm:$0xff]
  %v84 = vld [vmem:[%s1 + $0xc8] sm:$0xff]
  %v85 = vld [vmem:[%s1 + $0xd0] sm:$0xff]
  %v86 = vld [vmem:[%s1 + $0xd8] sm:$0xff]
  %v87 = vld [vmem:[%s1 + $0xe0] sm:$0xff]
  %v88 = vld [vmem:[%s1 + $0xe8] sm:$0xff]
  %v89 = vld [vmem:[%s1 + $0xf0] sm:$0xff]
  %v90 = vld [vmem:[%s1 + $0xf8] sm:$0xff]
  %v91 = vld [vmem:[%s1 + $0x100] sm:$0xff]
  %v92 = vld [vmem:[%s1 + $0x108] sm:$0xff]
  %v93 = vld [vmem:[%s1 + $0x110] sm:$0xff]
  %v94 = vld [vmem:[%s1 + $0x118] sm:$0xff]
  %v95 = vld [vmem:[%s1 + $0x120] sm:$0xff]
  %v96 = vld [vmem:[%s1 + $0x128] sm:$0xff]
  %v97 = vld [vmem:[%s1 + $0x130] sm:$0xff]
  %v98 = vld [vmem:[%s1 + $0x138] sm:$0xff]
  %v99 = vld [vmem:[%s1 + $0x140] sm:$0xff]
  %v100 = vld [vmem:[%s1 + $0x148] sm:$0xff]
  %v101 = vld [vmem:[%s1 + $0x150] sm:$0xff]
  %v102 = vld [vmem:[%s1 + $0x158] sm:$0xff]
  %v103 = vld [vmem:[%s1 + $0x160] sm:$0xff]
  %v104 = vld [vmem:[%s1 + $0x168] sm:$0xff]
  %v105 = vld [vmem:[%s1 + $0x170] sm:$0xff]
  %v106 = vld [vmem:[%s1 + $0x178] sm:$0xff]
  %v107 = vld [vmem:[%s1 + $0x180] sm:$0xff]
  %v108 = vld [vmem:[%s1 + $0x188] sm:$0xff]
  %v109 = vld [vmem:[%s1 + $0x190] sm:$0xff]
  %v110 = vld [vmem:[%s1 + $0x198] sm:$0xff]
  %v111 = vld [vmem:[%s1 + $0x1a0] sm:$0xff]
  %v112 = vld [vmem:[%s1 + $0x1a8] sm:$0xff]
  %v113 = vld [vmem:[%s1 + $0x1b0] sm:$0xff]
  %v114 = vld [vmem:[%s1 + $0x1b8] sm:$0xff]
  %v115 = vld [vmem:[%s1 + $0x1c0] sm:$0xff]
  %v116 = vld [vmem:[%s1 + $0x1c8] sm:$0xff]
  %v117 = vld [vmem:[%s1 + $0x1d0] sm:$0xff]
  %v118 = vld [vmem:[%s1 + $0x1d8] sm:$0xff]
  %v119 = vld [vmem:[%s1 + $0x1e0] sm:$0xff]
  %v120 = vld [vmem:[%s1 + $0x1e8] sm:$0xff]
  %v121 = vld [vmem:[%s1 + $0x1f0] sm:$0xff]
  %v122 = vld [vmem:[%s1 + $0x1f8] sm:$0xff]
  %v123 = vld [vmem:[%s1 + $0x200] sm:$0xff]
  %v124 = vld [vmem:[%s1 + $0x208] sm:$0xff]
  %v125 = vld [vmem:[%s1 + $0x210] sm:$0xff]
  %v126 = vld [vmem:[%s1 + $0x218] sm:$0xff]
  %v127 = vld [vmem:[%s1 + $0x220] sm:$0xff]
  %v128 = vld [vmem:[%s1 + $0x228] sm:$0xff]
  %v129 = vld [vmem:[%s1 + $0x230] sm:$0xff]
  %v130 = vld [vmem:[%s1 + $0x238] sm:$0xff]
  %v131 = vld [vmem:[%s1 + $0x240] sm:$0xff]
  %v132 = vld [vmem:[%s1 + $0x248] sm:$0xff]
  %v133 = vld [vmem:[%s1 + $0x250] sm:$0xff]
  %v134 = vld [vmem:[%s1 + $0x258] sm:$0xff]
  %v135 = vld [vmem:[%s1 + $0x260] sm:$0xff]
  %v136 = vld [vmem:[%s1 + $0x268] sm:$0xff]
  %v137 = vld [vmem:[%s1 + $0x270] sm:$0xff]
  %v138 = vld [vmem:[%s1 + $0x278] sm:$0xff]
  %v139 = vld [vmem:[%s1 + $0x280] sm:$0xff]
  %v140 = vld [vmem:[%s1 + $0x288] sm:$0xff]
  %v141 = vld [vmem:[%s1 + $0x290] sm:$0xff]
  %v142 = vld [vmem:[%s1 + $0x298] sm:$0xff]
  %v143 = vld [vmem:[%s1 + $0x2a0] sm:$0xff]
  %v144 = vld [vmem:[%s1 + $0x2a8] sm:$0xff]
  %v145 = vld [vmem:[%s1 + $0x2b0] sm:$0xff]
  %v146 = vld [vmem:[%s1 + $0x2b8] sm:$0xff]
  %v147 = vld [vmem:[%s1 + $0x2c0] sm:$0xff]
  %v148 = vld [vmem:[%s1 + $0x2c8] sm:$0xff]
  %v149 = vld [vmem:[%s1 + $0x2d0] sm:$0xff]
  %v150 = vld [vmem:[%s1 + $0x2d8] sm:$0xff]
  %v151 = vld [vmem:[%s1 + $0x2e0] sm:$0xff]
  %v152 = vld [vmem:[%s1 + $0x2e8] sm:$0xff]
  %v153 = vld [vmem:[%s1 + $0x2f0] sm:$0xff]
  %v154 = vld [vmem:[%s1 + $0x2f8] sm:$0xff]
  %v155 = vld [vmem:[%s1 + $0x300] sm:$0xff]
  %v156 = vld [vmem:[%s1 + $0x308] sm:$0xff]
  %v157 = vld [vmem:[%s1 + $0x310] sm:$0xff]
  %v158 = vld [vmem:[%s1 + $0x318] sm:$0xff]
  %v159 = vld [vmem:[%s1 + $0x320] sm:$0xff]
  %v160 = vld [vmem:[%s1 + $0x328] sm:$0xff]
  %v161 = vld [vmem:[%s1 + $0x330] sm:$0xff]
  %v162 = vld [vmem:[%s1 + $0x338] sm:$0xff]
  %v163 = vld [vmem:[%s1 + $0x340] sm:$0xff]
  %v164 = vld [vmem:[%s1 + $0x348] sm:$0xff]
  %v165 = vld [vmem:[%s1 + $0x350] sm:$0xff]
  %v166 = vld [vmem:[%s1 + $0x358] sm:$0xff]
  %v167 = vld [vmem:[%s1 + $0x360] sm:$0xff]
  %v168 = vld [vmem:[%s1 + $0x368] sm:$0xff]
  %v169 = vld [vmem:[%s1 + $0x370] sm:$0xff]
  %v170 = vld [vmem:[%s1 + $0x378] sm:$0xff]
  %v171 = vld [vmem:[%s1 + $0x380] sm:$0xff]
  %v172 = vld [vmem:[%s1 + $0x388] sm:$0xff]
  %v173 = vld [vmem:[%s1 + $0x390] sm:$0xff]
  %v174 = vld [vmem:[%s1 + $0x398] sm:$0xff]
  %v175 = vld [vmem:[%s1 + $0x3a0] sm:$0xff]
  %v176 = vld [vmem:[%s1 + $0x3a8] sm:$0xff]
  %v177 = vld [vmem:[%s1 + $0x3b0] sm:$0xff]
  %v178 = vld [vmem:[%s1 + $0x3b8] sm:$0xff]
  %v179 = vld [vmem:[%s1 + $0x3c0] sm:$0xff]
  %v180 = vld [vmem:[%s1 + $0x3c8] sm:$0xff]
  %v181 = vld [vmem:[%s1 + $0x3d0] sm:$0xff]
  %v182 = vld [vmem:[%s1 + $0x3d8] sm:$0xff]
  %v183 = vld [vmem:[%s1 + $0x3e0] sm:$0xff]
  %v184 = vld [vmem:[%s1 + $0x3e8] sm:$0xff]
  %v185 = vld [vmem:[%s1 + $0x3f0] sm:$0xff]
  %v186 = vld [vmem:[%s1 + $0x3f8] sm:$0xff]
  %v315 = vunpack.c.l.b16 %v59
  %v316 = vunpack.c.h.b16 %v59
  %v317 = vunpack.c.l.b16 %v60
  %v318 = vunpack.c.h.b16 %v60
  %v319 = vunpack.c.l.b16 %v61
  %v320 = vunpack.c.h.b16 %v61
  %v321 = vunpack.c.l.b16 %v62
  %v322 = vunpack.c.h.b16 %v62
  %v323 = vunpack.c.l.b16 %v63
  %v324 = vunpack.c.h.b16 %v63
  %v325 = vunpack.c.l.b16 %v64
  %v326 = vunpack.c.h.b16 %v64
  %v327 = vunpack.c.l.b16 %v65
  %v328 = vunpack.c.h.b16 %v65
  %v329 = vunpack.c.l.b16 %v66
  %v330 = vunpack.c.h.b16 %v66
  %v331 = vunpack.c.l.b16 %v67
  %v332 = vunpack.c.h.b16 %v67
  %v333 = vunpack.c.l.b16 %v68
  %v334 = vunpack.c.h.b16 %v68
  %v335 = vunpack.c.l.b16 %v69
  %v336 = vunpack.c.h.b16 %v69
  %v337 = vunpack.c.l.b16 %v70
  %v338 = vunpack.c.h.b16 %v70
  %v339 = vunpack.c.l.b16 %v71
  %v340 = vunpack.c.h.b16 %v71
  %v341 = vunpack.c.l.b16 %v72
  %v342 = vunpack.c.h.b16 %v72
  %v343 = vunpack.c.l.b16 %v73
  %v344 = vunpack.c.h.b16 %v73
  %v345 = vunpack.c.l.b16 %v74
  %v346 = vunpack.c.h.b16 %v74
  %v347 = vunpack.c.l.b16 %v75
  %v348 = vunpack.c.h.b16 %v75
  %v349 = vunpack.c.l.b16 %v76
  %v350 = vunpack.c.h.b16 %v76
  %v351 = vunpack.c.l.b16 %v77
  %v352 = vunpack.c.h.b16 %v77
  %v353 = vunpack.c.l.b16 %v78
  %v354 = vunpack.c.h.b16 %v78
  %v355 = vunpack.c.l.b16 %v79
  %v356 = vunpack.c.h.b16 %v79
  %v357 = vunpack.c.l.b16 %v80
  %v358 = vunpack.c.h.b16 %v80
  %v359 = vunpack.c.l.b16 %v81
  %v360 = vunpack.c.h.b16 %v81
  %v361 = vunpack.c.l.b16 %v82
  %v362 = vunpack.c.h.b16 %v82
  %v363 = vunpack.c.l.b16 %v83
  %v364 = vunpack.c.h.b16 %v83
  %v365 = vunpack.c.l.b16 %v84
  %v366 = vunpack.c.h.b16 %v84
  %v367 = vunpack.c.l.b16 %v85
  %v368 = vunpack.c.h.b16 %v85
  %v369 = vunpack.c.l.b16 %v86
  %v370 = vunpack.c.h.b16 %v86
  %v371 = vunpack.c.l.b16 %v87
  %v372 = vunpack.c.h.b16 %v87
  %v373 = vunpack.c.l.b16 %v88
  %v374 = vunpack.c.h.b16 %v88
  %v375 = vunpack.c.l.b16 %v89
  %v376 = vunpack.c.h.b16 %v89
  %v377 = vunpack.c.l.b16 %v90
  %v378 = vunpack.c.h.b16 %v90
  %v379 = vunpack.c.l.b16 %v91
  %v380 = vunpack.c.h.b16 %v91
  %v381 = vunpack.c.l.b16 %v92
  %v382 = vunpack.c.h.b16 %v92
  %v383 = vunpack.c.l.b16 %v93
  %v384 = vunpack.c.h.b16 %v93
  %v385 = vunpack.c.l.b16 %v94
  %v386 = vunpack.c.h.b16 %v94
  %v387 = vunpack.c.l.b16 %v95
  %v388 = vunpack.c.h.b16 %v95
  %v389 = vunpack.c.l.b16 %v96
  %v390 = vunpack.c.h.b16 %v96
  %v391 = vunpack.c.l.b16 %v97
  %v392 = vunpack.c.h.b16 %v97
  %v393 = vunpack.c.l.b16 %v98
  %v394 = vunpack.c.h.b16 %v98
  %v395 = vunpack.c.l.b16 %v99
  %v396 = vunpack.c.h.b16 %v99
  %v397 = vunpack.c.l.b16 %v100
  %v398 = vunpack.c.h.b16 %v100
  %v399 = vunpack.c.l.b16 %v101
  %v400 = vunpack.c.h.b16 %v101
  %v401 = vunpack.c.l.b16 %v102
  %v402 = vunpack.c.h.b16 %v102
  %v403 = vunpack.c.l.b16 %v103
  %v404 = vunpack.c.h.b16 %v103
  %v405 = vunpack.c.l.b16 %v104
  %v406 = vunpack.c.h.b16 %v104
  %v407 = vunpack.c.l.b16 %v105
  %v408 = vunpack.c.h.b16 %v105
  %v409 = vunpack.c.l.b16 %v106
  %v410 = vunpack.c.h.b16 %v106
  %v411 = vunpack.c.l.b16 %v107
  %v412 = vunpack.c.h.b16 %v107
  %v413 = vunpack.c.l.b16 %v108
  %v414 = vunpack.c.h.b16 %v108
  %v415 = vunpack.c.l.b16 %v109
  %v416 = vunpack.c.h.b16 %v109
  %v417 = vunpack.c.l.b16 %v110
  %v418 = vunpack.c.h.b16 %v110
  %v419 = vunpack.c.l.b16 %v111
  %v420 = vunpack.c.h.b16 %v111
  %v421 = vunpack.c.l.b16 %v112
  %v422 = vunpack.c.h.b16 %v112
  %v423 = vunpack.c.l.b16 %v113
  %v424 = vunpack.c.h.b16 %v113
  %v425 = vunpack.c.l.b16 %v114
  %v426 = vunpack.c.h.b16 %v114
  %v427 = vunpack.c.l.b16 %v115
  %v428 = vunpack.c.h.b16 %v115
  %v429 = vunpack.c.l.b16 %v116
  %v430 = vunpack.c.h.b16 %v116
  %v431 = vunpack.c.l.b16 %v117
  %v432 = vunpack.c.h.b16 %v117
  %v433 = vunpack.c.l.b16 %v118
  %v434 = vunpack.c.h.b16 %v118
  %v435 = vunpack.c.l.b16 %v119
  %v436 = vunpack.c.h.b16 %v119
  %v437 = vunpack.c.l.b16 %v120
  %v438 = vunpack.c.h.b16 %v120
  %v439 = vunpack.c.l.b16 %v121
  %v440 = vunpack.c.h.b16 %v121
  %v441 = vunpack.c.l.b16 %v122
  %v442 = vunpack.c.h.b16 %v122
  %v443 = vunpack.c.l.b16 %v123
  %v444 = vunpack.c.h.b16 %v123
  %v445 = vunpack.c.l.b16 %v124
  %v446 = vunpack.c.h.b16 %v124
  %v447 = vunpack.c.l.b16 %v125
  %v448 = vunpack.c.h.b16 %v125
  %v449 = vunpack.c.l.b16 %v126
  %v450 = vunpack.c.h.b16 %v126
  %v451 = vunpack.c.l.b16 %v127
  %v452 = vunpack.c.h.b16 %v127
  %v453 = vunpack.c.l.b16 %v128
  %v454 = vunpack.c.h.b16 %v128
  %v455 = vunpack.c.l.b16 %v129
  %v456 = vunpack.c.h.b16 %v129
  %v457 = vunpack.c.l.b16 %v130
  %v458 = vunpack.c.h.b16 %v130
  %v459 = vunpack.c.l.b16 %v131
  %v460 = vunpack.c.h.b16 %v131
  %v461 = vunpack.c.l.b16 %v132
  %v462 = vunpack.c.h.b16 %v132
  %v463 = vunpack.c.l.b16 %v133
  %v464 = vunpack.c.h.b16 %v133
  %v465 = vunpack.c.l.b16 %v134
  %v466 = vunpack.c.h.b16 %v134
  %v467 = vunpack.c.l.b16 %v135
  %v468 = vunpack.c.h.b16 %v135
  %v469 = vunpack.c.l.b16 %v136
  %v470 = vunpack.c.h.b16 %v136
  %v471 = vunpack.c.l.b16 %v137
  %v472 = vunpack.c.h.b16 %v137
  %v473 = vunpack.c.l.b16 %v138
  %v474 = vunpack.c.h.b16 %v138
  %v475 = vunpack.c.l.b16 %v139
  %v476 = vunpack.c.h.b16 %v139
  %v477 = vunpack.c.l.b16 %v140
  %v478 = vunpack.c.h.b16 %v140
  %v479 = vunpack.c.l.b16 %v141
  %v480 = vunpack.c.h.b16 %v141
  %v481 = vunpack.c.l.b16 %v142
  %v482 = vunpack.c.h.b16 %v142
  %v483 = vunpack.c.l.b16 %v143
  %v484 = vunpack.c.h.b16 %v143
  %v485 = vunpack.c.l.b16 %v144
  %v486 = vunpack.c.h.b16 %v144
  %v487 = vunpack.c.l.b16 %v145
  %v488 = vunpack.c.h.b16 %v145
  %v489 = vunpack.c.l.b16 %v146
  %v490 = vunpack.c.h.b16 %v146
  %v491 = vunpack.c.l.b16 %v147
  %v492 = vunpack.c.h.b16 %v147
  %v493 = vunpack.c.l.b16 %v148
  %v494 = vunpack.c.h.b16 %v148
  %v495 = vunpack.c.l.b16 %v149
  %v496 = vunpack.c.h.b16 %v149
  %v497 = vunpack.c.l.b16 %v150
  %v498 = vunpack.c.h.b16 %v150
  %v499 = vunpack.c.l.b16 %v151
  %v500 = vunpack.c.h.b16 %v151
  %v501 = vunpack.c.l.b16 %v152
  %v502 = vunpack.c.h.b16 %v152
  %v503 = vunpack.c.l.b16 %v153
  %v504 = vunpack.c.h.b16 %v153
  %v505 = vunpack.c.l.b16 %v154
  %v506 = vunpack.c.h.b16 %v154
  %v507 = vunpack.c.l.b16 %v155
  %v508 = vunpack.c.h.b16 %v155
  %v509 = vunpack.c.l.b16 %v156
  %v510 = vunpack.c.h.b16 %v156
  %v511 = vunpack.c.l.b16 %v157
  %v512 = vunpack.c.h.b16 %v157
  %v513 = vunpack.c.l.b16 %v158
  %v514 = vunpack.c.h.b16 %v158
  %v515 = vunpack.c.l.b16 %v159
  %v516 = vunpack.c.h.b16 %v159
  %v517 = vunpack.c.l.b16 %v160
  %v518 = vunpack.c.h.b16 %v160
  %v519 = vunpack.c.l.b16 %v161
  %v520 = vunpack.c.h.b16 %v161
  %v521 = vunpack.c.l.b16 %v162
  %v522 = vunpack.c.h.b16 %v162
  %v523 = vunpack.c.l.b16 %v163
  %v524 = vunpack.c.h.b16 %v163
  %v525 = vunpack.c.l.b16 %v164
  %v526 = vunpack.c.h.b16 %v164
  %v527 = vunpack.c.l.b16 %v165
  %v528 = vunpack.c.h.b16 %v165
  %v529 = vunpack.c.l.b16 %v166
  %v530 = vunpack.c.h.b16 %v166
  %v531 = vunpack.c.l.b16 %v167
  %v532 = vunpack.c.h.b16 %v167
  %v533 = vunpack.c.l.b16 %v168
  %v534 = vunpack.c.h.b16 %v168
  %v535 = vunpack.c.l.b16 %v169
  %v536 = vunpack.c.h.b16 %v169
  %v537 = vunpack.c.l.b16 %v170
  %v538 = vunpack.c.h.b16 %v170
  %v539 = vunpack.c.l.b16 %v171
  %v540 = vunpack.c.h.b16 %v171
  %v541 = vunpack.c.l.b16 %v172
  %v542 = vunpack.c.h.b16 %v172
  %v543 = vunpack.c.l.b16 %v173
  %v544 = vunpack.c.h.b16 %v173
  %v545 = vunpack.c.l.b16 %v174
  %v546 = vunpack.c.h.b16 %v174
  %v547 = vunpack.c.l.b16 %v175
  %v548 = vunpack.c.h.b16 %v175
  %v549 = vunpack.c.l.b16 %v176
  %v550 = vunpack.c.h.b16 %v176
  %v551 = vunpack.c.l.b16 %v177
  %v552 = vunpack.c.h.b16 %v177
  %v553 = vunpack.c.l.b16 %v178
  %v554 = vunpack.c.h.b16 %v178
  %v555 = vunpack.c.l.b16 %v179
  %v556 = vunpack.c.h.b16 %v179
  %v557 = vunpack.c.l.b16 %v180
  %v558 = vunpack.c.h.b16 %v180
  %v559 = vunpack.c.l.b16 %v181
  %v560 = vunpack.c.h.b16 %v181
  %v561 = vunpack.c.l.b16 %v182
  %v562 = vunpack.c.h.b16 %v182
  %v563 = vunpack.c.l.b16 %v183
  %v564 = vunpack.c.h.b16 %v183
  %v565 = vunpack.c.l.b16 %v184
  %v566 = vunpack.c.h.b16 %v184
  %v567 = vunpack.c.l.b16 %v185
  %v568 = vunpack.c.h.b16 %v185
  %v569 = vunpack.c.l.b16 %v186
  %v570 = vunpack.c.h.b16 %v186
  %v571 = vpack.c.b16 %v319, %v315
  %v572 = vpack.c.b16 %v320, %v316
  %v573 = vpack.c.b16 %v321, %v317
  %v574 = vpack.c.b16 %v322, %v318
  %v575 = vpack.c.b16 %v327, %v323
  %v576 = vpack.c.b16 %v328, %v324
  %v577 = vpack.c.b16 %v329, %v325
  %v578 = vpack.c.b16 %v330, %v326
  %v579 = vpack.c.b16 %v335, %v331
  %v580 = vpack.c.b16 %v336, %v332
  %v581 = vpack.c.b16 %v337, %v333
  %v582 = vpack.c.b16 %v338, %v334
  %v583 = vpack.c.b16 %v343, %v339
  %v584 = vpack.c.b16 %v344, %v340
  %v585 = vpack.c.b16 %v345, %v341
  %v586 = vpack.c.b16 %v346, %v342
  %v587 = vpack.c.b16 %v351, %v347
  %v588 = vpack.c.b16 %v352, %v348
  %v589 = vpack.c.b16 %v353, %v349
  %v590 = vpack.c.b16 %v354, %v350
  %v591 = vpack.c.b16 %v359, %v355
  %v592 = vpack.c.b16 %v360, %v356
  %v593 = vpack.c.b16 %v361, %v357
  %v594 = vpack.c.b16 %v362, %v358
  %v595 = vpack.c.b16 %v367, %v363
  %v596 = vpack.c.b16 %v368, %v364
  %v597 = vpack.c.b16 %v369, %v365
  %v598 = vpack.c.b16 %v370, %v366
  %v599 = vpack.c.b16 %v375, %v371
  %v600 = vpack.c.b16 %v376, %v372
  %v601 = vpack.c.b16 %v377, %v373
  %v602 = vpack.c.b16 %v378, %v374
  %v603 = vpack.c.b16 %v383, %v379
  %v604 = vpack.c.b16 %v384, %v380
  %v605 = vpack.c.b16 %v385, %v381
  %v606 = vpack.c.b16 %v386, %v382
  %v607 = vpack.c.b16 %v391, %v387
  %v608 = vpack.c.b16 %v392, %v388
  %v609 = vpack.c.b16 %v393, %v389
  %v610 = vpack.c.b16 %v394, %v390
  %v611 = vpack.c.b16 %v399, %v395
  %v612 = vpack.c.b16 %v400, %v396
  %v613 = vpack.c.b16 %v401, %v397
  %v614 = vpack.c.b16 %v402, %v398
  %v615 = vpack.c.b16 %v407, %v403
  %v616 = vpack.c.b16 %v408, %v404
  %v617 = vpack.c.b16 %v409, %v405
  %v618 = vpack.c.b16 %v410, %v406
  %v619 = vpack.c.b16 %v415, %v411
  %v620 = vpack.c.b16 %v416, %v412
  %v621 = vpack.c.b16 %v417, %v413
  %v622 = vpack.c.b16 %v418, %v414
  %v623 = vpack.c.b16 %v423, %v419
  %v624 = vpack.c.b16 %v424, %v420
  %v625 = vpack.c.b16 %v425, %v421
  %v626 = vpack.c.b16 %v426, %v422
  %v627 = vpack.c.b16 %v431, %v427
  %v628 = vpack.c.b16 %v432, %v428
  %v629 = vpack.c.b16 %v433, %v429
  %v630 = vpack.c.b16 %v434, %v430
  %v631 = vpack.c.b16 %v439, %v435
  %v632 = vpack.c.b16 %v440, %v436
  %v633 = vpack.c.b16 %v441, %v437
  %v634 = vpack.c.b16 %v442, %v438
  %v635 = vpack.c.b16 %v447, %v443
  %v636 = vpack.c.b16 %v448, %v444
  %v637 = vpack.c.b16 %v449, %v445
  %v638 = vpack.c.b16 %v450, %v446
  %v639 = vpack.c.b16 %v455, %v451
  %v640 = vpack.c.b16 %v456, %v452
  %v641 = vpack.c.b16 %v457, %v453
  %v642 = vpack.c.b16 %v458, %v454
  %v643 = vpack.c.b16 %v463, %v459
  %v644 = vpack.c.b16 %v464, %v460
  %v645 = vpack.c.b16 %v465, %v461
  %v646 = vpack.c.b16 %v466, %v462
  %v647 = vpack.c.b16 %v471, %v467
  %v648 = vpack.c.b16 %v472, %v468
  %v649 = vpack.c.b16 %v473, %v469
  %v650 = vpack.c.b16 %v474, %v470
  %v651 = vpack.c.b16 %v479, %v475
  %v652 = vpack.c.b16 %v480, %v476
  %v653 = vpack.c.b16 %v481, %v477
  %v654 = vpack.c.b16 %v482, %v478
  %v655 = vpack.c.b16 %v487, %v483
  %v656 = vpack.c.b16 %v488, %v484
  %v657 = vpack.c.b16 %v489, %v485
  %v658 = vpack.c.b16 %v490, %v486
  %v659 = vpack.c.b16 %v495, %v491
  %v660 = vpack.c.b16 %v496, %v492
  %v661 = vpack.c.b16 %v497, %v493
  %v662 = vpack.c.b16 %v498, %v494
  %v663 = vpack.c.b16 %v503, %v499
  %v664 = vpack.c.b16 %v504, %v500
  %v665 = vpack.c.b16 %v505, %v501
  %v666 = vpack.c.b16 %v506, %v502
  %v667 = vpack.c.b16 %v511, %v507
  %v668 = vpack.c.b16 %v512, %v508
  %v669 = vpack.c.b16 %v513, %v509
  %v670 = vpack.c.b16 %v514, %v510
  %v671 = vpack.c.b16 %v519, %v515
  %v672 = vpack.c.b16 %v520, %v516
  %v673 = vpack.c.b16 %v521, %v517
  %v674 = vpack.c.b16 %v522, %v518
  %v675 = vpack.c.b16 %v527, %v523
  %v676 = vpack.c.b16 %v528, %v524
  %v677 = vpack.c.b16 %v529, %v525
  %v678 = vpack.c.b16 %v530, %v526
  %v679 = vpack.c.b16 %v535, %v531
  %v680 = vpack.c.b16 %v536, %v532
  %v681 = vpack.c.b16 %v537, %v533
  %v682 = vpack.c.b16 %v538, %v534
  %v683 = vpack.c.b16 %v543, %v539
  %v684 = vpack.c.b16 %v544, %v540
  %v685 = vpack.c.b16 %v545, %v541
  %v686 = vpack.c.b16 %v546, %v542
  %v687 = vpack.c.b16 %v551, %v547
  %v688 = vpack.c.b16 %v552, %v548
  %v689 = vpack.c.b16 %v553, %v549
  %v690 = vpack.c.b16 %v554, %v550
  %v691 = vpack.c.b16 %v559, %v555
  %v692 = vpack.c.b16 %v560, %v556
  %v693 = vpack.c.b16 %v561, %v557
  %v694 = vpack.c.b16 %v562, %v558
  %v695 = vpack.c.b16 %v567, %v563
  %v696 = vpack.c.b16 %v568, %v564
  %v697 = vpack.c.b16 %v569, %v565
  %v698 = vpack.c.b16 %v570, %v566
  %827 = vmatprep.subr.bf16.mxu0 %v600
  %828 = vmatpush1.bf16.msra.mxu0 %v599
  %829 = vmatprep.subr.bf16.mxu0 %v596
  %830 = vmatpush1.bf16.msra.mxu0 %v595
  %831 = vmatprep.subr.bf16.mxu0 %v592
  %832 = vmatpush1.bf16.msra.mxu0 %v591
  %833 = vmatprep.subr.bf16.mxu0 %v588
  %834 = vmatpush1.bf16.msra.mxu0 %v587
  %835 = vmatprep.subr.bf16.mxu0 %v584
  %836 = vmatpush1.bf16.msra.mxu0 %v583
  %837 = vmatprep.subr.bf16.mxu0 %v580
  %838 = vmatpush1.bf16.msra.mxu0 %v579
  %839 = vmatprep.subr.bf16.mxu0 %v576
  %840 = vmatpush1.bf16.msra.mxu0 %v575
  %841 = vmatprep.subr.bf16.mxu0 %v572
  %842 = vmatpush1.bf16.msra.mxu0 %v571
  %843 = vmatprep.subr.bf16.mxu0 %v632
  %844 = vmatpush2.bf16.msra.mxu0 %v631
  %845 = vmatprep.subr.bf16.mxu0 %v628
  %846 = vmatpush2.bf16.msra.mxu0 %v627
  %847 = vmatprep.subr.bf16.mxu0 %v624
  %848 = vmatpush2.bf16.msra.mxu0 %v623
  %849 = vmatprep.subr.bf16.mxu0 %v620
  %850 = vmatpush2.bf16.msra.mxu0 %v619
  %851 = vmatprep.subr.bf16.mxu0 %v616
  %852 = vmatpush2.bf16.msra.mxu0 %v615
  %853 = vmatprep.subr.bf16.mxu0 %v612
  %854 = vmatpush2.bf16.msra.mxu0 %v611
  %855 = vmatprep.subr.bf16.mxu0 %v608
  %856 = vmatpush2.bf16.msra.mxu0 %v607
  %857 = vmatprep.subr.bf16.mxu0 %v604
  %858 = vmatpush2.bf16.msra.mxu0 %v603
  %859 = vmatprep.mubr.bf16.mxu0 %v48
  %860 = vmatmul.mubr.bf16.gmra.mxu0 %v47
  %v861 = vpop.f32.mrf.mxu0
  %v862 = vadd.f32 0.0, %v861
  %v863 = vpop.f32.mrf.mxu0
  %v864 = vadd.f32 0.0, %v863
  %v865 = vpop.f32.mrf.mxu0
  %v866 = vadd.f32 0.0, %v865
  %v867 = vpop.f32.mrf.mxu0
  %v868 = vadd.f32 0.0, %v867
  %869 = vmatprep.mubr.bf16.mxu0 %v52
  %870 = vmatmul.mubr.bf16.gmra.mxu0 %v51
  %v871 = vpop.f32.mrf.mxu0
  %v872 = vadd.f32 0.0, %v871
  %v873 = vpop.f32.mrf.mxu0
  %v874 = vadd.f32 0.0, %v873
  %v875 = vpop.f32.mrf.mxu0
  %v876 = vadd.f32 0.0, %v875
  %v877 = vpop.f32.mrf.mxu0
  %v878 = vadd.f32 0.0, %v877
  %879 = vmatprep.mubr.bf16.mxu0 %v56
  %880 = vmatmul.mubr.bf16.gmra.mxu0 %v55
  %v881 = vpop.f32.mrf.mxu0
  %v882 = vadd.f32 0.0, %v881
  %v883 = vpop.f32.mrf.mxu0
  %v884 = vadd.f32 0.0, %v883
  %v885 = vpop.f32.mrf.mxu0
  %v886 = vpop.f32.mrf.mxu0
  %887 = vdwg.mxu0
  %888 = vmatprep.subr.bf16.mxu0 %v664
  %889 = vmatpush1.bf16.msra.mxu0 %v663
  %890 = vmatprep.subr.bf16.mxu0 %v660
  %891 = vmatpush1.bf16.msra.mxu0 %v659
  %892 = vmatprep.subr.bf16.mxu0 %v656
  %893 = vmatpush1.bf16.msra.mxu0 %v655
  %894 = vmatprep.subr.bf16.mxu0 %v652
  %895 = vmatpush1.bf16.msra.mxu0 %v651
  %896 = vmatprep.subr.bf16.mxu0 %v648
  %897 = vmatpush1.bf16.msra.mxu0 %v647
  %898 = vmatprep.subr.bf16.mxu0 %v644
  %899 = vmatpush1.bf16.msra.mxu0 %v643
  %900 = vmatprep.subr.bf16.mxu0 %v640
  %901 = vmatpush1.bf16.msra.mxu0 %v639
  %902 = vmatprep.subr.bf16.mxu0 %v636
  %903 = vmatpush1.bf16.msra.mxu0 %v635
  %904 = vmatprep.subr.bf16.mxu0 %v696
  %905 = vmatpush2.bf16.msra.mxu0 %v695
  %906 = vmatprep.subr.bf16.mxu0 %v692
  %907 = vmatpush2.bf16.msra.mxu0 %v691
  %908 = vmatprep.subr.bf16.mxu0 %v688
  %909 = vmatpush2.bf16.msra.mxu0 %v687
  %910 = vmatprep.subr.bf16.mxu0 %v684
  %911 = vmatpush2.bf16.msra.mxu0 %v683
  %912 = vmatprep.subr.bf16.mxu0 %v680
  %913 = vmatpush2.bf16.msra.mxu0 %v679
  %914 = vmatprep.subr.bf16.mxu0 %v676
  %915 = vmatpush2.bf16.msra.mxu0 %v675
  %916 = vmatprep.subr.bf16.mxu0 %v672
  %917 = vmatpush2.bf16.msra.mxu0 %v671
  %918 = vmatprep.subr.bf16.mxu0 %v668
  %919 = vmatpush2.bf16.msra.mxu0 %v667
  %920 = vmatprep.mubr.bf16.mxu0 %v50
  %921 = vmatmul.mubr.bf16.gmra.mxu0 %v49
  %v922 = vpop.f32.mrf.mxu0
  %v923 = vadd.f32 %v862, %v922
  %v924 = vpop.f32.mrf.mxu0
  %v925 = vadd.f32 %v864, %v924
  %v926 = vpop.f32.mrf.mxu0
  %v927 = vadd.f32 %v866, %v926
  %v928 = vpop.f32.mrf.mxu0
  %v929 = vadd.f32 %v868, %v928
  %930 = vmatprep.mubr.bf16.mxu0 %v54
  %931 = vmatmul.mubr.bf16.gmra.mxu0 %v53
  %v932 = vpop.f32.mrf.mxu0
  %v933 = vadd.f32 %v872, %v932
  %v934 = vpop.f32.mrf.mxu0
  %v935 = vadd.f32 %v874, %v934
  %v936 = vpop.f32.mrf.mxu0
  %v937 = vadd.f32 %v876, %v936
  %v938 = vpop.f32.mrf.mxu0
  %v939 = vadd.f32 %v878, %v938
  %940 = vmatprep.mubr.bf16.mxu0 %v58
  %941 = vmatmul.mubr.bf16.gmra.mxu0 %v57
  %v942 = vpop.f32.mrf.mxu0
  %v943 = vadd.f32 %v882, %v942
  %v944 = vpop.f32.mrf.mxu0
  %v945 = vadd.f32 %v884, %v944
  %v946 = vpop.f32.mrf.mxu0
  %v947 = vpop.f32.mrf.mxu0
  %948 = vdwg.mxu0
  %949 = vmatprep.subr.bf16.mxu0 %v602
  %950 = vmatpush1.bf16.msra.mxu0 %v601
  %951 = vmatprep.subr.bf16.mxu0 %v598
  %952 = vmatpush1.bf16.msra.mxu0 %v597
  %953 = vmatprep.subr.bf16.mxu0 %v594
  %954 = vmatpush1.bf16.msra.mxu0 %v593
  %955 = vmatprep.subr.bf16.mxu0 %v590
  %956 = vmatpush1.bf16.msra.mxu0 %v589
  %957 = vmatprep.subr.bf16.mxu0 %v586
  %958 = vmatpush1.bf16.msra.mxu0 %v585
  %959 = vmatprep.subr.bf16.mxu0 %v582
  %960 = vmatpush1.bf16.msra.mxu0 %v581
  %961 = vmatprep.subr.bf16.mxu0 %v578
  %962 = vmatpush1.bf16.msra.mxu0 %v577
  %963 = vmatprep.subr.bf16.mxu0 %v574
  %964 = vmatpush1.bf16.msra.mxu0 %v573
  %965 = vmatprep.subr.bf16.mxu0 %v634
  %966 = vmatpush2.bf16.msra.mxu0 %v633
  %967 = vmatprep.subr.bf16.mxu0 %v630
  %968 = vmatpush2.bf16.msra.mxu0 %v629
  %969 = vmatprep.subr.bf16.mxu0 %v626
  %970 = vmatpush2.bf16.msra.mxu0 %v625
  %971 = vmatprep.subr.bf16.mxu0 %v622
  %972 = vmatpush2.bf16.msra.mxu0 %v621
  %973 = vmatprep.subr.bf16.mxu0 %v618
  %974 = vmatpush2.bf16.msra.mxu0 %v617
  %975 = vmatprep.subr.bf16.mxu0 %v614
  %976 = vmatpush2.bf16.msra.mxu0 %v613
  %977 = vmatprep.subr.bf16.mxu0 %v610
  %978 = vmatpush2.bf16.msra.mxu0 %v609
  %979 = vmatprep.subr.bf16.mxu0 %v606
  %980 = vmatpush2.bf16.msra.mxu0 %v605
  %981 = vmatprep.mubr.bf16.mxu0 %v48
  %982 = vmatmul.mubr.bf16.gmra.mxu0 %v47
  %v983 = vpop.f32.mrf.mxu0
  %v984 = vadd.f32 0.0, %v983
  %v985 = vpop.f32.mrf.mxu0
  %v986 = vadd.f32 0.0, %v985
  %v987 = vpop.f32.mrf.mxu0
  %v988 = vadd.f32 0.0, %v987
  %v989 = vpop.f32.mrf.mxu0
  %v990 = vadd.f32 0.0, %v989
  %991 = vmatprep.mubr.bf16.mxu0 %v52
  %992 = vmatmul.mubr.bf16.gmra.mxu0 %v51
  %v993 = vpop.f32.mrf.mxu0
  %v994 = vadd.f32 0.0, %v993
  %v995 = vpop.f32.mrf.mxu0
  %v996 = vadd.f32 0.0, %v995
  %v997 = vpop.f32.mrf.mxu0
  %v998 = vadd.f32 0.0, %v997
  %v999 = vpop.f32.mrf.mxu0
  %v1000 = vadd.f32 0.0, %v999
  %1001 = vmatprep.mubr.bf16.mxu0 %v56
  %1002 = vmatmul.mubr.bf16.gmra.mxu0 %v55
  %v1003 = vpop.f32.mrf.mxu0
  %v1004 = vadd.f32 0.0, %v1003
  %v1005 = vpop.f32.mrf.mxu0
  %v1006 = vadd.f32 0.0, %v1005
  %v1007 = vpop.f32.mrf.mxu0
  %v1008 = vpop.f32.mrf.mxu0
  %1009 = vdwg.mxu0
  %1010 = vmatprep.subr.bf16.mxu0 %v666
  %1011 = vmatpush1.bf16.msra.mxu0 %v665
  %1012 = vmatprep.subr.bf16.mxu0 %v662
  %1013 = vmatpush1.bf16.msra.mxu0 %v661
  %1014 = vmatprep.subr.bf16.mxu0 %v658
  %1015 = vmatpush1.bf16.msra.mxu0 %v657
  %1016 = vmatprep.subr.bf16.mxu0 %v654
  %1017 = vmatpush1.bf16.msra.mxu0 %v653
  %1018 = vmatprep.subr.bf16.mxu0 %v650
  %1019 = vmatpush1.bf16.msra.mxu0 %v649
  %1020 = vmatprep.subr.bf16.mxu0 %v646
  %1021 = vmatpush1.bf16.msra.mxu0 %v645
  %1022 = vmatprep.subr.bf16.mxu0 %v642
  %1023 = vmatpush1.bf16.msra.mxu0 %v641
  %1024 = vmatprep.subr.bf16.mxu0 %v638
  %1025 = vmatpush1.bf16.msra.mxu0 %v637
  %1026 = vmatprep.subr.bf16.mxu0 %v698
  %1027 = vmatpush2.bf16.msra.mxu0 %v697
  %1028 = vmatprep.subr.bf16.mxu0 %v694
  %1029 = vmatpush2.bf16.msra.mxu0 %v693
  %1030 = vmatprep.subr.bf16.mxu0 %v690
  %1031 = vmatpush2.bf16.msra.mxu0 %v689
  %1032 = vmatprep.subr.bf16.mxu0 %v686
  %1033 = vmatpush2.bf16.msra.mxu0 %v685
  %1034 = vmatprep.subr.bf16.mxu0 %v682
  %1035 = vmatpush2.bf16.msra.mxu0 %v681
  %1036 = vmatprep.subr.bf16.mxu0 %v678
  %1037 = vmatpush2.bf16.msra.mxu0 %v677
  %1038 = vmatprep.subr.bf16.mxu0 %v674
  %1039 = vmatpush2.bf16.msra.mxu0 %v673
  %1040 = vmatprep.subr.bf16.mxu0 %v670
  %1041 = vmatpush2.bf16.msra.mxu0 %v669
  %1042 = vmatprep.mubr.bf16.mxu0 %v50
  %1043 = vmatmul.mubr.bf16.gmra.mxu0 %v49
  %v1044 = vpop.f32.mrf.mxu0
  %v1045 = vadd.f32 %v984, %v1044
  %v1046 = vpop.f32.mrf.mxu0
  %v1047 = vadd.f32 %v986, %v1046
  %v1048 = vpop.f32.mrf.mxu0
  %v1049 = vadd.f32 %v988, %v1048
  %v1050 = vpop.f32.mrf.mxu0
  %v1051 = vadd.f32 %v990, %v1050
  %1052 = vmatprep.mubr.bf16.mxu0 %v54
  %1053 = vmatmul.mubr.bf16.gmra.mxu0 %v53
  %v1054 = vpop.f32.mrf.mxu0
  %v1055 = vadd.f32 %v994, %v1054
  %v1056 = vpop.f32.mrf.mxu0
  %v1057 = vadd.f32 %v996, %v1056
  %v1058 = vpop.f32.mrf.mxu0
  %v1059 = vadd.f32 %v998, %v1058
  %v1060 = vpop.f32.mrf.mxu0
  %v1061 = vadd.f32 %v1000, %v1060
  %1062 = vmatprep.mubr.bf16.mxu0 %v58
  %1063 = vmatmul.mubr.bf16.gmra.mxu0 %v57
  %v1064 = vpop.f32.mrf.mxu0
  %v1065 = vadd.f32 %v1004, %v1064
  %v1066 = vpop.f32.mrf.mxu0
  %v1067 = vadd.f32 %v1006, %v1066
  %v1068 = vpop.f32.mrf.mxu0
  %v1069 = vpop.f32.mrf.mxu0
  %1070 = vdwg.mxu0
  %v1071 = vmul.f32 %v923, %v923
  %v1072 = vmul.f32 %v925, %v925
  %v1073 = vmul.f32 %v927, %v927
  %v1074 = vmul.f32 %v929, %v929
  %v1075 = vmul.f32 %v933, %v933
  %v1076 = vmul.f32 %v935, %v935
  %v1077 = vmul.f32 %v937, %v937
  %v1078 = vmul.f32 %v939, %v939
  %v1079 = vmul.f32 %v943, %v943
  %v1080 = vmul.f32 %v945, %v945
  %v1081 = vmul.f32 %v1045, %v1045
  %v1082 = vmul.f32 %v1047, %v1047
  %v1083 = vmul.f32 %v1049, %v1049
  %v1084 = vmul.f32 %v1051, %v1051
  %v1085 = vmul.f32 %v1055, %v1055
  %v1086 = vmul.f32 %v1057, %v1057
  %v1087 = vmul.f32 %v1059, %v1059
  %v1088 = vmul.f32 %v1061, %v1061
  %v1089 = vmul.f32 %v1065, %v1065
  %v1090 = vmul.f32 %v1067, %v1067
  %v1091 = vadd.f32 %v1071, %v1081
  %v1092 = vadd.f32 %v1072, %v1082
  %v1093 = vadd.f32 %v1073, %v1083
  %v1094 = vadd.f32 %v1074, %v1084
  %v1095 = vadd.f32 %v1075, %v1085
  %v1096 = vadd.f32 %v1076, %v1086
  %v1097 = vadd.f32 %v1077, %v1087
  %v1098 = vadd.f32 %v1078, %v1088
  %v1099 = vadd.f32 %v1079, %v1089
  %v1100 = vadd.f32 %v1080, %v1090
  %v1101 = vpack.c.bf16 %v1093, %v1091
  %v1102 = vpack.c.bf16 %v1094, %v1092
  %v1103 = vpack.c.bf16 %v1097, %v1095
  %v1104 = vpack.c.bf16 %v1098, %v1096
  %v1105 = vpack.c.bf16 %v1099, %v1099
  %v1106 = vpack.c.bf16 %v1100, %v1100
  %v1107 = vld [vmem:[%s2] sm:$0xf]
  %v1108 = vld [vmem:[%s2 + $0x4] sm:$0xf]
  %v1109 = vld [vmem:[%s2 + $0x8] sm:$0xf]
  %v1110 = vld [vmem:[%s2 + $0xc] sm:$0xf]
  %v1111 = vld [vmem:[%s2 + $0x10] sm:$0xf]
  %v1112 = vld [vmem:[%s2 + $0x14] sm:$0xf]
  %v1113 = vld [vmem:[%s2 + $0x18] sm:$0xf]
  %v1114 = vld [vmem:[%s2 + $0x1c] sm:$0xf]
  %v1115 = vld [vmem:[%s2 + $0x20] sm:$0xf]
  %v1116 = vld [vmem:[%s2 + $0x24] sm:$0xf]
  %v1117 = vld [vmem:[%s2 + $0x28] sm:$0xf]
  %v1118 = vld [vmem:[%s2 + $0x2c] sm:$0xf]
  %v1119 = vld [vmem:[%s2 + $0x30] sm:$0xf]
  %v1120 = vld [vmem:[%s2 + $0x34] sm:$0xf]
  %v1121 = vld [vmem:[%s2 + $0x38] sm:$0xf]
  %v1122 = vld [vmem:[%s2 + $0x3c] sm:$0xf]
  %v1123 = vld [vmem:[%s2 + $0x40] sm:$0xf]
  %v1124 = vld [vmem:[%s2 + $0x44] sm:$0xf]
  %v1125 = vld [vmem:[%s2 + $0x48] sm:$0xf]
  %v1126 = vld [vmem:[%s2 + $0x4c] sm:$0xf]
  %v1127 = vld [vmem:[%s2 + $0x50] sm:$0xf]
  %v1128 = vld [vmem:[%s2 + $0x54] sm:$0xf]
  %v1129 = vld [vmem:[%s2 + $0x58] sm:$0xf]
  %v1130 = vld [vmem:[%s2 + $0x5c] sm:$0xf]
  %v1131 = vld [vmem:[%s2 + $0x60] sm:$0xf]
  %v1132 = vld [vmem:[%s2 + $0x64] sm:$0xf]
  %v1133 = vld [vmem:[%s2 + $0x68] sm:$0xf]
  %v1134 = vld [vmem:[%s2 + $0x6c] sm:$0xf]
  %v1135 = vld [vmem:[%s2 + $0x70] sm:$0xf]
  %v1136 = vld [vmem:[%s2 + $0x74] sm:$0xf]
  %v1137 = vld [vmem:[%s2 + $0x78] sm:$0xf]
  %v1138 = vld [vmem:[%s2 + $0x7c] sm:$0xf]
  %v1171 = vunpack.c.l.b16 %v1107
  %v1172 = vunpack.c.l.b16 %v1108
  %v1173 = vunpack.c.l.b16 %v1109
  %v1174 = vunpack.c.l.b16 %v1110
  %v1175 = vunpack.c.l.b16 %v1111
  %v1176 = vunpack.c.l.b16 %v1112
  %v1177 = vunpack.c.l.b16 %v1113
  %v1178 = vunpack.c.l.b16 %v1114
  %v1179 = vunpack.c.l.b16 %v1115
  %v1180 = vunpack.c.l.b16 %v1116
  %v1181 = vunpack.c.l.b16 %v1117
  %v1182 = vunpack.c.l.b16 %v1118
  %v1183 = vunpack.c.l.b16 %v1119
  %v1184 = vunpack.c.l.b16 %v1120
  %v1185 = vunpack.c.l.b16 %v1121
  %v1186 = vunpack.c.l.b16 %v1122
  %v1187 = vunpack.c.l.b16 %v1123
  %v1188 = vunpack.c.l.b16 %v1124
  %v1189 = vunpack.c.l.b16 %v1125
  %v1190 = vunpack.c.l.b16 %v1126
  %v1191 = vunpack.c.l.b16 %v1127
  %v1192 = vunpack.c.l.b16 %v1128
  %v1193 = vunpack.c.l.b16 %v1129
  %v1194 = vunpack.c.l.b16 %v1130
  %v1195 = vunpack.c.l.b16 %v1131
  %v1196 = vunpack.c.l.b16 %v1132
  %v1197 = vunpack.c.l.b16 %v1133
  %v1198 = vunpack.c.l.b16 %v1134
  %v1199 = vunpack.c.l.b16 %v1135
  %v1200 = vunpack.c.l.b16 %v1136
  %v1201 = vunpack.c.l.b16 %v1137
  %v1202 = vunpack.c.l.b16 %v1138
  %v1203 = vpack.c.b16 %v1172, %v1171
  %v1204 = vpack.c.b16 %v1174, %v1173
  %v1205 = vpack.c.b16 %v1176, %v1175
  %v1206 = vpack.c.b16 %v1178, %v1177
  %v1207 = vpack.c.b16 %v1180, %v1179
  %v1208 = vpack.c.b16 %v1182, %v1181
  %v1209 = vpack.c.b16 %v1184, %v1183
  %v1210 = vpack.c.b16 %v1186, %v1185
  %v1211 = vpack.c.b16 %v1188, %v1187
  %v1212 = vpack.c.b16 %v1190, %v1189
  %v1213 = vpack.c.b16 %v1192, %v1191
  %v1214 = vpack.c.b16 %v1194, %v1193
  %v1215 = vpack.c.b16 %v1196, %v1195
  %v1216 = vpack.c.b16 %v1198, %v1197
  %v1217 = vpack.c.b16 %v1200, %v1199
  %v1218 = vpack.c.b16 %v1202, %v1201
  %1235 = vmatprep.subr.bf16.mxu0 0
  %1236 = vmatpush1.bf16.msra.mxu0 %v1210
  %1237 = vmatprep.subr.bf16.mxu0 0
  %1238 = vmatpush1.bf16.msra.mxu0 %v1209
  %1239 = vmatprep.subr.bf16.mxu0 0
  %1240 = vmatpush1.bf16.msra.mxu0 %v1208
  %1241 = vmatprep.subr.bf16.mxu0 0
  %1242 = vmatpush1.bf16.msra.mxu0 %v1207
  %1243 = vmatprep.subr.bf16.mxu0 0
  %1244 = vmatpush1.bf16.msra.mxu0 %v1206
  %1245 = vmatprep.subr.bf16.mxu0 0
  %1246 = vmatpush1.bf16.msra.mxu0 %v1205
  %1247 = vmatprep.subr.bf16.mxu0 0
  %1248 = vmatpush1.bf16.msra.mxu0 %v1204
  %1249 = vmatprep.subr.bf16.mxu0 0
  %1250 = vmatpush1.bf16.msra.mxu0 %v1203
  %1251 = vmatprep.subr.bf16.mxu0 0
  %1252 = vmatpush2.bf16.msra.mxu0 %v1218
  %1253 = vmatprep.subr.bf16.mxu0 0
  %1254 = vmatpush2.bf16.msra.mxu0 %v1217
  %1255 = vmatprep.subr.bf16.mxu0 0
  %1256 = vmatpush2.bf16.msra.mxu0 %v1216
  %1257 = vmatprep.subr.bf16.mxu0 0
  %1258 = vmatpush2.bf16.msra.mxu0 %v1215
  %1259 = vmatprep.subr.bf16.mxu0 0
  %1260 = vmatpush2.bf16.msra.mxu0 %v1214
  %1261 = vmatprep.subr.bf16.mxu0 0
  %1262 = vmatpush2.bf16.msra.mxu0 %v1213
  %1263 = vmatprep.subr.bf16.mxu0 0
  %1264 = vmatpush2.bf16.msra.mxu0 %v1212
  %1265 = vmatprep.subr.bf16.mxu0 0
  %1266 = vmatpush2.bf16.msra.mxu0 %v1211
  %1267 = vmatprep.mubr.bf16.mxu0 %v1102
  %1268 = vmatmul.mubr.bf16.gmra.mxu0 %v1101
  %v1269 = vpop.f32.mrf.mxu0
  %v1270 = vadd.f32 0.0, %v1269
  %v1271 = vpop.f32.mrf.mxu0
  %v1272 = vpop.f32.mrf.mxu0
  %v1273 = vadd.f32 0.0, %v1272
  %v1274 = vpop.f32.mrf.mxu0
  %1275 = vmatprep.mubr.bf16.mxu0 %v1104
  %1276 = vmatmul.mubr.bf16.gmra.mxu0 %v1103
  %v1277 = vpop.f32.mrf.mxu0
  %v1278 = vadd.f32 0.0, %v1277
  %v1279 = vpop.f32.mrf.mxu0
  %v1280 = vpop.f32.mrf.mxu0
  %v1281 = vadd.f32 0.0, %v1280
  %v1282 = vpop.f32.mrf.mxu0
  %1283 = vmatprep.mubr.bf16.mxu0 %v1106
  %1284 = vmatmul.mubr.bf16.gmra.mxu0 %v1105
  %v1285 = vpop.f32.mrf.mxu0
  %v1286 = vadd.f32 0.0, %v1285
  %v1287 = vpop.f32.mrf.mxu0
  %v1288 = vpop.f32.mrf.mxu0
  %v1289 = vpop.f32.mrf.mxu0
  %1290 = vdwg.mxu0
  %v1291 = vmax.f32 %v1270, 1e-10
  %v1292 = vmax.f32 %v1273, 1e-10
  %v1293 = vmax.f32 %v1278, 1e-10
  %v1294 = vmax.f32 %v1281, 1e-10
  %v1295 = vmax.f32 %v1286, 1e-10
  %v1296 = vlog2.pop %v1291
  %v1297 = vmul.f32 %v1296, 0.6931472
  %v1298 = vlog2.pop %v1292
  %v1299 = vmul.f32 %v1298, 0.6931472
  %v1300 = vlog2.pop %v1293
  %v1301 = vmul.f32 %v1300, 0.6931472
  %v1302 = vlog2.pop %v1294
  %v1303 = vmul.f32 %v1302, 0.6931472
  %v1304 = vlog2.pop %v1295
  %v1305 = vmul.f32 %v1304, 0.6931472
  %v1306 = vmul.f32 %v1297, 0.4342945
  %v1307 = vmul.f32 %v1299, 0.4342945
  %v1308 = vmul.f32 %v1301, 0.4342945
  %v1309 = vmul.f32 %v1303, 0.4342945
  %v1310 = vmul.f32 %v1305, 0.4342945
  %v1311 = vmul.f32 %v1306, 10.0
  %v1312 = vmul.f32 %v1307, 10.0
  %v1313 = vmul.f32 %v1308, 10.0
  %v1314 = vmul.f32 %v1309, 10.0
  %v1315 = vmul.f32 %v1310, 10.0
  %v1316 = vld [vmem:[%s3] sm:$0xff]
  %v1317 = vld [vmem:[%s3 + $0x8] sm:$0xff]
  %v1318 = vld [vmem:[%s3 + $0x10] sm:$0xff]
  %v1319 = vld [vmem:[%s3 + $0x18] sm:$0xff]
  %v1320 = vld [vmem:[%s3 + $0x20] sm:$0xf]
  %vm1321 = vcmask 293888
  %v1323 = vsel %vm1321, %v1316, 0
  %v1326 = vsel %vm1321, %v1317, 0
  %v1329 = vsel %vm1321, %v1318, 0
  %v1332 = vsel %vm1321, %v1319, 0
  %v1335 = vsel %vm1321, %v1320, 0
  %vm1337 = vcmask 1043456
  %v1339 = vsel %vm1337, %v1315, 0
  %1341 = vmatprep.subr.mxu0 0.0
  %1342 = vmatpush1.msra.mxu0 0.0
  %1343 = vmatprep.subr.mxu0 0.0
  %1344 = vmatpush1.msra.mxu0 0.0
  %1345 = vmatprep.subr.mxu0 0.0
  %1346 = vmatpush1.msra.mxu0 0.0
  %1347 = vmatprep.subr.mxu0 0.0
  %1348 = vmatpush1.msra.mxu0 0.0
  %1349 = vmatprep.subr.mxu0 0.0
  %1350 = vmatpush1.msra.mxu0 0.0
  %1351 = vmatprep.subr.mxu0 0.0
  %1352 = vmatpush1.msra.mxu0 0.0
  %1353 = vmatprep.subr.mxu0 0.0
  %1354 = vmatpush1.msra.mxu0 0.0
  %1355 = vmatprep.subr.mxu0 0.0
  %1356 = vmatpush1.msra.mxu0 0.0
  %1357 = vmatprep.subr.mxu0 0.0
  %1358 = vmatpush1.msra.mxu0 0.0
  %1359 = vmatprep.subr.mxu0 0.0
  %1360 = vmatpush1.msra.mxu0 0.0
  %1361 = vmatprep.subr.mxu0 0.0
  %1362 = vmatpush1.msra.mxu0 0.0
  %1363 = vmatprep.subr.mxu0 0.0
  %1364 = vmatpush1.msra.mxu0 %v1339
  %1365 = vmatprep.subr.mxu0 0.0
  %1366 = vmatpush1.msra.mxu0 %v1314
  %1367 = vmatprep.subr.mxu0 0.0
  %1368 = vmatpush1.msra.mxu0 %v1313
  %1369 = vmatprep.subr.mxu0 0.0
  %1370 = vmatpush1.msra.mxu0 %v1312
  %1371 = vmatprep.subr.mxu0 0.0
  %1372 = vmatpush1.msra.mxu0 %v1311
  %1373 = vmatprep.subr.mxu0 0.0
  %1374 = vmatpush2.msra.mxu0 0.0
  %1375 = vmatprep.subr.mxu0 0.0
  %1376 = vmatpush2.msra.mxu0 0.0
  %1377 = vmatprep.subr.mxu0 0.0
  %1378 = vmatpush2.msra.mxu0 0.0
  %1379 = vmatprep.subr.mxu0 0.0
  %1380 = vmatpush2.msra.mxu0 0.0
  %1381 = vmatprep.subr.mxu0 0.0
  %1382 = vmatpush2.msra.mxu0 0.0
  %1383 = vmatprep.subr.mxu0 0.0
  %1384 = vmatpush2.msra.mxu0 0.0
  %1385 = vmatprep.subr.mxu0 0.0
  %1386 = vmatpush2.msra.mxu0 0.0
  %1387 = vmatprep.subr.mxu0 0.0
  %1388 = vmatpush2.msra.mxu0 0.0
  %1389 = vmatprep.subr.mxu0 0.0
  %1390 = vmatpush2.msra.mxu0 0.0
  %1391 = vmatprep.subr.mxu0 0.0
  %1392 = vmatpush2.msra.mxu0 0.0
  %1393 = vmatprep.subr.mxu0 0.0
  %1394 = vmatpush2.msra.mxu0 0.0
  %1395 = vmatprep.subr.mxu0 0.0
  %1396 = vmatpush2.msra.mxu0 0.0
  %1397 = vmatprep.subr.mxu0 0.0
  %1398 = vmatpush2.msra.mxu0 0.0
  %1399 = vmatprep.subr.mxu0 0.0
  %1400 = vmatpush2.msra.mxu0 0.0
  %1401 = vmatprep.subr.mxu0 0.0
  %1402 = vmatpush2.msra.mxu0 0.0
  %1403 = vmatprep.subr.mxu0 0.0
  %1404 = vmatpush2.msra.mxu0 0.0
  %1405 = vmatprep.mubr.f32.mxu0 0.0
  %1406 = vmatmul.mubr.f32.gmra.mxu0 %v1323
  %v1407 = vpop.f32.mrf.mxu0
  %v1408 = vadd.f32 0.0, %v1407
  %v1409 = vpop.f32.mrf.mxu0
  %1410 = vmatprep.mubr.f32.mxu0 0.0
  %1411 = vmatmul.mubr.f32.gmra.mxu0 %v1326
  %v1412 = vpop.f32.mrf.mxu0
  %v1413 = vadd.f32 0.0, %v1412
  %v1414 = vpop.f32.mrf.mxu0
  %1415 = vmatprep.mubr.f32.mxu0 0.0
  %1416 = vmatmul.mubr.f32.gmra.mxu0 %v1329
  %v1417 = vpop.f32.mrf.mxu0
  %v1418 = vadd.f32 0.0, %v1417
  %v1419 = vpop.f32.mrf.mxu0
  %1420 = vmatprep.mubr.f32.mxu0 0.0
  %1421 = vmatmul.mubr.f32.gmra.mxu0 %v1332
  %v1422 = vpop.f32.mrf.mxu0
  %v1423 = vadd.f32 0.0, %v1422
  %v1424 = vpop.f32.mrf.mxu0
  %1425 = vmatprep.mubr.f32.mxu0 0.0
  %1426 = vmatmul.mubr.f32.gmra.mxu0 %v1335
  %v1427 = vpop.f32.mrf.mxu0
  %v1428 = vadd.f32 0.0, %v1427
  %v1429 = vpop.f32.mrf.mxu0
  %1430 = vdwg.mxu0
  %v1431 = vsub.f32 %v1311, %v1408
  %v1432 = vsub.f32 %v1312, %v1413
  %v1433 = vsub.f32 %v1313, %v1418
  %v1434 = vsub.f32 %v1314, %v1423
  %v1435 = vsub.f32 %v1315, %v1428
  %v1436 = vld [vmem:[%s6] sm:$0x7]
  %v1437 = vld [vmem:[%s4] sm:$0xff]
  %v1438 = vld [vmem:[%s4 + $0x8] sm:$0xff]
  %v1439 = vld [vmem:[%s4 + $0x10] sm:$0xff]
  %v1440 = vld [vmem:[%s4 + $0x18] sm:$0xff]
  %v1441 = vld [vmem:[%s4 + $0x20] sm:$0xf]
  %v1443 = vsel %vm1321, %v1437, 0
  %v1446 = vsel %vm1321, %v1438, 0
  %v1449 = vsel %vm1321, %v1439, 0
  %v1452 = vsel %vm1321, %v1440, 0
  %v1455 = vsel %vm1321, %v1441, 0
  %v1458 = vsel %vm1337, %v1435, 0
  %1460 = vmatprep.subr.mxu0 0.0
  %1461 = vmatpush1.msra.mxu0 0.0
  %1462 = vmatprep.subr.mxu0 0.0
  %1463 = vmatpush1.msra.mxu0 0.0
  %1464 = vmatprep.subr.mxu0 0.0
  %1465 = vmatpush1.msra.mxu0 0.0
  %1466 = vmatprep.subr.mxu0 0.0
  %1467 = vmatpush1.msra.mxu0 0.0
  %1468 = vmatprep.subr.mxu0 0.0
  %1469 = vmatpush1.msra.mxu0 0.0
  %1470 = vmatprep.subr.mxu0 0.0
  %1471 = vmatpush1.msra.mxu0 0.0
  %1472 = vmatprep.subr.mxu0 0.0
  %1473 = vmatpush1.msra.mxu0 0.0
  %1474 = vmatprep.subr.mxu0 0.0
  %1475 = vmatpush1.msra.mxu0 0.0
  %1476 = vmatprep.subr.mxu0 0.0
  %1477 = vmatpush1.msra.mxu0 0.0
  %1478 = vmatprep.subr.mxu0 0.0
  %1479 = vmatpush1.msra.mxu0 0.0
  %1480 = vmatprep.subr.mxu0 0.0
  %1481 = vmatpush1.msra.mxu0 0.0
  %1482 = vmatprep.subr.mxu0 0.0
  %1483 = vmatpush1.msra.mxu0 %v1458
  %1484 = vmatprep.subr.mxu0 0.0
  %1485 = vmatpush1.msra.mxu0 %v1434
  %1486 = vmatprep.subr.mxu0 0.0
  %1487 = vmatpush1.msra.mxu0 %v1433
  %1488 = vmatprep.subr.mxu0 0.0
  %1489 = vmatpush1.msra.mxu0 %v1432
  %1490 = vmatprep.subr.mxu0 0.0
  %1491 = vmatpush1.msra.mxu0 %v1431
  %1492 = vmatprep.subr.mxu0 0.0
  %1493 = vmatpush2.msra.mxu0 0.0
  %1494 = vmatprep.subr.mxu0 0.0
  %1495 = vmatpush2.msra.mxu0 0.0
  %1496 = vmatprep.subr.mxu0 0.0
  %1497 = vmatpush2.msra.mxu0 0.0
  %1498 = vmatprep.subr.mxu0 0.0
  %1499 = vmatpush2.msra.mxu0 0.0
  %1500 = vmatprep.subr.mxu0 0.0
  %1501 = vmatpush2.msra.mxu0 0.0
  %1502 = vmatprep.subr.mxu0 0.0
  %1503 = vmatpush2.msra.mxu0 0.0
  %1504 = vmatprep.subr.mxu0 0.0
  %1505 = vmatpush2.msra.mxu0 0.0
  %1506 = vmatprep.subr.mxu0 0.0
  %1507 = vmatpush2.msra.mxu0 0.0
  %1508 = vmatprep.subr.mxu0 0.0
  %1509 = vmatpush2.msra.mxu0 0.0
  %1510 = vmatprep.subr.mxu0 0.0
  %1511 = vmatpush2.msra.mxu0 0.0
  %1512 = vmatprep.subr.mxu0 0.0
  %1513 = vmatpush2.msra.mxu0 0.0
  %1514 = vmatprep.subr.mxu0 0.0
  %1515 = vmatpush2.msra.mxu0 0.0
  %1516 = vmatprep.subr.mxu0 0.0
  %1517 = vmatpush2.msra.mxu0 0.0
  %1518 = vmatprep.subr.mxu0 0.0
  %1519 = vmatpush2.msra.mxu0 0.0
  %1520 = vmatprep.subr.mxu0 0.0
  %1521 = vmatpush2.msra.mxu0 0.0
  %1522 = vmatprep.subr.mxu0 0.0
  %1523 = vmatpush2.msra.mxu0 0.0
  %1524 = vmatprep.mubr.f32.mxu0 0.0
  %1525 = vmatmul.mubr.f32.gmra.mxu0 %v1443
  %v1526 = vpop.f32.mrf.mxu0
  %v1527 = vadd.f32 0.0, %v1526
  %v1528 = vpop.f32.mrf.mxu0
  %1529 = vmatprep.mubr.f32.mxu0 0.0
  %1530 = vmatmul.mubr.f32.gmra.mxu0 %v1446
  %v1531 = vpop.f32.mrf.mxu0
  %v1532 = vadd.f32 0.0, %v1531
  %v1533 = vpop.f32.mrf.mxu0
  %1534 = vmatprep.mubr.f32.mxu0 0.0
  %1535 = vmatmul.mubr.f32.gmra.mxu0 %v1449
  %v1536 = vpop.f32.mrf.mxu0
  %v1537 = vadd.f32 0.0, %v1536
  %v1538 = vpop.f32.mrf.mxu0
  %1539 = vmatprep.mubr.f32.mxu0 0.0
  %1540 = vmatmul.mubr.f32.gmra.mxu0 %v1452
  %v1541 = vpop.f32.mrf.mxu0
  %v1542 = vadd.f32 0.0, %v1541
  %v1543 = vpop.f32.mrf.mxu0
  %1544 = vmatprep.mubr.f32.mxu0 0.0
  %1545 = vmatmul.mubr.f32.gmra.mxu0 %v1455
  %v1546 = vpop.f32.mrf.mxu0
  %v1547 = vadd.f32 0.0, %v1546
  %v1548 = vpop.f32.mrf.mxu0
  %1549 = vdwg.mxu0
  %v1550 = vpack.c.bf16 %v1532, %v1527
  %v1551 = vpack.c.bf16 %v1542, %v1537
  %v1552 = vpack.c.bf16 %v1547, %v1547
  %v1553 = vld [vmem:[%s5] sm:$0xf]
  %v1554 = vld [vmem:[%s5 + $0x4] sm:$0xf]
  %v1555 = vld [vmem:[%s5 + $0x8] sm:$0xf]
  %v1556 = vld [vmem:[%s5 + $0xc] sm:$0xf]
  %v1557 = vld [vmem:[%s5 + $0x10] sm:$0xf]
  %v1558 = vld [vmem:[%s5 + $0x14] sm:$0xf]
  %v1559 = vld [vmem:[%s5 + $0x18] sm:$0xf]
  %v1560 = vld [vmem:[%s5 + $0x1c] sm:$0xf]
  %v1561 = vld [vmem:[%s5 + $0x20] sm:$0xf]
  %v1562 = vld [vmem:[%s5 + $0x24] sm:$0xf]
  %v1563 = vld [vmem:[%s5 + $0x28] sm:$0xf]
  %v1564 = vld [vmem:[%s5 + $0x2c] sm:$0xf]
  %v1565 = vld [vmem:[%s5 + $0x30] sm:$0xf]
  %v1566 = vld [vmem:[%s5 + $0x34] sm:$0xf]
  %v1567 = vld [vmem:[%s5 + $0x38] sm:$0xf]
  %v1568 = vld [vmem:[%s5 + $0x3c] sm:$0xf]
  %s1569 = scalar_lea.vmem %s4, 40
  %v1570 = vld [vmem:[%s1569] sm:$0xff]
  %v1571 = vld [vmem:[%s1569 + $0x8] sm:$0xff]
  %v1572 = vld [vmem:[%s1569 + $0x10] sm:$0xff]
  %v1573 = vld [vmem:[%s1569 + $0x18] sm:$0xff]
  %v1574 = vld [vmem:[%s1569 + $0x20] sm:$0xf]
  %v1576 = vsel %vm1321, %v1570, 0
  %v1579 = vsel %vm1321, %v1571, 0
  %v1582 = vsel %vm1321, %v1572, 0
  %v1585 = vsel %vm1321, %v1573, 0
  %v1588 = vsel %vm1321, %v1574, 0
  %1590 = vmatprep.subr.mxu0 0.0
  %1591 = vmatpush1.msra.mxu0 0.0
  %1592 = vmatprep.subr.mxu0 0.0
  %1593 = vmatpush1.msra.mxu0 0.0
  %1594 = vmatprep.subr.mxu0 0.0
  %1595 = vmatpush1.msra.mxu0 0.0
  %1596 = vmatprep.subr.mxu0 0.0
  %1597 = vmatpush1.msra.mxu0 0.0
  %1598 = vmatprep.subr.mxu0 0.0
  %1599 = vmatpush1.msra.mxu0 0.0
  %1600 = vmatprep.subr.mxu0 0.0
  %1601 = vmatpush1.msra.mxu0 0.0
  %1602 = vmatprep.subr.mxu0 0.0
  %1603 = vmatpush1.msra.mxu0 0.0
  %1604 = vmatprep.subr.mxu0 0.0
  %1605 = vmatpush1.msra.mxu0 0.0
  %1606 = vmatprep.subr.mxu0 0.0
  %1607 = vmatpush1.msra.mxu0 0.0
  %1608 = vmatprep.subr.mxu0 0.0
  %1609 = vmatpush1.msra.mxu0 0.0
  %1610 = vmatprep.subr.mxu0 0.0
  %1611 = vmatpush1.msra.mxu0 0.0
  %1612 = vmatprep.subr.mxu0 0.0
  %1613 = vmatpush1.msra.mxu0 %v1458
  %1614 = vmatprep.subr.mxu0 0.0
  %1615 = vmatpush1.msra.mxu0 %v1434
  %1616 = vmatprep.subr.mxu0 0.0
  %1617 = vmatpush1.msra.mxu0 %v1433
  %1618 = vmatprep.subr.mxu0 0.0
  %1619 = vmatpush1.msra.mxu0 %v1432
  %1620 = vmatprep.subr.mxu0 0.0
  %1621 = vmatpush1.msra.mxu0 %v1431
  %1622 = vmatprep.subr.mxu0 0.0
  %1623 = vmatpush2.msra.mxu0 0.0
  %1624 = vmatprep.subr.mxu0 0.0
  %1625 = vmatpush2.msra.mxu0 0.0
  %1626 = vmatprep.subr.mxu0 0.0
  %1627 = vmatpush2.msra.mxu0 0.0
  %1628 = vmatprep.subr.mxu0 0.0
  %1629 = vmatpush2.msra.mxu0 0.0
  %1630 = vmatprep.subr.mxu0 0.0
  %1631 = vmatpush2.msra.mxu0 0.0
  %1632 = vmatprep.subr.mxu0 0.0
  %1633 = vmatpush2.msra.mxu0 0.0
  %1634 = vmatprep.subr.mxu0 0.0
  %1635 = vmatpush2.msra.mxu0 0.0
  %1636 = vmatprep.subr.mxu0 0.0
  %1637 = vmatpush2.msra.mxu0 0.0
  %1638 = vmatprep.subr.mxu0 0.0
  %1639 = vmatpush2.msra.mxu0 0.0
  %1640 = vmatprep.subr.mxu0 0.0
  %1641 = vmatpush2.msra.mxu0 0.0
  %1642 = vmatprep.subr.mxu0 0.0
  %1643 = vmatpush2.msra.mxu0 0.0
  %1644 = vmatprep.subr.mxu0 0.0
  %1645 = vmatpush2.msra.mxu0 0.0
  %1646 = vmatprep.subr.mxu0 0.0
  %1647 = vmatpush2.msra.mxu0 0.0
  %1648 = vmatprep.subr.mxu0 0.0
  %1649 = vmatpush2.msra.mxu0 0.0
  %1650 = vmatprep.subr.mxu0 0.0
  %1651 = vmatpush2.msra.mxu0 0.0
  %1652 = vmatprep.subr.mxu0 0.0
  %1653 = vmatpush2.msra.mxu0 0.0
  %1654 = vmatprep.mubr.f32.mxu0 0.0
  %1655 = vmatmul.mubr.f32.gmra.mxu0 %v1576
  %v1656 = vpop.f32.mrf.mxu0
  %v1657 = vadd.f32 0.0, %v1656
  %v1658 = vpop.f32.mrf.mxu0
  %1659 = vmatprep.mubr.f32.mxu0 0.0
  %1660 = vmatmul.mubr.f32.gmra.mxu0 %v1579
  %v1661 = vpop.f32.mrf.mxu0
  %v1662 = vadd.f32 0.0, %v1661
  %v1663 = vpop.f32.mrf.mxu0
  %1664 = vmatprep.mubr.f32.mxu0 0.0
  %1665 = vmatmul.mubr.f32.gmra.mxu0 %v1582
  %v1666 = vpop.f32.mrf.mxu0
  %v1667 = vadd.f32 0.0, %v1666
  %v1668 = vpop.f32.mrf.mxu0
  %1669 = vmatprep.mubr.f32.mxu0 0.0
  %1670 = vmatmul.mubr.f32.gmra.mxu0 %v1585
  %v1671 = vpop.f32.mrf.mxu0
  %v1672 = vadd.f32 0.0, %v1671
  %v1673 = vpop.f32.mrf.mxu0
  %1674 = vmatprep.mubr.f32.mxu0 0.0
  %1675 = vmatmul.mubr.f32.gmra.mxu0 %v1588
  %v1676 = vpop.f32.mrf.mxu0
  %v1677 = vadd.f32 0.0, %v1676
  %v1678 = vpop.f32.mrf.mxu0
  %1679 = vdwg.mxu0
  %v1680 = vpack.c.bf16 %v1662, %v1657
  %v1681 = vpack.c.bf16 %v1672, %v1667
  %v1682 = vpack.c.bf16 %v1677, %v1677
  %s1683 = scalar_lea.vmem %s5, 64
  %v1684 = vld [vmem:[%s1683] sm:$0xf]
  %v1685 = vld [vmem:[%s1683 + $0x4] sm:$0xf]
  %v1686 = vld [vmem:[%s1683 + $0x8] sm:$0xf]
  %v1687 = vld [vmem:[%s1683 + $0xc] sm:$0xf]
  %v1688 = vld [vmem:[%s1683 + $0x10] sm:$0xf]
  %v1689 = vld [vmem:[%s1683 + $0x14] sm:$0xf]
  %v1690 = vld [vmem:[%s1683 + $0x18] sm:$0xf]
  %v1691 = vld [vmem:[%s1683 + $0x1c] sm:$0xf]
  %v1692 = vld [vmem:[%s1683 + $0x20] sm:$0xf]
  %v1693 = vld [vmem:[%s1683 + $0x24] sm:$0xf]
  %v1694 = vld [vmem:[%s1683 + $0x28] sm:$0xf]
  %v1695 = vld [vmem:[%s1683 + $0x2c] sm:$0xf]
  %v1696 = vld [vmem:[%s1683 + $0x30] sm:$0xf]
  %v1697 = vld [vmem:[%s1683 + $0x34] sm:$0xf]
  %v1698 = vld [vmem:[%s1683 + $0x38] sm:$0xf]
  %v1699 = vld [vmem:[%s1683 + $0x3c] sm:$0xf]
  %v1716 = vunpack.c.l.b16 %v1684
  %v1717 = vunpack.c.l.b16 %v1685
  %v1718 = vunpack.c.l.b16 %v1686
  %v1719 = vunpack.c.l.b16 %v1687
  %v1720 = vunpack.c.l.b16 %v1688
  %v1721 = vunpack.c.l.b16 %v1689
  %v1722 = vunpack.c.l.b16 %v1690
  %v1723 = vunpack.c.l.b16 %v1691
  %v1724 = vunpack.c.l.b16 %v1692
  %v1725 = vunpack.c.l.b16 %v1693
  %v1726 = vunpack.c.l.b16 %v1694
  %v1727 = vunpack.c.l.b16 %v1695
  %v1728 = vunpack.c.l.b16 %v1696
  %v1729 = vunpack.c.l.b16 %v1697
  %v1730 = vunpack.c.l.b16 %v1698
  %v1731 = vunpack.c.l.b16 %v1699
  %v1732 = vpack.c.b16 %v1717, %v1716
  %v1733 = vpack.c.b16 %v1719, %v1718
  %v1734 = vpack.c.b16 %v1721, %v1720
  %v1735 = vpack.c.b16 %v1723, %v1722
  %v1736 = vpack.c.b16 %v1725, %v1724
  %v1737 = vpack.c.b16 %v1727, %v1726
  %v1738 = vpack.c.b16 %v1729, %v1728
  %v1739 = vpack.c.b16 %v1731, %v1730
  %1748 = vmatprep.subr.bf16.mxu0 0
  %1749 = vmatpush1.bf16.msra.mxu0 %v1739
  %1750 = vmatprep.subr.bf16.mxu0 0
  %1751 = vmatpush1.bf16.msra.mxu0 %v1738
  %1752 = vmatprep.subr.bf16.mxu0 0
  %1753 = vmatpush1.bf16.msra.mxu0 %v1737
  %1754 = vmatprep.subr.bf16.mxu0 0
  %1755 = vmatpush1.bf16.msra.mxu0 %v1736
  %1756 = vmatprep.subr.bf16.mxu0 0
  %1757 = vmatpush1.bf16.msra.mxu0 %v1735
  %1758 = vmatprep.subr.bf16.mxu0 0
  %1759 = vmatpush1.bf16.msra.mxu0 %v1734
  %1760 = vmatprep.subr.bf16.mxu0 0
  %1761 = vmatpush1.bf16.msra.mxu0 %v1733
  %1762 = vmatprep.subr.bf16.mxu0 0
  %1763 = vmatpush1.bf16.msra.mxu0 %v1732
  %1764 = vmatprep.subr.bf16.mxu0 0
  %1765 = vmatpush2.bf16.msra.mxu0 0
  %1766 = vmatprep.subr.bf16.mxu0 0
  %1767 = vmatpush2.bf16.msra.mxu0 0
  %1768 = vmatprep.subr.bf16.mxu0 0
  %1769 = vmatpush2.bf16.msra.mxu0 0
  %1770 = vmatprep.subr.bf16.mxu0 0
  %1771 = vmatpush2.bf16.msra.mxu0 0
  %1772 = vmatprep.subr.bf16.mxu0 0
  %1773 = vmatpush2.bf16.msra.mxu0 0
  %1774 = vmatprep.subr.bf16.mxu0 0
  %1775 = vmatpush2.bf16.msra.mxu0 0
  %1776 = vmatprep.subr.bf16.mxu0 0
  %1777 = vmatpush2.bf16.msra.mxu0 0
  %1778 = vmatprep.subr.bf16.mxu0 0
  %1779 = vmatpush2.bf16.msra.mxu0 0
  %1780 = vmatprep.mubr.bf16.mxu0 0
  %1781 = vmatmul.mubr.bf16.gmra.mxu0 %v1680
  %v1782 = vpop.f32.mrf.mxu0
  %v1783 = vadd.f32 0.0, %v1782
  %v1784 = vpop.f32.mrf.mxu0
  %v1785 = vpop.f32.mrf.mxu0
  %v1786 = vadd.f32 0.0, %v1785
  %v1787 = vpop.f32.mrf.mxu0
  %1788 = vmatprep.mubr.bf16.mxu0 0
  %1789 = vmatmul.mubr.bf16.gmra.mxu0 %v1681
  %v1790 = vpop.f32.mrf.mxu0
  %v1791 = vadd.f32 0.0, %v1790
  %v1792 = vpop.f32.mrf.mxu0
  %v1793 = vpop.f32.mrf.mxu0
  %v1794 = vadd.f32 0.0, %v1793
  %v1795 = vpop.f32.mrf.mxu0
  %1796 = vmatprep.mubr.bf16.mxu0 0
  %1797 = vmatmul.mubr.bf16.gmra.mxu0 %v1682
  %v1798 = vpop.f32.mrf.mxu0
  %v1799 = vadd.f32 0.0, %v1798
  %v1800 = vpop.f32.mrf.mxu0
  %v1801 = vpop.f32.mrf.mxu0
  %v1802 = vpop.f32.mrf.mxu0
  %1803 = vdwg.mxu0
  %v1820 = vunpack.c.l.b16 %v1553
  %v1821 = vunpack.c.l.b16 %v1554
  %v1822 = vunpack.c.l.b16 %v1555
  %v1823 = vunpack.c.l.b16 %v1556
  %v1824 = vunpack.c.l.b16 %v1557
  %v1825 = vunpack.c.l.b16 %v1558
  %v1826 = vunpack.c.l.b16 %v1559
  %v1827 = vunpack.c.l.b16 %v1560
  %v1828 = vunpack.c.l.b16 %v1561
  %v1829 = vunpack.c.l.b16 %v1562
  %v1830 = vunpack.c.l.b16 %v1563
  %v1831 = vunpack.c.l.b16 %v1564
  %v1832 = vunpack.c.l.b16 %v1565
  %v1833 = vunpack.c.l.b16 %v1566
  %v1834 = vunpack.c.l.b16 %v1567
  %v1835 = vunpack.c.l.b16 %v1568
  %v1836 = vpack.c.b16 %v1821, %v1820
  %v1837 = vpack.c.b16 %v1823, %v1822
  %v1838 = vpack.c.b16 %v1825, %v1824
  %v1839 = vpack.c.b16 %v1827, %v1826
  %v1840 = vpack.c.b16 %v1829, %v1828
  %v1841 = vpack.c.b16 %v1831, %v1830
  %v1842 = vpack.c.b16 %v1833, %v1832
  %v1843 = vpack.c.b16 %v1835, %v1834
  %1852 = vmatprep.subr.bf16.mxu0 0
  %1853 = vmatpush1.bf16.msra.mxu0 %v1843
  %1854 = vmatprep.subr.bf16.mxu0 0
  %1855 = vmatpush1.bf16.msra.mxu0 %v1842
  %1856 = vmatprep.subr.bf16.mxu0 0
  %1857 = vmatpush1.bf16.msra.mxu0 %v1841
  %1858 = vmatprep.subr.bf16.mxu0 0
  %1859 = vmatpush1.bf16.msra.mxu0 %v1840
  %1860 = vmatprep.subr.bf16.mxu0 0
  %1861 = vmatpush1.bf16.msra.mxu0 %v1839
  %1862 = vmatprep.subr.bf16.mxu0 0
  %1863 = vmatpush1.bf16.msra.mxu0 %v1838
  %1864 = vmatprep.subr.bf16.mxu0 0
  %1865 = vmatpush1.bf16.msra.mxu0 %v1837
  %1866 = vmatprep.subr.bf16.mxu0 0
  %1867 = vmatpush1.bf16.msra.mxu0 %v1836
  %1868 = vmatprep.subr.bf16.mxu0 0
  %1869 = vmatpush2.bf16.msra.mxu0 0
  %1870 = vmatprep.subr.bf16.mxu0 0
  %1871 = vmatpush2.bf16.msra.mxu0 0
  %1872 = vmatprep.subr.bf16.mxu0 0
  %1873 = vmatpush2.bf16.msra.mxu0 0
  %1874 = vmatprep.subr.bf16.mxu0 0
  %1875 = vmatpush2.bf16.msra.mxu0 0
  %1876 = vmatprep.subr.bf16.mxu0 0
  %1877 = vmatpush2.bf16.msra.mxu0 0
  %1878 = vmatprep.subr.bf16.mxu0 0
  %1879 = vmatpush2.bf16.msra.mxu0 0
  %1880 = vmatprep.subr.bf16.mxu0 0
  %1881 = vmatpush2.bf16.msra.mxu0 0
  %1882 = vmatprep.subr.bf16.mxu0 0
  %1883 = vmatpush2.bf16.msra.mxu0 0
  %1884 = vmatprep.mubr.bf16.mxu0 0
  %1885 = vmatmul.mubr.bf16.gmra.mxu0 %v1550
  %v1886 = vpop.f32.mrf.mxu0
  %v1887 = vadd.f32 %v1783, %v1886
  %v1888 = vpop.f32.mrf.mxu0
  %v1889 = vpop.f32.mrf.mxu0
  %v1890 = vadd.f32 %v1786, %v1889
  %v1891 = vpop.f32.mrf.mxu0
  %1892 = vmatprep.mubr.bf16.mxu0 0
  %1893 = vmatmul.mubr.bf16.gmra.mxu0 %v1551
  %v1894 = vpop.f32.mrf.mxu0
  %v1895 = vadd.f32 %v1791, %v1894
  %v1896 = vpop.f32.mrf.mxu0
  %v1897 = vpop.f32.mrf.mxu0
  %v1898 = vadd.f32 %v1794, %v1897
  %v1899 = vpop.f32.mrf.mxu0
  %1900 = vmatprep.mubr.bf16.mxu0 0
  %1901 = vmatmul.mubr.bf16.gmra.mxu0 %v1552
  %v1902 = vpop.f32.mrf.mxu0
  %v1903 = vadd.f32 %v1799, %v1902
  %v1904 = vpop.f32.mrf.mxu0
  %v1905 = vpop.f32.mrf.mxu0
  %v1906 = vpop.f32.mrf.mxu0
  %1907 = vdwg.mxu0
  %s1908 = scalar_lea.vmem %s4, 80
  %v1909 = vld [vmem:[%s1908] sm:$0xff]
  %v1910 = vld [vmem:[%s1908 + $0x8] sm:$0xff]
  %v1911 = vld [vmem:[%s1908 + $0x10] sm:$0xff]
  %v1912 = vld [vmem:[%s1908 + $0x18] sm:$0xff]
  %v1913 = vld [vmem:[%s1908 + $0x20] sm:$0xf]
  %v1915 = vsel %vm1321, %v1909, 0
  %v1918 = vsel %vm1321, %v1910, 0
  %v1921 = vsel %vm1321, %v1911, 0
  %v1924 = vsel %vm1321, %v1912, 0
  %v1927 = vsel %vm1321, %v1913, 0
  %1929 = vmatprep.subr.mxu0 0.0
  %1930 = vmatpush1.msra.mxu0 0.0
  %1931 = vmatprep.subr.mxu0 0.0
  %1932 = vmatpush1.msra.mxu0 0.0
  %1933 = vmatprep.subr.mxu0 0.0
  %1934 = vmatpush1.msra.mxu0 0.0
  %1935 = vmatprep.subr.mxu0 0.0
  %1936 = vmatpush1.msra.mxu0 0.0
  %1937 = vmatprep.subr.mxu0 0.0
  %1938 = vmatpush1.msra.mxu0 0.0
  %1939 = vmatprep.subr.mxu0 0.0
  %1940 = vmatpush1.msra.mxu0 0.0
  %1941 = vmatprep.subr.mxu0 0.0
  %1942 = vmatpush1.msra.mxu0 0.0
  %1943 = vmatprep.subr.mxu0 0.0
  %1944 = vmatpush1.msra.mxu0 0.0
  %1945 = vmatprep.subr.mxu0 0.0
  %1946 = vmatpush1.msra.mxu0 0.0
  %1947 = vmatprep.subr.mxu0 0.0
  %1948 = vmatpush1.msra.mxu0 0.0
  %1949 = vmatprep.subr.mxu0 0.0
  %1950 = vmatpush1.msra.mxu0 0.0
  %1951 = vmatprep.subr.mxu0 0.0
  %1952 = vmatpush1.msra.mxu0 %v1458
  %1953 = vmatprep.subr.mxu0 0.0
  %1954 = vmatpush1.msra.mxu0 %v1434
  %1955 = vmatprep.subr.mxu0 0.0
  %1956 = vmatpush1.msra.mxu0 %v1433
  %1957 = vmatprep.subr.mxu0 0.0
  %1958 = vmatpush1.msra.mxu0 %v1432
  %1959 = vmatprep.subr.mxu0 0.0
  %1960 = vmatpush1.msra.mxu0 %v1431
  %1961 = vmatprep.subr.mxu0 0.0
  %1962 = vmatpush2.msra.mxu0 0.0
  %1963 = vmatprep.subr.mxu0 0.0
  %1964 = vmatpush2.msra.mxu0 0.0
  %1965 = vmatprep.subr.mxu0 0.0
  %1966 = vmatpush2.msra.mxu0 0.0
  %1967 = vmatprep.subr.mxu0 0.0
  %1968 = vmatpush2.msra.mxu0 0.0
  %1969 = vmatprep.subr.mxu0 0.0
  %1970 = vmatpush2.msra.mxu0 0.0
  %1971 = vmatprep.subr.mxu0 0.0
  %1972 = vmatpush2.msra.mxu0 0.0
  %1973 = vmatprep.subr.mxu0 0.0
  %1974 = vmatpush2.msra.mxu0 0.0
  %1975 = vmatprep.subr.mxu0 0.0
  %1976 = vmatpush2.msra.mxu0 0.0
  %1977 = vmatprep.subr.mxu0 0.0
  %1978 = vmatpush2.msra.mxu0 0.0
  %1979 = vmatprep.subr.mxu0 0.0
  %1980 = vmatpush2.msra.mxu0 0.0
  %1981 = vmatprep.subr.mxu0 0.0
  %1982 = vmatpush2.msra.mxu0 0.0
  %1983 = vmatprep.subr.mxu0 0.0
  %1984 = vmatpush2.msra.mxu0 0.0
  %1985 = vmatprep.subr.mxu0 0.0
  %1986 = vmatpush2.msra.mxu0 0.0
  %1987 = vmatprep.subr.mxu0 0.0
  %1988 = vmatpush2.msra.mxu0 0.0
  %1989 = vmatprep.subr.mxu0 0.0
  %1990 = vmatpush2.msra.mxu0 0.0
  %1991 = vmatprep.subr.mxu0 0.0
  %1992 = vmatpush2.msra.mxu0 0.0
  %1993 = vmatprep.mubr.f32.mxu0 0.0
  %1994 = vmatmul.mubr.f32.gmra.mxu0 %v1915
  %v1995 = vpop.f32.mrf.mxu0
  %v1996 = vadd.f32 0.0, %v1995
  %v1997 = vpop.f32.mrf.mxu0
  %1998 = vmatprep.mubr.f32.mxu0 0.0
  %1999 = vmatmul.mubr.f32.gmra.mxu0 %v1918
  %v2000 = vpop.f32.mrf.mxu0
  %v2001 = vadd.f32 0.0, %v2000
  %v2002 = vpop.f32.mrf.mxu0
  %2003 = vmatprep.mubr.f32.mxu0 0.0
  %2004 = vmatmul.mubr.f32.gmra.mxu0 %v1921
  %v2005 = vpop.f32.mrf.mxu0
  %v2006 = vadd.f32 0.0, %v2005
  %v2007 = vpop.f32.mrf.mxu0
  %2008 = vmatprep.mubr.f32.mxu0 0.0
  %2009 = vmatmul.mubr.f32.gmra.mxu0 %v1924
  %v2010 = vpop.f32.mrf.mxu0
  %v2011 = vadd.f32 0.0, %v2010
  %v2012 = vpop.f32.mrf.mxu0
  %2013 = vmatprep.mubr.f32.mxu0 0.0
  %2014 = vmatmul.mubr.f32.gmra.mxu0 %v1927
  %v2015 = vpop.f32.mrf.mxu0
  %v2016 = vadd.f32 0.0, %v2015
  %v2017 = vpop.f32.mrf.mxu0
  %2018 = vdwg.mxu0
  %v2019 = vpack.c.bf16 %v2001, %v1996
  %v2020 = vpack.c.bf16 %v2011, %v2006
  %v2021 = vpack.c.bf16 %v2016, %v2016
  %s2022 = scalar_lea.vmem %s5, 128
  %v2023 = vld [vmem:[%s2022] sm:$0xf]
  %v2024 = vld [vmem:[%s2022 + $0x4] sm:$0xf]
  %v2025 = vld [vmem:[%s2022 + $0x8] sm:$0xf]
  %v2026 = vld [vmem:[%s2022 + $0xc] sm:$0xf]
  %v2027 = vld [vmem:[%s2022 + $0x10] sm:$0xf]
  %v2028 = vld [vmem:[%s2022 + $0x14] sm:$0xf]
  %v2029 = vld [vmem:[%s2022 + $0x18] sm:$0xf]
  %v2030 = vld [vmem:[%s2022 + $0x1c] sm:$0xf]
  %v2031 = vld [vmem:[%s2022 + $0x20] sm:$0xf]
  %v2032 = vld [vmem:[%s2022 + $0x24] sm:$0xf]
  %v2033 = vld [vmem:[%s2022 + $0x28] sm:$0xf]
  %v2034 = vld [vmem:[%s2022 + $0x2c] sm:$0xf]
  %v2035 = vld [vmem:[%s2022 + $0x30] sm:$0xf]
  %v2036 = vld [vmem:[%s2022 + $0x34] sm:$0xf]
  %v2037 = vld [vmem:[%s2022 + $0x38] sm:$0xf]
  %v2038 = vld [vmem:[%s2022 + $0x3c] sm:$0xf]
  %v2055 = vunpack.c.l.b16 %v2023
  %v2056 = vunpack.c.l.b16 %v2024
  %v2057 = vunpack.c.l.b16 %v2025
  %v2058 = vunpack.c.l.b16 %v2026
  %v2059 = vunpack.c.l.b16 %v2027
  %v2060 = vunpack.c.l.b16 %v2028
  %v2061 = vunpack.c.l.b16 %v2029
  %v2062 = vunpack.c.l.b16 %v2030
  %v2063 = vunpack.c.l.b16 %v2031
  %v2064 = vunpack.c.l.b16 %v2032
  %v2065 = vunpack.c.l.b16 %v2033
  %v2066 = vunpack.c.l.b16 %v2034
  %v2067 = vunpack.c.l.b16 %v2035
  %v2068 = vunpack.c.l.b16 %v2036
  %v2069 = vunpack.c.l.b16 %v2037
  %v2070 = vunpack.c.l.b16 %v2038
  %v2071 = vpack.c.b16 %v2056, %v2055
  %v2072 = vpack.c.b16 %v2058, %v2057
  %v2073 = vpack.c.b16 %v2060, %v2059
  %v2074 = vpack.c.b16 %v2062, %v2061
  %v2075 = vpack.c.b16 %v2064, %v2063
  %v2076 = vpack.c.b16 %v2066, %v2065
  %v2077 = vpack.c.b16 %v2068, %v2067
  %v2078 = vpack.c.b16 %v2070, %v2069
  %2087 = vmatprep.subr.bf16.mxu0 0
  %2088 = vmatpush1.bf16.msra.mxu0 %v2078
  %2089 = vmatprep.subr.bf16.mxu0 0
  %2090 = vmatpush1.bf16.msra.mxu0 %v2077
  %2091 = vmatprep.subr.bf16.mxu0 0
  %2092 = vmatpush1.bf16.msra.mxu0 %v2076
  %2093 = vmatprep.subr.bf16.mxu0 0
  %2094 = vmatpush1.bf16.msra.mxu0 %v2075
  %2095 = vmatprep.subr.bf16.mxu0 0
  %2096 = vmatpush1.bf16.msra.mxu0 %v2074
  %2097 = vmatprep.subr.bf16.mxu0 0
  %2098 = vmatpush1.bf16.msra.mxu0 %v2073
  %2099 = vmatprep.subr.bf16.mxu0 0
  %2100 = vmatpush1.bf16.msra.mxu0 %v2072
  %2101 = vmatprep.subr.bf16.mxu0 0
  %2102 = vmatpush1.bf16.msra.mxu0 %v2071
  %2103 = vmatprep.subr.bf16.mxu0 0
  %2104 = vmatpush2.bf16.msra.mxu0 0
  %2105 = vmatprep.subr.bf16.mxu0 0
  %2106 = vmatpush2.bf16.msra.mxu0 0
  %2107 = vmatprep.subr.bf16.mxu0 0
  %2108 = vmatpush2.bf16.msra.mxu0 0
  %2109 = vmatprep.subr.bf16.mxu0 0
  %2110 = vmatpush2.bf16.msra.mxu0 0
  %2111 = vmatprep.subr.bf16.mxu0 0
  %2112 = vmatpush2.bf16.msra.mxu0 0
  %2113 = vmatprep.subr.bf16.mxu0 0
  %2114 = vmatpush2.bf16.msra.mxu0 0
  %2115 = vmatprep.subr.bf16.mxu0 0
  %2116 = vmatpush2.bf16.msra.mxu0 0
  %2117 = vmatprep.subr.bf16.mxu0 0
  %2118 = vmatpush2.bf16.msra.mxu0 0
  %2119 = vmatprep.mubr.bf16.mxu0 0
  %2120 = vmatmul.mubr.bf16.gmra.mxu0 %v2019
  %v2121 = vpop.f32.mrf.mxu0
  %v2122 = vadd.f32 0.0, %v2121
  %v2123 = vpop.f32.mrf.mxu0
  %v2124 = vpop.f32.mrf.mxu0
  %v2125 = vadd.f32 0.0, %v2124
  %v2126 = vpop.f32.mrf.mxu0
  %2127 = vmatprep.mubr.bf16.mxu0 0
  %2128 = vmatmul.mubr.bf16.gmra.mxu0 %v2020
  %v2129 = vpop.f32.mrf.mxu0
  %v2130 = vadd.f32 0.0, %v2129
  %v2131 = vpop.f32.mrf.mxu0
  %v2132 = vpop.f32.mrf.mxu0
  %v2133 = vadd.f32 0.0, %v2132
  %v2134 = vpop.f32.mrf.mxu0
  %2135 = vmatprep.mubr.bf16.mxu0 0
  %2136 = vmatmul.mubr.bf16.gmra.mxu0 %v2021
  %v2137 = vpop.f32.mrf.mxu0
  %v2138 = vadd.f32 0.0, %v2137
  %v2139 = vpop.f32.mrf.mxu0
  %v2140 = vpop.f32.mrf.mxu0
  %v2141 = vpop.f32.mrf.mxu0
  %2142 = vdwg.mxu0
  %v2143 = vadd.f32 %v1887, %v2122
  %v2144 = vadd.f32 %v1890, %v2125
  %v2145 = vadd.f32 %v1895, %v2130
  %v2146 = vadd.f32 %v1898, %v2133
  %v2147 = vadd.f32 %v1903, %v2138
  %s2148 = scalar_lea.vmem %s4, 120
  %v2149 = vld [vmem:[%s2148] sm:$0xff]
  %v2150 = vld [vmem:[%s2148 + $0x8] sm:$0xff]
  %v2151 = vld [vmem:[%s2148 + $0x10] sm:$0xff]
  %v2152 = vld [vmem:[%s2148 + $0x18] sm:$0xff]
  %v2153 = vld [vmem:[%s2148 + $0x20] sm:$0xf]
  %v2155 = vsel %vm1321, %v2149, 0
  %v2158 = vsel %vm1321, %v2150, 0
  %v2161 = vsel %vm1321, %v2151, 0
  %v2164 = vsel %vm1321, %v2152, 0
  %v2167 = vsel %vm1321, %v2153, 0
  %2169 = vmatprep.subr.mxu0 0.0
  %2170 = vmatpush1.msra.mxu0 0.0
  %2171 = vmatprep.subr.mxu0 0.0
  %2172 = vmatpush1.msra.mxu0 0.0
  %2173 = vmatprep.subr.mxu0 0.0
  %2174 = vmatpush1.msra.mxu0 0.0
  %2175 = vmatprep.subr.mxu0 0.0
  %2176 = vmatpush1.msra.mxu0 0.0
  %2177 = vmatprep.subr.mxu0 0.0
  %2178 = vmatpush1.msra.mxu0 0.0
  %2179 = vmatprep.subr.mxu0 0.0
  %2180 = vmatpush1.msra.mxu0 0.0
  %2181 = vmatprep.subr.mxu0 0.0
  %2182 = vmatpush1.msra.mxu0 0.0
  %2183 = vmatprep.subr.mxu0 0.0
  %2184 = vmatpush1.msra.mxu0 0.0
  %2185 = vmatprep.subr.mxu0 0.0
  %2186 = vmatpush1.msra.mxu0 0.0
  %2187 = vmatprep.subr.mxu0 0.0
  %2188 = vmatpush1.msra.mxu0 0.0
  %2189 = vmatprep.subr.mxu0 0.0
  %2190 = vmatpush1.msra.mxu0 0.0
  %2191 = vmatprep.subr.mxu0 0.0
  %2192 = vmatpush1.msra.mxu0 %v1458
  %2193 = vmatprep.subr.mxu0 0.0
  %2194 = vmatpush1.msra.mxu0 %v1434
  %2195 = vmatprep.subr.mxu0 0.0
  %2196 = vmatpush1.msra.mxu0 %v1433
  %2197 = vmatprep.subr.mxu0 0.0
  %2198 = vmatpush1.msra.mxu0 %v1432
  %2199 = vmatprep.subr.mxu0 0.0
  %2200 = vmatpush1.msra.mxu0 %v1431
  %2201 = vmatprep.subr.mxu0 0.0
  %2202 = vmatpush2.msra.mxu0 0.0
  %2203 = vmatprep.subr.mxu0 0.0
  %2204 = vmatpush2.msra.mxu0 0.0
  %2205 = vmatprep.subr.mxu0 0.0
  %2206 = vmatpush2.msra.mxu0 0.0
  %2207 = vmatprep.subr.mxu0 0.0
  %2208 = vmatpush2.msra.mxu0 0.0
  %2209 = vmatprep.subr.mxu0 0.0
  %2210 = vmatpush2.msra.mxu0 0.0
  %2211 = vmatprep.subr.mxu0 0.0
  %2212 = vmatpush2.msra.mxu0 0.0
  %2213 = vmatprep.subr.mxu0 0.0
  %2214 = vmatpush2.msra.mxu0 0.0
  %2215 = vmatprep.subr.mxu0 0.0
  %2216 = vmatpush2.msra.mxu0 0.0
  %2217 = vmatprep.subr.mxu0 0.0
  %2218 = vmatpush2.msra.mxu0 0.0
  %2219 = vmatprep.subr.mxu0 0.0
  %2220 = vmatpush2.msra.mxu0 0.0
  %2221 = vmatprep.subr.mxu0 0.0
  %2222 = vmatpush2.msra.mxu0 0.0
  %2223 = vmatprep.subr.mxu0 0.0
  %2224 = vmatpush2.msra.mxu0 0.0
  %2225 = vmatprep.subr.mxu0 0.0
  %2226 = vmatpush2.msra.mxu0 0.0
  %2227 = vmatprep.subr.mxu0 0.0
  %2228 = vmatpush2.msra.mxu0 0.0
  %2229 = vmatprep.subr.mxu0 0.0
  %2230 = vmatpush2.msra.mxu0 0.0
  %2231 = vmatprep.subr.mxu0 0.0
  %2232 = vmatpush2.msra.mxu0 0.0
  %2233 = vmatprep.mubr.f32.mxu0 0.0
  %2234 = vmatmul.mubr.f32.gmra.mxu0 %v2155
  %v2235 = vpop.f32.mrf.mxu0
  %v2236 = vadd.f32 0.0, %v2235
  %v2237 = vpop.f32.mrf.mxu0
  %2238 = vmatprep.mubr.f32.mxu0 0.0
  %2239 = vmatmul.mubr.f32.gmra.mxu0 %v2158
  %v2240 = vpop.f32.mrf.mxu0
  %v2241 = vadd.f32 0.0, %v2240
  %v2242 = vpop.f32.mrf.mxu0
  %2243 = vmatprep.mubr.f32.mxu0 0.0
  %2244 = vmatmul.mubr.f32.gmra.mxu0 %v2161
  %v2245 = vpop.f32.mrf.mxu0
  %v2246 = vadd.f32 0.0, %v2245
  %v2247 = vpop.f32.mrf.mxu0
  %2248 = vmatprep.mubr.f32.mxu0 0.0
  %2249 = vmatmul.mubr.f32.gmra.mxu0 %v2164
  %v2250 = vpop.f32.mrf.mxu0
  %v2251 = vadd.f32 0.0, %v2250
  %v2252 = vpop.f32.mrf.mxu0
  %2253 = vmatprep.mubr.f32.mxu0 0.0
  %2254 = vmatmul.mubr.f32.gmra.mxu0 %v2167
  %v2255 = vpop.f32.mrf.mxu0
  %v2256 = vadd.f32 0.0, %v2255
  %v2257 = vpop.f32.mrf.mxu0
  %2258 = vdwg.mxu0
  %v2259 = vpack.c.bf16 %v2241, %v2236
  %v2260 = vpack.c.bf16 %v2251, %v2246
  %v2261 = vpack.c.bf16 %v2256, %v2256
  %s2262 = scalar_lea.vmem %s5, 192
  %v2263 = vld [vmem:[%s2262] sm:$0xf]
  %v2264 = vld [vmem:[%s2262 + $0x4] sm:$0xf]
  %v2265 = vld [vmem:[%s2262 + $0x8] sm:$0xf]
  %v2266 = vld [vmem:[%s2262 + $0xc] sm:$0xf]
  %v2267 = vld [vmem:[%s2262 + $0x10] sm:$0xf]
  %v2268 = vld [vmem:[%s2262 + $0x14] sm:$0xf]
  %v2269 = vld [vmem:[%s2262 + $0x18] sm:$0xf]
  %v2270 = vld [vmem:[%s2262 + $0x1c] sm:$0xf]
  %v2271 = vld [vmem:[%s2262 + $0x20] sm:$0xf]
  %v2272 = vld [vmem:[%s2262 + $0x24] sm:$0xf]
  %v2273 = vld [vmem:[%s2262 + $0x28] sm:$0xf]
  %v2274 = vld [vmem:[%s2262 + $0x2c] sm:$0xf]
  %v2275 = vld [vmem:[%s2262 + $0x30] sm:$0xf]
  %v2276 = vld [vmem:[%s2262 + $0x34] sm:$0xf]
  %v2277 = vld [vmem:[%s2262 + $0x38] sm:$0xf]
  %v2278 = vld [vmem:[%s2262 + $0x3c] sm:$0xf]
  %v2295 = vunpack.c.l.b16 %v2263
  %v2296 = vunpack.c.l.b16 %v2264
  %v2297 = vunpack.c.l.b16 %v2265
  %v2298 = vunpack.c.l.b16 %v2266
  %v2299 = vunpack.c.l.b16 %v2267
  %v2300 = vunpack.c.l.b16 %v2268
  %v2301 = vunpack.c.l.b16 %v2269
  %v2302 = vunpack.c.l.b16 %v2270
  %v2303 = vunpack.c.l.b16 %v2271
  %v2304 = vunpack.c.l.b16 %v2272
  %v2305 = vunpack.c.l.b16 %v2273
  %v2306 = vunpack.c.l.b16 %v2274
  %v2307 = vunpack.c.l.b16 %v2275
  %v2308 = vunpack.c.l.b16 %v2276
  %v2309 = vunpack.c.l.b16 %v2277
  %v2310 = vunpack.c.l.b16 %v2278
  %v2311 = vpack.c.b16 %v2296, %v2295
  %v2312 = vpack.c.b16 %v2298, %v2297
  %v2313 = vpack.c.b16 %v2300, %v2299
  %v2314 = vpack.c.b16 %v2302, %v2301
  %v2315 = vpack.c.b16 %v2304, %v2303
  %v2316 = vpack.c.b16 %v2306, %v2305
  %v2317 = vpack.c.b16 %v2308, %v2307
  %v2318 = vpack.c.b16 %v2310, %v2309
  %2327 = vmatprep.subr.bf16.mxu0 0
  %2328 = vmatpush1.bf16.msra.mxu0 %v2318
  %2329 = vmatprep.subr.bf16.mxu0 0
  %2330 = vmatpush1.bf16.msra.mxu0 %v2317
  %2331 = vmatprep.subr.bf16.mxu0 0
  %2332 = vmatpush1.bf16.msra.mxu0 %v2316
  %2333 = vmatprep.subr.bf16.mxu0 0
  %2334 = vmatpush1.bf16.msra.mxu0 %v2315
  %2335 = vmatprep.subr.bf16.mxu0 0
  %2336 = vmatpush1.bf16.msra.mxu0 %v2314
  %2337 = vmatprep.subr.bf16.mxu0 0
  %2338 = vmatpush1.bf16.msra.mxu0 %v2313
  %2339 = vmatprep.subr.bf16.mxu0 0
  %2340 = vmatpush1.bf16.msra.mxu0 %v2312
  %2341 = vmatprep.subr.bf16.mxu0 0
  %2342 = vmatpush1.bf16.msra.mxu0 %v2311
  %2343 = vmatprep.subr.bf16.mxu0 0
  %2344 = vmatpush2.bf16.msra.mxu0 0
  %2345 = vmatprep.subr.bf16.mxu0 0
  %2346 = vmatpush2.bf16.msra.mxu0 0
  %2347 = vmatprep.subr.bf16.mxu0 0
  %2348 = vmatpush2.bf16.msra.mxu0 0
  %2349 = vmatprep.subr.bf16.mxu0 0
  %2350 = vmatpush2.bf16.msra.mxu0 0
  %2351 = vmatprep.subr.bf16.mxu0 0
  %2352 = vmatpush2.bf16.msra.mxu0 0
  %2353 = vmatprep.subr.bf16.mxu0 0
  %2354 = vmatpush2.bf16.msra.mxu0 0
  %2355 = vmatprep.subr.bf16.mxu0 0
  %2356 = vmatpush2.bf16.msra.mxu0 0
  %2357 = vmatprep.subr.bf16.mxu0 0
  %2358 = vmatpush2.bf16.msra.mxu0 0
  %2359 = vmatprep.mubr.bf16.mxu0 0
  %2360 = vmatmul.mubr.bf16.gmra.mxu0 %v2259
  %v2361 = vpop.f32.mrf.mxu0
  %v2362 = vadd.f32 0.0, %v2361
  %v2363 = vpop.f32.mrf.mxu0
  %v2364 = vpop.f32.mrf.mxu0
  %v2365 = vadd.f32 0.0, %v2364
  %v2366 = vpop.f32.mrf.mxu0
  %2367 = vmatprep.mubr.bf16.mxu0 0
  %2368 = vmatmul.mubr.bf16.gmra.mxu0 %v2260
  %v2369 = vpop.f32.mrf.mxu0
  %v2370 = vadd.f32 0.0, %v2369
  %v2371 = vpop.f32.mrf.mxu0
  %v2372 = vpop.f32.mrf.mxu0
  %v2373 = vadd.f32 0.0, %v2372
  %v2374 = vpop.f32.mrf.mxu0
  %2375 = vmatprep.mubr.bf16.mxu0 0
  %2376 = vmatmul.mubr.bf16.gmra.mxu0 %v2261
  %v2377 = vpop.f32.mrf.mxu0
  %v2378 = vadd.f32 0.0, %v2377
  %v2379 = vpop.f32.mrf.mxu0
  %v2380 = vpop.f32.mrf.mxu0
  %v2381 = vpop.f32.mrf.mxu0
  %2382 = vdwg.mxu0
  %v2383 = vadd.f32 %v2143, %v2362
  %v2384 = vadd.f32 %v2144, %v2365
  %v2385 = vadd.f32 %v2145, %v2370
  %v2386 = vadd.f32 %v2146, %v2373
  %v2387 = vadd.f32 %v2147, %v2378
  %s2388 = scalar_lea.vmem %s4, 160
  %v2389 = vld [vmem:[%s2388] sm:$0xff]
  %v2390 = vld [vmem:[%s2388 + $0x8] sm:$0xff]
  %v2391 = vld [vmem:[%s2388 + $0x10] sm:$0xff]
  %v2392 = vld [vmem:[%s2388 + $0x18] sm:$0xff]
  %v2393 = vld [vmem:[%s2388 + $0x20] sm:$0xf]
  %v2395 = vsel %vm1321, %v2389, 0
  %v2398 = vsel %vm1321, %v2390, 0
  %v2401 = vsel %vm1321, %v2391, 0
  %v2404 = vsel %vm1321, %v2392, 0
  %v2407 = vsel %vm1321, %v2393, 0
  %2409 = vmatprep.subr.mxu0 0.0
  %2410 = vmatpush1.msra.mxu0 0.0
  %2411 = vmatprep.subr.mxu0 0.0
  %2412 = vmatpush1.msra.mxu0 0.0
  %2413 = vmatprep.subr.mxu0 0.0
  %2414 = vmatpush1.msra.mxu0 0.0
  %2415 = vmatprep.subr.mxu0 0.0
  %2416 = vmatpush1.msra.mxu0 0.0
  %2417 = vmatprep.subr.mxu0 0.0
  %2418 = vmatpush1.msra.mxu0 0.0
  %2419 = vmatprep.subr.mxu0 0.0
  %2420 = vmatpush1.msra.mxu0 0.0
  %2421 = vmatprep.subr.mxu0 0.0
  %2422 = vmatpush1.msra.mxu0 0.0
  %2423 = vmatprep.subr.mxu0 0.0
  %2424 = vmatpush1.msra.mxu0 0.0
  %2425 = vmatprep.subr.mxu0 0.0
  %2426 = vmatpush1.msra.mxu0 0.0
  %2427 = vmatprep.subr.mxu0 0.0
  %2428 = vmatpush1.msra.mxu0 0.0
  %2429 = vmatprep.subr.mxu0 0.0
  %2430 = vmatpush1.msra.mxu0 0.0
  %2431 = vmatprep.subr.mxu0 0.0
  %2432 = vmatpush1.msra.mxu0 %v1458
  %2433 = vmatprep.subr.mxu0 0.0
  %2434 = vmatpush1.msra.mxu0 %v1434
  %2435 = vmatprep.subr.mxu0 0.0
  %2436 = vmatpush1.msra.mxu0 %v1433
  %2437 = vmatprep.subr.mxu0 0.0
  %2438 = vmatpush1.msra.mxu0 %v1432
  %2439 = vmatprep.subr.mxu0 0.0
  %2440 = vmatpush1.msra.mxu0 %v1431
  %2441 = vmatprep.subr.mxu0 0.0
  %2442 = vmatpush2.msra.mxu0 0.0
  %2443 = vmatprep.subr.mxu0 0.0
  %2444 = vmatpush2.msra.mxu0 0.0
  %2445 = vmatprep.subr.mxu0 0.0
  %2446 = vmatpush2.msra.mxu0 0.0
  %2447 = vmatprep.subr.mxu0 0.0
  %2448 = vmatpush2.msra.mxu0 0.0
  %2449 = vmatprep.subr.mxu0 0.0
  %2450 = vmatpush2.msra.mxu0 0.0
  %2451 = vmatprep.subr.mxu0 0.0
  %2452 = vmatpush2.msra.mxu0 0.0
  %2453 = vmatprep.subr.mxu0 0.0
  %2454 = vmatpush2.msra.mxu0 0.0
  %2455 = vmatprep.subr.mxu0 0.0
  %2456 = vmatpush2.msra.mxu0 0.0
  %2457 = vmatprep.subr.mxu0 0.0
  %2458 = vmatpush2.msra.mxu0 0.0
  %2459 = vmatprep.subr.mxu0 0.0
  %2460 = vmatpush2.msra.mxu0 0.0
  %2461 = vmatprep.subr.mxu0 0.0
  %2462 = vmatpush2.msra.mxu0 0.0
  %2463 = vmatprep.subr.mxu0 0.0
  %2464 = vmatpush2.msra.mxu0 0.0
  %2465 = vmatprep.subr.mxu0 0.0
  %2466 = vmatpush2.msra.mxu0 0.0
  %2467 = vmatprep.subr.mxu0 0.0
  %2468 = vmatpush2.msra.mxu0 0.0
  %2469 = vmatprep.subr.mxu0 0.0
  %2470 = vmatpush2.msra.mxu0 0.0
  %2471 = vmatprep.subr.mxu0 0.0
  %2472 = vmatpush2.msra.mxu0 0.0
  %2473 = vmatprep.mubr.f32.mxu0 0.0
  %2474 = vmatmul.mubr.f32.gmra.mxu0 %v2395
  %v2475 = vpop.f32.mrf.mxu0
  %v2476 = vadd.f32 0.0, %v2475
  %v2477 = vpop.f32.mrf.mxu0
  %2478 = vmatprep.mubr.f32.mxu0 0.0
  %2479 = vmatmul.mubr.f32.gmra.mxu0 %v2398
  %v2480 = vpop.f32.mrf.mxu0
  %v2481 = vadd.f32 0.0, %v2480
  %v2482 = vpop.f32.mrf.mxu0
  %2483 = vmatprep.mubr.f32.mxu0 0.0
  %2484 = vmatmul.mubr.f32.gmra.mxu0 %v2401
  %v2485 = vpop.f32.mrf.mxu0
  %v2486 = vadd.f32 0.0, %v2485
  %v2487 = vpop.f32.mrf.mxu0
  %2488 = vmatprep.mubr.f32.mxu0 0.0
  %2489 = vmatmul.mubr.f32.gmra.mxu0 %v2404
  %v2490 = vpop.f32.mrf.mxu0
  %v2491 = vadd.f32 0.0, %v2490
  %v2492 = vpop.f32.mrf.mxu0
  %2493 = vmatprep.mubr.f32.mxu0 0.0
  %2494 = vmatmul.mubr.f32.gmra.mxu0 %v2407
  %v2495 = vpop.f32.mrf.mxu0
  %v2496 = vadd.f32 0.0, %v2495
  %v2497 = vpop.f32.mrf.mxu0
  %2498 = vdwg.mxu0
  %v2499 = vpack.c.bf16 %v2481, %v2476
  %v2500 = vpack.c.bf16 %v2491, %v2486
  %v2501 = vpack.c.bf16 %v2496, %v2496
  %s2502 = scalar_lea.vmem %s5, 256
  %v2503 = vld [vmem:[%s2502] sm:$0xf]
  %v2504 = vld [vmem:[%s2502 + $0x4] sm:$0xf]
  %v2505 = vld [vmem:[%s2502 + $0x8] sm:$0xf]
  %v2506 = vld [vmem:[%s2502 + $0xc] sm:$0xf]
  %v2507 = vld [vmem:[%s2502 + $0x10] sm:$0xf]
  %v2508 = vld [vmem:[%s2502 + $0x14] sm:$0xf]
  %v2509 = vld [vmem:[%s2502 + $0x18] sm:$0xf]
  %v2510 = vld [vmem:[%s2502 + $0x1c] sm:$0xf]
  %v2511 = vld [vmem:[%s2502 + $0x20] sm:$0xf]
  %v2512 = vld [vmem:[%s2502 + $0x24] sm:$0xf]
  %v2513 = vld [vmem:[%s2502 + $0x28] sm:$0xf]
  %v2514 = vld [vmem:[%s2502 + $0x2c] sm:$0xf]
  %v2515 = vld [vmem:[%s2502 + $0x30] sm:$0xf]
  %v2516 = vld [vmem:[%s2502 + $0x34] sm:$0xf]
  %v2517 = vld [vmem:[%s2502 + $0x38] sm:$0xf]
  %v2518 = vld [vmem:[%s2502 + $0x3c] sm:$0xf]
  %v2535 = vunpack.c.l.b16 %v2503
  %v2536 = vunpack.c.l.b16 %v2504
  %v2537 = vunpack.c.l.b16 %v2505
  %v2538 = vunpack.c.l.b16 %v2506
  %v2539 = vunpack.c.l.b16 %v2507
  %v2540 = vunpack.c.l.b16 %v2508
  %v2541 = vunpack.c.l.b16 %v2509
  %v2542 = vunpack.c.l.b16 %v2510
  %v2543 = vunpack.c.l.b16 %v2511
  %v2544 = vunpack.c.l.b16 %v2512
  %v2545 = vunpack.c.l.b16 %v2513
  %v2546 = vunpack.c.l.b16 %v2514
  %v2547 = vunpack.c.l.b16 %v2515
  %v2548 = vunpack.c.l.b16 %v2516
  %v2549 = vunpack.c.l.b16 %v2517
  %v2550 = vunpack.c.l.b16 %v2518
  %v2551 = vpack.c.b16 %v2536, %v2535
  %v2552 = vpack.c.b16 %v2538, %v2537
  %v2553 = vpack.c.b16 %v2540, %v2539
  %v2554 = vpack.c.b16 %v2542, %v2541
  %v2555 = vpack.c.b16 %v2544, %v2543
  %v2556 = vpack.c.b16 %v2546, %v2545
  %v2557 = vpack.c.b16 %v2548, %v2547
  %v2558 = vpack.c.b16 %v2550, %v2549
  %2567 = vmatprep.subr.bf16.mxu0 0
  %2568 = vmatpush1.bf16.msra.mxu0 %v2558
  %2569 = vmatprep.subr.bf16.mxu0 0
  %2570 = vmatpush1.bf16.msra.mxu0 %v2557
  %2571 = vmatprep.subr.bf16.mxu0 0
  %2572 = vmatpush1.bf16.msra.mxu0 %v2556
  %2573 = vmatprep.subr.bf16.mxu0 0
  %2574 = vmatpush1.bf16.msra.mxu0 %v2555
  %2575 = vmatprep.subr.bf16.mxu0 0
  %2576 = vmatpush1.bf16.msra.mxu0 %v2554
  %2577 = vmatprep.subr.bf16.mxu0 0
  %2578 = vmatpush1.bf16.msra.mxu0 %v2553
  %2579 = vmatprep.subr.bf16.mxu0 0
  %2580 = vmatpush1.bf16.msra.mxu0 %v2552
  %2581 = vmatprep.subr.bf16.mxu0 0
  %2582 = vmatpush1.bf16.msra.mxu0 %v2551
  %2583 = vmatprep.subr.bf16.mxu0 0
  %2584 = vmatpush2.bf16.msra.mxu0 0
  %2585 = vmatprep.subr.bf16.mxu0 0
  %2586 = vmatpush2.bf16.msra.mxu0 0
  %2587 = vmatprep.subr.bf16.mxu0 0
  %2588 = vmatpush2.bf16.msra.mxu0 0
  %2589 = vmatprep.subr.bf16.mxu0 0
  %2590 = vmatpush2.bf16.msra.mxu0 0
  %2591 = vmatprep.subr.bf16.mxu0 0
  %2592 = vmatpush2.bf16.msra.mxu0 0
  %2593 = vmatprep.subr.bf16.mxu0 0
  %2594 = vmatpush2.bf16.msra.mxu0 0
  %2595 = vmatprep.subr.bf16.mxu0 0
  %2596 = vmatpush2.bf16.msra.mxu0 0
  %2597 = vmatprep.subr.bf16.mxu0 0
  %2598 = vmatpush2.bf16.msra.mxu0 0
  %2599 = vmatprep.mubr.bf16.mxu0 0
  %2600 = vmatmul.mubr.bf16.gmra.mxu0 %v2499
  %v2601 = vpop.f32.mrf.mxu0
  %v2602 = vadd.f32 0.0, %v2601
  %v2603 = vpop.f32.mrf.mxu0
  %v2604 = vpop.f32.mrf.mxu0
  %v2605 = vadd.f32 0.0, %v2604
  %v2606 = vpop.f32.mrf.mxu0
  %2607 = vmatprep.mubr.bf16.mxu0 0
  %2608 = vmatmul.mubr.bf16.gmra.mxu0 %v2500
  %v2609 = vpop.f32.mrf.mxu0
  %v2610 = vadd.f32 0.0, %v2609
  %v2611 = vpop.f32.mrf.mxu0
  %v2612 = vpop.f32.mrf.mxu0
  %v2613 = vadd.f32 0.0, %v2612
  %v2614 = vpop.f32.mrf.mxu0
  %2615 = vmatprep.mubr.bf16.mxu0 0
  %2616 = vmatmul.mubr.bf16.gmra.mxu0 %v2501
  %v2617 = vpop.f32.mrf.mxu0
  %v2618 = vadd.f32 0.0, %v2617
  %v2619 = vpop.f32.mrf.mxu0
  %v2620 = vpop.f32.mrf.mxu0
  %v2621 = vpop.f32.mrf.mxu0
  %2622 = vdwg.mxu0
  %v2623 = vadd.f32 %v2383, %v2602
  %v2624 = vadd.f32 %v2384, %v2605
  %v2625 = vadd.f32 %v2385, %v2610
  %v2626 = vadd.f32 %v2386, %v2613
  %v2627 = vadd.f32 %v2387, %v2618
  %v2628 = vlaneseq
  %v2629 = vshrl.u32 %v2628, 7
  %v2630 = vsub.s32 0, %v2629
  %v2631 = vrot.slane %v1436, %v2630
  %v2632 = vadd.f32 %v2623, %v2631
  %v2633 = vadd.f32 %v2624, %v2631
  %v2634 = vadd.f32 %v2625, %v2631
  %v2635 = vadd.f32 %v2626, %v2631
  %v2636 = vadd.f32 %v2627, %v2631
  %v2637 = vmax.f32 %v2632, 0.0
  %v2638 = vmax.f32 %v2633, 0.0
  %v2639 = vmax.f32 %v2634, 0.0
  %v2640 = vmax.f32 %v2635, 0.0
  %v2641 = vmax.f32 %v2636, 0.0
  %v2642 = vlaneseq
  %v2643 = vshrl.u32 %v2642, 7
  %v2644 = vsub.s32 1, %v2643
  %v2645 = vrot.slane %v1436, %v2644
  %v2646 = vmul.f32 %v2637, %v2645
  %v2647 = vmul.f32 %v2638, %v2645
  %v2648 = vmul.f32 %v2639, %v2645
  %v2649 = vmul.f32 %v2640, %v2645
  %v2650 = vmul.f32 %v2641, %v2645
  %v2651 = vlaneseq
  %v2652 = vshrl.u32 %v2651, 7
  %v2653 = vsub.s32 2, %v2652
  %v2654 = vrot.slane %v1436, %v2653
  %v2655 = vadd.f32 %v2646, %v2654
  %v2656 = vadd.f32 %v2647, %v2654
  %v2657 = vadd.f32 %v2648, %v2654
  %v2658 = vadd.f32 %v2649, %v2654
  %v2659 = vadd.f32 %v2650, %v2654
  %vm2660 = vcmask 523264
  %2661 = vst.msk [vmem:[%s7] sm:$0xff] %vm2660, %v2655
  %2662 = vst.msk [vmem:[%s7 + $0x8] sm:$0xff] %vm2660, %v2656
  %2663 = vst.msk [vmem:[%s7 + $0x10] sm:$0xff] %vm2660, %v2657
  %2664 = vst.msk [vmem:[%s7 + $0x18] sm:$0xff] %vm2660, %v2658
  %vm2665 = vcmask 519168
  %2666 = vst.msk [vmem:[%s7 + $0x20] sm:$0xf] %vm2665, %v2659
  // Predicated region
  $region30: #{reverser_forward.5} parent=0 // pred_check
    _
  $region31: #{reverser_forward.5} parent=0 // pred_check_branch
    %2668 = sbr.rel (0) target = $region33
  $region32: #{reverser_forward.5} parent=0 // pred_region
    _
  $region33: #{reverser_forward.5} parent=0 // pred_fallthru
    _
  // Predicated region
  $region34: #{reverser_forward.5} parent=0 // pred_check
    _
  $region35: #{reverser_forward.5} parent=0 // pred_check_branch
    %2670 = sbr.rel (0) target = $region37
  $region36: #{reverser_forward.5} parent=0 // pred_region
    _
  $region37: #{reverser_forward.5} parent=0 // pred_fallthru
    _

// kernel: reverser_forward.9
$region0: #{reverser_forward.9}
  #allocation0 [shape = 'u32[]', space=smem, size = 0x4, offset = 0x4, fixed_abs, tag = 'smem constant byte address 0x4 - core index']
  #allocation1 [shape = 'u32[144,128]{1,0:T(1,128)}', space=vmem, size = 0x12000, scoped, tag = 'internal scratch']
  %s0 = inlined_call_operand.vmem [shape: f32[36,64], index: 0, kind: input, shape index: {}]
  %s1 = inlined_call_operand.vmem [shape: f32[36,64], index: 1, kind: input, shape index: {}]
  %s2 = inlined_call_operand.vmem [shape: f32[36,64], index: 2, kind: input, shape index: {}]
  %s3 = inlined_call_operand.vmem [shape: f32[36,36], index: 3, kind: input, shape index: {}]
  %s4 = inlined_call_operand.vmem [shape: f32[36,36], index: 4, kind: input, shape index: {}]
  %s5 = inlined_call_operand.hbm [shape: f32[2,36], index: 5, kind: input, shape index: {}]
  %s6 = inlined_call_operand.vmem [shape: bf16[192,192], index: 6, kind: input, shape index: {}]
  %s7 = inlined_call_operand.vmem [shape: f32[3,192], index: 7, kind: input, shape index: {}]
  %s8 = inlined_call_operand.vmem [shape: bf16[576,32], index: 8, kind: input, shape index: {}]
  %s9 = inlined_call_operand.hbm [shape: f32[3,32], index: 9, kind: input, shape index: {}]
  %s10 = inlined_call_operand.vmem [shape: bf16[32,192], index: 10, kind: input, shape index: {}]
  %s11 = inlined_call_operand.hbm [shape: f32[1,192], index: 11, kind: input, shape index: {}]
  %s12 = inlined_call_operand.vmem [shape: f32[4,192], index: 12, kind: input, shape index: {}]
  %s13 = inlined_call_operand.vmem [shape: bf16[192,192], index: 13, kind: input, shape index: {}]
  %s14 = inlined_call_operand.vmem [shape: bf16[192,192], index: 14, kind: input, shape index: {}]
  %s15 = inlined_call_operand.hbm [shape: f32[1,192], index: 15, kind: input, shape index: {}]
  %s16 = inlined_call_operand.hbm [shape: f32[2,192], index: 16, kind: output, shape index: {}]
  %s17 = sld [smem:[#allocation0]]
  $region90: #{reverser_forward.9} parent=0
    _
  %s19 = ssub.s32 1, %s17
  %s20 = scalar_select 0, %s19, %s17
  $region1: #{reverser_forward.9} parent=0
    #allocation2 [shape = 'u8[1024]{0}', space=vmem, size = 0x400, scoped, tag = 'input window, operand 5, single buffered']
    #allocation3 [shape = 's32[1]{0}', space=sflag, size = 0x4, scoped, tag = 'scoped memory for reverser_forward.9']
    #allocation4 [shape = 's32[1]{0}', space=sflag, size = 0x4, scoped, tag = 'scoped memory for reverser_forward.9']
    #allocation5 [shape = 'u8[2048]{0}', space=vmem, size = 0x800, scoped, tag = 'input window, operand 9, single buffered']
    #allocation6 [shape = 's32[1]{0}', space=sflag, size = 0x4, scoped, tag = 'scoped memory for reverser_forward.9']
    #allocation7 [shape = 'u8[1024]{0}', space=vmem, size = 0x400, scoped, tag = 'input window, operand 11, single buffered']
    #allocation8 [shape = 'u8[1024]{0}', space=vmem, size = 0x400, scoped, tag = 'input window, operand 15, single buffered']
    #allocation9 [shape = 's32[1]{0}', space=sflag, size = 0x4, scoped, tag = 'scoped memory for reverser_forward.9']
    #allocation10 [shape = 'u8[2048]{0}', space=vmem, size = 0x800, scoped, tag = 'output window, operand 0, single buffered']
    %21 = vsyncpa [#allocation3], 0
    %22 = vsyncpa [#allocation6], 0
    %23 = vsyncpa [#allocation9], 0
    %24 = vsyncpa [#allocation4], 0
    // Predicated region
    $region2: #{reverser_forward.9} parent=1 // pred_check
      _
    $region3: #{reverser_forward.9} parent=1 // pred_check_branch
      %26 = sbr.rel (0) target = $region5
    $region4: #{reverser_forward.9} parent=1 // pred_region
      _
    $region5: #{reverser_forward.9} parent=1 // pred_fallthru
      _
    // Predicated region
    $region6: #{reverser_forward.9} parent=1 // pred_check
      _
    $region7: #{reverser_forward.9} parent=1 // pred_check_branch
      %28 = sbr.rel (0) target = $region9
    $region8: #{reverser_forward.9} parent=1 // pred_region
      _
    $region9: #{reverser_forward.9} parent=1 // pred_fallthru
      _
    // Predicated region
    $region10: #{reverser_forward.9} parent=1 // pred_check
      _
    $region11: #{reverser_forward.9} parent=1 // pred_check_branch
      %30 = sbr.rel (0) target = $region13
    $region12: #{reverser_forward.9} parent=1 // pred_region
      _
    $region13: #{reverser_forward.9} parent=1 // pred_fallthru
      _
    // Predicated region
    $region14: #{reverser_forward.9} parent=1 // pred_check
      _
    $region15: #{reverser_forward.9} parent=1 // pred_check_branch
      %32 = sbr.rel (0) target = $region17
    $region16: #{reverser_forward.9} parent=1 // pred_region
      _
    $region17: #{reverser_forward.9} parent=1 // pred_fallthru
      _
    // Predicated region
    $region18: #{reverser_forward.9} parent=1 // pred_check
      _
    $region19: #{reverser_forward.9} parent=1 // pred_check_branch
      %34 = sbr.rel (0) target = $region21
    $region20: #{reverser_forward.9} parent=1 // pred_region
      _
    $region21: #{reverser_forward.9} parent=1 // pred_fallthru
      _
    // Predicated region
    $region22: #{reverser_forward.9} parent=1 // pred_check
      _
    $region23: #{reverser_forward.9} parent=1 // pred_check_branch
      %36 = sbr.rel (0) target = $region25
    $region24: #{reverser_forward.9} parent=1 // pred_region
      %s38 = ssub.s32 32, 32
      %39 = vsyncadd [#allocation3], %s38
      %s41 = sshll.u32 [#allocation2], 4
      %s42 = int_to_ptr.vmem [resolvable:$true] %s41
      %44 = dma.hbm_to_vmem [thread:$0]  %s5, 32, %s42, [#allocation3]
    $region25: #{reverser_forward.9} parent=1 // pred_fallthru
      _
    // Predicated region
    $region26: #{reverser_forward.9} parent=1 // pred_check
      _
    $region27: #{reverser_forward.9} parent=1 // pred_check_branch
      %46 = sbr.rel (0) target = $region29
    $region28: #{reverser_forward.9} parent=1 // pred_region
      _
    $region29: #{reverser_forward.9} parent=1 // pred_fallthru
      _
    // Predicated region
    $region30: #{reverser_forward.9} parent=1 // pred_check
      _
    $region31: #{reverser_forward.9} parent=1 // pred_check_branch
      %48 = sbr.rel (0) target = $region33
    $region32: #{reverser_forward.9} parent=1 // pred_region
      _
    $region33: #{reverser_forward.9} parent=1 // pred_fallthru
      _
    // Predicated region
    $region34: #{reverser_forward.9} parent=1 // pred_check
      _
    $region35: #{reverser_forward.9} parent=1 // pred_check_branch
      %50 = sbr.rel (0) target = $region37
    $region36: #{reverser_forward.9} parent=1 // pred_region
      _
    $region37: #{reverser_forward.9} parent=1 // pred_fallthru
      _
    // Predicated region
    $region38: #{reverser_forward.9} parent=1 // pred_check
      _
    $region39: #{reverser_forward.9} parent=1 // pred_check_branch
      %52 = sbr.rel (0) target = $region41
    $region40: #{reverser_forward.9} parent=1 // pred_region
      %s54 = ssub.s32 64, 64
      %55 = vsyncadd [#allocation6], %s54
      %s57 = sshll.u32 [#allocation5], 4
      %s58 = int_to_ptr.vmem [resolvable:$true] %s57
      %60 = dma.hbm_to_vmem [thread:$0]  %s9, 64, %s58, [#allocation6]
    $region41: #{reverser_forward.9} parent=1 // pred_fallthru
      _
    // Predicated region
    $region42: #{reverser_forward.9} parent=1 // pred_check
      _
    $region43: #{reverser_forward.9} parent=1 // pred_check_branch
      %62 = sbr.rel (0) target = $region45
    $region44: #{reverser_forward.9} parent=1 // pred_region
      _
    $region45: #{reverser_forward.9} parent=1 // pred_fallthru
      _
    // Predicated region
    $region46: #{reverser_forward.9} parent=1 // pred_check
      _
    $region47: #{reverser_forward.9} parent=1 // pred_check_branch
      %64 = sbr.rel (0) target = $region49
    $region48: #{reverser_forward.9} parent=1 // pred_region
      %s66 = ssub.s32 32, 32
      %67 = vsyncadd [#allocation6], %s66
      %s69 = sshll.u32 [#allocation7], 4
      %s70 = int_to_ptr.vmem [resolvable:$true] %s69
      %72 = dma.hbm_to_vmem [thread:$0]  %s11, 32, %s70, [#allocation6]
    $region49: #{reverser_forward.9} parent=1 // pred_fallthru
      _
    // Predicated region
    $region50: #{reverser_forward.9} parent=1 // pred_check
      _
    $region51: #{reverser_forward.9} parent=1 // pred_check_branch
      %74 = sbr.rel (0) target = $region53
    $region52: #{reverser_forward.9} parent=1 // pred_region
      _
    $region53: #{reverser_forward.9} parent=1 // pred_fallthru
      _
    // Predicated region
    $region54: #{reverser_forward.9} parent=1 // pred_check
      _
    $region55: #{reverser_forward.9} parent=1 // pred_check_branch
      %76 = sbr.rel (0) target = $region57
    $region56: #{reverser_forward.9} parent=1 // pred_region
      _
    $region57: #{reverser_forward.9} parent=1 // pred_fallthru
      _
    // Predicated region
    $region58: #{reverser_forward.9} parent=1 // pred_check
      _
    $region59: #{reverser_forward.9} parent=1 // pred_check_branch
      %78 = sbr.rel (0) target = $region61
    $region60: #{reverser_forward.9} parent=1 // pred_region
      _
    $region61: #{reverser_forward.9} parent=1 // pred_fallthru
      _
    // Predicated region
    $region62: #{reverser_forward.9} parent=1 // pred_check
      _
    $region63: #{reverser_forward.9} parent=1 // pred_check_branch
      %80 = sbr.rel (0) target = $region65
    $region64: #{reverser_forward.9} parent=1 // pred_region
      %s82 = ssub.s32 32, 32
      %83 = vsyncadd [#allocation9], %s82
      %s85 = sshll.u32 [#allocation8], 4
      %s86 = int_to_ptr.vmem [resolvable:$true] %s85
      %88 = dma.hbm_to_vmem [thread:$0]  %s15, 32, %s86, [#allocation9]
    $region65: #{reverser_forward.9} parent=1 // pred_fallthru
      _
    // Predicated region
    $region66: #{reverser_forward.9} parent=1 // pred_check
      _
    $region67: #{reverser_forward.9} parent=1 // pred_check_branch
      %90 = sbr.rel (0) target = $region69
    $region68: #{reverser_forward.9} parent=1 // pred_region
      %91 = dma.done [#allocation3], 32
    $region69: #{reverser_forward.9} parent=1 // pred_fallthru
      _
    // Predicated region
    $region70: #{reverser_forward.9} parent=1 // pred_check
      _
    $region71: #{reverser_forward.9} parent=1 // pred_check_branch
      %93 = sbr.rel (0) target = $region73
    $region72: #{reverser_forward.9} parent=1 // pred_region
      %94 = dma.done [#allocation6], 64
    $region73: #{reverser_forward.9} parent=1 // pred_fallthru
      _
    // Predicated region
    $region74: #{reverser_forward.9} parent=1 // pred_check
      _
    $region75: #{reverser_forward.9} parent=1 // pred_check_branch
      %96 = sbr.rel (0) target = $region77
    $region76: #{reverser_forward.9} parent=1 // pred_region
      %97 = dma.done [#allocation6], 32
    $region77: #{reverser_forward.9} parent=1 // pred_fallthru
      _
    // Predicated region
    $region78: #{reverser_forward.9} parent=1 // pred_check
      _
    $region79: #{reverser_forward.9} parent=1 // pred_check_branch
      %99 = sbr.rel (0) target = $region81
    $region80: #{reverser_forward.9} parent=1 // pred_region
      %100 = dma.done [#allocation9], 32
    $region81: #{reverser_forward.9} parent=1 // pred_fallthru
      _
    %v102 = vld [vmem:[%s0] sm:$0xff]
    %v103 = vld [vmem:[%s0 + $0x8] sm:$0xff]
    %v104 = vld [vmem:[%s0 + $0x10] sm:$0xff]
    %v105 = vld [vmem:[%s0 + $0x18] sm:$0xff]
    %v106 = vld [vmem:[%s0 + $0x20] sm:$0xf]
    %v107 = vpack.c.bf16 %v103, %v102
    %v108 = vpack.c.bf16 %v105, %v104
    %v109 = vpack.c.bf16 %v106, %v106
    %v110 = vld [vmem:[%s1] sm:$0xff]
    %v111 = vld [vmem:[%s1 + $0x8] sm:$0xff]
    %v112 = vld [vmem:[%s1 + $0x10] sm:$0xff]
    %v113 = vld [vmem:[%s1 + $0x18] sm:$0xff]
    %v114 = vld [vmem:[%s1 + $0x20] sm:$0xf]
    %v115 = vpack.c.bf16 %v111, %v110
    %v116 = vpack.c.bf16 %v113, %v112
    %v117 = vpack.c.bf16 %v114, %v114
    %v118 = vld [vmem:[%s2] sm:$0xff]
    %v119 = vld [vmem:[%s2 + $0x8] sm:$0xff]
    %v120 = vld [vmem:[%s2 + $0x10] sm:$0xff]
    %v121 = vld [vmem:[%s2 + $0x18] sm:$0xff]
    %v122 = vld [vmem:[%s2 + $0x20] sm:$0xf]
    %v123 = vpack.c.bf16 %v119, %v118
    %v124 = vpack.c.bf16 %v121, %v120
    %v125 = vpack.c.bf16 %v122, %v122
    %v126 = vld [vmem:[%s6] sm:$0xff]
    %v127 = vld [vmem:[%s6 + $0x8] sm:$0xff]
    %v128 = vld [vmem:[%s6 + $0x10] sm:$0xff]
    %v129 = vld [vmem:[%s6 + $0x18] sm:$0xff]
    %v130 = vld [vmem:[%s6 + $0x20] sm:$0xff]
    %v131 = vld [vmem:[%s6 + $0x28] sm:$0xff]
    %v132 = vld [vmem:[%s6 + $0x30] sm:$0xff]
    %v133 = vld [vmem:[%s6 + $0x38] sm:$0xff]
    %v134 = vld [vmem:[%s6 + $0x40] sm:$0xff]
    %v135 = vld [vmem:[%s6 + $0x48] sm:$0xff]
    %v136 = vld [vmem:[%s6 + $0x50] sm:$0xff]
    %v137 = vld [vmem:[%s6 + $0x58] sm:$0xff]
    %v138 = vld [vmem:[%s6 + $0x60] sm:$0xff]
    %v139 = vld [vmem:[%s6 + $0x68] sm:$0xff]
    %v140 = vld [vmem:[%s6 + $0x70] sm:$0xff]
    %v141 = vld [vmem:[%s6 + $0x78] sm:$0xff]
    %v150 = vunpack.c.l.b16 %v134
    %v151 = vunpack.c.h.b16 %v134
    %v152 = vunpack.c.l.b16 %v135
    %v153 = vunpack.c.h.b16 %v135
    %v154 = vunpack.c.l.b16 %v136
    %v155 = vunpack.c.h.b16 %v136
    %v156 = vunpack.c.l.b16 %v137
    %v157 = vunpack.c.h.b16 %v137
    %v158 = vunpack.c.l.b16 %v138
    %v159 = vunpack.c.h.b16 %v138
    %v160 = vunpack.c.l.b16 %v139
    %v161 = vunpack.c.h.b16 %v139
    %v162 = vunpack.c.l.b16 %v140
    %v163 = vunpack.c.h.b16 %v140
    %v164 = vunpack.c.l.b16 %v141
    %v165 = vunpack.c.h.b16 %v141
    %v166 = vpack.c.b16 %v152, %v150
    %v167 = vpack.c.b16 %v153, %v151
    %v168 = vpack.c.b16 %v156, %v154
    %v169 = vpack.c.b16 %v157, %v155
    %v170 = vpack.c.b16 %v160, %v158
    %v171 = vpack.c.b16 %v161, %v159
    %v172 = vpack.c.b16 %v164, %v162
    %v173 = vpack.c.b16 %v165, %v163
    %vm182 = vcmask 523264
    %v184 = vsel %vm182, %v115, 0
    %v187 = vsel %vm182, %v116, 0
    %v190 = vsel %vm182, %v117, 0
    %192 = vmatprep.subr.bf16.mxu0 0
    %193 = vmatpush1.bf16.msra.mxu0 0
    %194 = vmatprep.subr.bf16.mxu0 0
    %195 = vmatpush1.bf16.msra.mxu0 0
    %196 = vmatprep.subr.bf16.mxu0 0
    %197 = vmatpush1.bf16.msra.mxu0 0
    %198 = vmatprep.subr.bf16.mxu0 0
    %199 = vmatpush1.bf16.msra.mxu0 0
    %200 = vmatprep.subr.bf16.mxu0 %v173
    %201 = vmatpush1.bf16.msra.mxu0 %v172
    %202 = vmatprep.subr.bf16.mxu0 %v171
    %203 = vmatpush1.bf16.msra.mxu0 %v170
    %204 = vmatprep.subr.bf16.mxu0 %v169
    %205 = vmatpush1.bf16.msra.mxu0 %v168
    %206 = vmatprep.subr.bf16.mxu0 %v167
    %207 = vmatpush1.bf16.msra.mxu0 %v166
    %208 = vmatprep.subr.bf16.mxu0 0
    %209 = vmatpush2.bf16.msra.mxu0 0
    %210 = vmatprep.subr.bf16.mxu0 0
    %211 = vmatpush2.bf16.msra.mxu0 0
    %212 = vmatprep.subr.bf16.mxu0 0
    %213 = vmatpush2.bf16.msra.mxu0 0
    %214 = vmatprep.subr.bf16.mxu0 0
    %215 = vmatpush2.bf16.msra.mxu0 0
    %216 = vmatprep.subr.bf16.mxu0 0
    %217 = vmatpush2.bf16.msra.mxu0 0
    %218 = vmatprep.subr.bf16.mxu0 0
    %219 = vmatpush2.bf16.msra.mxu0 0
    %220 = vmatprep.subr.bf16.mxu0 0
    %221 = vmatpush2.bf16.msra.mxu0 0
    %222 = vmatprep.subr.bf16.mxu0 0
    %223 = vmatpush2.bf16.msra.mxu0 0
    %224 = vmatprep.mubr.bf16.mxu0 0
    %225 = vmatmul.mubr.bf16.gmra.mxu0 %v184
    %v226 = vpop.f32.mrf.mxu0
    %v227 = vadd.f32 0.0, %v226
    %v228 = vpop.f32.mrf.mxu0
    %v229 = vadd.f32 0.0, %v228
    %v230 = vpop.f32.mrf.mxu0
    %v231 = vadd.f32 0.0, %v230
    %v232 = vpop.f32.mrf.mxu0
    %v233 = vadd.f32 0.0, %v232
    %234 = vmatprep.mubr.bf16.mxu0 0
    %235 = vmatmul.mubr.bf16.gmra.mxu0 %v187
    %v236 = vpop.f32.mrf.mxu0
    %v237 = vadd.f32 0.0, %v236
    %v238 = vpop.f32.mrf.mxu0
    %v239 = vadd.f32 0.0, %v238
    %v240 = vpop.f32.mrf.mxu0
    %v241 = vadd.f32 0.0, %v240
    %v242 = vpop.f32.mrf.mxu0
    %v243 = vadd.f32 0.0, %v242
    %244 = vmatprep.mubr.bf16.mxu0 0
    %245 = vmatmul.mubr.bf16.gmra.mxu0 %v190
    %v246 = vpop.f32.mrf.mxu0
    %v247 = vadd.f32 0.0, %v246
    %v248 = vpop.f32.mrf.mxu0
    %v249 = vadd.f32 0.0, %v248
    %v250 = vpop.f32.mrf.mxu0
    %v251 = vpop.f32.mrf.mxu0
    %252 = vdwg.mxu0
    %v261 = vunpack.c.l.b16 %v126
    %v262 = vunpack.c.h.b16 %v126
    %v263 = vunpack.c.l.b16 %v127
    %v264 = vunpack.c.h.b16 %v127
    %v265 = vunpack.c.l.b16 %v128
    %v266 = vunpack.c.h.b16 %v128
    %v267 = vunpack.c.l.b16 %v129
    %v268 = vunpack.c.h.b16 %v129
    %v269 = vunpack.c.l.b16 %v130
    %v270 = vunpack.c.h.b16 %v130
    %v271 = vunpack.c.l.b16 %v131
    %v272 = vunpack.c.h.b16 %v131
    %v273 = vunpack.c.l.b16 %v132
    %v274 = vunpack.c.h.b16 %v132
    %v275 = vunpack.c.l.b16 %v133
    %v276 = vunpack.c.h.b16 %v133
    %v277 = vpack.c.b16 %v263, %v261
    %v278 = vpack.c.b16 %v264, %v262
    %v279 = vpack.c.b16 %v267, %v265
    %v280 = vpack.c.b16 %v268, %v266
    %v281 = vpack.c.b16 %v271, %v269
    %v282 = vpack.c.b16 %v272, %v270
    %v283 = vpack.c.b16 %v275, %v273
    %v284 = vpack.c.b16 %v276, %v274
    %v294 = vsel %vm182, %v107, 0
    %v297 = vsel %vm182, %v108, 0
    %v300 = vsel %vm182, %v109, 0
    %302 = vmatprep.subr.bf16.mxu0 0
    %303 = vmatpush1.bf16.msra.mxu0 0
    %304 = vmatprep.subr.bf16.mxu0 0
    %305 = vmatpush1.bf16.msra.mxu0 0
    %306 = vmatprep.subr.bf16.mxu0 0
    %307 = vmatpush1.bf16.msra.mxu0 0
    %308 = vmatprep.subr.bf16.mxu0 0
    %309 = vmatpush1.bf16.msra.mxu0 0
    %310 = vmatprep.subr.bf16.mxu0 %v284
    %311 = vmatpush1.bf16.msra.mxu0 %v283
    %312 = vmatprep.subr.bf16.mxu0 %v282
    %313 = vmatpush1.bf16.msra.mxu0 %v281
    %314 = vmatprep.subr.bf16.mxu0 %v280
    %315 = vmatpush1.bf16.msra.mxu0 %v279
    %316 = vmatprep.subr.bf16.mxu0 %v278
    %317 = vmatpush1.bf16.msra.mxu0 %v277
    %318 = vmatprep.subr.bf16.mxu0 0
    %319 = vmatpush2.bf16.msra.mxu0 0
    %320 = vmatprep.subr.bf16.mxu0 0
    %321 = vmatpush2.bf16.msra.mxu0 0
    %322 = vmatprep.subr.bf16.mxu0 0
    %323 = vmatpush2.bf16.msra.mxu0 0
    %324 = vmatprep.subr.bf16.mxu0 0
    %325 = vmatpush2.bf16.msra.mxu0 0
    %326 = vmatprep.subr.bf16.mxu0 0
    %327 = vmatpush2.bf16.msra.mxu0 0
    %328 = vmatprep.subr.bf16.mxu0 0
    %329 = vmatpush2.bf16.msra.mxu0 0
    %330 = vmatprep.subr.bf16.mxu0 0
    %331 = vmatpush2.bf16.msra.mxu0 0
    %332 = vmatprep.subr.bf16.mxu0 0
    %333 = vmatpush2.bf16.msra.mxu0 0
    %334 = vmatprep.mubr.bf16.mxu0 0
    %335 = vmatmul.mubr.bf16.gmra.mxu0 %v294
    %v336 = vpop.f32.mrf.mxu0
    %v337 = vadd.f32 %v227, %v336
    %v338 = vpop.f32.mrf.mxu0
    %v339 = vadd.f32 %v229, %v338
    %v340 = vpop.f32.mrf.mxu0
    %v341 = vadd.f32 %v231, %v340
    %v342 = vpop.f32.mrf.mxu0
    %v343 = vadd.f32 %v233, %v342
    %344 = vmatprep.mubr.bf16.mxu0 0
    %345 = vmatmul.mubr.bf16.gmra.mxu0 %v297
    %v346 = vpop.f32.mrf.mxu0
    %v347 = vadd.f32 %v237, %v346
    %v348 = vpop.f32.mrf.mxu0
    %v349 = vadd.f32 %v239, %v348
    %v350 = vpop.f32.mrf.mxu0
    %v351 = vadd.f32 %v241, %v350
    %v352 = vpop.f32.mrf.mxu0
    %v353 = vadd.f32 %v243, %v352
    %354 = vmatprep.mubr.bf16.mxu0 0
    %355 = vmatmul.mubr.bf16.gmra.mxu0 %v300
    %v356 = vpop.f32.mrf.mxu0
    %v357 = vadd.f32 %v247, %v356
    %v358 = vpop.f32.mrf.mxu0
    %v359 = vadd.f32 %v249, %v358
    %v360 = vpop.f32.mrf.mxu0
    %v361 = vpop.f32.mrf.mxu0
    %362 = vdwg.mxu0
    %v363 = vld [vmem:[%s6 + $0x80] sm:$0xff]
    %v364 = vld [vmem:[%s6 + $0x88] sm:$0xff]
    %v365 = vld [vmem:[%s6 + $0x90] sm:$0xff]
    %v366 = vld [vmem:[%s6 + $0x98] sm:$0xff]
    %v367 = vld [vmem:[%s6 + $0xa0] sm:$0xff]
    %v368 = vld [vmem:[%s6 + $0xa8] sm:$0xff]
    %v369 = vld [vmem:[%s6 + $0xb0] sm:$0xff]
    %v370 = vld [vmem:[%s6 + $0xb8] sm:$0xff]
    %v379 = vunpack.c.l.b16 %v363
    %v380 = vunpack.c.h.b16 %v363
    %v381 = vunpack.c.l.b16 %v364
    %v382 = vunpack.c.h.b16 %v364
    %v383 = vunpack.c.l.b16 %v365
    %v384 = vunpack.c.h.b16 %v365
    %v385 = vunpack.c.l.b16 %v366
    %v386 = vunpack.c.h.b16 %v366
    %v387 = vunpack.c.l.b16 %v367
    %v388 = vunpack.c.h.b16 %v367
    %v389 = vunpack.c.l.b16 %v368
    %v390 = vunpack.c.h.b16 %v368
    %v391 = vunpack.c.l.b16 %v369
    %v392 = vunpack.c.h.b16 %v369
    %v393 = vunpack.c.l.b16 %v370
    %v394 = vunpack.c.h.b16 %v370
    %v395 = vpack.c.b16 %v381, %v379
    %v396 = vpack.c.b16 %v382, %v380
    %v397 = vpack.c.b16 %v385, %v383
    %v398 = vpack.c.b16 %v386, %v384
    %v399 = vpack.c.b16 %v389, %v387
    %v400 = vpack.c.b16 %v390, %v388
    %v401 = vpack.c.b16 %v393, %v391
    %v402 = vpack.c.b16 %v394, %v392
    %v412 = vsel %vm182, %v123, 0
    %v415 = vsel %vm182, %v124, 0
    %v418 = vsel %vm182, %v125, 0
    %420 = vmatprep.subr.bf16.mxu0 0
    %421 = vmatpush1.bf16.msra.mxu0 0
    %422 = vmatprep.subr.bf16.mxu0 0
    %423 = vmatpush1.bf16.msra.mxu0 0
    %424 = vmatprep.subr.bf16.mxu0 0
    %425 = vmatpush1.bf16.msra.mxu0 0
    %426 = vmatprep.subr.bf16.mxu0 0
    %427 = vmatpush1.bf16.msra.mxu0 0
    %428 = vmatprep.subr.bf16.mxu0 %v402
    %429 = vmatpush1.bf16.msra.mxu0 %v401
    %430 = vmatprep.subr.bf16.mxu0 %v400
    %431 = vmatpush1.bf16.msra.mxu0 %v399
    %432 = vmatprep.subr.bf16.mxu0 %v398
    %433 = vmatpush1.bf16.msra.mxu0 %v397
    %434 = vmatprep.subr.bf16.mxu0 %v396
    %435 = vmatpush1.bf16.msra.mxu0 %v395
    %436 = vmatprep.subr.bf16.mxu0 0
    %437 = vmatpush2.bf16.msra.mxu0 0
    %438 = vmatprep.subr.bf16.mxu0 0
    %439 = vmatpush2.bf16.msra.mxu0 0
    %440 = vmatprep.subr.bf16.mxu0 0
    %441 = vmatpush2.bf16.msra.mxu0 0
    %442 = vmatprep.subr.bf16.mxu0 0
    %443 = vmatpush2.bf16.msra.mxu0 0
    %444 = vmatprep.subr.bf16.mxu0 0
    %445 = vmatpush2.bf16.msra.mxu0 0
    %446 = vmatprep.subr.bf16.mxu0 0
    %447 = vmatpush2.bf16.msra.mxu0 0
    %448 = vmatprep.subr.bf16.mxu0 0
    %449 = vmatpush2.bf16.msra.mxu0 0
    %450 = vmatprep.subr.bf16.mxu0 0
    %451 = vmatpush2.bf16.msra.mxu0 0
    %452 = vmatprep.mubr.bf16.mxu0 0
    %453 = vmatmul.mubr.bf16.gmra.mxu0 %v412
    %v454 = vpop.f32.mrf.mxu0
    %v455 = vadd.f32 0.0, %v454
    %v456 = vpop.f32.mrf.mxu0
    %v457 = vadd.f32 0.0, %v456
    %v458 = vpop.f32.mrf.mxu0
    %v459 = vadd.f32 0.0, %v458
    %v460 = vpop.f32.mrf.mxu0
    %v461 = vadd.f32 0.0, %v460
    %462 = vmatprep.mubr.bf16.mxu0 0
    %463 = vmatmul.mubr.bf16.gmra.mxu0 %v415
    %v464 = vpop.f32.mrf.mxu0
    %v465 = vadd.f32 0.0, %v464
    %v466 = vpop.f32.mrf.mxu0
    %v467 = vadd.f32 0.0, %v466
    %v468 = vpop.f32.mrf.mxu0
    %v469 = vadd.f32 0.0, %v468
    %v470 = vpop.f32.mrf.mxu0
    %v471 = vadd.f32 0.0, %v470
    %472 = vmatprep.mubr.bf16.mxu0 0
    %473 = vmatmul.mubr.bf16.gmra.mxu0 %v418
    %v474 = vpop.f32.mrf.mxu0
    %v475 = vadd.f32 0.0, %v474
    %v476 = vpop.f32.mrf.mxu0
    %v477 = vadd.f32 0.0, %v476
    %v478 = vpop.f32.mrf.mxu0
    %v479 = vpop.f32.mrf.mxu0
    %480 = vdwg.mxu0
    %v481 = vadd.f32 %v337, %v455
    %v482 = vadd.f32 %v339, %v457
    %v483 = vadd.f32 %v341, %v459
    %v484 = vadd.f32 %v343, %v461
    %v485 = vadd.f32 %v347, %v465
    %v486 = vadd.f32 %v349, %v467
    %v487 = vadd.f32 %v351, %v469
    %v488 = vadd.f32 %v353, %v471
    %v489 = vadd.f32 %v357, %v475
    %v490 = vadd.f32 %v359, %v477
    %v491 = vld [vmem:[%s7] sm:$0x77]
    %v493 = vlaneseq
    %v494 = vshrl.u32 %v493, 7
    %v495 = vsub.s32 0, %v494
    %v496 = vrot.slane %v491, %v495
    %v497 = vlaneseq
    %v498 = vshrl.u32 %v497, 7
    %v499 = vsub.s32 4, %v498
    %v500 = vrot.slane %v491, %v499
    %v503 = vlaneseq
    %v504 = vshrl.u32 %v503, 7
    %v505 = vsub.s32 0, %v504
    %v506 = vrot.slane %v496, %v505
    %v507 = vlaneseq
    %v508 = vshrl.u32 %v507, 7
    %v509 = vsub.s32 0, %v508
    %v510 = vrot.slane %v500, %v509
    %v511 = vadd.f32 %v481, %v506
    %v512 = vadd.f32 %v482, %v510
    %v513 = vadd.f32 %v483, %v506
    %v514 = vadd.f32 %v484, %v510
    %v515 = vadd.f32 %v485, %v506
    %v516 = vadd.f32 %v486, %v510
    %v517 = vadd.f32 %v487, %v506
    %v518 = vadd.f32 %v488, %v510
    %v519 = vadd.f32 %v489, %v506
    %v520 = vadd.f32 %v490, %v510
    %v521 = vmax.f32 %v511, 0.0
    %v522 = vmax.f32 %v512, 0.0
    %v523 = vmax.f32 %v513, 0.0
    %v524 = vmax.f32 %v514, 0.0
    %v525 = vmax.f32 %v515, 0.0
    %v526 = vmax.f32 %v516, 0.0
    %v527 = vmax.f32 %v517, 0.0
    %v528 = vmax.f32 %v518, 0.0
    %v529 = vmax.f32 %v519, 0.0
    %v530 = vmax.f32 %v520, 0.0
    %v531 = vlaneseq
    %v532 = vshrl.u32 %v531, 7
    %v533 = vsub.s32 1, %v532
    %v534 = vrot.slane %v491, %v533
    %v535 = vlaneseq
    %v536 = vshrl.u32 %v535, 7
    %v537 = vsub.s32 5, %v536
    %v538 = vrot.slane %v491, %v537
    %v541 = vlaneseq
    %v542 = vshrl.u32 %v541, 7
    %v543 = vsub.s32 1, %v542
    %v544 = vrot.slane %v534, %v543
    %v545 = vlaneseq
    %v546 = vshrl.u32 %v545, 7
    %v547 = vsub.s32 1, %v546
    %v548 = vrot.slane %v538, %v547
    %v549 = vmul.f32 %v521, %v544
    %v550 = vmul.f32 %v522, %v548
    %v551 = vmul.f32 %v523, %v544
    %v552 = vmul.f32 %v524, %v548
    %v553 = vmul.f32 %v525, %v544
    %v554 = vmul.f32 %v526, %v548
    %v555 = vmul.f32 %v527, %v544
    %v556 = vmul.f32 %v528, %v548
    %v557 = vmul.f32 %v529, %v544
    %v558 = vmul.f32 %v530, %v548
    %v559 = vlaneseq
    %v560 = vshrl.u32 %v559, 7
    %v561 = vsub.s32 2, %v560
    %v562 = vrot.slane %v491, %v561
    %v563 = vlaneseq
    %v564 = vshrl.u32 %v563, 7
    %v565 = vsub.s32 6, %v564
    %v566 = vrot.slane %v491, %v565
    %v569 = vlaneseq
    %v570 = vshrl.u32 %v569, 7
    %v571 = vsub.s32 2, %v570
    %v572 = vrot.slane %v562, %v571
    %v573 = vlaneseq
    %v574 = vshrl.u32 %v573, 7
    %v575 = vsub.s32 2, %v574
    %v576 = vrot.slane %v566, %v575
    %v577 = vadd.f32 %v549, %v572
    %v578 = vadd.f32 %v550, %v576
    %v579 = vadd.f32 %v551, %v572
    %v580 = vadd.f32 %v552, %v576
    %v581 = vadd.f32 %v553, %v572
    %v582 = vadd.f32 %v554, %v576
    %v583 = vadd.f32 %v555, %v572
    %v584 = vadd.f32 %v556, %v576
    %v585 = vadd.f32 %v557, %v572
    %v586 = vadd.f32 %v558, %v576
    %v587 = vld [vmem:[%s3] sm:$0xff]
    %v588 = vld [vmem:[%s3 + $0x8] sm:$0xff]
    %v589 = vld [vmem:[%s3 + $0x10] sm:$0xff]
    %v590 = vld [vmem:[%s3 + $0x18] sm:$0xff]
    %v591 = vld [vmem:[%s3 + $0x20] sm:$0xf]
    %vm592 = vcmask 293888
    %v594 = vsel %vm592, %v587, 0
    %v597 = vsel %vm592, %v588, 0
    %v600 = vsel %vm592, %v589, 0
    %v603 = vsel %vm592, %v590, 0
    %v606 = vsel %vm592, %v591, 0
    %vm608 = vcmask 1043456
    %v610 = vsel %vm608, %v585, 0
    %v613 = vsel %vm608, %v586, 0
    %615 = vmatprep.subr.mxu0 0.0
    %616 = vmatpush1.msra.mxu0 0.0
    %617 = vmatprep.subr.mxu0 0.0
    %618 = vmatpush1.msra.mxu0 0.0
    %619 = vmatprep.subr.mxu0 0.0
    %620 = vmatpush1.msra.mxu0 0.0
    %621 = vmatprep.subr.mxu0 0.0
    %622 = vmatpush1.msra.mxu0 0.0
    %623 = vmatprep.subr.mxu0 0.0
    %624 = vmatpush1.msra.mxu0 0.0
    %625 = vmatprep.subr.mxu0 0.0
    %626 = vmatpush1.msra.mxu0 0.0
    %627 = vmatprep.subr.mxu0 0.0
    %628 = vmatpush1.msra.mxu0 0.0
    %629 = vmatprep.subr.mxu0 0.0
    %630 = vmatpush1.msra.mxu0 0.0
    %631 = vmatprep.subr.mxu0 0.0
    %632 = vmatpush1.msra.mxu0 0.0
    %633 = vmatprep.subr.mxu0 0.0
    %634 = vmatpush1.msra.mxu0 0.0
    %635 = vmatprep.subr.mxu0 0.0
    %636 = vmatpush1.msra.mxu0 0.0
    %637 = vmatprep.subr.mxu0 %v613
    %638 = vmatpush1.msra.mxu0 %v610
    %639 = vmatprep.subr.mxu0 %v584
    %640 = vmatpush1.msra.mxu0 %v583
    %641 = vmatprep.subr.mxu0 %v582
    %642 = vmatpush1.msra.mxu0 %v581
    %643 = vmatprep.subr.mxu0 %v580
    %644 = vmatpush1.msra.mxu0 %v579
    %645 = vmatprep.subr.mxu0 %v578
    %646 = vmatpush1.msra.mxu0 %v577
    %647 = vmatprep.subr.mxu0 0.0
    %648 = vmatpush2.msra.mxu0 0.0
    %649 = vmatprep.subr.mxu0 0.0
    %650 = vmatpush2.msra.mxu0 0.0
    %651 = vmatprep.subr.mxu0 0.0
    %652 = vmatpush2.msra.mxu0 0.0
    %653 = vmatprep.subr.mxu0 0.0
    %654 = vmatpush2.msra.mxu0 0.0
    %655 = vmatprep.subr.mxu0 0.0
    %656 = vmatpush2.msra.mxu0 0.0
    %657 = vmatprep.subr.mxu0 0.0
    %658 = vmatpush2.msra.mxu0 0.0
    %659 = vmatprep.subr.mxu0 0.0
    %660 = vmatpush2.msra.mxu0 0.0
    %661 = vmatprep.subr.mxu0 0.0
    %662 = vmatpush2.msra.mxu0 0.0
    %663 = vmatprep.subr.mxu0 0.0
    %664 = vmatpush2.msra.mxu0 0.0
    %665 = vmatprep.subr.mxu0 0.0
    %666 = vmatpush2.msra.mxu0 0.0
    %667 = vmatprep.subr.mxu0 0.0
    %668 = vmatpush2.msra.mxu0 0.0
    %669 = vmatprep.subr.mxu0 0.0
    %670 = vmatpush2.msra.mxu0 0.0
    %671 = vmatprep.subr.mxu0 0.0
    %672 = vmatpush2.msra.mxu0 0.0
    %673 = vmatprep.subr.mxu0 0.0
    %674 = vmatpush2.msra.mxu0 0.0
    %675 = vmatprep.subr.mxu0 0.0
    %676 = vmatpush2.msra.mxu0 0.0
    %677 = vmatprep.subr.mxu0 0.0
    %678 = vmatpush2.msra.mxu0 0.0
    %679 = vmatprep.mubr.f32.mxu0 0.0
    %680 = vmatmul.mubr.f32.gmra.mxu0 %v594
    %v681 = vpop.f32.mrf.mxu0
    %v682 = vadd.f32 0.0, %v681
    %v683 = vpop.f32.mrf.mxu0
    %v684 = vadd.f32 0.0, %v683
    %685 = vmatprep.mubr.f32.mxu0 0.0
    %686 = vmatmul.mubr.f32.gmra.mxu0 %v597
    %v687 = vpop.f32.mrf.mxu0
    %v688 = vadd.f32 0.0, %v687
    %v689 = vpop.f32.mrf.mxu0
    %v690 = vadd.f32 0.0, %v689
    %691 = vmatprep.mubr.f32.mxu0 0.0
    %692 = vmatmul.mubr.f32.gmra.mxu0 %v600
    %v693 = vpop.f32.mrf.mxu0
    %v694 = vadd.f32 0.0, %v693
    %v695 = vpop.f32.mrf.mxu0
    %v696 = vadd.f32 0.0, %v695
    %697 = vmatprep.mubr.f32.mxu0 0.0
    %698 = vmatmul.mubr.f32.gmra.mxu0 %v603
    %v699 = vpop.f32.mrf.mxu0
    %v700 = vadd.f32 0.0, %v699
    %v701 = vpop.f32.mrf.mxu0
    %v702 = vadd.f32 0.0, %v701
    %703 = vmatprep.mubr.f32.mxu0 0.0
    %704 = vmatmul.mubr.f32.gmra.mxu0 %v606
    %v705 = vpop.f32.mrf.mxu0
    %v706 = vadd.f32 0.0, %v705
    %v707 = vpop.f32.mrf.mxu0
    %v708 = vadd.f32 0.0, %v707
    %709 = vdwg.mxu0
    %v710 = vsub.f32 %v577, %v682
    %v711 = vsub.f32 %v578, %v684
    %v712 = vsub.f32 %v579, %v688
    %v713 = vsub.f32 %v580, %v690
    %v714 = vsub.f32 %v581, %v694
    %v715 = vsub.f32 %v582, %v696
    %v716 = vsub.f32 %v583, %v700
    %v717 = vsub.f32 %v584, %v702
    %v718 = vsub.f32 %v585, %v706
    %v719 = vsub.f32 %v586, %v708
    %v720 = vmul.f32 %v710, %v710
    %v721 = vmul.f32 %v711, %v711
    %v722 = vmul.f32 %v712, %v712
    %v723 = vmul.f32 %v713, %v713
    %v724 = vmul.f32 %v714, %v714
    %v725 = vmul.f32 %v715, %v715
    %v726 = vmul.f32 %v716, %v716
    %v727 = vmul.f32 %v717, %v717
    %v728 = vmul.f32 %v718, %v718
    %v729 = vmul.f32 %v719, %v719
    %v731 = vsel %vm608, %v728, 0
    %v734 = vsel %vm608, %v729, 0
    %736 = vmatprep.subr.mxu0 0.0
    %737 = vmatpush1.msra.mxu0 0.0
    %738 = vmatprep.subr.mxu0 0.0
    %739 = vmatpush1.msra.mxu0 0.0
    %740 = vmatprep.subr.mxu0 0.0
    %741 = vmatpush1.msra.mxu0 0.0
    %742 = vmatprep.subr.mxu0 0.0
    %743 = vmatpush1.msra.mxu0 0.0
    %744 = vmatprep.subr.mxu0 0.0
    %745 = vmatpush1.msra.mxu0 0.0
    %746 = vmatprep.subr.mxu0 0.0
    %747 = vmatpush1.msra.mxu0 0.0
    %748 = vmatprep.subr.mxu0 0.0
    %749 = vmatpush1.msra.mxu0 0.0
    %750 = vmatprep.subr.mxu0 0.0
    %751 = vmatpush1.msra.mxu0 0.0
    %752 = vmatprep.subr.mxu0 0.0
    %753 = vmatpush1.msra.mxu0 0.0
    %754 = vmatprep.subr.mxu0 0.0
    %755 = vmatpush1.msra.mxu0 0.0
    %756 = vmatprep.subr.mxu0 0.0
    %757 = vmatpush1.msra.mxu0 0.0
    %758 = vmatprep.subr.mxu0 %v734
    %759 = vmatpush1.msra.mxu0 %v731
    %760 = vmatprep.subr.mxu0 %v727
    %761 = vmatpush1.msra.mxu0 %v726
    %762 = vmatprep.subr.mxu0 %v725
    %763 = vmatpush1.msra.mxu0 %v724
    %764 = vmatprep.subr.mxu0 %v723
    %765 = vmatpush1.msra.mxu0 %v722
    %766 = vmatprep.subr.mxu0 %v721
    %767 = vmatpush1.msra.mxu0 %v720
    %768 = vmatprep.subr.mxu0 0.0
    %769 = vmatpush2.msra.mxu0 0.0
    %770 = vmatprep.subr.mxu0 0.0
    %771 = vmatpush2.msra.mxu0 0.0
    %772 = vmatprep.subr.mxu0 0.0
    %773 = vmatpush2.msra.mxu0 0.0
    %774 = vmatprep.subr.mxu0 0.0
    %775 = vmatpush2.msra.mxu0 0.0
    %776 = vmatprep.subr.mxu0 0.0
    %777 = vmatpush2.msra.mxu0 0.0
    %778 = vmatprep.subr.mxu0 0.0
    %779 = vmatpush2.msra.mxu0 0.0
    %780 = vmatprep.subr.mxu0 0.0
    %781 = vmatpush2.msra.mxu0 0.0
    %782 = vmatprep.subr.mxu0 0.0
    %783 = vmatpush2.msra.mxu0 0.0
    %784 = vmatprep.subr.mxu0 0.0
    %785 = vmatpush2.msra.mxu0 0.0
    %786 = vmatprep.subr.mxu0 0.0
    %787 = vmatpush2.msra.mxu0 0.0
    %788 = vmatprep.subr.mxu0 0.0
    %789 = vmatpush2.msra.mxu0 0.0
    %790 = vmatprep.subr.mxu0 0.0
    %791 = vmatpush2.msra.mxu0 0.0
    %792 = vmatprep.subr.mxu0 0.0
    %793 = vmatpush2.msra.mxu0 0.0
    %794 = vmatprep.subr.mxu0 0.0
    %795 = vmatpush2.msra.mxu0 0.0
    %796 = vmatprep.subr.mxu0 0.0
    %797 = vmatpush2.msra.mxu0 0.0
    %798 = vmatprep.subr.mxu0 0.0
    %799 = vmatpush2.msra.mxu0 0.0
    %800 = vmatprep.mubr.f32.mxu0 0.0
    %801 = vmatmul.mubr.f32.gmra.mxu0 %v594
    %v802 = vpop.f32.mrf.mxu0
    %v803 = vadd.f32 0.0, %v802
    %v804 = vpop.f32.mrf.mxu0
    %v805 = vadd.f32 0.0, %v804
    %806 = vmatprep.mubr.f32.mxu0 0.0
    %807 = vmatmul.mubr.f32.gmra.mxu0 %v597
    %v808 = vpop.f32.mrf.mxu0
    %v809 = vadd.f32 0.0, %v808
    %v810 = vpop.f32.mrf.mxu0
    %v811 = vadd.f32 0.0, %v810
    %812 = vmatprep.mubr.f32.mxu0 0.0
    %813 = vmatmul.mubr.f32.gmra.mxu0 %v600
    %v814 = vpop.f32.mrf.mxu0
    %v815 = vadd.f32 0.0, %v814
    %v816 = vpop.f32.mrf.mxu0
    %v817 = vadd.f32 0.0, %v816
    %818 = vmatprep.mubr.f32.mxu0 0.0
    %819 = vmatmul.mubr.f32.gmra.mxu0 %v603
    %v820 = vpop.f32.mrf.mxu0
    %v821 = vadd.f32 0.0, %v820
    %v822 = vpop.f32.mrf.mxu0
    %v823 = vadd.f32 0.0, %v822
    %824 = vmatprep.mubr.f32.mxu0 0.0
    %825 = vmatmul.mubr.f32.gmra.mxu0 %v606
    %v826 = vpop.f32.mrf.mxu0
    %v827 = vadd.f32 0.0, %v826
    %v828 = vpop.f32.mrf.mxu0
    %v829 = vadd.f32 0.0, %v828
    %830 = vdwg.mxu0
    %v831 = vmax.f32 %v803, 1e-12
    %v832 = vmax.f32 %v805, 1e-12
    %v833 = vmax.f32 %v809, 1e-12
    %v834 = vmax.f32 %v811, 1e-12
    %v835 = vmax.f32 %v815, 1e-12
    %v836 = vmax.f32 %v817, 1e-12
    %v837 = vmax.f32 %v821, 1e-12
    %v838 = vmax.f32 %v823, 1e-12
    %v839 = vmax.f32 %v827, 1e-12
    %v840 = vmax.f32 %v829, 1e-12
    %v841 = vrsqrt.pop %v831
    %v842 = vmul.f32 %v831, %v841
    %vm843 = vcmp.eq.f32.partialorder %v831, inf
    %v844 = vsel %vm843, %v831, %v842
    %vm845 = vcmp.eq.f32.partialorder %v831, 0.0
    %v846 = vand.u32 %v831, 2147483648
    %v847 = vsel %vm845, %v846, %v844
    %v848 = vrsqrt.pop %v832
    %v849 = vmul.f32 %v832, %v848
    %vm850 = vcmp.eq.f32.partialorder %v832, inf
    %v851 = vsel %vm850, %v832, %v849
    %vm852 = vcmp.eq.f32.partialorder %v832, 0.0
    %v853 = vand.u32 %v832, 2147483648
    %v854 = vsel %vm852, %v853, %v851
    %v855 = vrsqrt.pop %v833
    %v856 = vmul.f32 %v833, %v855
    %vm857 = vcmp.eq.f32.partialorder %v833, inf
    %v858 = vsel %vm857, %v833, %v856
    %vm859 = vcmp.eq.f32.partialorder %v833, 0.0
    %v860 = vand.u32 %v833, 2147483648
    %v861 = vsel %vm859, %v860, %v858
    %v862 = vrsqrt.pop %v834
    %v863 = vmul.f32 %v834, %v862
    %vm864 = vcmp.eq.f32.partialorder %v834, inf
    %v865 = vsel %vm864, %v834, %v863
    %vm866 = vcmp.eq.f32.partialorder %v834, 0.0
    %v867 = vand.u32 %v834, 2147483648
    %v868 = vsel %vm866, %v867, %v865
    %v869 = vrsqrt.pop %v835
    %v870 = vmul.f32 %v835, %v869
    %vm871 = vcmp.eq.f32.partialorder %v835, inf
    %v872 = vsel %vm871, %v835, %v870
    %vm873 = vcmp.eq.f32.partialorder %v835, 0.0
    %v874 = vand.u32 %v835, 2147483648
    %v875 = vsel %vm873, %v874, %v872
    %v876 = vrsqrt.pop %v836
    %v877 = vmul.f32 %v836, %v876
    %vm878 = vcmp.eq.f32.partialorder %v836, inf
    %v879 = vsel %vm878, %v836, %v877
    %vm880 = vcmp.eq.f32.partialorder %v836, 0.0
    %v881 = vand.u32 %v836, 2147483648
    %v882 = vsel %vm880, %v881, %v879
    %v883 = vrsqrt.pop %v837
    %v884 = vmul.f32 %v837, %v883
    %vm885 = vcmp.eq.f32.partialorder %v837, inf
    %v886 = vsel %vm885, %v837, %v884
    %vm887 = vcmp.eq.f32.partialorder %v837, 0.0
    %v888 = vand.u32 %v837, 2147483648
    %v889 = vsel %vm887, %v888, %v886
    %v890 = vrsqrt.pop %v838
    %v891 = vmul.f32 %v838, %v890
    %vm892 = vcmp.eq.f32.partialorder %v838, inf
    %v893 = vsel %vm892, %v838, %v891
    %vm894 = vcmp.eq.f32.partialorder %v838, 0.0
    %v895 = vand.u32 %v838, 2147483648
    %v896 = vsel %vm894, %v895, %v893
    %v897 = vrsqrt.pop %v839
    %v898 = vmul.f32 %v839, %v897
    %vm899 = vcmp.eq.f32.partialorder %v839, inf
    %v900 = vsel %vm899, %v839, %v898
    %vm901 = vcmp.eq.f32.partialorder %v839, 0.0
    %v902 = vand.u32 %v839, 2147483648
    %v903 = vsel %vm901, %v902, %v900
    %v904 = vrsqrt.pop %v840
    %v905 = vmul.f32 %v840, %v904
    %vm906 = vcmp.eq.f32.partialorder %v840, inf
    %v907 = vsel %vm906, %v840, %v905
    %vm908 = vcmp.eq.f32.partialorder %v840, 0.0
    %v909 = vand.u32 %v840, 2147483648
    %v910 = vsel %vm908, %v909, %v907
    %v911 = vpack.c.bf16 %v579, %v577
    %v912 = vpack.c.bf16 %v580, %v578
    %v913 = vpack.c.bf16 %v583, %v581
    %v914 = vpack.c.bf16 %v584, %v582
    %v915 = vpack.c.bf16 %v585, %v585
    %v916 = vpack.c.bf16 %v586, %v586
    %v917 = vld [vmem:[%s8] sm:$0xf]
    %v918 = vld [vmem:[%s8 + $0x4] sm:$0xf]
    %v919 = vld [vmem:[%s8 + $0x8] sm:$0xf]
    %v920 = vld [vmem:[%s8 + $0xc] sm:$0xf]
    %v921 = vld [vmem:[%s8 + $0x10] sm:$0xf]
    %v922 = vld [vmem:[%s8 + $0x14] sm:$0xf]
    %v923 = vld [vmem:[%s8 + $0x18] sm:$0xf]
    %v924 = vld [vmem:[%s8 + $0x1c] sm:$0xf]
    %v925 = vld [vmem:[%s8 + $0x20] sm:$0xf]
    %v926 = vld [vmem:[%s8 + $0x24] sm:$0xf]
    %v927 = vld [vmem:[%s8 + $0x28] sm:$0xf]
    %v928 = vld [vmem:[%s8 + $0x2c] sm:$0xf]
    %v929 = vld [vmem:[%s8 + $0x30] sm:$0xf]
    %v930 = vld [vmem:[%s8 + $0x34] sm:$0xf]
    %v931 = vld [vmem:[%s8 + $0x38] sm:$0xf]
    %v932 = vld [vmem:[%s8 + $0x3c] sm:$0xf]
    %v933 = vld [vmem:[%s8 + $0x40] sm:$0xf]
    %v934 = vld [vmem:[%s8 + $0x44] sm:$0xf]
    %v935 = vld [vmem:[%s8 + $0x48] sm:$0xf]
    %v936 = vld [vmem:[%s8 + $0x4c] sm:$0xf]
    %v937 = vld [vmem:[%s8 + $0x50] sm:$0xf]
    %v938 = vld [vmem:[%s8 + $0x54] sm:$0xf]
    %v939 = vld [vmem:[%s8 + $0x58] sm:$0xf]
    %v940 = vld [vmem:[%s8 + $0x5c] sm:$0xf]
    %v941 = vpack.c.bf16 %v688, %v682
    %v942 = vpack.c.bf16 %v690, %v684
    %v943 = vpack.c.bf16 %v700, %v694
    %v944 = vpack.c.bf16 %v702, %v696
    %v945 = vpack.c.bf16 %v706, %v706
    %v946 = vpack.c.bf16 %v708, %v708
    %v947 = vld [vmem:[%s8 + $0x60] sm:$0xf]
    %v948 = vld [vmem:[%s8 + $0x64] sm:$0xf]
    %v949 = vld [vmem:[%s8 + $0x68] sm:$0xf]
    %v950 = vld [vmem:[%s8 + $0x6c] sm:$0xf]
    %v951 = vld [vmem:[%s8 + $0x70] sm:$0xf]
    %v952 = vld [vmem:[%s8 + $0x74] sm:$0xf]
    %v953 = vld [vmem:[%s8 + $0x78] sm:$0xf]
    %v954 = vld [vmem:[%s8 + $0x7c] sm:$0xf]
    %v955 = vld [vmem:[%s8 + $0x80] sm:$0xf]
    %v956 = vld [vmem:[%s8 + $0x84] sm:$0xf]
    %v957 = vld [vmem:[%s8 + $0x88] sm:$0xf]
    %v958 = vld [vmem:[%s8 + $0x8c] sm:$0xf]
    %v959 = vld [vmem:[%s8 + $0x90] sm:$0xf]
    %v960 = vld [vmem:[%s8 + $0x94] sm:$0xf]
    %v961 = vld [vmem:[%s8 + $0x98] sm:$0xf]
    %v962 = vld [vmem:[%s8 + $0x9c] sm:$0xf]
    %v963 = vld [vmem:[%s8 + $0xa0] sm:$0xf]
    %v964 = vld [vmem:[%s8 + $0xa4] sm:$0xf]
    %v965 = vld [vmem:[%s8 + $0xa8] sm:$0xf]
    %v966 = vld [vmem:[%s8 + $0xac] sm:$0xf]
    %v967 = vld [vmem:[%s8 + $0xb0] sm:$0xf]
    %v968 = vld [vmem:[%s8 + $0xb4] sm:$0xf]
    %v969 = vld [vmem:[%s8 + $0xb8] sm:$0xf]
    %v970 = vld [vmem:[%s8 + $0xbc] sm:$0xf]
    %v995 = vunpack.c.l.b16 %v947
    %v996 = vunpack.c.l.b16 %v948
    %v997 = vunpack.c.l.b16 %v949
    %v998 = vunpack.c.l.b16 %v950
    %v999 = vunpack.c.l.b16 %v951
    %v1000 = vunpack.c.l.b16 %v952
    %v1001 = vunpack.c.l.b16 %v953
    %v1002 = vunpack.c.l.b16 %v954
    %v1003 = vunpack.c.l.b16 %v955
    %v1004 = vunpack.c.l.b16 %v956
    %v1005 = vunpack.c.l.b16 %v957
    %v1006 = vunpack.c.l.b16 %v958
    %v1007 = vunpack.c.l.b16 %v959
    %v1008 = vunpack.c.l.b16 %v960
    %v1009 = vunpack.c.l.b16 %v961
    %v1010 = vunpack.c.l.b16 %v962
    %v1011 = vunpack.c.l.b16 %v963
    %v1012 = vunpack.c.l.b16 %v964
    %v1013 = vunpack.c.l.b16 %v965
    %v1014 = vunpack.c.l.b16 %v966
    %v1015 = vunpack.c.l.b16 %v967
    %v1016 = vunpack.c.l.b16 %v968
    %v1017 = vunpack.c.l.b16 %v969
    %v1018 = vunpack.c.l.b16 %v970
    %v1019 = vpack.c.b16 %v996, %v995
    %v1020 = vpack.c.b16 %v998, %v997
    %v1021 = vpack.c.b16 %v1000, %v999
    %v1022 = vpack.c.b16 %v1002, %v1001
    %v1023 = vpack.c.b16 %v1004, %v1003
    %v1024 = vpack.c.b16 %v1006, %v1005
    %v1025 = vpack.c.b16 %v1008, %v1007
    %v1026 = vpack.c.b16 %v1010, %v1009
    %v1027 = vpack.c.b16 %v1012, %v1011
    %v1028 = vpack.c.b16 %v1014, %v1013
    %v1029 = vpack.c.b16 %v1016, %v1015
    %v1030 = vpack.c.b16 %v1018, %v1017
    %v1044 = vsel %vm182, %v942, 0
    %v1047 = vsel %vm182, %v944, 0
    %v1050 = vsel %vm182, %v946, 0
    %1052 = vmatprep.subr.bf16.mxu0 0
    %1053 = vmatpush1.bf16.msra.mxu0 %v1026
    %1054 = vmatprep.subr.bf16.mxu0 0
    %1055 = vmatpush1.bf16.msra.mxu0 %v1025
    %1056 = vmatprep.subr.bf16.mxu0 0
    %1057 = vmatpush1.bf16.msra.mxu0 %v1024
    %1058 = vmatprep.subr.bf16.mxu0 0
    %1059 = vmatpush1.bf16.msra.mxu0 %v1023
    %1060 = vmatprep.subr.bf16.mxu0 0
    %1061 = vmatpush1.bf16.msra.mxu0 %v1022
    %1062 = vmatprep.subr.bf16.mxu0 0
    %1063 = vmatpush1.bf16.msra.mxu0 %v1021
    %1064 = vmatprep.subr.bf16.mxu0 0
    %1065 = vmatpush1.bf16.msra.mxu0 %v1020
    %1066 = vmatprep.subr.bf16.mxu0 0
    %1067 = vmatpush1.bf16.msra.mxu0 %v1019
    %1068 = vmatprep.subr.bf16.mxu0 0
    %1069 = vmatpush2.bf16.msra.mxu0 0
    %1070 = vmatprep.subr.bf16.mxu0 0
    %1071 = vmatpush2.bf16.msra.mxu0 0
    %1072 = vmatprep.subr.bf16.mxu0 0
    %1073 = vmatpush2.bf16.msra.mxu0 0
    %1074 = vmatprep.subr.bf16.mxu0 0
    %1075 = vmatpush2.bf16.msra.mxu0 0
    %1076 = vmatprep.subr.bf16.mxu0 0
    %1077 = vmatpush2.bf16.msra.mxu0 %v1030
    %1078 = vmatprep.subr.bf16.mxu0 0
    %1079 = vmatpush2.bf16.msra.mxu0 %v1029
    %1080 = vmatprep.subr.bf16.mxu0 0
    %1081 = vmatpush2.bf16.msra.mxu0 %v1028
    %1082 = vmatprep.subr.bf16.mxu0 0
    %1083 = vmatpush2.bf16.msra.mxu0 %v1027
    %1084 = vmatprep.mubr.bf16.mxu0 %v1044
    %1085 = vmatmul.mubr.bf16.gmra.mxu0 %v941
    %v1086 = vpop.f32.mrf.mxu0
    %v1087 = vadd.f32 0.0, %v1086
    %v1088 = vpop.f32.mrf.mxu0
    %v1089 = vpop.f32.mrf.mxu0
    %v1090 = vadd.f32 0.0, %v1089
    %v1091 = vpop.f32.mrf.mxu0
    %1092 = vmatprep.mubr.bf16.mxu0 %v1047
    %1093 = vmatmul.mubr.bf16.gmra.mxu0 %v943
    %v1094 = vpop.f32.mrf.mxu0
    %v1095 = vadd.f32 0.0, %v1094
    %v1096 = vpop.f32.mrf.mxu0
    %v1097 = vpop.f32.mrf.mxu0
    %v1098 = vadd.f32 0.0, %v1097
    %v1099 = vpop.f32.mrf.mxu0
    %1100 = vmatprep.mubr.bf16.mxu0 %v1050
    %1101 = vmatmul.mubr.bf16.gmra.mxu0 %v945
    %v1102 = vpop.f32.mrf.mxu0
    %v1103 = vadd.f32 0.0, %v1102
    %v1104 = vpop.f32.mrf.mxu0
    %v1105 = vpop.f32.mrf.mxu0
    %v1106 = vpop.f32.mrf.mxu0
    %1107 = vdwg.mxu0
    %v1132 = vunpack.c.l.b16 %v917
    %v1133 = vunpack.c.l.b16 %v918
    %v1134 = vunpack.c.l.b16 %v919
    %v1135 = vunpack.c.l.b16 %v920
    %v1136 = vunpack.c.l.b16 %v921
    %v1137 = vunpack.c.l.b16 %v922
    %v1138 = vunpack.c.l.b16 %v923
    %v1139 = vunpack.c.l.b16 %v924
    %v1140 = vunpack.c.l.b16 %v925
    %v1141 = vunpack.c.l.b16 %v926
    %v1142 = vunpack.c.l.b16 %v927
    %v1143 = vunpack.c.l.b16 %v928
    %v1144 = vunpack.c.l.b16 %v929
    %v1145 = vunpack.c.l.b16 %v930
    %v1146 = vunpack.c.l.b16 %v931
    %v1147 = vunpack.c.l.b16 %v932
    %v1148 = vunpack.c.l.b16 %v933
    %v1149 = vunpack.c.l.b16 %v934
    %v1150 = vunpack.c.l.b16 %v935
    %v1151 = vunpack.c.l.b16 %v936
    %v1152 = vunpack.c.l.b16 %v937
    %v1153 = vunpack.c.l.b16 %v938
    %v1154 = vunpack.c.l.b16 %v939
    %v1155 = vunpack.c.l.b16 %v940
    %v1156 = vpack.c.b16 %v1133, %v1132
    %v1157 = vpack.c.b16 %v1135, %v1134
    %v1158 = vpack.c.b16 %v1137, %v1136
    %v1159 = vpack.c.b16 %v1139, %v1138
    %v1160 = vpack.c.b16 %v1141, %v1140
    %v1161 = vpack.c.b16 %v1143, %v1142
    %v1162 = vpack.c.b16 %v1145, %v1144
    %v1163 = vpack.c.b16 %v1147, %v1146
    %v1164 = vpack.c.b16 %v1149, %v1148
    %v1165 = vpack.c.b16 %v1151, %v1150
    %v1166 = vpack.c.b16 %v1153, %v1152
    %v1167 = vpack.c.b16 %v1155, %v1154
    %v1181 = vsel %vm182, %v912, 0
    %v1184 = vsel %vm182, %v914, 0
    %v1187 = vsel %vm182, %v916, 0
    %1189 = vmatprep.subr.bf16.mxu0 0
    %1190 = vmatpush1.bf16.msra.mxu0 %v1163
    %1191 = vmatprep.subr.bf16.mxu0 0
    %1192 = vmatpush1.bf16.msra.mxu0 %v1162
    %1193 = vmatprep.subr.bf16.mxu0 0
    %1194 = vmatpush1.bf16.msra.mxu0 %v1161
    %1195 = vmatprep.subr.bf16.mxu0 0
    %1196 = vmatpush1.bf16.msra.mxu0 %v1160
    %1197 = vmatprep.subr.bf16.mxu0 0
    %1198 = vmatpush1.bf16.msra.mxu0 %v1159
    %1199 = vmatprep.subr.bf16.mxu0 0
    %1200 = vmatpush1.bf16.msra.mxu0 %v1158
    %1201 = vmatprep.subr.bf16.mxu0 0
    %1202 = vmatpush1.bf16.msra.mxu0 %v1157
    %1203 = vmatprep.subr.bf16.mxu0 0
    %1204 = vmatpush1.bf16.msra.mxu0 %v1156
    %1205 = vmatprep.subr.bf16.mxu0 0
    %1206 = vmatpush2.bf16.msra.mxu0 0
    %1207 = vmatprep.subr.bf16.mxu0 0
    %1208 = vmatpush2.bf16.msra.mxu0 0
    %1209 = vmatprep.subr.bf16.mxu0 0
    %1210 = vmatpush2.bf16.msra.mxu0 0
    %1211 = vmatprep.subr.bf16.mxu0 0
    %1212 = vmatpush2.bf16.msra.mxu0 0
    %1213 = vmatprep.subr.bf16.mxu0 0
    %1214 = vmatpush2.bf16.msra.mxu0 %v1167
    %1215 = vmatprep.subr.bf16.mxu0 0
    %1216 = vmatpush2.bf16.msra.mxu0 %v1166
    %1217 = vmatprep.subr.bf16.mxu0 0
    %1218 = vmatpush2.bf16.msra.mxu0 %v1165
    %1219 = vmatprep.subr.bf16.mxu0 0
    %1220 = vmatpush2.bf16.msra.mxu0 %v1164
    %1221 = vmatprep.mubr.bf16.mxu0 %v1181
    %1222 = vmatmul.mubr.bf16.gmra.mxu0 %v911
    %v1223 = vpop.f32.mrf.mxu0
    %v1224 = vadd.f32 %v1087, %v1223
    %v1225 = vpop.f32.mrf.mxu0
    %v1226 = vpop.f32.mrf.mxu0
    %v1227 = vadd.f32 %v1090, %v1226
    %v1228 = vpop.f32.mrf.mxu0
    %1229 = vmatprep.mubr.bf16.mxu0 %v1184
    %1230 = vmatmul.mubr.bf16.gmra.mxu0 %v913
    %v1231 = vpop.f32.mrf.mxu0
    %v1232 = vadd.f32 %v1095, %v1231
    %v1233 = vpop.f32.mrf.mxu0
    %v1234 = vpop.f32.mrf.mxu0
    %v1235 = vadd.f32 %v1098, %v1234
    %v1236 = vpop.f32.mrf.mxu0
    %1237 = vmatprep.mubr.bf16.mxu0 %v1187
    %1238 = vmatmul.mubr.bf16.gmra.mxu0 %v915
    %v1239 = vpop.f32.mrf.mxu0
    %v1240 = vadd.f32 %v1103, %v1239
    %v1241 = vpop.f32.mrf.mxu0
    %v1242 = vpop.f32.mrf.mxu0
    %v1243 = vpop.f32.mrf.mxu0
    %1244 = vdwg.mxu0
    %v1245 = vpack.c.bf16 %v861, %v847
    %v1246 = vpack.c.bf16 %v868, %v854
    %v1247 = vpack.c.bf16 %v889, %v875
    %v1248 = vpack.c.bf16 %v896, %v882
    %v1249 = vpack.c.bf16 %v903, %v903
    %v1250 = vpack.c.bf16 %v910, %v910
    %v1251 = vld [vmem:[%s8 + $0xc0] sm:$0xf]
    %v1252 = vld [vmem:[%s8 + $0xc4] sm:$0xf]
    %v1253 = vld [vmem:[%s8 + $0xc8] sm:$0xf]
    %v1254 = vld [vmem:[%s8 + $0xcc] sm:$0xf]
    %v1255 = vld [vmem:[%s8 + $0xd0] sm:$0xf]
    %v1256 = vld [vmem:[%s8 + $0xd4] sm:$0xf]
    %v1257 = vld [vmem:[%s8 + $0xd8] sm:$0xf]
    %v1258 = vld [vmem:[%s8 + $0xdc] sm:$0xf]
    %v1259 = vld [vmem:[%s8 + $0xe0] sm:$0xf]
    %v1260 = vld [vmem:[%s8 + $0xe4] sm:$0xf]
    %v1261 = vld [vmem:[%s8 + $0xe8] sm:$0xf]
    %v1262 = vld [vmem:[%s8 + $0xec] sm:$0xf]
    %v1263 = vld [vmem:[%s8 + $0xf0] sm:$0xf]
    %v1264 = vld [vmem:[%s8 + $0xf4] sm:$0xf]
    %v1265 = vld [vmem:[%s8 + $0xf8] sm:$0xf]
    %v1266 = vld [vmem:[%s8 + $0xfc] sm:$0xf]
    %v1267 = vld [vmem:[%s8 + $0x100] sm:$0xf]
    %v1268 = vld [vmem:[%s8 + $0x104] sm:$0xf]
    %v1269 = vld [vmem:[%s8 + $0x108] sm:$0xf]
    %v1270 = vld [vmem:[%s8 + $0x10c] sm:$0xf]
    %v1271 = vld [vmem:[%s8 + $0x110] sm:$0xf]
    %v1272 = vld [vmem:[%s8 + $0x114] sm:$0xf]
    %v1273 = vld [vmem:[%s8 + $0x118] sm:$0xf]
    %v1274 = vld [vmem:[%s8 + $0x11c] sm:$0xf]
    %v1299 = vunpack.c.l.b16 %v1251
    %v1300 = vunpack.c.l.b16 %v1252
    %v1301 = vunpack.c.l.b16 %v1253
    %v1302 = vunpack.c.l.b16 %v1254
    %v1303 = vunpack.c.l.b16 %v1255
    %v1304 = vunpack.c.l.b16 %v1256
    %v1305 = vunpack.c.l.b16 %v1257
    %v1306 = vunpack.c.l.b16 %v1258
    %v1307 = vunpack.c.l.b16 %v1259
    %v1308 = vunpack.c.l.b16 %v1260
    %v1309 = vunpack.c.l.b16 %v1261
    %v1310 = vunpack.c.l.b16 %v1262
    %v1311 = vunpack.c.l.b16 %v1263
    %v1312 = vunpack.c.l.b16 %v1264
    %v1313 = vunpack.c.l.b16 %v1265
    %v1314 = vunpack.c.l.b16 %v1266
    %v1315 = vunpack.c.l.b16 %v1267
    %v1316 = vunpack.c.l.b16 %v1268
    %v1317 = vunpack.c.l.b16 %v1269
    %v1318 = vunpack.c.l.b16 %v1270
    %v1319 = vunpack.c.l.b16 %v1271
    %v1320 = vunpack.c.l.b16 %v1272
    %v1321 = vunpack.c.l.b16 %v1273
    %v1322 = vunpack.c.l.b16 %v1274
    %v1323 = vpack.c.b16 %v1300, %v1299
    %v1324 = vpack.c.b16 %v1302, %v1301
    %v1325 = vpack.c.b16 %v1304, %v1303
    %v1326 = vpack.c.b16 %v1306, %v1305
    %v1327 = vpack.c.b16 %v1308, %v1307
    %v1328 = vpack.c.b16 %v1310, %v1309
    %v1329 = vpack.c.b16 %v1312, %v1311
    %v1330 = vpack.c.b16 %v1314, %v1313
    %v1331 = vpack.c.b16 %v1316, %v1315
    %v1332 = vpack.c.b16 %v1318, %v1317
    %v1333 = vpack.c.b16 %v1320, %v1319
    %v1334 = vpack.c.b16 %v1322, %v1321
    %v1348 = vsel %vm182, %v1246, 0
    %v1351 = vsel %vm182, %v1248, 0
    %v1354 = vsel %vm182, %v1250, 0
    %1356 = vmatprep.subr.bf16.mxu0 0
    %1357 = vmatpush1.bf16.msra.mxu0 %v1330
    %1358 = vmatprep.subr.bf16.mxu0 0
    %1359 = vmatpush1.bf16.msra.mxu0 %v1329
    %1360 = vmatprep.subr.bf16.mxu0 0
    %1361 = vmatpush1.bf16.msra.mxu0 %v1328
    %1362 = vmatprep.subr.bf16.mxu0 0
    %1363 = vmatpush1.bf16.msra.mxu0 %v1327
    %1364 = vmatprep.subr.bf16.mxu0 0
    %1365 = vmatpush1.bf16.msra.mxu0 %v1326
    %1366 = vmatprep.subr.bf16.mxu0 0
    %1367 = vmatpush1.bf16.msra.mxu0 %v1325
    %1368 = vmatprep.subr.bf16.mxu0 0
    %1369 = vmatpush1.bf16.msra.mxu0 %v1324
    %1370 = vmatprep.subr.bf16.mxu0 0
    %1371 = vmatpush1.bf16.msra.mxu0 %v1323
    %1372 = vmatprep.subr.bf16.mxu0 0
    %1373 = vmatpush2.bf16.msra.mxu0 0
    %1374 = vmatprep.subr.bf16.mxu0 0
    %1375 = vmatpush2.bf16.msra.mxu0 0
    %1376 = vmatprep.subr.bf16.mxu0 0
    %1377 = vmatpush2.bf16.msra.mxu0 0
    %1378 = vmatprep.subr.bf16.mxu0 0
    %1379 = vmatpush2.bf16.msra.mxu0 0
    %1380 = vmatprep.subr.bf16.mxu0 0
    %1381 = vmatpush2.bf16.msra.mxu0 %v1334
    %1382 = vmatprep.subr.bf16.mxu0 0
    %1383 = vmatpush2.bf16.msra.mxu0 %v1333
    %1384 = vmatprep.subr.bf16.mxu0 0
    %1385 = vmatpush2.bf16.msra.mxu0 %v1332
    %1386 = vmatprep.subr.bf16.mxu0 0
    %1387 = vmatpush2.bf16.msra.mxu0 %v1331
    %1388 = vmatprep.mubr.bf16.mxu0 %v1348
    %1389 = vmatmul.mubr.bf16.gmra.mxu0 %v1245
    %v1390 = vpop.f32.mrf.mxu0
    %v1391 = vadd.f32 0.0, %v1390
    %v1392 = vpop.f32.mrf.mxu0
    %v1393 = vpop.f32.mrf.mxu0
    %v1394 = vadd.f32 0.0, %v1393
    %v1395 = vpop.f32.mrf.mxu0
    %1396 = vmatprep.mubr.bf16.mxu0 %v1351
    %1397 = vmatmul.mubr.bf16.gmra.mxu0 %v1247
    %v1398 = vpop.f32.mrf.mxu0
    %v1399 = vadd.f32 0.0, %v1398
    %v1400 = vpop.f32.mrf.mxu0
    %v1401 = vpop.f32.mrf.mxu0
    %v1402 = vadd.f32 0.0, %v1401
    %v1403 = vpop.f32.mrf.mxu0
    %1404 = vmatprep.mubr.bf16.mxu0 %v1354
    %1405 = vmatmul.mubr.bf16.gmra.mxu0 %v1249
    %v1406 = vpop.f32.mrf.mxu0
    %v1407 = vadd.f32 0.0, %v1406
    %v1408 = vpop.f32.mrf.mxu0
    %v1409 = vpop.f32.mrf.mxu0
    %v1410 = vpop.f32.mrf.mxu0
    %1411 = vdwg.mxu0
    %v1412 = vadd.f32 %v1224, %v1391
    %v1413 = vadd.f32 %v1227, %v1394
    %v1414 = vadd.f32 %v1232, %v1399
    %v1415 = vadd.f32 %v1235, %v1402
    %v1416 = vadd.f32 %v1240, %v1407
    %v1417 = vld [vmem:[#allocation5] sm:$0x7]
    %v1418 = vlaneseq
    %v1419 = vshrl.u32 %v1418, 7
    %v1420 = vsub.s32 0, %v1419
    %v1421 = vrot.slane %v1417, %v1420
    %v1422 = vadd.f32 %v1412, %v1421
    %v1423 = vadd.f32 %v1413, %v1421
    %v1424 = vadd.f32 %v1414, %v1421
    %v1425 = vadd.f32 %v1415, %v1421
    %v1426 = vadd.f32 %v1416, %v1421
    %v1427 = vmax.f32 %v1422, 0.0
    %v1428 = vmax.f32 %v1423, 0.0
    %v1429 = vmax.f32 %v1424, 0.0
    %v1430 = vmax.f32 %v1425, 0.0
    %v1431 = vmax.f32 %v1426, 0.0
    %v1432 = vlaneseq
    %v1433 = vshrl.u32 %v1432, 7
    %v1434 = vsub.s32 1, %v1433
    %v1435 = vrot.slane %v1417, %v1434
    %v1436 = vmul.f32 %v1427, %v1435
    %v1437 = vmul.f32 %v1428, %v1435
    %v1438 = vmul.f32 %v1429, %v1435
    %v1439 = vmul.f32 %v1430, %v1435
    %v1440 = vmul.f32 %v1431, %v1435
    %v1441 = vlaneseq
    %v1442 = vshrl.u32 %v1441, 7
    %v1443 = vsub.s32 2, %v1442
    %v1444 = vrot.slane %v1417, %v1443
    %v1445 = vadd.f32 %v1436, %v1444
    %v1446 = vadd.f32 %v1437, %v1444
    %v1447 = vadd.f32 %v1438, %v1444
    %v1448 = vadd.f32 %v1439, %v1444
    %v1449 = vadd.f32 %v1440, %v1444
    %v1450 = vtanh.pop %v1445
    %v1451 = vtanh.pop %v1446
    %v1452 = vtanh.pop %v1447
    %v1453 = vtanh.pop %v1448
    %v1454 = vtanh.pop %v1449
    %v1455 = vpack.c.bf16 %v1451, %v1450
    %v1456 = vpack.c.bf16 %v1453, %v1452
    %v1457 = vpack.c.bf16 %v1454, %v1454
    %v1458 = vld [vmem:[%s10] sm:$0xff]
    %v1459 = vld [vmem:[%s10 + $0x8] sm:$0xff]
    %v1460 = vld [vmem:[%s10 + $0x10] sm:$0xff]
    %v1461 = vld [vmem:[%s10 + $0x18] sm:$0xff]
    %v1462 = vld [vmem:[#allocation7] sm:$0x3]
    %v1464 = vlaneseq
    %v1465 = vshrl.u32 %v1464, 7
    %v1466 = vsub.s32 0, %v1465
    %v1467 = vrot.slane %v1462, %v1466
    %v1468 = vlaneseq
    %v1469 = vshrl.u32 %v1468, 7
    %v1470 = vsub.s32 1, %v1469
    %v1471 = vrot.slane %v1462, %v1470
    %v1478 = vunpack.c.l.b16 %v1458
    %v1479 = vunpack.c.h.b16 %v1458
    %v1480 = vunpack.c.l.b16 %v1459
    %v1481 = vunpack.c.h.b16 %v1459
    %v1482 = vunpack.c.l.b16 %v1460
    %v1483 = vunpack.c.h.b16 %v1460
    %v1484 = vunpack.c.l.b16 %v1461
    %v1485 = vunpack.c.h.b16 %v1461
    %v1486 = vpack.c.b16 %v1480, %v1478
    %v1487 = vpack.c.b16 %v1481, %v1479
    %v1488 = vpack.c.b16 %v1484, %v1482
    %v1489 = vpack.c.b16 %v1485, %v1483
    %vm1494 = vcmask 261120
    %v1496 = vsel %vm1494, %v1455, 0
    %v1499 = vsel %vm1494, %v1456, 0
    %v1502 = vsel %vm1494, %v1457, 0
    %1504 = vmatprep.subr.bf16.mxu0 0
    %1505 = vmatpush1.bf16.msra.mxu0 0
    %1506 = vmatprep.subr.bf16.mxu0 0
    %1507 = vmatpush1.bf16.msra.mxu0 0
    %1508 = vmatprep.subr.bf16.mxu0 0
    %1509 = vmatpush1.bf16.msra.mxu0 0
    %1510 = vmatprep.subr.bf16.mxu0 0
    %1511 = vmatpush1.bf16.msra.mxu0 0
    %1512 = vmatprep.subr.bf16.mxu0 0
    %1513 = vmatpush1.bf16.msra.mxu0 0
    %1514 = vmatprep.subr.bf16.mxu0 0
    %1515 = vmatpush1.bf16.msra.mxu0 0
    %1516 = vmatprep.subr.bf16.mxu0 %v1489
    %1517 = vmatpush1.bf16.msra.mxu0 %v1488
    %1518 = vmatprep.subr.bf16.mxu0 %v1487
    %1519 = vmatpush1.bf16.msra.mxu0 %v1486
    %1520 = vmatprep.subr.bf16.mxu0 0
    %1521 = vmatpush2.bf16.msra.mxu0 0
    %1522 = vmatprep.subr.bf16.mxu0 0
    %1523 = vmatpush2.bf16.msra.mxu0 0
    %1524 = vmatprep.subr.bf16.mxu0 0
    %1525 = vmatpush2.bf16.msra.mxu0 0
    %1526 = vmatprep.subr.bf16.mxu0 0
    %1527 = vmatpush2.bf16.msra.mxu0 0
    %1528 = vmatprep.subr.bf16.mxu0 0
    %1529 = vmatpush2.bf16.msra.mxu0 0
    %1530 = vmatprep.subr.bf16.mxu0 0
    %1531 = vmatpush2.bf16.msra.mxu0 0
    %1532 = vmatprep.subr.bf16.mxu0 0
    %1533 = vmatpush2.bf16.msra.mxu0 0
    %1534 = vmatprep.subr.bf16.mxu0 0
    %1535 = vmatpush2.bf16.msra.mxu0 0
    %1536 = vmatprep.mubr.bf16.mxu0 0
    %1537 = vmatmul.mubr.bf16.gmra.mxu0 %v1496
    %v1538 = vpop.f32.mrf.mxu0
    %v1539 = vadd.f32 %v1467, %v1538
    %v1540 = vpop.f32.mrf.mxu0
    %v1541 = vadd.f32 %v1471, %v1540
    %v1542 = vpop.f32.mrf.mxu0
    %v1543 = vadd.f32 %v1467, %v1542
    %v1544 = vpop.f32.mrf.mxu0
    %v1545 = vadd.f32 %v1471, %v1544
    %1546 = vmatprep.mubr.bf16.mxu0 0
    %1547 = vmatmul.mubr.bf16.gmra.mxu0 %v1499
    %v1548 = vpop.f32.mrf.mxu0
    %v1549 = vadd.f32 %v1467, %v1548
    %v1550 = vpop.f32.mrf.mxu0
    %v1551 = vadd.f32 %v1471, %v1550
    %v1552 = vpop.f32.mrf.mxu0
    %v1553 = vadd.f32 %v1467, %v1552
    %v1554 = vpop.f32.mrf.mxu0
    %v1555 = vadd.f32 %v1471, %v1554
    %1556 = vmatprep.mubr.bf16.mxu0 0
    %1557 = vmatmul.mubr.bf16.gmra.mxu0 %v1502
    %v1558 = vpop.f32.mrf.mxu0
    %v1559 = vadd.f32 %v1467, %v1558
    %v1560 = vpop.f32.mrf.mxu0
    %v1561 = vadd.f32 %v1471, %v1560
    %v1562 = vpop.f32.mrf.mxu0
    %v1563 = vpop.f32.mrf.mxu0
    %1564 = vdwg.mxu0
    %v1565 = vsel %vm182, %v1541, -inf
    %v1566 = vsel %vm182, %v1545, -inf
    %v1567 = vmax.f32 %v1539, %v1549
    %v1568 = vsel %vm182, %v1551, -inf
    %v1569 = vmax.f32 %v1565, %v1568
    %v1570 = vmax.f32 %v1543, %v1553
    %v1571 = vsel %vm182, %v1555, -inf
    %v1572 = vmax.f32 %v1566, %v1571
    %v1573 = vsel %vm608, %v1559, -inf
    %v1574 = vmax.f32 %v1567, %v1573
    %vm1575 = vcmask 519168
    %v1576 = vsel %vm1575, %v1561, -inf
    %v1577 = vmax.f32 %v1569, %v1576
    %v1578 = vmax.f32 %v1574, %v1577
    %v1579 = vmax.f32 %v1570, %v1572
    %v1580 = vmax.f32 %v1578, %v1579
    %1581 = vmax.xlane.f32.xlu0 %v1580
    %v1582 = vpop.xlane.xlu0 %1581
    %v1583 = vrot.slane %v1582, 4
    %v1584 = vmax.f32 %v1582, %v1583
    %v1585 = vrot.slane %v1584, 2
    %v1586 = vmax.f32 %v1584, %v1585
    %v1587 = vrot.slane %v1586, 1
    %v1588 = vmax.f32 %v1586, %v1587
    %s1589 = vtos %v1588
    %v1590 = vstv %s1589
    %v1591 = vsub.f32 %v1539, %v1590
    %v1592 = vsub.f32 %v1541, %v1590
    %v1593 = vsub.f32 %v1543, %v1590
    %v1594 = vsub.f32 %v1545, %v1590
    %v1595 = vsub.f32 %v1549, %v1590
    %v1596 = vsub.f32 %v1551, %v1590
    %v1597 = vsub.f32 %v1553, %v1590
    %v1598 = vsub.f32 %v1555, %v1590
    %v1599 = vsub.f32 %v1559, %v1590
    %v1600 = vsub.f32 %v1561, %v1590
    %v1601 = vmul.f32 %v1591, 1.442695
    %v1602 = vpow.pop %v1601
    %v1603 = vmul.f32 %v1592, 1.442695
    %v1604 = vpow.pop %v1603
    %v1605 = vmul.f32 %v1593, 1.442695
    %v1606 = vpow.pop %v1605
    %v1607 = vmul.f32 %v1594, 1.442695
    %v1608 = vpow.pop %v1607
    %v1609 = vmul.f32 %v1595, 1.442695
    %v1610 = vpow.pop %v1609
    %v1611 = vmul.f32 %v1596, 1.442695
    %v1612 = vpow.pop %v1611
    %v1613 = vmul.f32 %v1597, 1.442695
    %v1614 = vpow.pop %v1613
    %v1615 = vmul.f32 %v1598, 1.442695
    %v1616 = vpow.pop %v1615
    %v1617 = vmul.f32 %v1599, 1.442695
    %v1618 = vpow.pop %v1617
    %v1619 = vmul.f32 %v1600, 1.442695
    %v1620 = vpow.pop %v1619
    %v1621 = vld [vmem:[%s4] sm:$0xff]
    %v1622 = vld [vmem:[%s4 + $0x8] sm:$0xff]
    %v1623 = vld [vmem:[%s4 + $0x10] sm:$0xff]
    %v1624 = vld [vmem:[%s4 + $0x18] sm:$0xff]
    %v1625 = vld [vmem:[%s4 + $0x20] sm:$0xf]
    %v1627 = vsel %vm592, %v1621, 0
    %v1630 = vsel %vm592, %v1622, 0
    %v1633 = vsel %vm592, %v1623, 0
    %v1636 = vsel %vm592, %v1624, 0
    %v1639 = vsel %vm592, %v1625, 0
    %v1642 = vsel %vm608, %v1618, 0
    %v1645 = vsel %vm608, %v1620, 0
    %1647 = vmatprep.subr.mxu0 0.0
    %1648 = vmatpush1.msra.mxu0 0.0
    %1649 = vmatprep.subr.mxu0 0.0
    %1650 = vmatpush1.msra.mxu0 0.0
    %1651 = vmatprep.subr.mxu0 0.0
    %1652 = vmatpush1.msra.mxu0 0.0
    %1653 = vmatprep.subr.mxu0 0.0
    %1654 = vmatpush1.msra.mxu0 0.0
    %1655 = vmatprep.subr.mxu0 0.0
    %1656 = vmatpush1.msra.mxu0 0.0
    %1657 = vmatprep.subr.mxu0 0.0
    %1658 = vmatpush1.msra.mxu0 0.0
    %1659 = vmatprep.subr.mxu0 0.0
    %1660 = vmatpush1.msra.mxu0 0.0
    %1661 = vmatprep.subr.mxu0 0.0
    %1662 = vmatpush1.msra.mxu0 0.0
    %1663 = vmatprep.subr.mxu0 0.0
    %1664 = vmatpush1.msra.mxu0 0.0
    %1665 = vmatprep.subr.mxu0 0.0
    %1666 = vmatpush1.msra.mxu0 0.0
    %1667 = vmatprep.subr.mxu0 0.0
    %1668 = vmatpush1.msra.mxu0 0.0
    %1669 = vmatprep.subr.mxu0 %v1645
    %1670 = vmatpush1.msra.mxu0 %v1642
    %1671 = vmatprep.subr.mxu0 %v1616
    %1672 = vmatpush1.msra.mxu0 %v1614
    %1673 = vmatprep.subr.mxu0 %v1612
    %1674 = vmatpush1.msra.mxu0 %v1610
    %1675 = vmatprep.subr.mxu0 %v1608
    %1676 = vmatpush1.msra.mxu0 %v1606
    %1677 = vmatprep.subr.mxu0 %v1604
    %1678 = vmatpush1.msra.mxu0 %v1602
    %1679 = vmatprep.subr.mxu0 0.0
    %1680 = vmatpush2.msra.mxu0 0.0
    %1681 = vmatprep.subr.mxu0 0.0
    %1682 = vmatpush2.msra.mxu0 0.0
    %1683 = vmatprep.subr.mxu0 0.0
    %1684 = vmatpush2.msra.mxu0 0.0
    %1685 = vmatprep.subr.mxu0 0.0
    %1686 = vmatpush2.msra.mxu0 0.0
    %1687 = vmatprep.subr.mxu0 0.0
    %1688 = vmatpush2.msra.mxu0 0.0
    %1689 = vmatprep.subr.mxu0 0.0
    %1690 = vmatpush2.msra.mxu0 0.0
    %1691 = vmatprep.subr.mxu0 0.0
    %1692 = vmatpush2.msra.mxu0 0.0
    %1693 = vmatprep.subr.mxu0 0.0
    %1694 = vmatpush2.msra.mxu0 0.0
    %1695 = vmatprep.subr.mxu0 0.0
    %1696 = vmatpush2.msra.mxu0 0.0
    %1697 = vmatprep.subr.mxu0 0.0
    %1698 = vmatpush2.msra.mxu0 0.0
    %1699 = vmatprep.subr.mxu0 0.0
    %1700 = vmatpush2.msra.mxu0 0.0
    %1701 = vmatprep.subr.mxu0 0.0
    %1702 = vmatpush2.msra.mxu0 0.0
    %1703 = vmatprep.subr.mxu0 0.0
    %1704 = vmatpush2.msra.mxu0 0.0
    %1705 = vmatprep.subr.mxu0 0.0
    %1706 = vmatpush2.msra.mxu0 0.0
    %1707 = vmatprep.subr.mxu0 0.0
    %1708 = vmatpush2.msra.mxu0 0.0
    %1709 = vmatprep.subr.mxu0 0.0
    %1710 = vmatpush2.msra.mxu0 0.0
    %1711 = vmatprep.mubr.f32.mxu0 0.0
    %1712 = vmatmul.mubr.f32.gmra.mxu0 %v1627
    %v1713 = vpop.f32.mrf.mxu0
    %v1714 = vadd.f32 0.0, %v1713
    %v1715 = vpop.f32.mrf.mxu0
    %v1716 = vadd.f32 0.0, %v1715
    %1717 = vmatprep.mubr.f32.mxu0 0.0
    %1718 = vmatmul.mubr.f32.gmra.mxu0 %v1630
    %v1719 = vpop.f32.mrf.mxu0
    %v1720 = vadd.f32 0.0, %v1719
    %v1721 = vpop.f32.mrf.mxu0
    %v1722 = vadd.f32 0.0, %v1721
    %1723 = vmatprep.mubr.f32.mxu0 0.0
    %1724 = vmatmul.mubr.f32.gmra.mxu0 %v1633
    %v1725 = vpop.f32.mrf.mxu0
    %v1726 = vadd.f32 0.0, %v1725
    %v1727 = vpop.f32.mrf.mxu0
    %v1728 = vadd.f32 0.0, %v1727
    %1729 = vmatprep.mubr.f32.mxu0 0.0
    %1730 = vmatmul.mubr.f32.gmra.mxu0 %v1636
    %v1731 = vpop.f32.mrf.mxu0
    %v1732 = vadd.f32 0.0, %v1731
    %v1733 = vpop.f32.mrf.mxu0
    %v1734 = vadd.f32 0.0, %v1733
    %1735 = vmatprep.mubr.f32.mxu0 0.0
    %1736 = vmatmul.mubr.f32.gmra.mxu0 %v1639
    %v1737 = vpop.f32.mrf.mxu0
    %v1738 = vadd.f32 0.0, %v1737
    %v1739 = vpop.f32.mrf.mxu0
    %v1740 = vadd.f32 0.0, %v1739
    %1741 = vdwg.mxu0
    %v1742 = vrcp.pop %v1714
    %v1743 = vmul.f32 %v1602, %v1742
    %v1744 = vrcp.pop %v1716
    %v1745 = vmul.f32 %v1604, %v1744
    %v1746 = vrcp.pop %v1720
    %v1747 = vmul.f32 %v1606, %v1746
    %v1748 = vrcp.pop %v1722
    %v1749 = vmul.f32 %v1608, %v1748
    %v1750 = vrcp.pop %v1726
    %v1751 = vmul.f32 %v1610, %v1750
    %v1752 = vrcp.pop %v1728
    %v1753 = vmul.f32 %v1612, %v1752
    %v1754 = vrcp.pop %v1732
    %v1755 = vmul.f32 %v1614, %v1754
    %v1756 = vrcp.pop %v1734
    %v1757 = vmul.f32 %v1616, %v1756
    %v1758 = vrcp.pop %v1738
    %v1759 = vmul.f32 %v1618, %v1758
    %v1760 = vrcp.pop %v1740
    %v1761 = vmul.f32 %v1620, %v1760
    %v1762 = vmul.f32 %v1743, %v577
    %v1763 = vmul.f32 %v1745, %v578
    %v1764 = vmul.f32 %v1747, %v579
    %v1765 = vmul.f32 %v1749, %v580
    %v1766 = vmul.f32 %v1751, %v581
    %v1767 = vmul.f32 %v1753, %v582
    %v1768 = vmul.f32 %v1755, %v583
    %v1769 = vmul.f32 %v1757, %v584
    %v1770 = vmul.f32 %v1759, %v585
    %v1771 = vmul.f32 %v1761, %v586
    %v1773 = vsel %vm608, %v1770, 0
    %v1776 = vsel %vm608, %v1771, 0
    %1778 = vmatprep.subr.mxu0 0.0
    %1779 = vmatpush1.msra.mxu0 0.0
    %1780 = vmatprep.subr.mxu0 0.0
    %1781 = vmatpush1.msra.mxu0 0.0
    %1782 = vmatprep.subr.mxu0 0.0
    %1783 = vmatpush1.msra.mxu0 0.0
    %1784 = vmatprep.subr.mxu0 0.0
    %1785 = vmatpush1.msra.mxu0 0.0
    %1786 = vmatprep.subr.mxu0 0.0
    %1787 = vmatpush1.msra.mxu0 0.0
    %1788 = vmatprep.subr.mxu0 0.0
    %1789 = vmatpush1.msra.mxu0 0.0
    %1790 = vmatprep.subr.mxu0 0.0
    %1791 = vmatpush1.msra.mxu0 0.0
    %1792 = vmatprep.subr.mxu0 0.0
    %1793 = vmatpush1.msra.mxu0 0.0
    %1794 = vmatprep.subr.mxu0 0.0
    %1795 = vmatpush1.msra.mxu0 0.0
    %1796 = vmatprep.subr.mxu0 0.0
    %1797 = vmatpush1.msra.mxu0 0.0
    %1798 = vmatprep.subr.mxu0 0.0
    %1799 = vmatpush1.msra.mxu0 0.0
    %1800 = vmatprep.subr.mxu0 %v1776
    %1801 = vmatpush1.msra.mxu0 %v1773
    %1802 = vmatprep.subr.mxu0 %v1769
    %1803 = vmatpush1.msra.mxu0 %v1768
    %1804 = vmatprep.subr.mxu0 %v1767
    %1805 = vmatpush1.msra.mxu0 %v1766
    %1806 = vmatprep.subr.mxu0 %v1765
    %1807 = vmatpush1.msra.mxu0 %v1764
    %1808 = vmatprep.subr.mxu0 %v1763
    %1809 = vmatpush1.msra.mxu0 %v1762
    %1810 = vmatprep.subr.mxu0 0.0
    %1811 = vmatpush2.msra.mxu0 0.0
    %1812 = vmatprep.subr.mxu0 0.0
    %1813 = vmatpush2.msra.mxu0 0.0
    %1814 = vmatprep.subr.mxu0 0.0
    %1815 = vmatpush2.msra.mxu0 0.0
    %1816 = vmatprep.subr.mxu0 0.0
    %1817 = vmatpush2.msra.mxu0 0.0
    %1818 = vmatprep.subr.mxu0 0.0
    %1819 = vmatpush2.msra.mxu0 0.0
    %1820 = vmatprep.subr.mxu0 0.0
    %1821 = vmatpush2.msra.mxu0 0.0
    %1822 = vmatprep.subr.mxu0 0.0
    %1823 = vmatpush2.msra.mxu0 0.0
    %1824 = vmatprep.subr.mxu0 0.0
    %1825 = vmatpush2.msra.mxu0 0.0
    %1826 = vmatprep.subr.mxu0 0.0
    %1827 = vmatpush2.msra.mxu0 0.0
    %1828 = vmatprep.subr.mxu0 0.0
    %1829 = vmatpush2.msra.mxu0 0.0
    %1830 = vmatprep.subr.mxu0 0.0
    %1831 = vmatpush2.msra.mxu0 0.0
    %1832 = vmatprep.subr.mxu0 0.0
    %1833 = vmatpush2.msra.mxu0 0.0
    %1834 = vmatprep.subr.mxu0 0.0
    %1835 = vmatpush2.msra.mxu0 0.0
    %1836 = vmatprep.subr.mxu0 0.0
    %1837 = vmatpush2.msra.mxu0 0.0
    %1838 = vmatprep.subr.mxu0 0.0
    %1839 = vmatpush2.msra.mxu0 0.0
    %1840 = vmatprep.subr.mxu0 0.0
    %1841 = vmatpush2.msra.mxu0 0.0
    %1842 = vmatprep.mubr.f32.mxu0 0.0
    %1843 = vmatmul.mubr.f32.gmra.mxu0 %v1627
    %v1844 = vpop.f32.mrf.mxu0
    %v1845 = vadd.f32 0.0, %v1844
    %v1846 = vpop.f32.mrf.mxu0
    %v1847 = vadd.f32 0.0, %v1846
    %1848 = vmatprep.mubr.f32.mxu0 0.0
    %1849 = vmatmul.mubr.f32.gmra.mxu0 %v1630
    %v1850 = vpop.f32.mrf.mxu0
    %v1851 = vadd.f32 0.0, %v1850
    %v1852 = vpop.f32.mrf.mxu0
    %v1853 = vadd.f32 0.0, %v1852
    %1854 = vmatprep.mubr.f32.mxu0 0.0
    %1855 = vmatmul.mubr.f32.gmra.mxu0 %v1633
    %v1856 = vpop.f32.mrf.mxu0
    %v1857 = vadd.f32 0.0, %v1856
    %v1858 = vpop.f32.mrf.mxu0
    %v1859 = vadd.f32 0.0, %v1858
    %1860 = vmatprep.mubr.f32.mxu0 0.0
    %1861 = vmatmul.mubr.f32.gmra.mxu0 %v1636
    %v1862 = vpop.f32.mrf.mxu0
    %v1863 = vadd.f32 0.0, %v1862
    %v1864 = vpop.f32.mrf.mxu0
    %v1865 = vadd.f32 0.0, %v1864
    %1866 = vmatprep.mubr.f32.mxu0 0.0
    %1867 = vmatmul.mubr.f32.gmra.mxu0 %v1639
    %v1868 = vpop.f32.mrf.mxu0
    %v1869 = vadd.f32 0.0, %v1868
    %v1870 = vpop.f32.mrf.mxu0
    %v1871 = vadd.f32 0.0, %v1870
    %1872 = vdwg.mxu0
    %v1873 = vld [vmem:[#allocation2] sm:$0x3]
    %v1875 = vsel %vm592, %v1873, 0
    %1877 = vmatprep.subr.mxu0 0.0
    %1878 = vmatpush1.msra.mxu0 0.0
    %1879 = vmatprep.subr.mxu0 0.0
    %1880 = vmatpush1.msra.mxu0 0.0
    %1881 = vmatprep.subr.mxu0 0.0
    %1882 = vmatpush1.msra.mxu0 0.0
    %1883 = vmatprep.subr.mxu0 0.0
    %1884 = vmatpush1.msra.mxu0 0.0
    %1885 = vmatprep.subr.mxu0 0.0
    %1886 = vmatpush1.msra.mxu0 0.0
    %1887 = vmatprep.subr.mxu0 0.0
    %1888 = vmatpush1.msra.mxu0 0.0
    %1889 = vmatprep.subr.mxu0 0.0
    %1890 = vmatpush1.msra.mxu0 0.0
    %1891 = vmatprep.subr.mxu0 0.0
    %1892 = vmatpush1.msra.mxu0 0.0
    %1893 = vmatprep.subr.mxu0 0.0
    %1894 = vmatpush1.msra.mxu0 0.0
    %1895 = vmatprep.subr.mxu0 0.0
    %1896 = vmatpush1.msra.mxu0 0.0
    %1897 = vmatprep.subr.mxu0 0.0
    %1898 = vmatpush1.msra.mxu0 0.0
    %1899 = vmatprep.subr.mxu0 %v1776
    %1900 = vmatpush1.msra.mxu0 %v1773
    %1901 = vmatprep.subr.mxu0 %v1769
    %1902 = vmatpush1.msra.mxu0 %v1768
    %1903 = vmatprep.subr.mxu0 %v1767
    %1904 = vmatpush1.msra.mxu0 %v1766
    %1905 = vmatprep.subr.mxu0 %v1765
    %1906 = vmatpush1.msra.mxu0 %v1764
    %1907 = vmatprep.subr.mxu0 %v1763
    %1908 = vmatpush1.msra.mxu0 %v1762
    %1909 = vmatprep.subr.mxu0 0.0
    %1910 = vmatpush2.msra.mxu0 0.0
    %1911 = vmatprep.subr.mxu0 0.0
    %1912 = vmatpush2.msra.mxu0 0.0
    %1913 = vmatprep.subr.mxu0 0.0
    %1914 = vmatpush2.msra.mxu0 0.0
    %1915 = vmatprep.subr.mxu0 0.0
    %1916 = vmatpush2.msra.mxu0 0.0
    %1917 = vmatprep.subr.mxu0 0.0
    %1918 = vmatpush2.msra.mxu0 0.0
    %1919 = vmatprep.subr.mxu0 0.0
    %1920 = vmatpush2.msra.mxu0 0.0
    %1921 = vmatprep.subr.mxu0 0.0
    %1922 = vmatpush2.msra.mxu0 0.0
    %1923 = vmatprep.subr.mxu0 0.0
    %1924 = vmatpush2.msra.mxu0 0.0
    %1925 = vmatprep.subr.mxu0 0.0
    %1926 = vmatpush2.msra.mxu0 0.0
    %1927 = vmatprep.subr.mxu0 0.0
    %1928 = vmatpush2.msra.mxu0 0.0
    %1929 = vmatprep.subr.mxu0 0.0
    %1930 = vmatpush2.msra.mxu0 0.0
    %1931 = vmatprep.subr.mxu0 0.0
    %1932 = vmatpush2.msra.mxu0 0.0
    %1933 = vmatprep.subr.mxu0 0.0
    %1934 = vmatpush2.msra.mxu0 0.0
    %1935 = vmatprep.subr.mxu0 0.0
    %1936 = vmatpush2.msra.mxu0 0.0
    %1937 = vmatprep.subr.mxu0 0.0
    %1938 = vmatpush2.msra.mxu0 0.0
    %1939 = vmatprep.subr.mxu0 0.0
    %1940 = vmatpush2.msra.mxu0 0.0
    %1941 = vmatprep.mubr.f32.mxu0 0.0
    %1942 = vmatmul.mubr.f32.gmra.mxu0 %v1875
    %v1943 = vpop.f32.mrf.mxu0
    %v1944 = vadd.f32 0.0, %v1943
    %v1945 = vpop.f32.mrf.mxu0
    %v1946 = vadd.f32 0.0, %v1945
    %1947 = vdwg.mxu0
    %v1948 = vsub.f32 %v577, %v1845
    %v1949 = vsub.f32 %v578, %v1847
    %v1950 = vsub.f32 %v579, %v1851
    %v1951 = vsub.f32 %v580, %v1853
    %v1952 = vsub.f32 %v581, %v1857
    %v1953 = vsub.f32 %v582, %v1859
    %v1954 = vsub.f32 %v583, %v1863
    %v1955 = vsub.f32 %v584, %v1865
    %v1956 = vsub.f32 %v585, %v1869
    %v1957 = vsub.f32 %v586, %v1871
    %v1958 = vmul.f32 %v1948, %v1948
    %v1959 = vmul.f32 %v1949, %v1949
    %v1960 = vmul.f32 %v1950, %v1950
    %v1961 = vmul.f32 %v1951, %v1951
    %v1962 = vmul.f32 %v1952, %v1952
    %v1963 = vmul.f32 %v1953, %v1953
    %v1964 = vmul.f32 %v1954, %v1954
    %v1965 = vmul.f32 %v1955, %v1955
    %v1966 = vmul.f32 %v1956, %v1956
    %v1967 = vmul.f32 %v1957, %v1957
    %v1968 = vmul.f32 %v1743, %v1958
    %v1969 = vmul.f32 %v1745, %v1959
    %v1970 = vmul.f32 %v1747, %v1960
    %v1971 = vmul.f32 %v1749, %v1961
    %v1972 = vmul.f32 %v1751, %v1962
    %v1973 = vmul.f32 %v1753, %v1963
    %v1974 = vmul.f32 %v1755, %v1964
    %v1975 = vmul.f32 %v1757, %v1965
    %v1976 = vmul.f32 %v1759, %v1966
    %v1977 = vmul.f32 %v1761, %v1967
    %v1979 = vsel %vm608, %v1976, 0
    %v1982 = vsel %vm608, %v1977, 0
    %1984 = vmatprep.subr.mxu0 0.0
    %1985 = vmatpush1.msra.mxu0 0.0
    %1986 = vmatprep.subr.mxu0 0.0
    %1987 = vmatpush1.msra.mxu0 0.0
    %1988 = vmatprep.subr.mxu0 0.0
    %1989 = vmatpush1.msra.mxu0 0.0
    %1990 = vmatprep.subr.mxu0 0.0
    %1991 = vmatpush1.msra.mxu0 0.0
    %1992 = vmatprep.subr.mxu0 0.0
    %1993 = vmatpush1.msra.mxu0 0.0
    %1994 = vmatprep.subr.mxu0 0.0
    %1995 = vmatpush1.msra.mxu0 0.0
    %1996 = vmatprep.subr.mxu0 0.0
    %1997 = vmatpush1.msra.mxu0 0.0
    %1998 = vmatprep.subr.mxu0 0.0
    %1999 = vmatpush1.msra.mxu0 0.0
    %2000 = vmatprep.subr.mxu0 0.0
    %2001 = vmatpush1.msra.mxu0 0.0
    %2002 = vmatprep.subr.mxu0 0.0
    %2003 = vmatpush1.msra.mxu0 0.0
    %2004 = vmatprep.subr.mxu0 0.0
    %2005 = vmatpush1.msra.mxu0 0.0
    %2006 = vmatprep.subr.mxu0 %v1982
    %2007 = vmatpush1.msra.mxu0 %v1979
    %2008 = vmatprep.subr.mxu0 %v1975
    %2009 = vmatpush1.msra.mxu0 %v1974
    %2010 = vmatprep.subr.mxu0 %v1973
    %2011 = vmatpush1.msra.mxu0 %v1972
    %2012 = vmatprep.subr.mxu0 %v1971
    %2013 = vmatpush1.msra.mxu0 %v1970
    %2014 = vmatprep.subr.mxu0 %v1969
    %2015 = vmatpush1.msra.mxu0 %v1968
    %2016 = vmatprep.subr.mxu0 0.0
    %2017 = vmatpush2.msra.mxu0 0.0
    %2018 = vmatprep.subr.mxu0 0.0
    %2019 = vmatpush2.msra.mxu0 0.0
    %2020 = vmatprep.subr.mxu0 0.0
    %2021 = vmatpush2.msra.mxu0 0.0
    %2022 = vmatprep.subr.mxu0 0.0
    %2023 = vmatpush2.msra.mxu0 0.0
    %2024 = vmatprep.subr.mxu0 0.0
    %2025 = vmatpush2.msra.mxu0 0.0
    %2026 = vmatprep.subr.mxu0 0.0
    %2027 = vmatpush2.msra.mxu0 0.0
    %2028 = vmatprep.subr.mxu0 0.0
    %2029 = vmatpush2.msra.mxu0 0.0
    %2030 = vmatprep.subr.mxu0 0.0
    %2031 = vmatpush2.msra.mxu0 0.0
    %2032 = vmatprep.subr.mxu0 0.0
    %2033 = vmatpush2.msra.mxu0 0.0
    %2034 = vmatprep.subr.mxu0 0.0
    %2035 = vmatpush2.msra.mxu0 0.0
    %2036 = vmatprep.subr.mxu0 0.0
    %2037 = vmatpush2.msra.mxu0 0.0
    %2038 = vmatprep.subr.mxu0 0.0
    %2039 = vmatpush2.msra.mxu0 0.0
    %2040 = vmatprep.subr.mxu0 0.0
    %2041 = vmatpush2.msra.mxu0 0.0
    %2042 = vmatprep.subr.mxu0 0.0
    %2043 = vmatpush2.msra.mxu0 0.0
    %2044 = vmatprep.subr.mxu0 0.0
    %2045 = vmatpush2.msra.mxu0 0.0
    %2046 = vmatprep.subr.mxu0 0.0
    %2047 = vmatpush2.msra.mxu0 0.0
    %2048 = vmatprep.mubr.f32.mxu0 0.0
    %2049 = vmatmul.mubr.f32.gmra.mxu0 %v1875
    %v2050 = vpop.f32.mrf.mxu0
    %v2051 = vadd.f32 0.0, %v2050
    %v2052 = vpop.f32.mrf.mxu0
    %v2053 = vadd.f32 0.0, %v2052
    %2054 = vdwg.mxu0
    %v2055 = vmax.f32 %v2051, 1e-12
    %v2056 = vmax.f32 %v2053, 1e-12
    %v2057 = vrsqrt.pop %v2055
    %v2058 = vmul.f32 %v2055, %v2057
    %vm2059 = vcmp.eq.f32.partialorder %v2055, inf
    %v2060 = vsel %vm2059, %v2055, %v2058
    %vm2061 = vcmp.eq.f32.partialorder %v2055, 0.0
    %v2062 = vand.u32 %v2055, 2147483648
    %v2063 = vsel %vm2061, %v2062, %v2060
    %v2064 = vrsqrt.pop %v2056
    %v2065 = vmul.f32 %v2056, %v2064
    %vm2066 = vcmp.eq.f32.partialorder %v2056, inf
    %v2067 = vsel %vm2066, %v2056, %v2065
    %vm2068 = vcmp.eq.f32.partialorder %v2056, 0.0
    %v2069 = vand.u32 %v2056, 2147483648
    %v2070 = vsel %vm2068, %v2069, %v2067
    %v2071 = vld [vmem:[%s12] sm:$0xff]
    %v2073 = vlaneseq
    %v2074 = vshrl.u32 %v2073, 7
    %v2075 = vsub.s32 0, %v2074
    %v2076 = vrot.slane %v2071, %v2075
    %v2077 = vlaneseq
    %v2078 = vshrl.u32 %v2077, 7
    %v2079 = vsub.s32 4, %v2078
    %v2080 = vrot.slane %v2071, %v2079
    %v2083 = vlaneseq
    %v2084 = vshrl.u32 %v2083, 7
    %v2085 = vsub.s32 0, %v2084
    %v2086 = vrot.slane %v2076, %v2085
    %v2087 = vlaneseq
    %v2088 = vshrl.u32 %v2087, 7
    %v2089 = vsub.s32 0, %v2088
    %v2090 = vrot.slane %v2080, %v2089
    %v2091 = vmul.f32 %v1944, %v2086
    %v2092 = vmul.f32 %v1946, %v2090
    %v2093 = vlaneseq
    %v2094 = vshrl.u32 %v2093, 7
    %v2095 = vsub.s32 1, %v2094
    %v2096 = vrot.slane %v2071, %v2095
    %v2097 = vlaneseq
    %v2098 = vshrl.u32 %v2097, 7
    %v2099 = vsub.s32 5, %v2098
    %v2100 = vrot.slane %v2071, %v2099
    %v2103 = vlaneseq
    %v2104 = vshrl.u32 %v2103, 7
    %v2105 = vsub.s32 1, %v2104
    %v2106 = vrot.slane %v2096, %v2105
    %v2107 = vlaneseq
    %v2108 = vshrl.u32 %v2107, 7
    %v2109 = vsub.s32 1, %v2108
    %v2110 = vrot.slane %v2100, %v2109
    %v2111 = vadd.f32 %v2091, %v2106
    %v2112 = vadd.f32 %v2092, %v2110
    %v2113 = vlaneseq
    %v2114 = vshrl.u32 %v2113, 7
    %v2115 = vsub.s32 2, %v2114
    %v2116 = vrot.slane %v2071, %v2115
    %v2117 = vlaneseq
    %v2118 = vshrl.u32 %v2117, 7
    %v2119 = vsub.s32 6, %v2118
    %v2120 = vrot.slane %v2071, %v2119
    %v2123 = vlaneseq
    %v2124 = vshrl.u32 %v2123, 7
    %v2125 = vsub.s32 2, %v2124
    %v2126 = vrot.slane %v2116, %v2125
    %v2127 = vlaneseq
    %v2128 = vshrl.u32 %v2127, 7
    %v2129 = vsub.s32 2, %v2128
    %v2130 = vrot.slane %v2120, %v2129
    %v2131 = vmul.f32 %v2063, %v2126
    %v2132 = vmul.f32 %v2070, %v2130
    %v2133 = vlaneseq
    %v2134 = vshrl.u32 %v2133, 7
    %v2135 = vsub.s32 3, %v2134
    %v2136 = vrot.slane %v2071, %v2135
    %v2137 = vlaneseq
    %v2138 = vshrl.u32 %v2137, 7
    %v2139 = vsub.s32 7, %v2138
    %v2140 = vrot.slane %v2071, %v2139
    %v2143 = vlaneseq
    %v2144 = vshrl.u32 %v2143, 7
    %v2145 = vsub.s32 3, %v2144
    %v2146 = vrot.slane %v2136, %v2145
    %v2147 = vlaneseq
    %v2148 = vshrl.u32 %v2147, 7
    %v2149 = vsub.s32 3, %v2148
    %v2150 = vrot.slane %v2140, %v2149
    %v2151 = vadd.f32 %v2131, %v2146
    %v2152 = vadd.f32 %v2132, %v2150
    %v2153 = vpack.c.bf16 %v2111, %v2111
    %v2154 = vpack.c.bf16 %v2112, %v2112
    %v2155 = vld [vmem:[%s13] sm:$0xff]
    %v2156 = vld [vmem:[%s13 + $0x8] sm:$0xff]
    %v2157 = vld [vmem:[%s13 + $0x10] sm:$0xff]
    %v2158 = vld [vmem:[%s13 + $0x18] sm:$0xff]
    %v2159 = vld [vmem:[%s13 + $0x20] sm:$0xff]
    %v2160 = vld [vmem:[%s13 + $0x28] sm:$0xff]
    %v2161 = vld [vmem:[%s13 + $0x30] sm:$0xff]
    %v2162 = vld [vmem:[%s13 + $0x38] sm:$0xff]
    %v2163 = vld [vmem:[%s13 + $0x40] sm:$0xff]
    %v2164 = vld [vmem:[%s13 + $0x48] sm:$0xff]
    %v2165 = vld [vmem:[%s13 + $0x50] sm:$0xff]
    %v2166 = vld [vmem:[%s13 + $0x58] sm:$0xff]
    %v2167 = vld [vmem:[%s13 + $0x60] sm:$0xff]
    %v2168 = vld [vmem:[%s13 + $0x68] sm:$0xff]
    %v2169 = vld [vmem:[%s13 + $0x70] sm:$0xff]
    %v2170 = vld [vmem:[%s13 + $0x78] sm:$0xff]
    %v2171 = vld [vmem:[%s13 + $0x80] sm:$0xff]
    %v2172 = vld [vmem:[%s13 + $0x88] sm:$0xff]
    %v2173 = vld [vmem:[%s13 + $0x90] sm:$0xff]
    %v2174 = vld [vmem:[%s13 + $0x98] sm:$0xff]
    %v2175 = vld [vmem:[%s13 + $0xa0] sm:$0xff]
    %v2176 = vld [vmem:[%s13 + $0xa8] sm:$0xff]
    %v2177 = vld [vmem:[%s13 + $0xb0] sm:$0xff]
    %v2178 = vld [vmem:[%s13 + $0xb8] sm:$0xff]
    %v2179 = vpack.c.bf16 %v2151, %v2151
    %v2180 = vpack.c.bf16 %v2152, %v2152
    %v2181 = vld [vmem:[%s14] sm:$0xff]
    %v2182 = vld [vmem:[%s14 + $0x8] sm:$0xff]
    %v2183 = vld [vmem:[%s14 + $0x10] sm:$0xff]
    %v2184 = vld [vmem:[%s14 + $0x18] sm:$0xff]
    %v2185 = vld [vmem:[%s14 + $0x20] sm:$0xff]
    %v2186 = vld [vmem:[%s14 + $0x28] sm:$0xff]
    %v2187 = vld [vmem:[%s14 + $0x30] sm:$0xff]
    %v2188 = vld [vmem:[%s14 + $0x38] sm:$0xff]
    %v2189 = vld [vmem:[%s14 + $0x40] sm:$0xff]
    %v2190 = vld [vmem:[%s14 + $0x48] sm:$0xff]
    %v2191 = vld [vmem:[%s14 + $0x50] sm:$0xff]
    %v2192 = vld [vmem:[%s14 + $0x58] sm:$0xff]
    %v2193 = vld [vmem:[%s14 + $0x60] sm:$0xff]
    %v2194 = vld [vmem:[%s14 + $0x68] sm:$0xff]
    %v2195 = vld [vmem:[%s14 + $0x70] sm:$0xff]
    %v2196 = vld [vmem:[%s14 + $0x78] sm:$0xff]
    %v2197 = vld [vmem:[%s14 + $0x80] sm:$0xff]
    %v2198 = vld [vmem:[%s14 + $0x88] sm:$0xff]
    %v2199 = vld [vmem:[%s14 + $0x90] sm:$0xff]
    %v2200 = vld [vmem:[%s14 + $0x98] sm:$0xff]
    %v2201 = vld [vmem:[%s14 + $0xa0] sm:$0xff]
    %v2202 = vld [vmem:[%s14 + $0xa8] sm:$0xff]
    %v2203 = vld [vmem:[%s14 + $0xb0] sm:$0xff]
    %v2204 = vld [vmem:[%s14 + $0xb8] sm:$0xff]
    %v2229 = vunpack.c.l.b16 %v2181
    %v2230 = vunpack.c.h.b16 %v2181
    %v2231 = vunpack.c.l.b16 %v2182
    %v2232 = vunpack.c.h.b16 %v2182
    %v2233 = vunpack.c.l.b16 %v2183
    %v2234 = vunpack.c.h.b16 %v2183
    %v2235 = vunpack.c.l.b16 %v2184
    %v2236 = vunpack.c.h.b16 %v2184
    %v2237 = vunpack.c.l.b16 %v2185
    %v2238 = vunpack.c.h.b16 %v2185
    %v2239 = vunpack.c.l.b16 %v2186
    %v2240 = vunpack.c.h.b16 %v2186
    %v2241 = vunpack.c.l.b16 %v2187
    %v2242 = vunpack.c.h.b16 %v2187
    %v2243 = vunpack.c.l.b16 %v2188
    %v2244 = vunpack.c.h.b16 %v2188
    %v2245 = vunpack.c.l.b16 %v2189
    %v2246 = vunpack.c.h.b16 %v2189
    %v2247 = vunpack.c.l.b16 %v2190
    %v2248 = vunpack.c.h.b16 %v2190
    %v2249 = vunpack.c.l.b16 %v2191
    %v2250 = vunpack.c.h.b16 %v2191
    %v2251 = vunpack.c.l.b16 %v2192
    %v2252 = vunpack.c.h.b16 %v2192
    %v2253 = vunpack.c.l.b16 %v2193
    %v2254 = vunpack.c.h.b16 %v2193
    %v2255 = vunpack.c.l.b16 %v2194
    %v2256 = vunpack.c.h.b16 %v2194
    %v2257 = vunpack.c.l.b16 %v2195
    %v2258 = vunpack.c.h.b16 %v2195
    %v2259 = vunpack.c.l.b16 %v2196
    %v2260 = vunpack.c.h.b16 %v2196
    %v2261 = vunpack.c.l.b16 %v2197
    %v2262 = vunpack.c.h.b16 %v2197
    %v2263 = vunpack.c.l.b16 %v2198
    %v2264 = vunpack.c.h.b16 %v2198
    %v2265 = vunpack.c.l.b16 %v2199
    %v2266 = vunpack.c.h.b16 %v2199
    %v2267 = vunpack.c.l.b16 %v2200
    %v2268 = vunpack.c.h.b16 %v2200
    %v2269 = vunpack.c.l.b16 %v2201
    %v2270 = vunpack.c.h.b16 %v2201
    %v2271 = vunpack.c.l.b16 %v2202
    %v2272 = vunpack.c.h.b16 %v2202
    %v2273 = vunpack.c.l.b16 %v2203
    %v2274 = vunpack.c.h.b16 %v2203
    %v2275 = vunpack.c.l.b16 %v2204
    %v2276 = vunpack.c.h.b16 %v2204
    %v2277 = vpack.c.b16 %v2231, %v2229
    %v2278 = vpack.c.b16 %v2232, %v2230
    %v2279 = vpack.c.b16 %v2235, %v2233
    %v2280 = vpack.c.b16 %v2236, %v2234
    %v2281 = vpack.c.b16 %v2239, %v2237
    %v2282 = vpack.c.b16 %v2240, %v2238
    %v2283 = vpack.c.b16 %v2243, %v2241
    %v2284 = vpack.c.b16 %v2244, %v2242
    %v2285 = vpack.c.b16 %v2247, %v2245
    %v2286 = vpack.c.b16 %v2248, %v2246
    %v2287 = vpack.c.b16 %v2251, %v2249
    %v2288 = vpack.c.b16 %v2252, %v2250
    %v2289 = vpack.c.b16 %v2255, %v2253
    %v2290 = vpack.c.b16 %v2256, %v2254
    %v2291 = vpack.c.b16 %v2259, %v2257
    %v2292 = vpack.c.b16 %v2260, %v2258
    %v2293 = vpack.c.b16 %v2263, %v2261
    %v2294 = vpack.c.b16 %v2264, %v2262
    %v2295 = vpack.c.b16 %v2267, %v2265
    %v2296 = vpack.c.b16 %v2268, %v2266
    %v2297 = vpack.c.b16 %v2271, %v2269
    %v2298 = vpack.c.b16 %v2272, %v2270
    %v2299 = vpack.c.b16 %v2275, %v2273
    %v2300 = vpack.c.b16 %v2276, %v2274
    %v2326 = vsel %vm182, %v2180, 0
    %2328 = vmatprep.subr.bf16.mxu0 %v2292
    %2329 = vmatpush1.bf16.msra.mxu0 %v2291
    %2330 = vmatprep.subr.bf16.mxu0 %v2290
    %2331 = vmatpush1.bf16.msra.mxu0 %v2289
    %2332 = vmatprep.subr.bf16.mxu0 %v2288
    %2333 = vmatpush1.bf16.msra.mxu0 %v2287
    %2334 = vmatprep.subr.bf16.mxu0 %v2286
    %2335 = vmatpush1.bf16.msra.mxu0 %v2285
    %2336 = vmatprep.subr.bf16.mxu0 %v2284
    %2337 = vmatpush1.bf16.msra.mxu0 %v2283
    %2338 = vmatprep.subr.bf16.mxu0 %v2282
    %2339 = vmatpush1.bf16.msra.mxu0 %v2281
    %2340 = vmatprep.subr.bf16.mxu0 %v2280
    %2341 = vmatpush1.bf16.msra.mxu0 %v2279
    %2342 = vmatprep.subr.bf16.mxu0 %v2278
    %2343 = vmatpush1.bf16.msra.mxu0 %v2277
    %2344 = vmatprep.subr.bf16.mxu0 0
    %2345 = vmatpush2.bf16.msra.mxu0 0
    %2346 = vmatprep.subr.bf16.mxu0 0
    %2347 = vmatpush2.bf16.msra.mxu0 0
    %2348 = vmatprep.subr.bf16.mxu0 0
    %2349 = vmatpush2.bf16.msra.mxu0 0
    %2350 = vmatprep.subr.bf16.mxu0 0
    %2351 = vmatpush2.bf16.msra.mxu0 0
    %2352 = vmatprep.subr.bf16.mxu0 %v2300
    %2353 = vmatpush2.bf16.msra.mxu0 %v2299
    %2354 = vmatprep.subr.bf16.mxu0 %v2298
    %2355 = vmatpush2.bf16.msra.mxu0 %v2297
    %2356 = vmatprep.subr.bf16.mxu0 %v2296
    %2357 = vmatpush2.bf16.msra.mxu0 %v2295
    %2358 = vmatprep.subr.bf16.mxu0 %v2294
    %2359 = vmatpush2.bf16.msra.mxu0 %v2293
    %2360 = vmatprep.mubr.bf16.mxu0 %v2326
    %2361 = vmatmul.mubr.bf16.gmra.mxu0 %v2179
    %v2362 = vpop.f32.mrf.mxu0
    %v2363 = vadd.f32 0.0, %v2362
    %v2364 = vpop.f32.mrf.mxu0
    %v2365 = vadd.f32 0.0, %v2364
    %v2366 = vpop.f32.mrf.mxu0
    %v2367 = vpop.f32.mrf.mxu0
    %2368 = vdwg.mxu0
    %v2393 = vunpack.c.l.b16 %v2155
    %v2394 = vunpack.c.h.b16 %v2155
    %v2395 = vunpack.c.l.b16 %v2156
    %v2396 = vunpack.c.h.b16 %v2156
    %v2397 = vunpack.c.l.b16 %v2157
    %v2398 = vunpack.c.h.b16 %v2157
    %v2399 = vunpack.c.l.b16 %v2158
    %v2400 = vunpack.c.h.b16 %v2158
    %v2401 = vunpack.c.l.b16 %v2159
    %v2402 = vunpack.c.h.b16 %v2159
    %v2403 = vunpack.c.l.b16 %v2160
    %v2404 = vunpack.c.h.b16 %v2160
    %v2405 = vunpack.c.l.b16 %v2161
    %v2406 = vunpack.c.h.b16 %v2161
    %v2407 = vunpack.c.l.b16 %v2162
    %v2408 = vunpack.c.h.b16 %v2162
    %v2409 = vunpack.c.l.b16 %v2163
    %v2410 = vunpack.c.h.b16 %v2163
    %v2411 = vunpack.c.l.b16 %v2164
    %v2412 = vunpack.c.h.b16 %v2164
    %v2413 = vunpack.c.l.b16 %v2165
    %v2414 = vunpack.c.h.b16 %v2165
    %v2415 = vunpack.c.l.b16 %v2166
    %v2416 = vunpack.c.h.b16 %v2166
    %v2417 = vunpack.c.l.b16 %v2167
    %v2418 = vunpack.c.h.b16 %v2167
    %v2419 = vunpack.c.l.b16 %v2168
    %v2420 = vunpack.c.h.b16 %v2168
    %v2421 = vunpack.c.l.b16 %v2169
    %v2422 = vunpack.c.h.b16 %v2169
    %v2423 = vunpack.c.l.b16 %v2170
    %v2424 = vunpack.c.h.b16 %v2170
    %v2425 = vunpack.c.l.b16 %v2171
    %v2426 = vunpack.c.h.b16 %v2171
    %v2427 = vunpack.c.l.b16 %v2172
    %v2428 = vunpack.c.h.b16 %v2172
    %v2429 = vunpack.c.l.b16 %v2173
    %v2430 = vunpack.c.h.b16 %v2173
    %v2431 = vunpack.c.l.b16 %v2174
    %v2432 = vunpack.c.h.b16 %v2174
    %v2433 = vunpack.c.l.b16 %v2175
    %v2434 = vunpack.c.h.b16 %v2175
    %v2435 = vunpack.c.l.b16 %v2176
    %v2436 = vunpack.c.h.b16 %v2176
    %v2437 = vunpack.c.l.b16 %v2177
    %v2438 = vunpack.c.h.b16 %v2177
    %v2439 = vunpack.c.l.b16 %v2178
    %v2440 = vunpack.c.h.b16 %v2178
    %v2441 = vpack.c.b16 %v2395, %v2393
    %v2442 = vpack.c.b16 %v2396, %v2394
    %v2443 = vpack.c.b16 %v2399, %v2397
    %v2444 = vpack.c.b16 %v2400, %v2398
    %v2445 = vpack.c.b16 %v2403, %v2401
    %v2446 = vpack.c.b16 %v2404, %v2402
    %v2447 = vpack.c.b16 %v2407, %v2405
    %v2448 = vpack.c.b16 %v2408, %v2406
    %v2449 = vpack.c.b16 %v2411, %v2409
    %v2450 = vpack.c.b16 %v2412, %v2410
    %v2451 = vpack.c.b16 %v2415, %v2413
    %v2452 = vpack.c.b16 %v2416, %v2414
    %v2453 = vpack.c.b16 %v2419, %v2417
    %v2454 = vpack.c.b16 %v2420, %v2418
    %v2455 = vpack.c.b16 %v2423, %v2421
    %v2456 = vpack.c.b16 %v2424, %v2422
    %v2457 = vpack.c.b16 %v2427, %v2425
    %v2458 = vpack.c.b16 %v2428, %v2426
    %v2459 = vpack.c.b16 %v2431, %v2429
    %v2460 = vpack.c.b16 %v2432, %v2430
    %v2461 = vpack.c.b16 %v2435, %v2433
    %v2462 = vpack.c.b16 %v2436, %v2434
    %v2463 = vpack.c.b16 %v2439, %v2437
    %v2464 = vpack.c.b16 %v2440, %v2438
    %v2490 = vsel %vm182, %v2154, 0
    %2492 = vmatprep.subr.bf16.mxu0 %v2456
    %2493 = vmatpush1.bf16.msra.mxu0 %v2455
    %2494 = vmatprep.subr.bf16.mxu0 %v2454
    %2495 = vmatpush1.bf16.msra.mxu0 %v2453
    %2496 = vmatprep.subr.bf16.mxu0 %v2452
    %2497 = vmatpush1.bf16.msra.mxu0 %v2451
    %2498 = vmatprep.subr.bf16.mxu0 %v2450
    %2499 = vmatpush1.bf16.msra.mxu0 %v2449
    %2500 = vmatprep.subr.bf16.mxu0 %v2448
    %2501 = vmatpush1.bf16.msra.mxu0 %v2447
    %2502 = vmatprep.subr.bf16.mxu0 %v2446
    %2503 = vmatpush1.bf16.msra.mxu0 %v2445
    %2504 = vmatprep.subr.bf16.mxu0 %v2444
    %2505 = vmatpush1.bf16.msra.mxu0 %v2443
    %2506 = vmatprep.subr.bf16.mxu0 %v2442
    %2507 = vmatpush1.bf16.msra.mxu0 %v2441
    %2508 = vmatprep.subr.bf16.mxu0 0
    %2509 = vmatpush2.bf16.msra.mxu0 0
    %2510 = vmatprep.subr.bf16.mxu0 0
    %2511 = vmatpush2.bf16.msra.mxu0 0
    %2512 = vmatprep.subr.bf16.mxu0 0
    %2513 = vmatpush2.bf16.msra.mxu0 0
    %2514 = vmatprep.subr.bf16.mxu0 0
    %2515 = vmatpush2.bf16.msra.mxu0 0
    %2516 = vmatprep.subr.bf16.mxu0 %v2464
    %2517 = vmatpush2.bf16.msra.mxu0 %v2463
    %2518 = vmatprep.subr.bf16.mxu0 %v2462
    %2519 = vmatpush2.bf16.msra.mxu0 %v2461
    %2520 = vmatprep.subr.bf16.mxu0 %v2460
    %2521 = vmatpush2.bf16.msra.mxu0 %v2459
    %2522 = vmatprep.subr.bf16.mxu0 %v2458
    %2523 = vmatpush2.bf16.msra.mxu0 %v2457
    %2524 = vmatprep.mubr.bf16.mxu0 %v2490
    %2525 = vmatmul.mubr.bf16.gmra.mxu0 %v2153
    %v2526 = vpop.f32.mrf.mxu0
    %v2527 = vadd.f32 %v2363, %v2526
    %v2528 = vpop.f32.mrf.mxu0
    %v2529 = vadd.f32 %v2365, %v2528
    %v2530 = vpop.f32.mrf.mxu0
    %v2531 = vpop.f32.mrf.mxu0
    %2532 = vdwg.mxu0
    %v2533 = vld [vmem:[#allocation8] sm:$0x3]
    %v2535 = vlaneseq
    %v2536 = vshrl.u32 %v2535, 7
    %v2537 = vsub.s32 0, %v2536
    %v2538 = vrot.slane %v2533, %v2537
    %v2539 = vlaneseq
    %v2540 = vshrl.u32 %v2539, 7
    %v2541 = vsub.s32 1, %v2540
    %v2542 = vrot.slane %v2533, %v2541
    %v2545 = vadd.f32 %v2527, %v2538
    %v2546 = vadd.f32 %v2529, %v2542
    %v2549 = vcombine.low %v2545, %v2546
    %v2551 = vunpack.c.l.s4 1983009808
    %v2552 = vunpack.c.0.s8 %v2551
    %v2553 = vlaneseq
    %v2554 = vshrl.u32 %v2553, 7
    %v2555 = vsub.s32 %v2552, %v2554
    %v2556 = vrot.slane %v2549, %v2555
    %vm2558 = vcmask 1041408
    %vm2559 = vcmask 519170
    %vm2560 = vmor %vm2559, %vm2558
    %2561 = vst.msk [vmem:[#allocation10] sm:$0xf] %vm2560, %v2556
    // Predicated region
    $region82: #{reverser_forward.9} parent=1 // pred_check
      _
    $region83: #{reverser_forward.9} parent=1 // pred_check_branch
      %2563 = sbr.rel (0) target = $region85
    $region84: #{reverser_forward.9} parent=1 // pred_region
      %s2565 = ssub.s32 64, 64
      %2566 = vsyncadd [#allocation4], %s2565
      %s2568 = sshll.u32 [#allocation10], 4
      %s2569 = int_to_ptr.vmem [resolvable:$true] %s2568
      %2571 = dma.vmem_to_hbm [thread:$0]  %s2569, 64, %s16, [#allocation4]
    $region85: #{reverser_forward.9} parent=1 // pred_fallthru
      _
    // Predicated region
    $region86: #{reverser_forward.9} parent=1 // pred_check
      _
    $region87: #{reverser_forward.9} parent=1 // pred_check_branch
      %2573 = sbr.rel (0) target = $region89
    $region88: #{reverser_forward.9} parent=1 // pred_region
      %2574 = dma.done [#allocation4], 64
    $region89: #{reverser_forward.9} parent=1 // pred_fallthru
      _
    %2575 = vsyncpa [#allocation3], 1
    %2576 = vsyncpa [#allocation6], 1
    %2577 = vsyncpa [#allocation9], 1
    %2578 = vsyncpa [#allocation4], 1

</llo_original>
